<compile_context>
chip_gen: v5e
topology: v5e:2x2
jax: 0.10.0
libtpu: 0.0.40
codegen_flags: <defaults>
</compile_context>

<pallas_src>
import jax
import jax.numpy as jnp
from jax import lax
from jax.experimental import pallas as pl
from jax.experimental.pallas import tpu as pltpu


def _vmem_need_bytes(TH, W, C_in, C_mid):
    """Rough per-grid-step VMEM footprint (double-buffered blocks + live temps)."""
    center = 2 * C_in * TH * W                     # input row tile, x2 buffers
    halos = 2 * 2 * C_in * 8 * W                   # two 8-row halo blocks, x2
    out = 2 * 4 * C_mid * (TH // 2) * (W // 2)     # fused-unshuffle output, x2
    temps = (C_mid + 8) * TH * W                   # live f32 temporaries
    return 4 * (center + halos + out + temps)


def _vmem_capacity_bytes():
    try:
        return int(pltpu.get_tpu_info().vmem_capacity_bytes)
    except Exception:                              # no TPU visible / older jax
        return 64 << 20                            # v7x per-TensorCore VMEM


def _pick_row_tile(H, W, C_in, C_mid, target_bytes=24 << 20):
    """Largest row tile TH (multiple of 16, dividing H) fitting the VMEM target.

    TH % 16 == 0 keeps the input tile (TH rows) and the output tile (TH/2 rows)
    8-sublane aligned and the 8-row halo blocks aligned.  Falls back to one
    full-height tile (no halo path) when H has no such divisor.
    """
    best = None
    th = 16
    while th <= H:
        if H % th == 0 and _vmem_need_bytes(th, W, C_in, C_mid) <= target_bytes:
            best = th
        th += 16
    if best is None:
        return 16 if H % 16 == 0 else H
    return best


def _make_kernel(C_in, C_mid, TH, W, has_halo):
    """Depthwise 3x3 + pointwise 1x1 + PixelUnshuffle(2) on one (TH, W) row tile."""

    def body(dw_ref, pw_ref, xc_ref, xup_ref, xdn_ref, o_ref):
        # dw_ref : SMEM (C_in*9,)      depthwise taps, index c*9 + i*3 + j
        # pw_ref : SMEM (C_mid*C_in,)  pointwise weights, index m*C_in + c
        # xc_ref : VMEM (1, C_in, TH, W)   center row tile
        # xup/xdn: VMEM (1, C_in, 8, W)    halo blocks (only when has_halo)
        # o_ref  : VMEM (1, 4*C_mid, TH/2, W/2) fused-unshuffle output tile
        f32 = jnp.float32
        zrow = jnp.zeros((1, W), f32)     # hoisted: jnp does not CSE broadcasts
        zcol = jnp.zeros((TH, 1), f32)

        if has_halo:
            t = pl.program_id(1)
            not_top = t > 0
            not_bot = t < pl.num_programs(1) - 1

        out_acc = [None] * C_mid
        for c in range(C_in):
            xc = xc_ref[0, c, :, :]                                   # (TH, W)

            # Neighbour rows from the halo blocks; zeroed at the image border.
            # Only a single (1, W) row is touched (no full-tile select).
            if has_halo:
                row_up = jnp.where(not_top, xup_ref[0, c, 7:8, :], 0.0)
                row_dn = jnp.where(not_bot, xdn_ref[0, c, 0:1, :], 0.0)
            else:
                row_up = zrow
                row_dn = zrow

            # Row-shifted windows via concatenate-of-slices (sublane shift).
            x_up = jnp.concatenate([row_up, xc[: TH - 1, :]], axis=0)  # x[r-1]
            x_dn = jnp.concatenate([xc[1:, :], row_dn], axis=0)        # x[r+1]

            # Column-factored depthwise 3x3: fold the three row taps per column
            # offset first, then one zero-padded lane shift per side.
            g = []
            for j in range(3):                                         # dj = j-1
                g.append(x_up * dw_ref[c * 9 + j]
                         + xc * dw_ref[c * 9 + 3 + j]
                         + x_dn * dw_ref[c * 9 + 6 + j])
            g_m1 = jnp.concatenate([zcol, g[0][:, : W - 1]], axis=1)   # x[., w-1]
            g_p1 = jnp.concatenate([g[2][:, 1:], zcol], axis=1)        # x[., w+1]
            conv_c = g_m1 + g[1] + g_p1

            # Pointwise 1x1 (tiny channel count -> plain VPU scalar FMAs).
            for m in range(C_mid):
                contrib = conv_c * pw_ref[m * C_in + c]
                out_acc[m] = contrib if out_acc[m] is None else out_acc[m] + contrib

        # Fused PixelUnshuffle(2): out[m*4 + dh*2 + dv, i, j] = y[m, 2i+dh, 2j+dv]
        # TODO(synk): if Mosaic rejects the 4-D value reshape on some versions,
        # swap for sublane/lane strided reads from a VMEM scratch of conv_c.
        for m in range(C_mid):
            a4 = out_acc[m].reshape(TH // 2, 2, W // 2, 2)
            for dh in range(2):
                for dv in range(2):
                    o_ref[0, m * 4 + dh * 2 + dv, :, :] = (
                        a4[:, dh, :, dv].astype(o_ref.dtype))

    if has_halo:
        def kernel(dw_ref, pw_ref, xc_ref, xup_ref, xdn_ref, o_ref):
            body(dw_ref, pw_ref, xc_ref, xup_ref, xdn_ref, o_ref)
    else:
        def kernel(dw_ref, pw_ref, xc_ref, o_ref):
            body(dw_ref, pw_ref, xc_ref, None, None, o_ref)
    return kernel


def downsample_pallas(x_nchw, dw_weight, pw_weight, *, row_tile=None):
    """Forward pass of the PyTorch `Downsample` module.

    x_nchw   : (N, C_in, H, W) float
    dw_weight: (C_in, 1, 3, 3)      depthwise conv weight (PyTorch layout)
    pw_weight: (C_mid, C_in, 1, 1)  pointwise conv weight, C_mid = out_feat//4
    returns  : (N, 4*C_mid, H//2, W//2)
    """
    N, C_in, H, W = x_nchw.shape
    C_mid = pw_weight.shape[0]
    C_out = 4 * C_mid
    assert H % 2 == 0 and W % 2 == 0, "PixelUnshuffle(2) requires even H and W"

    if row_tile is None:
        TH = _pick_row_tile(H, W, C_in, C_mid)
    else:
        assert row_tile == H or (H % row_tile == 0 and row_tile % 16 == 0)
        TH = row_tile
    T = H // TH
    has_halo = T > 1

    x_nchw = x_nchw.astype(jnp.float32)
    dw_flat = dw_weight[:, 0, :, :].reshape(C_in * 9).astype(jnp.float32)
    pw_flat = pw_weight[:, :, 0, 0].reshape(C_mid * C_in).astype(jnp.float32)

    # NCHW end-to-end: W sits on the 128-lane axis, the tiny channel dims never
    # touch lanes.  NOTE: if the real model's W is small / not lane-dense, swap
    # the roles of H and W before calling for lane-dense stores.
    in_specs = [pl.BlockSpec((1, C_in, TH, W),
                             lambda n, t, dw, pw: (n, 0, t, 0))]
    operands = [x_nchw]
    if has_halo:
        nhb = TH // 8                       # row-tile size in 8-row blocks
        hb_last = H // 8 - 1
        in_specs.append(pl.BlockSpec(       # 8 rows just above the tile
            (1, C_in, 8, W),
            lambda n, t, dw, pw: (n, 0, jnp.maximum(t * nhb - 1, 0), 0)))
        in_specs.append(pl.BlockSpec(       # 8 rows just below the tile
            (1, C_in, 8, W),
            lambda n, t, dw, pw: (n, 0, jnp.minimum((t + 1) * nhb, hb_last), 0)))
        operands += [x_nchw, x_nchw]

    out_spec = pl.BlockSpec((1, C_out, TH // 2, W // 2),
                            lambda n, t, dw, pw: (n, 0, t, 0))

    vmem_need = _vmem_need_bytes(TH, W, C_in, C_mid)
    vmem_limit = int(min(max(vmem_need + (8 << 20), 32 << 20),
                         (_vmem_capacity_bytes() * 3) // 4))

    macs = (9 + C_mid) * C_in * N * H * W
    cost = pl.CostEstimate(flops=2 * macs, transcendentals=0,
                           bytes_accessed=4 * N * H * W * (C_in + C_mid))

    return pl.pallas_call(
        _make_kernel(C_in, C_mid, TH, W, has_halo),
        out_shape=jax.ShapeDtypeStruct((N, C_out, H // 2, W // 2), jnp.float32),
        grid_spec=pltpu.PrefetchScalarGridSpec(
            num_scalar_prefetch=2,
            grid=(N, T),
            in_specs=in_specs,
            out_specs=out_spec),
        compiler_params=pltpu.CompilerParams(
            dimension_semantics=("parallel", "parallel"),
            vmem_limit_bytes=vmem_limit),
        cost_estimate=cost,
    )(dw_flat, pw_flat, *operands)


def _reference(x_nchw, dw_weight, pw_weight):
    """Pure-JAX reference mirroring the PyTorch module (lax convs + explicit
    strided-gather PixelUnshuffle), written independently of the kernel glue."""
    C_in = x_nchw.shape[1]
    y = lax.conv_general_dilated(
        x_nchw, dw_weight, window_strides=(1, 1), padding=((1, 1), (1, 1)),
        dimension_numbers=("NCHW", "OIHW", "NCHW"), feature_group_count=C_in)
    y = lax.conv_general_dilated(
        y, pw_weight, window_strides=(1, 1), padding=((0, 0), (0, 0)),
        dimension_numbers=("NCHW", "OIHW", "NCHW"))
    C_mid = y.shape[1]
    chans = []
    for c in range(C_mid):            # torch.nn.PixelUnshuffle(2) ordering
        for dh in range(2):
            for dv in range(2):
                chans.append(y[:, c, dh::2, dv::2])
    return jnp.stack(chans, axis=1)


if __name__ == "__main__":
    key = jax.random.PRNGKey(0)
    k1, k2, k3, k4, k5, k6 = jax.random.split(key, 6)

    # Config A: input_feat=4, out_feat=8, 16x128 spatial -> single row tile
    # (T=1 path, no halo blocks).
    N, C_in, H, W = 2, 4, 16, 128
    out_feat = 8
    C_mid = out_feat // 4
    x = jax.random.normal(k1, (N, C_in, H, W), jnp.float32)
    dw_w = jax.random.normal(k2, (C_in, 1, 3, 3), jnp.float32) * 0.1
    pw_w = jax.random.normal(k3, (C_mid, C_in, 1, 1), jnp.float32) * 0.1

    out = jax.block_until_ready(downsample_pallas(x, dw_w, pw_w))
    ref = _reference(x, dw_w, pw_w)
    assert out.shape == (N, out_feat, H // 2, W // 2), out.shape
    err = float(jnp.max(jnp.abs(out - ref)))
    assert jnp.allclose(out, ref, atol=1e-4, rtol=1e-4), err

    # Config B: force 16-row tiles over a 64-row image (T=4) to exercise the
    # halo-tiled path and a larger out_feat.
    N2, C_in2, H2, W2 = 1, 4, 64, 128
    out_feat2 = 16
    C_mid2 = out_feat2 // 4
    x2 = jax.random.normal(k4, (N2, C_in2, H2, W2), jnp.float32)
    dw_w2 = jax.random.normal(k5, (C_in2, 1, 3, 3), jnp.float32) * 0.1
    pw_w2 = jax.random.normal(k6, (C_mid2, C_in2, 1, 1), jnp.float32) * 0.1

    out2 = jax.block_until_ready(downsample_pallas(x2, dw_w2, pw_w2, row_tile=16))
    ref2 = _reference(x2, dw_w2, pw_w2)
    assert out2.shape == (N2, out_feat2, H2 // 2, W2 // 2), out2.shape
    err2 = float(jnp.max(jnp.abs(out2 - ref2)))
    assert jnp.allclose(out2, ref2, atol=1e-4, rtol=1e-4), err2

    print("KERNEL_OK")
</pallas_src>

<mosaic_0001>
module attributes {stable_mosaic.version = 11 : i64} {
  func.func @kernel(%arg0: i32, %arg1: i32, %arg2: memref<36xf32, #tpu.memory_space<smem>>, %arg3: memref<8xf32, #tpu.memory_space<smem>>, %arg4: memref<1x4x16x128xf32, #tpu.memory_space<vmem>>, %arg5: memref<1x8x8x64xf32, #tpu.memory_space<vmem>>) attributes {dimension_semantics = [#tpu.dimension_semantics<parallel>, #tpu.dimension_semantics<parallel>], iteration_bounds = array<i64: 2, 1>, scalar_prefetch = 2 : i64, scratch_operands = 0 : i64, tpu.core_type = #tpu.core_type<tc>, window_params = [{transform_indices = @transform_0, window_bounds = array<i64: 1, 4, 16, 128>}, {transform_indices = @transform_1, window_bounds = array<i64: 1, 8, 8, 64>}]} {
    %cst = arith.constant 0.000000e+00 : f32
    %0 = vector.broadcast %cst : f32 to vector<1x128xf32>
    %cst_0 = arith.constant 0.000000e+00 : f32
    %1 = vector.broadcast %cst_0 : f32 to vector<16x1xf32>
    %c0 = arith.constant 0 : index
    %c0_1 = arith.constant 0 : index
    %c0_2 = arith.constant 0 : index
    %c0_3 = arith.constant 0 : index
    %2 = vector.load %arg4[%c0, %c0_1, %c0_2, %c0_3] : memref<1x4x16x128xf32, #tpu.memory_space<vmem>>, vector<1x1x16x128xf32>
    %3 = vector.shape_cast %2 : vector<1x1x16x128xf32> to vector<16x128xf32>
    %4 = vector.extract_strided_slice %3 {offsets = [0, 0], sizes = [15, 128], strides = [1, 1]} : vector<16x128xf32> to vector<15x128xf32>
    %5 = tpu.concatenate %0, %4 in 0 : vector<1x128xf32>, vector<15x128xf32> -> vector<16x128xf32>
    %6 = vector.extract_strided_slice %3 {offsets = [1, 0], sizes = [15, 128], strides = [1, 1]} : vector<16x128xf32> to vector<15x128xf32>
    %7 = tpu.concatenate %6, %0 in 0 : vector<15x128xf32>, vector<1x128xf32> -> vector<16x128xf32>
    %c0_4 = arith.constant 0 : index
    %8 = memref.load %arg2[%c0_4] : memref<36xf32, #tpu.memory_space<smem>>
    %9 = vector.broadcast %8 : f32 to vector<16x128xf32>
    %10 = arith.mulf %5, %9 : vector<16x128xf32>
    %c3 = arith.constant 3 : index
    %11 = memref.load %arg2[%c3] : memref<36xf32, #tpu.memory_space<smem>>
    %12 = vector.broadcast %11 : f32 to vector<16x128xf32>
    %13 = arith.mulf %3, %12 : vector<16x128xf32>
    %14 = arith.addf %10, %13 : vector<16x128xf32>
    %c6 = arith.constant 6 : index
    %15 = memref.load %arg2[%c6] : memref<36xf32, #tpu.memory_space<smem>>
    %16 = vector.broadcast %15 : f32 to vector<16x128xf32>
    %17 = arith.mulf %7, %16 : vector<16x128xf32>
    %18 = arith.addf %14, %17 : vector<16x128xf32>
    %c1 = arith.constant 1 : index
    %19 = memref.load %arg2[%c1] : memref<36xf32, #tpu.memory_space<smem>>
    %20 = vector.broadcast %19 : f32 to vector<16x128xf32>
    %21 = arith.mulf %5, %20 : vector<16x128xf32>
    %c4 = arith.constant 4 : index
    %22 = memref.load %arg2[%c4] : memref<36xf32, #tpu.memory_space<smem>>
    %23 = vector.broadcast %22 : f32 to vector<16x128xf32>
    %24 = arith.mulf %3, %23 : vector<16x128xf32>
    %25 = arith.addf %21, %24 : vector<16x128xf32>
    %c7 = arith.constant 7 : index
    %26 = memref.load %arg2[%c7] : memref<36xf32, #tpu.memory_space<smem>>
    %27 = vector.broadcast %26 : f32 to vector<16x128xf32>
    %28 = arith.mulf %7, %27 : vector<16x128xf32>
    %29 = arith.addf %25, %28 : vector<16x128xf32>
    %c2 = arith.constant 2 : index
    %30 = memref.load %arg2[%c2] : memref<36xf32, #tpu.memory_space<smem>>
    %31 = vector.broadcast %30 : f32 to vector<16x128xf32>
    %32 = arith.mulf %5, %31 : vector<16x128xf32>
    %c5 = arith.constant 5 : index
    %33 = memref.load %arg2[%c5] : memref<36xf32, #tpu.memory_space<smem>>
    %34 = vector.broadcast %33 : f32 to vector<16x128xf32>
    %35 = arith.mulf %3, %34 : vector<16x128xf32>
    %36 = arith.addf %32, %35 : vector<16x128xf32>
    %c8 = arith.constant 8 : index
    %37 = memref.load %arg2[%c8] : memref<36xf32, #tpu.memory_space<smem>>
    %38 = vector.broadcast %37 : f32 to vector<16x128xf32>
    %39 = arith.mulf %7, %38 : vector<16x128xf32>
    %40 = arith.addf %36, %39 : vector<16x128xf32>
    %41 = vector.extract_strided_slice %18 {offsets = [0, 0], sizes = [16, 127], strides = [1, 1]} : vector<16x128xf32> to vector<16x127xf32>
    %42 = tpu.concatenate %1, %41 in 1 : vector<16x1xf32>, vector<16x127xf32> -> vector<16x128xf32>
    %43 = vector.extract_strided_slice %40 {offsets = [0, 1], sizes = [16, 127], strides = [1, 1]} : vector<16x128xf32> to vector<16x127xf32>
    %44 = tpu.concatenate %43, %1 in 1 : vector<16x127xf32>, vector<16x1xf32> -> vector<16x128xf32>
    %45 = arith.addf %42, %29 : vector<16x128xf32>
    %46 = arith.addf %45, %44 : vector<16x128xf32>
    %c0_5 = arith.constant 0 : index
    %47 = memref.load %arg3[%c0_5] : memref<8xf32, #tpu.memory_space<smem>>
    %48 = vector.broadcast %47 : f32 to vector<16x128xf32>
    %49 = arith.mulf %46, %48 : vector<16x128xf32>
    %c4_6 = arith.constant 4 : index
    %50 = memref.load %arg3[%c4_6] : memref<8xf32, #tpu.memory_space<smem>>
    %51 = vector.broadcast %50 : f32 to vector<16x128xf32>
    %52 = arith.mulf %46, %51 : vector<16x128xf32>
    %c0_7 = arith.constant 0 : index
    %c1_8 = arith.constant 1 : index
    %c0_9 = arith.constant 0 : index
    %c0_10 = arith.constant 0 : index
    %53 = vector.load %arg4[%c0_7, %c1_8, %c0_9, %c0_10] : memref<1x4x16x128xf32, #tpu.memory_space<vmem>>, vector<1x1x16x128xf32>
    %54 = vector.shape_cast %53 : vector<1x1x16x128xf32> to vector<16x128xf32>
    %55 = vector.extract_strided_slice %54 {offsets = [0, 0], sizes = [15, 128], strides = [1, 1]} : vector<16x128xf32> to vector<15x128xf32>
    %56 = tpu.concatenate %0, %55 in 0 : vector<1x128xf32>, vector<15x128xf32> -> vector<16x128xf32>
    %57 = vector.extract_strided_slice %54 {offsets = [1, 0], sizes = [15, 128], strides = [1, 1]} : vector<16x128xf32> to vector<15x128xf32>
    %58 = tpu.concatenate %57, %0 in 0 : vector<15x128xf32>, vector<1x128xf32> -> vector<16x128xf32>
    %c9 = arith.constant 9 : index
    %59 = memref.load %arg2[%c9] : memref<36xf32, #tpu.memory_space<smem>>
    %60 = vector.broadcast %59 : f32 to vector<16x128xf32>
    %61 = arith.mulf %56, %60 : vector<16x128xf32>
    %c12 = arith.constant 12 : index
    %62 = memref.load %arg2[%c12] : memref<36xf32, #tpu.memory_space<smem>>
    %63 = vector.broadcast %62 : f32 to vector<16x128xf32>
    %64 = arith.mulf %54, %63 : vector<16x128xf32>
    %65 = arith.addf %61, %64 : vector<16x128xf32>
    %c15 = arith.constant 15 : index
    %66 = memref.load %arg2[%c15] : memref<36xf32, #tpu.memory_space<smem>>
    %67 = vector.broadcast %66 : f32 to vector<16x128xf32>
    %68 = arith.mulf %58, %67 : vector<16x128xf32>
    %69 = arith.addf %65, %68 : vector<16x128xf32>
    %c10 = arith.constant 10 : index
    %70 = memref.load %arg2[%c10] : memref<36xf32, #tpu.memory_space<smem>>
    %71 = vector.broadcast %70 : f32 to vector<16x128xf32>
    %72 = arith.mulf %56, %71 : vector<16x128xf32>
    %c13 = arith.constant 13 : index
    %73 = memref.load %arg2[%c13] : memref<36xf32, #tpu.memory_space<smem>>
    %74 = vector.broadcast %73 : f32 to vector<16x128xf32>
    %75 = arith.mulf %54, %74 : vector<16x128xf32>
    %76 = arith.addf %72, %75 : vector<16x128xf32>
    %c16 = arith.constant 16 : index
    %77 = memref.load %arg2[%c16] : memref<36xf32, #tpu.memory_space<smem>>
    %78 = vector.broadcast %77 : f32 to vector<16x128xf32>
    %79 = arith.mulf %58, %78 : vector<16x128xf32>
    %80 = arith.addf %76, %79 : vector<16x128xf32>
    %c11 = arith.constant 11 : index
    %81 = memref.load %arg2[%c11] : memref<36xf32, #tpu.memory_space<smem>>
    %82 = vector.broadcast %81 : f32 to vector<16x128xf32>
    %83 = arith.mulf %56, %82 : vector<16x128xf32>
    %c14 = arith.constant 14 : index
    %84 = memref.load %arg2[%c14] : memref<36xf32, #tpu.memory_space<smem>>
    %85 = vector.broadcast %84 : f32 to vector<16x128xf32>
    %86 = arith.mulf %54, %85 : vector<16x128xf32>
    %87 = arith.addf %83, %86 : vector<16x128xf32>
    %c17 = arith.constant 17 : index
    %88 = memref.load %arg2[%c17] : memref<36xf32, #tpu.memory_space<smem>>
    %89 = vector.broadcast %88 : f32 to vector<16x128xf32>
    %90 = arith.mulf %58, %89 : vector<16x128xf32>
    %91 = arith.addf %87, %90 : vector<16x128xf32>
    %92 = vector.extract_strided_slice %69 {offsets = [0, 0], sizes = [16, 127], strides = [1, 1]} : vector<16x128xf32> to vector<16x127xf32>
    %93 = tpu.concatenate %1, %92 in 1 : vector<16x1xf32>, vector<16x127xf32> -> vector<16x128xf32>
    %94 = vector.extract_strided_slice %91 {offsets = [0, 1], sizes = [16, 127], strides = [1, 1]} : vector<16x128xf32> to vector<16x127xf32>
    %95 = tpu.concatenate %94, %1 in 1 : vector<16x127xf32>, vector<16x1xf32> -> vector<16x128xf32>
    %96 = arith.addf %93, %80 : vector<16x128xf32>
    %97 = arith.addf %96, %95 : vector<16x128xf32>
    %c1_11 = arith.constant 1 : index
    %98 = memref.load %arg3[%c1_11] : memref<8xf32, #tpu.memory_space<smem>>
    %99 = vector.broadcast %98 : f32 to vector<16x128xf32>
    %100 = arith.mulf %97, %99 : vector<16x128xf32>
    %101 = arith.addf %49, %100 : vector<16x128xf32>
    %c5_12 = arith.constant 5 : index
    %102 = memref.load %arg3[%c5_12] : memref<8xf32, #tpu.memory_space<smem>>
    %103 = vector.broadcast %102 : f32 to vector<16x128xf32>
    %104 = arith.mulf %97, %103 : vector<16x128xf32>
    %105 = arith.addf %52, %104 : vector<16x128xf32>
    %c0_13 = arith.constant 0 : index
    %c2_14 = arith.constant 2 : index
    %c0_15 = arith.constant 0 : index
    %c0_16 = arith.constant 0 : index
    %106 = vector.load %arg4[%c0_13, %c2_14, %c0_15, %c0_16] : memref<1x4x16x128xf32, #tpu.memory_space<vmem>>, vector<1x1x16x128xf32>
    %107 = vector.shape_cast %106 : vector<1x1x16x128xf32> to vector<16x128xf32>
    %108 = vector.extract_strided_slice %107 {offsets = [0, 0], sizes = [15, 128], strides = [1, 1]} : vector<16x128xf32> to vector<15x128xf32>
    %109 = tpu.concatenate %0, %108 in 0 : vector<1x128xf32>, vector<15x128xf32> -> vector<16x128xf32>
    %110 = vector.extract_strided_slice %107 {offsets = [1, 0], sizes = [15, 128], strides = [1, 1]} : vector<16x128xf32> to vector<15x128xf32>
    %111 = tpu.concatenate %110, %0 in 0 : vector<15x128xf32>, vector<1x128xf32> -> vector<16x128xf32>
    %c18 = arith.constant 18 : index
    %112 = memref.load %arg2[%c18] : memref<36xf32, #tpu.memory_space<smem>>
    %113 = vector.broadcast %112 : f32 to vector<16x128xf32>
    %114 = arith.mulf %109, %113 : vector<16x128xf32>
    %c21 = arith.constant 21 : index
    %115 = memref.load %arg2[%c21] : memref<36xf32, #tpu.memory_space<smem>>
    %116 = vector.broadcast %115 : f32 to vector<16x128xf32>
    %117 = arith.mulf %107, %116 : vector<16x128xf32>
    %118 = arith.addf %114, %117 : vector<16x128xf32>
    %c24 = arith.constant 24 : index
    %119 = memref.load %arg2[%c24] : memref<36xf32, #tpu.memory_space<smem>>
    %120 = vector.broadcast %119 : f32 to vector<16x128xf32>
    %121 = arith.mulf %111, %120 : vector<16x128xf32>
    %122 = arith.addf %118, %121 : vector<16x128xf32>
    %c19 = arith.constant 19 : index
    %123 = memref.load %arg2[%c19] : memref<36xf32, #tpu.memory_space<smem>>
    %124 = vector.broadcast %123 : f32 to vector<16x128xf32>
    %125 = arith.mulf %109, %124 : vector<16x128xf32>
    %c22 = arith.constant 22 : index
    %126 = memref.load %arg2[%c22] : memref<36xf32, #tpu.memory_space<smem>>
    %127 = vector.broadcast %126 : f32 to vector<16x128xf32>
    %128 = arith.mulf %107, %127 : vector<16x128xf32>
    %129 = arith.addf %125, %128 : vector<16x128xf32>
    %c25 = arith.constant 25 : index
    %130 = memref.load %arg2[%c25] : memref<36xf32, #tpu.memory_space<smem>>
    %131 = vector.broadcast %130 : f32 to vector<16x128xf32>
    %132 = arith.mulf %111, %131 : vector<16x128xf32>
    %133 = arith.addf %129, %132 : vector<16x128xf32>
    %c20 = arith.constant 20 : index
    %134 = memref.load %arg2[%c20] : memref<36xf32, #tpu.memory_space<smem>>
    %135 = vector.broadcast %134 : f32 to vector<16x128xf32>
    %136 = arith.mulf %109, %135 : vector<16x128xf32>
    %c23 = arith.constant 23 : index
    %137 = memref.load %arg2[%c23] : memref<36xf32, #tpu.memory_space<smem>>
    %138 = vector.broadcast %137 : f32 to vector<16x128xf32>
    %139 = arith.mulf %107, %138 : vector<16x128xf32>
    %140 = arith.addf %136, %139 : vector<16x128xf32>
    %c26 = arith.constant 26 : index
    %141 = memref.load %arg2[%c26] : memref<36xf32, #tpu.memory_space<smem>>
    %142 = vector.broadcast %141 : f32 to vector<16x128xf32>
    %143 = arith.mulf %111, %142 : vector<16x128xf32>
    %144 = arith.addf %140, %143 : vector<16x128xf32>
    %145 = vector.extract_strided_slice %122 {offsets = [0, 0], sizes = [16, 127], strides = [1, 1]} : vector<16x128xf32> to vector<16x127xf32>
    %146 = tpu.concatenate %1, %145 in 1 : vector<16x1xf32>, vector<16x127xf32> -> vector<16x128xf32>
    %147 = vector.extract_strided_slice %144 {offsets = [0, 1], sizes = [16, 127], strides = [1, 1]} : vector<16x128xf32> to vector<16x127xf32>
    %148 = tpu.concatenate %147, %1 in 1 : vector<16x127xf32>, vector<16x1xf32> -> vector<16x128xf32>
    %149 = arith.addf %146, %133 : vector<16x128xf32>
    %150 = arith.addf %149, %148 : vector<16x128xf32>
    %c2_17 = arith.constant 2 : index
    %151 = memref.load %arg3[%c2_17] : memref<8xf32, #tpu.memory_space<smem>>
    %152 = vector.broadcast %151 : f32 to vector<16x128xf32>
    %153 = arith.mulf %150, %152 : vector<16x128xf32>
    %154 = arith.addf %101, %153 : vector<16x128xf32>
    %c6_18 = arith.constant 6 : index
    %155 = memref.load %arg3[%c6_18] : memref<8xf32, #tpu.memory_space<smem>>
    %156 = vector.broadcast %155 : f32 to vector<16x128xf32>
    %157 = arith.mulf %150, %156 : vector<16x128xf32>
    %158 = arith.addf %105, %157 : vector<16x128xf32>
    %c0_19 = arith.constant 0 : index
    %c3_20 = arith.constant 3 : index
    %c0_21 = arith.constant 0 : index
    %c0_22 = arith.constant 0 : index
    %159 = vector.load %arg4[%c0_19, %c3_20, %c0_21, %c0_22] : memref<1x4x16x128xf32, #tpu.memory_space<vmem>>, vector<1x1x16x128xf32>
    %160 = vector.shape_cast %159 : vector<1x1x16x128xf32> to vector<16x128xf32>
    %161 = vector.extract_strided_slice %160 {offsets = [0, 0], sizes = [15, 128], strides = [1, 1]} : vector<16x128xf32> to vector<15x128xf32>
    %162 = tpu.concatenate %0, %161 in 0 : vector<1x128xf32>, vector<15x128xf32> -> vector<16x128xf32>
    %163 = vector.extract_strided_slice %160 {offsets = [1, 0], sizes = [15, 128], strides = [1, 1]} : vector<16x128xf32> to vector<15x128xf32>
    %164 = tpu.concatenate %163, %0 in 0 : vector<15x128xf32>, vector<1x128xf32> -> vector<16x128xf32>
    %c27 = arith.constant 27 : index
    %165 = memref.load %arg2[%c27] : memref<36xf32, #tpu.memory_space<smem>>
    %166 = vector.broadcast %165 : f32 to vector<16x128xf32>
    %167 = arith.mulf %162, %166 : vector<16x128xf32>
    %c30 = arith.constant 30 : index
    %168 = memref.load %arg2[%c30] : memref<36xf32, #tpu.memory_space<smem>>
    %169 = vector.broadcast %168 : f32 to vector<16x128xf32>
    %170 = arith.mulf %160, %169 : vector<16x128xf32>
    %171 = arith.addf %167, %170 : vector<16x128xf32>
    %c33 = arith.constant 33 : index
    %172 = memref.load %arg2[%c33] : memref<36xf32, #tpu.memory_space<smem>>
    %173 = vector.broadcast %172 : f32 to vector<16x128xf32>
    %174 = arith.mulf %164, %173 : vector<16x128xf32>
    %175 = arith.addf %171, %174 : vector<16x128xf32>
    %c28 = arith.constant 28 : index
    %176 = memref.load %arg2[%c28] : memref<36xf32, #tpu.memory_space<smem>>
    %177 = vector.broadcast %176 : f32 to vector<16x128xf32>
    %178 = arith.mulf %162, %177 : vector<16x128xf32>
    %c31 = arith.constant 31 : index
    %179 = memref.load %arg2[%c31] : memref<36xf32, #tpu.memory_space<smem>>
    %180 = vector.broadcast %179 : f32 to vector<16x128xf32>
    %181 = arith.mulf %160, %180 : vector<16x128xf32>
    %182 = arith.addf %178, %181 : vector<16x128xf32>
    %c34 = arith.constant 34 : index
    %183 = memref.load %arg2[%c34] : memref<36xf32, #tpu.memory_space<smem>>
    %184 = vector.broadcast %183 : f32 to vector<16x128xf32>
    %185 = arith.mulf %164, %184 : vector<16x128xf32>
    %186 = arith.addf %182, %185 : vector<16x128xf32>
    %c29 = arith.constant 29 : index
    %187 = memref.load %arg2[%c29] : memref<36xf32, #tpu.memory_space<smem>>
    %188 = vector.broadcast %187 : f32 to vector<16x128xf32>
    %189 = arith.mulf %162, %188 : vector<16x128xf32>
    %c32 = arith.constant 32 : index
    %190 = memref.load %arg2[%c32] : memref<36xf32, #tpu.memory_space<smem>>
    %191 = vector.broadcast %190 : f32 to vector<16x128xf32>
    %192 = arith.mulf %160, %191 : vector<16x128xf32>
    %193 = arith.addf %189, %192 : vector<16x128xf32>
    %c35 = arith.constant 35 : index
    %194 = memref.load %arg2[%c35] : memref<36xf32, #tpu.memory_space<smem>>
    %195 = vector.broadcast %194 : f32 to vector<16x128xf32>
    %196 = arith.mulf %164, %195 : vector<16x128xf32>
    %197 = arith.addf %193, %196 : vector<16x128xf32>
    %198 = vector.extract_strided_slice %175 {offsets = [0, 0], sizes = [16, 127], strides = [1, 1]} : vector<16x128xf32> to vector<16x127xf32>
    %199 = tpu.concatenate %1, %198 in 1 : vector<16x1xf32>, vector<16x127xf32> -> vector<16x128xf32>
    %200 = vector.extract_strided_slice %197 {offsets = [0, 1], sizes = [16, 127], strides = [1, 1]} : vector<16x128xf32> to vector<16x127xf32>
    %201 = tpu.concatenate %200, %1 in 1 : vector<16x127xf32>, vector<16x1xf32> -> vector<16x128xf32>
    %202 = arith.addf %199, %186 : vector<16x128xf32>
    %203 = arith.addf %202, %201 : vector<16x128xf32>
    %c3_23 = arith.constant 3 : index
    %204 = memref.load %arg3[%c3_23] : memref<8xf32, #tpu.memory_space<smem>>
    %205 = vector.broadcast %204 : f32 to vector<16x128xf32>
    %206 = arith.mulf %203, %205 : vector<16x128xf32>
    %207 = arith.addf %154, %206 : vector<16x128xf32>
    %c7_24 = arith.constant 7 : index
    %208 = memref.load %arg3[%c7_24] : memref<8xf32, #tpu.memory_space<smem>>
    %209 = vector.broadcast %208 : f32 to vector<16x128xf32>
    %210 = arith.mulf %203, %209 : vector<16x128xf32>
    %211 = arith.addf %158, %210 : vector<16x128xf32>
    %212 = vector.shape_cast %207 : vector<16x128xf32> to vector<8x2x64x2xf32>
    %213 = vector.extract_strided_slice %212 {offsets = [0, 0, 0, 0], sizes = [8, 1, 64, 1], strides = [1, 1, 1, 1]} : vector<8x2x64x2xf32> to vector<8x1x64x1xf32>
    %214 = vector.shape_cast %213 : vector<8x1x64x1xf32> to vector<8x64xf32>
    %c0_25 = arith.constant 0 : index
    %c0_26 = arith.constant 0 : index
    %c0_27 = arith.constant 0 : index
    %c0_28 = arith.constant 0 : index
    %215 = vector.load %arg5[%c0_25, %c0_26, %c0_27, %c0_28] : memref<1x8x8x64xf32, #tpu.memory_space<vmem>>, vector<1x1x8x64xf32>
    %216 = vector.shape_cast %215 : vector<1x1x8x64xf32> to vector<8x64xf32>
    %217 = vector.shape_cast %214 : vector<8x64xf32> to vector<1x1x8x64xf32>
    tpu.vector_store %arg5[%c0_25, %c0_26, %c0_27, %c0_28], %217 {strides = array<i32>} : memref<1x8x8x64xf32, #tpu.memory_space<vmem>>, vector<1x1x8x64xf32>,
    %218 = vector.extract_strided_slice %212 {offsets = [0, 0, 0, 1], sizes = [8, 1, 64, 1], strides = [1, 1, 1, 1]} : vector<8x2x64x2xf32> to vector<8x1x64x1xf32>
    %219 = vector.shape_cast %218 : vector<8x1x64x1xf32> to vector<8x64xf32>
    %c0_29 = arith.constant 0 : index
    %c1_30 = arith.constant 1 : index
    %c0_31 = arith.constant 0 : index
    %c0_32 = arith.constant 0 : index
    %220 = vector.load %arg5[%c0_29, %c1_30, %c0_31, %c0_32] : memref<1x8x8x64xf32, #tpu.memory_space<vmem>>, vector<1x1x8x64xf32>
    %221 = vector.shape_cast %220 : vector<1x1x8x64xf32> to vector<8x64xf32>
    %222 = vector.shape_cast %219 : vector<8x64xf32> to vector<1x1x8x64xf32>
    tpu.vector_store %arg5[%c0_29, %c1_30, %c0_31, %c0_32], %222 {strides = array<i32>} : memref<1x8x8x64xf32, #tpu.memory_space<vmem>>, vector<1x1x8x64xf32>,
    %223 = vector.extract_strided_slice %212 {offsets = [0, 1, 0, 0], sizes = [8, 1, 64, 1], strides = [1, 1, 1, 1]} : vector<8x2x64x2xf32> to vector<8x1x64x1xf32>
    %224 = vector.shape_cast %223 : vector<8x1x64x1xf32> to vector<8x64xf32>
    %c0_33 = arith.constant 0 : index
    %c2_34 = arith.constant 2 : index
    %c0_35 = arith.constant 0 : index
    %c0_36 = arith.constant 0 : index
    %225 = vector.load %arg5[%c0_33, %c2_34, %c0_35, %c0_36] : memref<1x8x8x64xf32, #tpu.memory_space<vmem>>, vector<1x1x8x64xf32>
    %226 = vector.shape_cast %225 : vector<1x1x8x64xf32> to vector<8x64xf32>
    %227 = vector.shape_cast %224 : vector<8x64xf32> to vector<1x1x8x64xf32>
    tpu.vector_store %arg5[%c0_33, %c2_34, %c0_35, %c0_36], %227 {strides = array<i32>} : memref<1x8x8x64xf32, #tpu.memory_space<vmem>>, vector<1x1x8x64xf32>,
    %228 = vector.extract_strided_slice %212 {offsets = [0, 1, 0, 1], sizes = [8, 1, 64, 1], strides = [1, 1, 1, 1]} : vector<8x2x64x2xf32> to vector<8x1x64x1xf32>
    %229 = vector.shape_cast %228 : vector<8x1x64x1xf32> to vector<8x64xf32>
    %c0_37 = arith.constant 0 : index
    %c3_38 = arith.constant 3 : index
    %c0_39 = arith.constant 0 : index
    %c0_40 = arith.constant 0 : index
    %230 = vector.load %arg5[%c0_37, %c3_38, %c0_39, %c0_40] : memref<1x8x8x64xf32, #tpu.memory_space<vmem>>, vector<1x1x8x64xf32>
    %231 = vector.shape_cast %230 : vector<1x1x8x64xf32> to vector<8x64xf32>
    %232 = vector.shape_cast %229 : vector<8x64xf32> to vector<1x1x8x64xf32>
    tpu.vector_store %arg5[%c0_37, %c3_38, %c0_39, %c0_40], %232 {strides = array<i32>} : memref<1x8x8x64xf32, #tpu.memory_space<vmem>>, vector<1x1x8x64xf32>,
    %233 = vector.shape_cast %211 : vector<16x128xf32> to vector<8x2x64x2xf32>
    %234 = vector.extract_strided_slice %233 {offsets = [0, 0, 0, 0], sizes = [8, 1, 64, 1], strides = [1, 1, 1, 1]} : vector<8x2x64x2xf32> to vector<8x1x64x1xf32>
    %235 = vector.shape_cast %234 : vector<8x1x64x1xf32> to vector<8x64xf32>
    %c0_41 = arith.constant 0 : index
    %c4_42 = arith.constant 4 : index
    %c0_43 = arith.constant 0 : index
    %c0_44 = arith.constant 0 : index
    %236 = vector.load %arg5[%c0_41, %c4_42, %c0_43, %c0_44] : memref<1x8x8x64xf32, #tpu.memory_space<vmem>>, vector<1x1x8x64xf32>
    %237 = vector.shape_cast %236 : vector<1x1x8x64xf32> to vector<8x64xf32>
    %238 = vector.shape_cast %235 : vector<8x64xf32> to vector<1x1x8x64xf32>
    tpu.vector_store %arg5[%c0_41, %c4_42, %c0_43, %c0_44], %238 {strides = array<i32>} : memref<1x8x8x64xf32, #tpu.memory_space<vmem>>, vector<1x1x8x64xf32>,
    %239 = vector.extract_strided_slice %233 {offsets = [0, 0, 0, 1], sizes = [8, 1, 64, 1], strides = [1, 1, 1, 1]} : vector<8x2x64x2xf32> to vector<8x1x64x1xf32>
    %240 = vector.shape_cast %239 : vector<8x1x64x1xf32> to vector<8x64xf32>
    %c0_45 = arith.constant 0 : index
    %c5_46 = arith.constant 5 : index
    %c0_47 = arith.constant 0 : index
    %c0_48 = arith.constant 0 : index
    %241 = vector.load %arg5[%c0_45, %c5_46, %c0_47, %c0_48] : memref<1x8x8x64xf32, #tpu.memory_space<vmem>>, vector<1x1x8x64xf32>
    %242 = vector.shape_cast %241 : vector<1x1x8x64xf32> to vector<8x64xf32>
    %243 = vector.shape_cast %240 : vector<8x64xf32> to vector<1x1x8x64xf32>
    tpu.vector_store %arg5[%c0_45, %c5_46, %c0_47, %c0_48], %243 {strides = array<i32>} : memref<1x8x8x64xf32, #tpu.memory_space<vmem>>, vector<1x1x8x64xf32>,
    %244 = vector.extract_strided_slice %233 {offsets = [0, 1, 0, 0], sizes = [8, 1, 64, 1], strides = [1, 1, 1, 1]} : vector<8x2x64x2xf32> to vector<8x1x64x1xf32>
    %245 = vector.shape_cast %244 : vector<8x1x64x1xf32> to vector<8x64xf32>
    %c0_49 = arith.constant 0 : index
    %c6_50 = arith.constant 6 : index
    %c0_51 = arith.constant 0 : index
    %c0_52 = arith.constant 0 : index
    %246 = vector.load %arg5[%c0_49, %c6_50, %c0_51, %c0_52] : memref<1x8x8x64xf32, #tpu.memory_space<vmem>>, vector<1x1x8x64xf32>
    %247 = vector.shape_cast %246 : vector<1x1x8x64xf32> to vector<8x64xf32>
    %248 = vector.shape_cast %245 : vector<8x64xf32> to vector<1x1x8x64xf32>
    tpu.vector_store %arg5[%c0_49, %c6_50, %c0_51, %c0_52], %248 {strides = array<i32>} : memref<1x8x8x64xf32, #tpu.memory_space<vmem>>, vector<1x1x8x64xf32>,
    %249 = vector.extract_strided_slice %233 {offsets = [0, 1, 0, 1], sizes = [8, 1, 64, 1], strides = [1, 1, 1, 1]} : vector<8x2x64x2xf32> to vector<8x1x64x1xf32>
    %250 = vector.shape_cast %249 : vector<8x1x64x1xf32> to vector<8x64xf32>
    %c0_53 = arith.constant 0 : index
    %c7_54 = arith.constant 7 : index
    %c0_55 = arith.constant 0 : index
    %c0_56 = arith.constant 0 : index
    %251 = vector.load %arg5[%c0_53, %c7_54, %c0_55, %c0_56] : memref<1x8x8x64xf32, #tpu.memory_space<vmem>>, vector<1x1x8x64xf32>
    %252 = vector.shape_cast %251 : vector<1x1x8x64xf32> to vector<8x64xf32>
    %253 = vector.shape_cast %250 : vector<8x64xf32> to vector<1x1x8x64xf32>
    tpu.vector_store %arg5[%c0_53, %c7_54, %c0_55, %c0_56], %253 {strides = array<i32>} : memref<1x8x8x64xf32, #tpu.memory_space<vmem>>, vector<1x1x8x64xf32>,
    return
  }
  func.func @transform_0(%arg0: i32, %arg1: i32, %arg2: memref<36xf32, #tpu.memory_space<smem>>, %arg3: memref<8xf32, #tpu.memory_space<smem>>) -> (i32, i32, i32, i32) {
    %c0_i32 = arith.constant 0 : i32
    %c0_i32_0 = arith.constant 0 : i32
    %c0_i32_1 = arith.constant 0 : i32
    return %arg0, %c0_i32, %arg1, %c0_i32_0 : i32, i32, i32, i32
  }
  func.func @transform_1(%arg0: i32, %arg1: i32, %arg2: memref<36xf32, #tpu.memory_space<smem>>, %arg3: memref<8xf32, #tpu.memory_space<smem>>) -> (i32, i32, i32, i32) {
    %c0_i32 = arith.constant 0 : i32
    %c0_i32_0 = arith.constant 0 : i32
    %c0_i32_1 = arith.constant 0 : i32
    return %arg0, %c0_i32, %arg1, %c0_i32_0 : i32, i32, i32, i32
  }
}

</mosaic_0001>

<llo_original>
// kernel: tpu_custom_call.1
$region0: #{tpu_custom_call.1}
  #allocation0 [shape = 'u32[]', space=smem, size = 0x4, offset = 0x4, fixed_abs, tag = 'smem constant byte address 0x4 - core index']
  #allocation1 [shape = 'u32[72,128]{1,0:T(1,128)}', space=vmem, size = 0x9000, scoped, tag = 'internal scratch']
  #allocation2 [shape = 's32[1]{0}', space=sflag, size = 0x4, scoped, tag = 'scoped memory for tpu_custom_call.1']
  #allocation3 [shape = 'u8[512]{0}', space=smem, size = 0x200, scoped, tag = 'prefetched SMEM operand 0']
  #allocation4 [shape = 'u8[512]{0}', space=smem, size = 0x200, scoped, tag = 'prefetched SMEM operand 1']
  %s0 = inlined_call_operand.hbm [shape: f32[36], index: 0, kind: input, shape index: {}]
  %s1 = inlined_call_operand.hbm [shape: f32[8], index: 1, kind: input, shape index: {}]
  %s2 = inlined_call_operand.hbm [shape: f32[2,4,16,128], index: 2, kind: input, shape index: {}]
  %s3 = inlined_call_operand.hbm [shape: f32[2,8,8,64], index: 3, kind: output, shape index: {}]
  %s4 = sld [smem:[#allocation0]]
  $region41: #{tpu_custom_call.1} parent=0
    _
  %s6 = ssub.s32 1, %s4
  %s7 = scalar_select 0, %s6, %s4
  %s9 = sshll.u32 %s0, 4
  %s10 = int_to_ptr.hbm [resolvable:$true] %s9
  %12 = dma.hbm_to_smem %s10, 16, [#allocation3], [#allocation2]
  %s14 = sshll.u32 %s1, 4
  %s15 = int_to_ptr.hbm [resolvable:$true] %s14
  %17 = dma.hbm_to_smem %s15, 16, [#allocation4], [#allocation2]
  %19 = dma.done [#allocation2], 32
  %20 = sfence
  $region1: #{tpu_custom_call.1} parent=0
    #allocation5 [shape = 'u8[65536]{0}', space=vmem, size = 0x10000, scoped, tag = 'input window, operand 2']
    #allocation6 [shape = 's32[2]{0}', space=sflag, size = 0x8, scoped, tag = 'scoped memory for tpu_custom_call.1']
    #allocation7 [shape = 's32[2]{0}', space=sflag, size = 0x8, scoped, tag = 'scoped memory for tpu_custom_call.1']
    #allocation8 [shape = 'u8[65536]{0}', space=vmem, size = 0x10000, scoped, tag = 'output window, operand 0']
    %21 = vsyncpa [#allocation6], 0
    %s22 = scalar_lea.sflag [#allocation6], 1
    %23 = vsyncpa %s22, 0
    %24 = vsyncpa [#allocation7], 0
    %s25 = scalar_lea.sflag [#allocation7], 1
    %26 = vsyncpa %s25, 0
    loop: start=0, step=1, limit=4
    $region2: #{tpu_custom_call.1} parent=1 // loop_pre_header
      _
    $region3: #{tpu_custom_call.1} parent=1 // loop_header
      %s28 = sphi 0, %s32
      %p29 = scmp.ge.s32.totalorder %s28, 4
      %s35 = sphi 0, %s47
      %s36 = sphi 0, %s43
      %s37 = sphi 0, %s35
      %s38 = sphi 0, %s36
      %s39 = sphi 0, %s37
      %s40 = sphi 0, %s38
      %s52 = sphi 0, %s54
      %s55 = sphi 0, %s52
      %s56 = sphi 0, %s55
      %s72 = sphi 0, %s56
      %s80 = sphi 0, %s82
      %s83 = sphi 0, %s80
      %s84 = sphi 0, %s83
      %s100 = sphi 0, %s84
    $region4: #{tpu_custom_call.1} parent=1 // loop_header_branch
      %31 = sbr.rel (%p29) target = $region8
    $region5: #{tpu_custom_call.1} parent=1 // loop_body
      %s33 = ssub.s32 %s28, 1
      %s34 = ssub.s32 %s28, 2
      %s41 = sadd.s32 1, %s36
      %p42 = scmp.ge.s32.totalorder %s41, 1
      %s43 = scalar_select %p42, 0, %s41
      %s44 = sadd.s32 1, %s35
      %s45 = scalar_select %p42, %s44, %s35
      %p46 = scmp.ge.s32.totalorder %s45, 2
      %s47 = scalar_select %p46, 0, %s45
      %s48 = ssub.s32 %s35, %s47
      %s49 = ssub.s32 %s36, %s43
      %s50 = sor.u32 %s48, %s49
      %p51 = scmp.eq.s32.totalorder %s50, 0
      %s53 = sadd.s32 %s52, 1
      %s54 = scalar_select %p51, %s52, %s53
      %p57 = pneg %p51
      %p58 = scmp.eq.s32.totalorder %s28, 1
      %p59 = por %p57, %p58
      %p60 = scmp.ne.s32.totalorder %s52, %s55
      %p61 = scmp.eq.s32.totalorder %s28, 0
      %p62 = por %p60, %p61
      %p63 = scmp.ne.s32.totalorder %s52, %s55
      %p64 = scmp.eq.s32.totalorder %s33, 1
      %p65 = por %p63, %p64
      %p66 = scmp.ne.s32.totalorder %s55, %s56
      %p67 = scmp.eq.s32.totalorder %s33, 0
      %p68 = por %p66, %p67
      %p69 = scmp.ne.s32.totalorder %s55, %s56
      %p70 = scmp.eq.s32.totalorder %s34, 1
      %p71 = por %p69, %p70
      %p73 = scmp.ne.s32.totalorder %s56, %s72
      %p74 = scmp.eq.s32.totalorder %s34, 0
      %p75 = por %p73, %p74
      %s76 = ssub.s32 %s35, %s47
      %s77 = ssub.s32 %s36, %s43
      %s78 = sor.u32 %s76, %s77
      %p79 = scmp.eq.s32.totalorder %s78, 0
      %s81 = sadd.s32 %s80, 1
      %s82 = scalar_select %p79, %s80, %s81
      %p85 = pneg %p79
      %p86 = scmp.eq.s32.totalorder %s28, 1
      %p87 = por %p85, %p86
      %p88 = scmp.ne.s32.totalorder %s80, %s83
      %p89 = scmp.eq.s32.totalorder %s28, 0
      %p90 = por %p88, %p89
      %p91 = scmp.ne.s32.totalorder %s80, %s83
      %p92 = scmp.eq.s32.totalorder %s33, 1
      %p93 = por %p91, %p92
      %p94 = scmp.ne.s32.totalorder %s83, %s84
      %p95 = scmp.eq.s32.totalorder %s33, 0
      %p96 = por %p94, %p95
      %p97 = scmp.ne.s32.totalorder %s83, %s84
      %p98 = scmp.eq.s32.totalorder %s34, 1
      %p99 = por %p97, %p98
      %p101 = scmp.ne.s32.totalorder %s84, %s100
      %p102 = scmp.eq.s32.totalorder %s34, 0
      %p103 = por %p101, %p102
      %p104 = scmp.le.s32.totalorder 1, %s28
      %p105 = scmp.lt.s32.totalorder %s28, 3
      %p106 = pnand %p104, %p105
      %p107 = pneg %p106
      // Predicated region
      $region9: #{tpu_custom_call.1} parent=5 // pred_check
        _
      $region10: #{tpu_custom_call.1} parent=5 // pred_check_branch
        %109 = sbr.rel (%p106) target = $region12
      $region11: #{tpu_custom_call.1} parent=5 // pred_region
        %s110 = ssub.s32 %s28, 1
      $region12: #{tpu_custom_call.1} parent=5 // pred_fallthru
        _
      %p111 = scmp.lt.s32.totalorder %s28, 2
      // Predicated region
      $region13: #{tpu_custom_call.1} parent=5 // pred_check
        %p112 = pneg %p111
      $region14: #{tpu_custom_call.1} parent=5 // pred_check_branch
        %114 = sbr.rel (%p112) target = $region16
      $region15: #{tpu_custom_call.1} parent=5 // pred_region
        // Predicated region
        $region17: #{tpu_custom_call.1} parent=15 // pred_check
          %p115 = pneg %p62
        $region18: #{tpu_custom_call.1} parent=15 // pred_check_branch
          %117 = sbr.rel (%p115) target = $region20
        $region19: #{tpu_custom_call.1} parent=15 // pred_region
          %s118 = sand.u32 %s52, 1
          %s119 = scalar_lea.sflag [#allocation6], %s118
          %s120 = sand.u32 %s52, 1
          %s121 = smul.addr %s120, 64
          %s122 = scalar_lea.vmem [#allocation5], %s121
          %s123 = smul.u32 2, %s36
          %125 = vsyncadd %s119, 0
          %s126 = smul.addr %s35, 8
          %s127 = sadd.s32 %s123, %s126
          %s128 = smul.addr %s127, 8
          %s129 = scalar_lea.hbm %s2, %s128
          %s130 = sshll.u32 %s129, 4
          %s131 = int_to_ptr.hbm [resolvable:$true] %s130
          %s132 = sshll.u32 %s122, 4
          %s133 = int_to_ptr.vmem [resolvable:$true] %s132
          %138 = dma.hbm_to_vmem [thread:$0]  %s131, 1024, %s133, %s119, 128, 128, 8
        $region20: #{tpu_custom_call.1} parent=15 // pred_fallthru
          _
      $region16: #{tpu_custom_call.1} parent=5 // pred_fallthru
        _
      %p139 = scmp.le.s32.totalorder 1, %s28
      %p140 = scmp.lt.s32.totalorder %s28, 3
      %p141 = pnand %p139, %p140
      %p142 = pneg %p141
      // Predicated region
      $region21: #{tpu_custom_call.1} parent=5 // pred_check
        _
      $region22: #{tpu_custom_call.1} parent=5 // pred_check_branch
        %144 = sbr.rel (%p141) target = $region24
      $region23: #{tpu_custom_call.1} parent=5 // pred_region
        %s145 = ssub.s32 %s28, 1
        %s146 = sand.u32 %s55, 1
        %s147 = scalar_lea.sflag [#allocation6], %s146
        %s148 = sand.u32 %s55, 1
        %s149 = smul.addr %s148, 64
        %s150 = scalar_lea.vmem [#allocation5], %s149
        // Predicated region
        $region25: #{tpu_custom_call.1} parent=23 // pred_check
          %p151 = pneg %p68
        $region26: #{tpu_custom_call.1} parent=23 // pred_check_branch
          %153 = sbr.rel (%p151) target = $region28
        $region27: #{tpu_custom_call.1} parent=23 // pred_region
          %155 = dma.done %s147, 1024
        $region28: #{tpu_custom_call.1} parent=23 // pred_fallthru
          _
        %s156 = sand.u32 %s55, 1
        %s157 = scalar_lea.sflag [#allocation6], %s156
        %s158 = sand.u32 %s55, 1
        %s159 = smul.addr %s158, 64
        %s160 = scalar_lea.vmem [#allocation5], %s159
        %p161 = pneg %p68
        %p162 = pneg %p65
        %p163 = pneg %p96
        %p164 = pneg %p93
        %s165 = sand.u32 %s83, 1
        %s166 = scalar_lea.sflag [#allocation7], %s165
        %s167 = sand.u32 %s83, 1
        %s168 = smul.addr %s167, 64
        %s169 = scalar_lea.vmem [#allocation8], %s168
        %s170 = smul.u32 2, %s38
        %v171 = vld [vmem:[%s150] sm:$0xff]
        %v172 = vld [vmem:[%s150 + $0x8] sm:$0xff]
        %vm175 = vcmask 1040384
        %v176 = vrot.slane %v171, 7
        %v177 = vrot.slane %v172, 7
        %v178 = vsel %vm175, %v176, %v177
        %v181 = vsel %vm175, 0.0, %v176
        %vm182 = vcmask 1046528
        %v183 = vrot.slane %v171, 1
        %v184 = vrot.slane %v172, 1
        %v185 = vsel %vm182, %v183, %v184
        %v188 = vsel %vm182, %v184, 0.0
        %s189 = sld [smem:[#allocation3]]
        %v190 = vstv %s189
        %v191 = vmul.f32 %v181, %v190
        %v192 = vmul.f32 %v178, %v190
        %s193 = sld [smem:[#allocation3 + $0x3]]
        %v194 = vstv %s193
        %v195 = vmul.f32 %v171, %v194
        %v196 = vmul.f32 %v172, %v194
        %v197 = vadd.f32 %v191, %v195
        %v198 = vadd.f32 %v192, %v196
        %s199 = sld [smem:[#allocation3 + $0x6]]
        %v200 = vstv %s199
        %v201 = vmul.f32 %v185, %v200
        %v202 = vmul.f32 %v188, %v200
        %v203 = vadd.f32 %v197, %v201
        %v204 = vadd.f32 %v198, %v202
        %s205 = sld [smem:[#allocation3 + $0x1]]
        %v206 = vstv %s205
        %v207 = vmul.f32 %v181, %v206
        %v208 = vmul.f32 %v178, %v206
        %s209 = sld [smem:[#allocation3 + $0x4]]
        %v210 = vstv %s209
        %v211 = vmul.f32 %v171, %v210
        %v212 = vmul.f32 %v172, %v210
        %v213 = vadd.f32 %v207, %v211
        %v214 = vadd.f32 %v208, %v212
        %s215 = sld [smem:[#allocation3 + $0x7]]
        %v216 = vstv %s215
        %v217 = vmul.f32 %v185, %v216
        %v218 = vmul.f32 %v188, %v216
        %v219 = vadd.f32 %v213, %v217
        %v220 = vadd.f32 %v214, %v218
        %s221 = sld [smem:[#allocation3 + $0x2]]
        %v222 = vstv %s221
        %v223 = vmul.f32 %v181, %v222
        %v224 = vmul.f32 %v178, %v222
        %s225 = sld [smem:[#allocation3 + $0x5]]
        %v226 = vstv %s225
        %v227 = vmul.f32 %v171, %v226
        %v228 = vmul.f32 %v172, %v226
        %v229 = vadd.f32 %v223, %v227
        %v230 = vadd.f32 %v224, %v228
        %s231 = sld [smem:[#allocation3 + $0x8]]
        %v232 = vstv %s231
        %v233 = vmul.f32 %v185, %v232
        %v234 = vmul.f32 %v188, %v232
        %v235 = vadd.f32 %v229, %v233
        %v236 = vadd.f32 %v230, %v234
        %239 = vrot.lane.b32.xlu0 %v203, 1
        %v240 = vpop.permute.xlu0 %239
        %241 = vrot.lane.b32.xlu0 %v204, 1
        %v242 = vpop.permute.xlu0 %241
        %vm245 = vcmask 7168
        %v246 = vsel %vm245, 0.0, %v240
        %v247 = vsel %vm245, 0.0, %v242
        %250 = vrot.lane.b32.xlu0 %v235, 127
        %v251 = vpop.permute.xlu0 %250
        %252 = vrot.lane.b32.xlu0 %v236, 127
        %v253 = vpop.permute.xlu0 %252
        %vm256 = vcmask 1039360
        %v257 = vsel %vm256, %v251, 0.0
        %v258 = vsel %vm256, %v253, 0.0
        %v259 = vadd.f32 %v246, %v219
        %v260 = vadd.f32 %v247, %v220
        %v261 = vadd.f32 %v259, %v257
        %v262 = vadd.f32 %v260, %v258
        %s263 = sld [smem:[#allocation4]]
        %v264 = vstv %s263
        %v265 = vmul.f32 %v261, %v264
        %v266 = vmul.f32 %v262, %v264
        %s267 = sld [smem:[#allocation4 + $0x4]]
        %v268 = vstv %s267
        %v269 = vmul.f32 %v261, %v268
        %v270 = vmul.f32 %v262, %v268
        %s271 = scalar_lea.vmem %s150, 16 [#allocation5]
        %v272 = vld [vmem:[%s271] sm:$0xff]
        %v273 = vld [vmem:[%s271 + $0x8] sm:$0xff]
        %v276 = vrot.slane %v272, 7
        %v277 = vrot.slane %v273, 7
        %v278 = vsel %vm175, %v276, %v277
        %v281 = vsel %vm175, 0.0, %v276
        %v282 = vrot.slane %v272, 1
        %v283 = vrot.slane %v273, 1
        %v284 = vsel %vm182, %v282, %v283
        %v287 = vsel %vm182, %v283, 0.0
        %s288 = sld [smem:[#allocation3 + $0x9]]
        %v289 = vstv %s288
        %v290 = vmul.f32 %v281, %v289
        %v291 = vmul.f32 %v278, %v289
        %s292 = sld [smem:[#allocation3 + $0xc]]
        %v293 = vstv %s292
        %v294 = vmul.f32 %v272, %v293
        %v295 = vmul.f32 %v273, %v293
        %v296 = vadd.f32 %v290, %v294
        %v297 = vadd.f32 %v291, %v295
        %s298 = sld [smem:[#allocation3 + $0xf]]
        %v299 = vstv %s298
        %v300 = vmul.f32 %v284, %v299
        %v301 = vmul.f32 %v287, %v299
        %v302 = vadd.f32 %v296, %v300
        %v303 = vadd.f32 %v297, %v301
        %s304 = sld [smem:[#allocation3 + $0xa]]
        %v305 = vstv %s304
        %v306 = vmul.f32 %v281, %v305
        %v307 = vmul.f32 %v278, %v305
        %s308 = sld [smem:[#allocation3 + $0xd]]
        %v309 = vstv %s308
        %v310 = vmul.f32 %v272, %v309
        %v311 = vmul.f32 %v273, %v309
        %v312 = vadd.f32 %v306, %v310
        %v313 = vadd.f32 %v307, %v311
        %s314 = sld [smem:[#allocation3 + $0x10]]
        %v315 = vstv %s314
        %v316 = vmul.f32 %v284, %v315
        %v317 = vmul.f32 %v287, %v315
        %v318 = vadd.f32 %v312, %v316
        %v319 = vadd.f32 %v313, %v317
        %s320 = sld [smem:[#allocation3 + $0xb]]
        %v321 = vstv %s320
        %v322 = vmul.f32 %v281, %v321
        %v323 = vmul.f32 %v278, %v321
        %s324 = sld [smem:[#allocation3 + $0xe]]
        %v325 = vstv %s324
        %v326 = vmul.f32 %v272, %v325
        %v327 = vmul.f32 %v273, %v325
        %v328 = vadd.f32 %v322, %v326
        %v329 = vadd.f32 %v323, %v327
        %s330 = sld [smem:[#allocation3 + $0x11]]
        %v331 = vstv %s330
        %v332 = vmul.f32 %v284, %v331
        %v333 = vmul.f32 %v287, %v331
        %v334 = vadd.f32 %v328, %v332
        %v335 = vadd.f32 %v329, %v333
        %338 = vrot.lane.b32.xlu0 %v302, 1
        %v339 = vpop.permute.xlu0 %338
        %340 = vrot.lane.b32.xlu0 %v303, 1
        %v341 = vpop.permute.xlu0 %340
        %v344 = vsel %vm245, 0.0, %v339
        %v345 = vsel %vm245, 0.0, %v341
        %348 = vrot.lane.b32.xlu0 %v334, 127
        %v349 = vpop.permute.xlu0 %348
        %350 = vrot.lane.b32.xlu0 %v335, 127
        %v351 = vpop.permute.xlu0 %350
        %v354 = vsel %vm256, %v349, 0.0
        %v355 = vsel %vm256, %v351, 0.0
        %v356 = vadd.f32 %v344, %v318
        %v357 = vadd.f32 %v345, %v319
        %v358 = vadd.f32 %v356, %v354
        %v359 = vadd.f32 %v357, %v355
        %s360 = sld [smem:[#allocation4 + $0x1]]
        %v361 = vstv %s360
        %v362 = vmul.f32 %v358, %v361
        %v363 = vmul.f32 %v359, %v361
        %v364 = vadd.f32 %v265, %v362
        %v365 = vadd.f32 %v266, %v363
        %s366 = sld [smem:[#allocation4 + $0x5]]
        %v367 = vstv %s366
        %v368 = vmul.f32 %v358, %v367
        %v369 = vmul.f32 %v359, %v367
        %v370 = vadd.f32 %v269, %v368
        %v371 = vadd.f32 %v270, %v369
        %s372 = scalar_lea.vmem %s150, 32 [#allocation5]
        %v373 = vld [vmem:[%s372] sm:$0xff]
        %v374 = vld [vmem:[%s372 + $0x8] sm:$0xff]
        %v377 = vrot.slane %v373, 7
        %v378 = vrot.slane %v374, 7
        %v379 = vsel %vm175, %v377, %v378
        %v382 = vsel %vm175, 0.0, %v377
        %v383 = vrot.slane %v373, 1
        %v384 = vrot.slane %v374, 1
        %v385 = vsel %vm182, %v383, %v384
        %v388 = vsel %vm182, %v384, 0.0
        %s389 = sld [smem:[#allocation3 + $0x12]]
        %v390 = vstv %s389
        %v391 = vmul.f32 %v382, %v390
        %v392 = vmul.f32 %v379, %v390
        %s393 = sld [smem:[#allocation3 + $0x15]]
        %v394 = vstv %s393
        %v395 = vmul.f32 %v373, %v394
        %v396 = vmul.f32 %v374, %v394
        %v397 = vadd.f32 %v391, %v395
        %v398 = vadd.f32 %v392, %v396
        %s399 = sld [smem:[#allocation3 + $0x18]]
        %v400 = vstv %s399
        %v401 = vmul.f32 %v385, %v400
        %v402 = vmul.f32 %v388, %v400
        %v403 = vadd.f32 %v397, %v401
        %v404 = vadd.f32 %v398, %v402
        %s405 = sld [smem:[#allocation3 + $0x13]]
        %v406 = vstv %s405
        %v407 = vmul.f32 %v382, %v406
        %v408 = vmul.f32 %v379, %v406
        %s409 = sld [smem:[#allocation3 + $0x16]]
        %v410 = vstv %s409
        %v411 = vmul.f32 %v373, %v410
        %v412 = vmul.f32 %v374, %v410
        %v413 = vadd.f32 %v407, %v411
        %v414 = vadd.f32 %v408, %v412
        %s415 = sld [smem:[#allocation3 + $0x19]]
        %v416 = vstv %s415
        %v417 = vmul.f32 %v385, %v416
        %v418 = vmul.f32 %v388, %v416
        %v419 = vadd.f32 %v413, %v417
        %v420 = vadd.f32 %v414, %v418
        %s421 = sld [smem:[#allocation3 + $0x14]]
        %v422 = vstv %s421
        %v423 = vmul.f32 %v382, %v422
        %v424 = vmul.f32 %v379, %v422
        %s425 = sld [smem:[#allocation3 + $0x17]]
        %v426 = vstv %s425
        %v427 = vmul.f32 %v373, %v426
        %v428 = vmul.f32 %v374, %v426
        %v429 = vadd.f32 %v423, %v427
        %v430 = vadd.f32 %v424, %v428
        %s431 = sld [smem:[#allocation3 + $0x1a]]
        %v432 = vstv %s431
        %v433 = vmul.f32 %v385, %v432
        %v434 = vmul.f32 %v388, %v432
        %v435 = vadd.f32 %v429, %v433
        %v436 = vadd.f32 %v430, %v434
        %439 = vrot.lane.b32.xlu0 %v403, 1
        %v440 = vpop.permute.xlu0 %439
        %441 = vrot.lane.b32.xlu0 %v404, 1
        %v442 = vpop.permute.xlu0 %441
        %v445 = vsel %vm245, 0.0, %v440
        %v446 = vsel %vm245, 0.0, %v442
        %449 = vrot.lane.b32.xlu0 %v435, 127
        %v450 = vpop.permute.xlu0 %449
        %451 = vrot.lane.b32.xlu0 %v436, 127
        %v452 = vpop.permute.xlu0 %451
        %v455 = vsel %vm256, %v450, 0.0
        %v456 = vsel %vm256, %v452, 0.0
        %v457 = vadd.f32 %v445, %v419
        %v458 = vadd.f32 %v446, %v420
        %v459 = vadd.f32 %v457, %v455
        %v460 = vadd.f32 %v458, %v456
        %s461 = sld [smem:[#allocation4 + $0x2]]
        %v462 = vstv %s461
        %v463 = vmul.f32 %v459, %v462
        %v464 = vmul.f32 %v460, %v462
        %v465 = vadd.f32 %v364, %v463
        %v466 = vadd.f32 %v365, %v464
        %s467 = sld [smem:[#allocation4 + $0x6]]
        %v468 = vstv %s467
        %v469 = vmul.f32 %v459, %v468
        %v470 = vmul.f32 %v460, %v468
        %v471 = vadd.f32 %v370, %v469
        %v472 = vadd.f32 %v371, %v470
        %s473 = scalar_lea.vmem %s150, 48 [#allocation5]
        %v474 = vld [vmem:[%s473] sm:$0xff]
        %v475 = vld [vmem:[%s473 + $0x8] sm:$0xff]
        %v478 = vrot.slane %v474, 7
        %v479 = vrot.slane %v475, 7
        %v480 = vsel %vm175, %v478, %v479
        %v483 = vsel %vm175, 0.0, %v478
        %v484 = vrot.slane %v474, 1
        %v485 = vrot.slane %v475, 1
        %v486 = vsel %vm182, %v484, %v485
        %v489 = vsel %vm182, %v485, 0.0
        %s490 = sld [smem:[#allocation3 + $0x1b]]
        %v491 = vstv %s490
        %v492 = vmul.f32 %v483, %v491
        %v493 = vmul.f32 %v480, %v491
        %s494 = sld [smem:[#allocation3 + $0x1e]]
        %v495 = vstv %s494
        %v496 = vmul.f32 %v474, %v495
        %v497 = vmul.f32 %v475, %v495
        %v498 = vadd.f32 %v492, %v496
        %v499 = vadd.f32 %v493, %v497
        %s500 = sld [smem:[#allocation3 + $0x21]]
        %v501 = vstv %s500
        %v502 = vmul.f32 %v486, %v501
        %v503 = vmul.f32 %v489, %v501
        %v504 = vadd.f32 %v498, %v502
        %v505 = vadd.f32 %v499, %v503
        %s506 = sld [smem:[#allocation3 + $0x1c]]
        %v507 = vstv %s506
        %v508 = vmul.f32 %v483, %v507
        %v509 = vmul.f32 %v480, %v507
        %s510 = sld [smem:[#allocation3 + $0x1f]]
        %v511 = vstv %s510
        %v512 = vmul.f32 %v474, %v511
        %v513 = vmul.f32 %v475, %v511
        %v514 = vadd.f32 %v508, %v512
        %v515 = vadd.f32 %v509, %v513
        %s516 = sld [smem:[#allocation3 + $0x22]]
        %v517 = vstv %s516
        %v518 = vmul.f32 %v486, %v517
        %v519 = vmul.f32 %v489, %v517
        %v520 = vadd.f32 %v514, %v518
        %v521 = vadd.f32 %v515, %v519
        %s522 = sld [smem:[#allocation3 + $0x1d]]
        %v523 = vstv %s522
        %v524 = vmul.f32 %v483, %v523
        %v525 = vmul.f32 %v480, %v523
        %s526 = sld [smem:[#allocation3 + $0x20]]
        %v527 = vstv %s526
        %v528 = vmul.f32 %v474, %v527
        %v529 = vmul.f32 %v475, %v527
        %v530 = vadd.f32 %v524, %v528
        %v531 = vadd.f32 %v525, %v529
        %s532 = sld [smem:[#allocation3 + $0x23]]
        %v533 = vstv %s532
        %v534 = vmul.f32 %v486, %v533
        %v535 = vmul.f32 %v489, %v533
        %v536 = vadd.f32 %v530, %v534
        %v537 = vadd.f32 %v531, %v535
        %540 = vrot.lane.b32.xlu0 %v504, 1
        %v541 = vpop.permute.xlu0 %540
        %542 = vrot.lane.b32.xlu0 %v505, 1
        %v543 = vpop.permute.xlu0 %542
        %v546 = vsel %vm245, 0.0, %v541
        %v547 = vsel %vm245, 0.0, %v543
        %550 = vrot.lane.b32.xlu0 %v536, 127
        %v551 = vpop.permute.xlu0 %550
        %552 = vrot.lane.b32.xlu0 %v537, 127
        %v553 = vpop.permute.xlu0 %552
        %v556 = vsel %vm256, %v551, 0.0
        %v557 = vsel %vm256, %v553, 0.0
        %v558 = vadd.f32 %v546, %v520
        %v559 = vadd.f32 %v547, %v521
        %v560 = vadd.f32 %v558, %v556
        %v561 = vadd.f32 %v559, %v557
        %s562 = sld [smem:[#allocation4 + $0x3]]
        %v563 = vstv %s562
        %v564 = vmul.f32 %v560, %v563
        %v565 = vmul.f32 %v561, %v563
        %v566 = vadd.f32 %v465, %v564
        %v567 = vadd.f32 %v466, %v565
        %s568 = sld [smem:[#allocation4 + $0x7]]
        %v569 = vstv %s568
        %v570 = vmul.f32 %v560, %v569
        %v571 = vmul.f32 %v561, %v569
        %v572 = vadd.f32 %v471, %v570
        %v573 = vadd.f32 %v472, %v571
        %576 = vrot.lane.b32.xlu0 %v566, 126
        %v577 = vpop.permute.xlu0 %576
        %578 = vrot.lane.b32.xlu0 %v567, 126
        %v579 = vpop.permute.xlu0 %578
        %582 = vrot.lane.b32.xlu0 %v566, 124
        %v583 = vpop.permute.xlu0 %582
        %584 = vrot.lane.b32.xlu0 %v567, 124
        %v585 = vpop.permute.xlu0 %584
        %588 = vrot.lane.b32.xlu0 %v566, 122
        %v589 = vpop.permute.xlu0 %588
        %590 = vrot.lane.b32.xlu0 %v567, 122
        %v591 = vpop.permute.xlu0 %590
        %594 = vrot.lane.b32.xlu0 %v566, 120
        %v595 = vpop.permute.xlu0 %594
        %596 = vrot.lane.b32.xlu0 %v567, 120
        %v597 = vpop.permute.xlu0 %596
        %600 = vrot.lane.b32.xlu0 %v566, 118
        %v601 = vpop.permute.xlu0 %600
        %602 = vrot.lane.b32.xlu0 %v567, 118
        %v603 = vpop.permute.xlu0 %602
        %606 = vrot.lane.b32.xlu0 %v566, 116
        %v607 = vpop.permute.xlu0 %606
        %608 = vrot.lane.b32.xlu0 %v567, 116
        %v609 = vpop.permute.xlu0 %608
        %612 = vrot.lane.b32.xlu0 %v566, 114
        %v613 = vpop.permute.xlu0 %612
        %614 = vrot.lane.b32.xlu0 %v567, 114
        %v615 = vpop.permute.xlu0 %614
        %618 = vrot.lane.b32.xlu0 %v566, 112
        %v619 = vpop.permute.xlu0 %618
        %620 = vrot.lane.b32.xlu0 %v567, 112
        %v621 = vpop.permute.xlu0 %620
        %624 = vrot.lane.b32.xlu0 %v566, 110
        %v625 = vpop.permute.xlu0 %624
        %626 = vrot.lane.b32.xlu0 %v567, 110
        %v627 = vpop.permute.xlu0 %626
        %630 = vrot.lane.b32.xlu0 %v566, 108
        %v631 = vpop.permute.xlu0 %630
        %632 = vrot.lane.b32.xlu0 %v567, 108
        %v633 = vpop.permute.xlu0 %632
        %636 = vrot.lane.b32.xlu0 %v566, 106
        %v637 = vpop.permute.xlu0 %636
        %638 = vrot.lane.b32.xlu0 %v567, 106
        %v639 = vpop.permute.xlu0 %638
        %642 = vrot.lane.b32.xlu0 %v566, 104
        %v643 = vpop.permute.xlu0 %642
        %644 = vrot.lane.b32.xlu0 %v567, 104
        %v645 = vpop.permute.xlu0 %644
        %648 = vrot.lane.b32.xlu0 %v566, 102
        %v649 = vpop.permute.xlu0 %648
        %650 = vrot.lane.b32.xlu0 %v567, 102
        %v651 = vpop.permute.xlu0 %650
        %654 = vrot.lane.b32.xlu0 %v566, 100
        %v655 = vpop.permute.xlu0 %654
        %656 = vrot.lane.b32.xlu0 %v567, 100
        %v657 = vpop.permute.xlu0 %656
        %660 = vrot.lane.b32.xlu0 %v566, 98
        %v661 = vpop.permute.xlu0 %660
        %662 = vrot.lane.b32.xlu0 %v567, 98
        %v663 = vpop.permute.xlu0 %662
        %666 = vrot.lane.b32.xlu0 %v566, 96
        %v667 = vpop.permute.xlu0 %666
        %668 = vrot.lane.b32.xlu0 %v567, 96
        %v669 = vpop.permute.xlu0 %668
        %672 = vrot.lane.b32.xlu0 %v566, 94
        %v673 = vpop.permute.xlu0 %672
        %674 = vrot.lane.b32.xlu0 %v567, 94
        %v675 = vpop.permute.xlu0 %674
        %678 = vrot.lane.b32.xlu0 %v566, 92
        %v679 = vpop.permute.xlu0 %678
        %680 = vrot.lane.b32.xlu0 %v567, 92
        %v681 = vpop.permute.xlu0 %680
        %684 = vrot.lane.b32.xlu0 %v566, 90
        %v685 = vpop.permute.xlu0 %684
        %686 = vrot.lane.b32.xlu0 %v567, 90
        %v687 = vpop.permute.xlu0 %686
        %690 = vrot.lane.b32.xlu0 %v566, 88
        %v691 = vpop.permute.xlu0 %690
        %692 = vrot.lane.b32.xlu0 %v567, 88
        %v693 = vpop.permute.xlu0 %692
        %696 = vrot.lane.b32.xlu0 %v566, 86
        %v697 = vpop.permute.xlu0 %696
        %698 = vrot.lane.b32.xlu0 %v567, 86
        %v699 = vpop.permute.xlu0 %698
        %702 = vrot.lane.b32.xlu0 %v566, 84
        %v703 = vpop.permute.xlu0 %702
        %704 = vrot.lane.b32.xlu0 %v567, 84
        %v705 = vpop.permute.xlu0 %704
        %708 = vrot.lane.b32.xlu0 %v566, 82
        %v709 = vpop.permute.xlu0 %708
        %710 = vrot.lane.b32.xlu0 %v567, 82
        %v711 = vpop.permute.xlu0 %710
        %714 = vrot.lane.b32.xlu0 %v566, 80
        %v715 = vpop.permute.xlu0 %714
        %716 = vrot.lane.b32.xlu0 %v567, 80
        %v717 = vpop.permute.xlu0 %716
        %720 = vrot.lane.b32.xlu0 %v566, 78
        %v721 = vpop.permute.xlu0 %720
        %722 = vrot.lane.b32.xlu0 %v567, 78
        %v723 = vpop.permute.xlu0 %722
        %726 = vrot.lane.b32.xlu0 %v566, 76
        %v727 = vpop.permute.xlu0 %726
        %728 = vrot.lane.b32.xlu0 %v567, 76
        %v729 = vpop.permute.xlu0 %728
        %732 = vrot.lane.b32.xlu0 %v566, 74
        %v733 = vpop.permute.xlu0 %732
        %734 = vrot.lane.b32.xlu0 %v567, 74
        %v735 = vpop.permute.xlu0 %734
        %738 = vrot.lane.b32.xlu0 %v566, 72
        %v739 = vpop.permute.xlu0 %738
        %740 = vrot.lane.b32.xlu0 %v567, 72
        %v741 = vpop.permute.xlu0 %740
        %744 = vrot.lane.b32.xlu0 %v566, 70
        %v745 = vpop.permute.xlu0 %744
        %746 = vrot.lane.b32.xlu0 %v567, 70
        %v747 = vpop.permute.xlu0 %746
        %750 = vrot.lane.b32.xlu0 %v566, 68
        %v751 = vpop.permute.xlu0 %750
        %752 = vrot.lane.b32.xlu0 %v567, 68
        %v753 = vpop.permute.xlu0 %752
        %756 = vrot.lane.b32.xlu0 %v566, 66
        %v757 = vpop.permute.xlu0 %756
        %758 = vrot.lane.b32.xlu0 %v567, 66
        %v759 = vpop.permute.xlu0 %758
        %762 = vrot.lane.b32.xlu0 %v566, 64
        %v763 = vpop.permute.xlu0 %762
        %764 = vrot.lane.b32.xlu0 %v567, 64
        %v765 = vpop.permute.xlu0 %764
        %768 = vrot.lane.b32.xlu0 %v566, 62
        %v769 = vpop.permute.xlu0 %768
        %770 = vrot.lane.b32.xlu0 %v567, 62
        %v771 = vpop.permute.xlu0 %770
        %774 = vrot.lane.b32.xlu0 %v566, 60
        %v775 = vpop.permute.xlu0 %774
        %776 = vrot.lane.b32.xlu0 %v567, 60
        %v777 = vpop.permute.xlu0 %776
        %780 = vrot.lane.b32.xlu0 %v566, 58
        %v781 = vpop.permute.xlu0 %780
        %782 = vrot.lane.b32.xlu0 %v567, 58
        %v783 = vpop.permute.xlu0 %782
        %786 = vrot.lane.b32.xlu0 %v566, 56
        %v787 = vpop.permute.xlu0 %786
        %788 = vrot.lane.b32.xlu0 %v567, 56
        %v789 = vpop.permute.xlu0 %788
        %792 = vrot.lane.b32.xlu0 %v566, 54
        %v793 = vpop.permute.xlu0 %792
        %794 = vrot.lane.b32.xlu0 %v567, 54
        %v795 = vpop.permute.xlu0 %794
        %798 = vrot.lane.b32.xlu0 %v566, 52
        %v799 = vpop.permute.xlu0 %798
        %800 = vrot.lane.b32.xlu0 %v567, 52
        %v801 = vpop.permute.xlu0 %800
        %804 = vrot.lane.b32.xlu0 %v566, 50
        %v805 = vpop.permute.xlu0 %804
        %806 = vrot.lane.b32.xlu0 %v567, 50
        %v807 = vpop.permute.xlu0 %806
        %810 = vrot.lane.b32.xlu0 %v566, 48
        %v811 = vpop.permute.xlu0 %810
        %812 = vrot.lane.b32.xlu0 %v567, 48
        %v813 = vpop.permute.xlu0 %812
        %816 = vrot.lane.b32.xlu0 %v566, 46
        %v817 = vpop.permute.xlu0 %816
        %818 = vrot.lane.b32.xlu0 %v567, 46
        %v819 = vpop.permute.xlu0 %818
        %822 = vrot.lane.b32.xlu0 %v566, 44
        %v823 = vpop.permute.xlu0 %822
        %824 = vrot.lane.b32.xlu0 %v567, 44
        %v825 = vpop.permute.xlu0 %824
        %828 = vrot.lane.b32.xlu0 %v566, 42
        %v829 = vpop.permute.xlu0 %828
        %830 = vrot.lane.b32.xlu0 %v567, 42
        %v831 = vpop.permute.xlu0 %830
        %834 = vrot.lane.b32.xlu0 %v566, 40
        %v835 = vpop.permute.xlu0 %834
        %836 = vrot.lane.b32.xlu0 %v567, 40
        %v837 = vpop.permute.xlu0 %836
        %840 = vrot.lane.b32.xlu0 %v566, 38
        %v841 = vpop.permute.xlu0 %840
        %842 = vrot.lane.b32.xlu0 %v567, 38
        %v843 = vpop.permute.xlu0 %842
        %846 = vrot.lane.b32.xlu0 %v566, 36
        %v847 = vpop.permute.xlu0 %846
        %848 = vrot.lane.b32.xlu0 %v567, 36
        %v849 = vpop.permute.xlu0 %848
        %852 = vrot.lane.b32.xlu0 %v566, 34
        %v853 = vpop.permute.xlu0 %852
        %854 = vrot.lane.b32.xlu0 %v567, 34
        %v855 = vpop.permute.xlu0 %854
        %858 = vrot.lane.b32.xlu0 %v566, 32
        %v859 = vpop.permute.xlu0 %858
        %860 = vrot.lane.b32.xlu0 %v567, 32
        %v861 = vpop.permute.xlu0 %860
        %864 = vrot.lane.b32.xlu0 %v566, 30
        %v865 = vpop.permute.xlu0 %864
        %866 = vrot.lane.b32.xlu0 %v567, 30
        %v867 = vpop.permute.xlu0 %866
        %870 = vrot.lane.b32.xlu0 %v566, 28
        %v871 = vpop.permute.xlu0 %870
        %872 = vrot.lane.b32.xlu0 %v567, 28
        %v873 = vpop.permute.xlu0 %872
        %876 = vrot.lane.b32.xlu0 %v566, 26
        %v877 = vpop.permute.xlu0 %876
        %878 = vrot.lane.b32.xlu0 %v567, 26
        %v879 = vpop.permute.xlu0 %878
        %882 = vrot.lane.b32.xlu0 %v566, 24
        %v883 = vpop.permute.xlu0 %882
        %884 = vrot.lane.b32.xlu0 %v567, 24
        %v885 = vpop.permute.xlu0 %884
        %888 = vrot.lane.b32.xlu0 %v566, 22
        %v889 = vpop.permute.xlu0 %888
        %890 = vrot.lane.b32.xlu0 %v567, 22
        %v891 = vpop.permute.xlu0 %890
        %894 = vrot.lane.b32.xlu0 %v566, 20
        %v895 = vpop.permute.xlu0 %894
        %896 = vrot.lane.b32.xlu0 %v567, 20
        %v897 = vpop.permute.xlu0 %896
        %900 = vrot.lane.b32.xlu0 %v566, 18
        %v901 = vpop.permute.xlu0 %900
        %902 = vrot.lane.b32.xlu0 %v567, 18
        %v903 = vpop.permute.xlu0 %902
        %906 = vrot.lane.b32.xlu0 %v566, 16
        %v907 = vpop.permute.xlu0 %906
        %908 = vrot.lane.b32.xlu0 %v567, 16
        %v909 = vpop.permute.xlu0 %908
        %912 = vrot.lane.b32.xlu0 %v566, 14
        %v913 = vpop.permute.xlu0 %912
        %914 = vrot.lane.b32.xlu0 %v567, 14
        %v915 = vpop.permute.xlu0 %914
        %918 = vrot.lane.b32.xlu0 %v566, 12
        %v919 = vpop.permute.xlu0 %918
        %920 = vrot.lane.b32.xlu0 %v567, 12
        %v921 = vpop.permute.xlu0 %920
        %924 = vrot.lane.b32.xlu0 %v566, 10
        %v925 = vpop.permute.xlu0 %924
        %926 = vrot.lane.b32.xlu0 %v567, 10
        %v927 = vpop.permute.xlu0 %926
        %930 = vrot.lane.b32.xlu0 %v566, 8
        %v931 = vpop.permute.xlu0 %930
        %932 = vrot.lane.b32.xlu0 %v567, 8
        %v933 = vpop.permute.xlu0 %932
        %936 = vrot.lane.b32.xlu0 %v566, 6
        %v937 = vpop.permute.xlu0 %936
        %938 = vrot.lane.b32.xlu0 %v567, 6
        %v939 = vpop.permute.xlu0 %938
        %942 = vrot.lane.b32.xlu0 %v566, 4
        %v943 = vpop.permute.xlu0 %942
        %944 = vrot.lane.b32.xlu0 %v567, 4
        %v945 = vpop.permute.xlu0 %944
        %948 = vrot.lane.b32.xlu0 %v566, 2
        %v949 = vpop.permute.xlu0 %948
        %950 = vrot.lane.b32.xlu0 %v567, 2
        %v951 = vpop.permute.xlu0 %950
        %v954 = vrot.slane %v583, 4
        %vm955 = vcmask 1047556
        %v956 = vsel %vm955, %v954, %v566
        %v957 = vrot.slane %v566, 4
        %v958 = vsel %vm955, %v583, %v957
        %v960 = vunpack.c.l.s4 1983009808
        %v961 = vunpack.c.0.s8 %v960
        %v962 = vperm.slane %v956, %v961
        %v964 = vunpack.c.l.s4 1983009808
        %v965 = vunpack.c.0.s8 %v964
        %v966 = vperm.slane %v958, %v965
        %v967 = vrot.slane %v589, 4
        %v968 = vsel %vm955, %v967, %v577
        %v969 = vrot.slane %v577, 4
        %v970 = vsel %vm955, %v589, %v969
        %v972 = vunpack.c.l.s4 1983009808
        %v973 = vunpack.c.0.s8 %v972
        %v974 = vperm.slane %v968, %v973
        %v976 = vunpack.c.l.s4 1983009808
        %v977 = vunpack.c.0.s8 %v976
        %v978 = vperm.slane %v970, %v977
        %v979 = vrot.slane %v607, 4
        %v980 = vsel %vm955, %v979, %v595
        %v981 = vrot.slane %v595, 4
        %v982 = vsel %vm955, %v607, %v981
        %v984 = vunpack.c.l.s4 1983009808
        %v985 = vunpack.c.0.s8 %v984
        %v986 = vperm.slane %v980, %v985
        %v988 = vunpack.c.l.s4 1983009808
        %v989 = vunpack.c.0.s8 %v988
        %v990 = vperm.slane %v982, %v989
        %v991 = vrot.slane %v613, 4
        %v992 = vsel %vm955, %v991, %v601
        %v993 = vrot.slane %v601, 4
        %v994 = vsel %vm955, %v613, %v993
        %v996 = vunpack.c.l.s4 1983009808
        %v997 = vunpack.c.0.s8 %v996
        %v998 = vperm.slane %v992, %v997
        %v1000 = vunpack.c.l.s4 1983009808
        %v1001 = vunpack.c.0.s8 %v1000
        %v1002 = vperm.slane %v994, %v1001
        %v1003 = vrot.slane %v974, 4
        %v1004 = vsel %vm955, %v1003, %v962
        %v1005 = vrot.slane %v962, 4
        %v1006 = vsel %vm955, %v974, %v1005
        %v1008 = vunpack.c.l.s4 1934713408
        %v1009 = vunpack.c.0.s8 %v1008
        %v1010 = vperm.slane %v1004, %v1009
        %v1012 = vunpack.c.l.s4 1934713408
        %v1013 = vunpack.c.0.s8 %v1012
        %v1014 = vperm.slane %v1006, %v1013
        %v1015 = vrot.slane %v978, 4
        %v1016 = vsel %vm955, %v1015, %v966
        %v1017 = vrot.slane %v966, 4
        %v1018 = vsel %vm955, %v978, %v1017
        %v1020 = vunpack.c.l.s4 1934713408
        %v1021 = vunpack.c.0.s8 %v1020
        %v1022 = vperm.slane %v1016, %v1021
        %v1024 = vunpack.c.l.s4 1934713408
        %v1025 = vunpack.c.0.s8 %v1024
        %v1026 = vperm.slane %v1018, %v1025
        %v1027 = vrot.slane %v998, 4
        %v1028 = vsel %vm955, %v1027, %v986
        %v1029 = vrot.slane %v986, 4
        %v1030 = vsel %vm955, %v998, %v1029
        %v1032 = vunpack.c.l.s4 1934713408
        %v1033 = vunpack.c.0.s8 %v1032
        %v1034 = vperm.slane %v1028, %v1033
        %v1036 = vunpack.c.l.s4 1934713408
        %v1037 = vunpack.c.0.s8 %v1036
        %v1038 = vperm.slane %v1030, %v1037
        %v1039 = vrot.slane %v1002, 4
        %v1040 = vsel %vm955, %v1039, %v990
        %v1041 = vrot.slane %v990, 4
        %v1042 = vsel %vm955, %v1002, %v1041
        %v1044 = vunpack.c.l.s4 1934713408
        %v1045 = vunpack.c.0.s8 %v1044
        %v1046 = vperm.slane %v1040, %v1045
        %v1048 = vunpack.c.l.s4 1934713408
        %v1049 = vunpack.c.0.s8 %v1048
        %v1050 = vperm.slane %v1042, %v1049
        %v1051 = vrot.slane %v1034, 4
        %v1052 = vsel %vm955, %v1051, %v1010
        %v1053 = vrot.slane %v1010, 4
        %v1054 = vsel %vm955, %v1034, %v1053
        %v1055 = vrot.slane %v1038, 4
        %v1056 = vsel %vm955, %v1055, %v1014
        %v1057 = vrot.slane %v1014, 4
        %v1058 = vsel %vm955, %v1038, %v1057
        %v1059 = vrot.slane %v1046, 4
        %v1060 = vsel %vm955, %v1059, %v1022
        %v1061 = vrot.slane %v1022, 4
        %v1062 = vsel %vm955, %v1046, %v1061
        %v1063 = vrot.slane %v1050, 4
        %v1064 = vsel %vm955, %v1063, %v1026
        %v1065 = vrot.slane %v1026, 4
        %v1066 = vsel %vm955, %v1050, %v1065
        %v1067 = vrot.slane %v631, 4
        %v1068 = vsel %vm955, %v1067, %v619
        %v1069 = vrot.slane %v619, 4
        %v1070 = vsel %vm955, %v631, %v1069
        %v1072 = vunpack.c.l.s4 1983009808
        %v1073 = vunpack.c.0.s8 %v1072
        %v1074 = vperm.slane %v1068, %v1073
        %v1076 = vunpack.c.l.s4 1983009808
        %v1077 = vunpack.c.0.s8 %v1076
        %v1078 = vperm.slane %v1070, %v1077
        %v1079 = vrot.slane %v637, 4
        %v1080 = vsel %vm955, %v1079, %v625
        %v1081 = vrot.slane %v625, 4
        %v1082 = vsel %vm955, %v637, %v1081
        %v1084 = vunpack.c.l.s4 1983009808
        %v1085 = vunpack.c.0.s8 %v1084
        %v1086 = vperm.slane %v1080, %v1085
        %v1088 = vunpack.c.l.s4 1983009808
        %v1089 = vunpack.c.0.s8 %v1088
        %v1090 = vperm.slane %v1082, %v1089
        %v1091 = vrot.slane %v655, 4
        %v1092 = vsel %vm955, %v1091, %v643
        %v1093 = vrot.slane %v643, 4
        %v1094 = vsel %vm955, %v655, %v1093
        %v1096 = vunpack.c.l.s4 1983009808
        %v1097 = vunpack.c.0.s8 %v1096
        %v1098 = vperm.slane %v1092, %v1097
        %v1100 = vunpack.c.l.s4 1983009808
        %v1101 = vunpack.c.0.s8 %v1100
        %v1102 = vperm.slane %v1094, %v1101
        %v1103 = vrot.slane %v661, 4
        %v1104 = vsel %vm955, %v1103, %v649
        %v1105 = vrot.slane %v649, 4
        %v1106 = vsel %vm955, %v661, %v1105
        %v1108 = vunpack.c.l.s4 1983009808
        %v1109 = vunpack.c.0.s8 %v1108
        %v1110 = vperm.slane %v1104, %v1109
        %v1112 = vunpack.c.l.s4 1983009808
        %v1113 = vunpack.c.0.s8 %v1112
        %v1114 = vperm.slane %v1106, %v1113
        %v1115 = vrot.slane %v1086, 4
        %v1116 = vsel %vm955, %v1115, %v1074
        %v1117 = vrot.slane %v1074, 4
        %v1118 = vsel %vm955, %v1086, %v1117
        %v1120 = vunpack.c.l.s4 1934713408
        %v1121 = vunpack.c.0.s8 %v1120
        %v1122 = vperm.slane %v1116, %v1121
        %v1124 = vunpack.c.l.s4 1934713408
        %v1125 = vunpack.c.0.s8 %v1124
        %v1126 = vperm.slane %v1118, %v1125
        %v1127 = vrot.slane %v1090, 4
        %v1128 = vsel %vm955, %v1127, %v1078
        %v1129 = vrot.slane %v1078, 4
        %v1130 = vsel %vm955, %v1090, %v1129
        %v1132 = vunpack.c.l.s4 1934713408
        %v1133 = vunpack.c.0.s8 %v1132
        %v1134 = vperm.slane %v1128, %v1133
        %v1136 = vunpack.c.l.s4 1934713408
        %v1137 = vunpack.c.0.s8 %v1136
        %v1138 = vperm.slane %v1130, %v1137
        %v1139 = vrot.slane %v1110, 4
        %v1140 = vsel %vm955, %v1139, %v1098
        %v1141 = vrot.slane %v1098, 4
        %v1142 = vsel %vm955, %v1110, %v1141
        %v1144 = vunpack.c.l.s4 1934713408
        %v1145 = vunpack.c.0.s8 %v1144
        %v1146 = vperm.slane %v1140, %v1145
        %v1148 = vunpack.c.l.s4 1934713408
        %v1149 = vunpack.c.0.s8 %v1148
        %v1150 = vperm.slane %v1142, %v1149
        %v1151 = vrot.slane %v1114, 4
        %v1152 = vsel %vm955, %v1151, %v1102
        %v1153 = vrot.slane %v1102, 4
        %v1154 = vsel %vm955, %v1114, %v1153
        %v1156 = vunpack.c.l.s4 1934713408
        %v1157 = vunpack.c.0.s8 %v1156
        %v1158 = vperm.slane %v1152, %v1157
        %v1160 = vunpack.c.l.s4 1934713408
        %v1161 = vunpack.c.0.s8 %v1160
        %v1162 = vperm.slane %v1154, %v1161
        %v1163 = vrot.slane %v1146, 4
        %v1164 = vsel %vm955, %v1163, %v1122
        %v1165 = vrot.slane %v1122, 4
        %v1166 = vsel %vm955, %v1146, %v1165
        %v1167 = vrot.slane %v1150, 4
        %v1168 = vsel %vm955, %v1167, %v1126
        %v1169 = vrot.slane %v1126, 4
        %v1170 = vsel %vm955, %v1150, %v1169
        %v1171 = vrot.slane %v1158, 4
        %v1172 = vsel %vm955, %v1171, %v1134
        %v1173 = vrot.slane %v1134, 4
        %v1174 = vsel %vm955, %v1158, %v1173
        %v1175 = vrot.slane %v1162, 4
        %v1176 = vsel %vm955, %v1175, %v1138
        %v1177 = vrot.slane %v1138, 4
        %v1178 = vsel %vm955, %v1162, %v1177
        %v1179 = vrot.slane %v679, 4
        %v1180 = vsel %vm955, %v1179, %v667
        %v1181 = vrot.slane %v667, 4
        %v1182 = vsel %vm955, %v679, %v1181
        %v1184 = vunpack.c.l.s4 1983009808
        %v1185 = vunpack.c.0.s8 %v1184
        %v1186 = vperm.slane %v1180, %v1185
        %v1188 = vunpack.c.l.s4 1983009808
        %v1189 = vunpack.c.0.s8 %v1188
        %v1190 = vperm.slane %v1182, %v1189
        %v1191 = vrot.slane %v685, 4
        %v1192 = vsel %vm955, %v1191, %v673
        %v1193 = vrot.slane %v673, 4
        %v1194 = vsel %vm955, %v685, %v1193
        %v1196 = vunpack.c.l.s4 1983009808
        %v1197 = vunpack.c.0.s8 %v1196
        %v1198 = vperm.slane %v1192, %v1197
        %v1200 = vunpack.c.l.s4 1983009808
        %v1201 = vunpack.c.0.s8 %v1200
        %v1202 = vperm.slane %v1194, %v1201
        %v1203 = vrot.slane %v703, 4
        %v1204 = vsel %vm955, %v1203, %v691
        %v1205 = vrot.slane %v691, 4
        %v1206 = vsel %vm955, %v703, %v1205
        %v1208 = vunpack.c.l.s4 1983009808
        %v1209 = vunpack.c.0.s8 %v1208
        %v1210 = vperm.slane %v1204, %v1209
        %v1212 = vunpack.c.l.s4 1983009808
        %v1213 = vunpack.c.0.s8 %v1212
        %v1214 = vperm.slane %v1206, %v1213
        %v1215 = vrot.slane %v709, 4
        %v1216 = vsel %vm955, %v1215, %v697
        %v1217 = vrot.slane %v697, 4
        %v1218 = vsel %vm955, %v709, %v1217
        %v1220 = vunpack.c.l.s4 1983009808
        %v1221 = vunpack.c.0.s8 %v1220
        %v1222 = vperm.slane %v1216, %v1221
        %v1224 = vunpack.c.l.s4 1983009808
        %v1225 = vunpack.c.0.s8 %v1224
        %v1226 = vperm.slane %v1218, %v1225
        %v1227 = vrot.slane %v1198, 4
        %v1228 = vsel %vm955, %v1227, %v1186
        %v1229 = vrot.slane %v1186, 4
        %v1230 = vsel %vm955, %v1198, %v1229
        %v1232 = vunpack.c.l.s4 1934713408
        %v1233 = vunpack.c.0.s8 %v1232
        %v1234 = vperm.slane %v1228, %v1233
        %v1236 = vunpack.c.l.s4 1934713408
        %v1237 = vunpack.c.0.s8 %v1236
        %v1238 = vperm.slane %v1230, %v1237
        %v1239 = vrot.slane %v1202, 4
        %v1240 = vsel %vm955, %v1239, %v1190
        %v1241 = vrot.slane %v1190, 4
        %v1242 = vsel %vm955, %v1202, %v1241
        %v1244 = vunpack.c.l.s4 1934713408
        %v1245 = vunpack.c.0.s8 %v1244
        %v1246 = vperm.slane %v1240, %v1245
        %v1248 = vunpack.c.l.s4 1934713408
        %v1249 = vunpack.c.0.s8 %v1248
        %v1250 = vperm.slane %v1242, %v1249
        %v1251 = vrot.slane %v1222, 4
        %v1252 = vsel %vm955, %v1251, %v1210
        %v1253 = vrot.slane %v1210, 4
        %v1254 = vsel %vm955, %v1222, %v1253
        %v1256 = vunpack.c.l.s4 1934713408
        %v1257 = vunpack.c.0.s8 %v1256
        %v1258 = vperm.slane %v1252, %v1257
        %v1260 = vunpack.c.l.s4 1934713408
        %v1261 = vunpack.c.0.s8 %v1260
        %v1262 = vperm.slane %v1254, %v1261
        %v1263 = vrot.slane %v1226, 4
        %v1264 = vsel %vm955, %v1263, %v1214
        %v1265 = vrot.slane %v1214, 4
        %v1266 = vsel %vm955, %v1226, %v1265
        %v1268 = vunpack.c.l.s4 1934713408
        %v1269 = vunpack.c.0.s8 %v1268
        %v1270 = vperm.slane %v1264, %v1269
        %v1272 = vunpack.c.l.s4 1934713408
        %v1273 = vunpack.c.0.s8 %v1272
        %v1274 = vperm.slane %v1266, %v1273
        %v1275 = vrot.slane %v1258, 4
        %v1276 = vsel %vm955, %v1275, %v1234
        %v1277 = vrot.slane %v1234, 4
        %v1278 = vsel %vm955, %v1258, %v1277
        %v1279 = vrot.slane %v1262, 4
        %v1280 = vsel %vm955, %v1279, %v1238
        %v1281 = vrot.slane %v1238, 4
        %v1282 = vsel %vm955, %v1262, %v1281
        %v1283 = vrot.slane %v1270, 4
        %v1284 = vsel %vm955, %v1283, %v1246
        %v1285 = vrot.slane %v1246, 4
        %v1286 = vsel %vm955, %v1270, %v1285
        %v1287 = vrot.slane %v1274, 4
        %v1288 = vsel %vm955, %v1287, %v1250
        %v1289 = vrot.slane %v1250, 4
        %v1290 = vsel %vm955, %v1274, %v1289
        %v1291 = vrot.slane %v727, 4
        %v1292 = vsel %vm955, %v1291, %v715
        %v1293 = vrot.slane %v715, 4
        %v1294 = vsel %vm955, %v727, %v1293
        %v1296 = vunpack.c.l.s4 1983009808
        %v1297 = vunpack.c.0.s8 %v1296
        %v1298 = vperm.slane %v1292, %v1297
        %v1300 = vunpack.c.l.s4 1983009808
        %v1301 = vunpack.c.0.s8 %v1300
        %v1302 = vperm.slane %v1294, %v1301
        %v1303 = vrot.slane %v733, 4
        %v1304 = vsel %vm955, %v1303, %v721
        %v1305 = vrot.slane %v721, 4
        %v1306 = vsel %vm955, %v733, %v1305
        %v1308 = vunpack.c.l.s4 1983009808
        %v1309 = vunpack.c.0.s8 %v1308
        %v1310 = vperm.slane %v1304, %v1309
        %v1312 = vunpack.c.l.s4 1983009808
        %v1313 = vunpack.c.0.s8 %v1312
        %v1314 = vperm.slane %v1306, %v1313
        %v1315 = vrot.slane %v751, 4
        %v1316 = vsel %vm955, %v1315, %v739
        %v1317 = vrot.slane %v739, 4
        %v1318 = vsel %vm955, %v751, %v1317
        %v1320 = vunpack.c.l.s4 1983009808
        %v1321 = vunpack.c.0.s8 %v1320
        %v1322 = vperm.slane %v1316, %v1321
        %v1324 = vunpack.c.l.s4 1983009808
        %v1325 = vunpack.c.0.s8 %v1324
        %v1326 = vperm.slane %v1318, %v1325
        %v1327 = vrot.slane %v757, 4
        %v1328 = vsel %vm955, %v1327, %v745
        %v1329 = vrot.slane %v745, 4
        %v1330 = vsel %vm955, %v757, %v1329
        %v1332 = vunpack.c.l.s4 1983009808
        %v1333 = vunpack.c.0.s8 %v1332
        %v1334 = vperm.slane %v1328, %v1333
        %v1336 = vunpack.c.l.s4 1983009808
        %v1337 = vunpack.c.0.s8 %v1336
        %v1338 = vperm.slane %v1330, %v1337
        %v1339 = vrot.slane %v1310, 4
        %v1340 = vsel %vm955, %v1339, %v1298
        %v1341 = vrot.slane %v1298, 4
        %v1342 = vsel %vm955, %v1310, %v1341
        %v1344 = vunpack.c.l.s4 1934713408
        %v1345 = vunpack.c.0.s8 %v1344
        %v1346 = vperm.slane %v1340, %v1345
        %v1348 = vunpack.c.l.s4 1934713408
        %v1349 = vunpack.c.0.s8 %v1348
        %v1350 = vperm.slane %v1342, %v1349
        %v1351 = vrot.slane %v1314, 4
        %v1352 = vsel %vm955, %v1351, %v1302
        %v1353 = vrot.slane %v1302, 4
        %v1354 = vsel %vm955, %v1314, %v1353
        %v1356 = vunpack.c.l.s4 1934713408
        %v1357 = vunpack.c.0.s8 %v1356
        %v1358 = vperm.slane %v1352, %v1357
        %v1360 = vunpack.c.l.s4 1934713408
        %v1361 = vunpack.c.0.s8 %v1360
        %v1362 = vperm.slane %v1354, %v1361
        %v1363 = vrot.slane %v1334, 4
        %v1364 = vsel %vm955, %v1363, %v1322
        %v1365 = vrot.slane %v1322, 4
        %v1366 = vsel %vm955, %v1334, %v1365
        %v1368 = vunpack.c.l.s4 1934713408
        %v1369 = vunpack.c.0.s8 %v1368
        %v1370 = vperm.slane %v1364, %v1369
        %v1372 = vunpack.c.l.s4 1934713408
        %v1373 = vunpack.c.0.s8 %v1372
        %v1374 = vperm.slane %v1366, %v1373
        %v1375 = vrot.slane %v1338, 4
        %v1376 = vsel %vm955, %v1375, %v1326
        %v1377 = vrot.slane %v1326, 4
        %v1378 = vsel %vm955, %v1338, %v1377
        %v1380 = vunpack.c.l.s4 1934713408
        %v1381 = vunpack.c.0.s8 %v1380
        %v1382 = vperm.slane %v1376, %v1381
        %v1384 = vunpack.c.l.s4 1934713408
        %v1385 = vunpack.c.0.s8 %v1384
        %v1386 = vperm.slane %v1378, %v1385
        %v1387 = vrot.slane %v1370, 4
        %v1388 = vsel %vm955, %v1387, %v1346
        %v1389 = vrot.slane %v1346, 4
        %v1390 = vsel %vm955, %v1370, %v1389
        %v1391 = vrot.slane %v1374, 4
        %v1392 = vsel %vm955, %v1391, %v1350
        %v1393 = vrot.slane %v1350, 4
        %v1394 = vsel %vm955, %v1374, %v1393
        %v1395 = vrot.slane %v1382, 4
        %v1396 = vsel %vm955, %v1395, %v1358
        %v1397 = vrot.slane %v1358, 4
        %v1398 = vsel %vm955, %v1382, %v1397
        %v1399 = vrot.slane %v1386, 4
        %v1400 = vsel %vm955, %v1399, %v1362
        %v1401 = vrot.slane %v1362, 4
        %v1402 = vsel %vm955, %v1386, %v1401
        %v1403 = vrot.slane %v775, 4
        %v1404 = vsel %vm955, %v1403, %v763
        %v1405 = vrot.slane %v763, 4
        %v1406 = vsel %vm955, %v775, %v1405
        %v1408 = vunpack.c.l.s4 1983009808
        %v1409 = vunpack.c.0.s8 %v1408
        %v1410 = vperm.slane %v1404, %v1409
        %v1412 = vunpack.c.l.s4 1983009808
        %v1413 = vunpack.c.0.s8 %v1412
        %v1414 = vperm.slane %v1406, %v1413
        %v1415 = vrot.slane %v781, 4
        %v1416 = vsel %vm955, %v1415, %v769
        %v1417 = vrot.slane %v769, 4
        %v1418 = vsel %vm955, %v781, %v1417
        %v1420 = vunpack.c.l.s4 1983009808
        %v1421 = vunpack.c.0.s8 %v1420
        %v1422 = vperm.slane %v1416, %v1421
        %v1424 = vunpack.c.l.s4 1983009808
        %v1425 = vunpack.c.0.s8 %v1424
        %v1426 = vperm.slane %v1418, %v1425
        %v1427 = vrot.slane %v799, 4
        %v1428 = vsel %vm955, %v1427, %v787
        %v1429 = vrot.slane %v787, 4
        %v1430 = vsel %vm955, %v799, %v1429
        %v1432 = vunpack.c.l.s4 1983009808
        %v1433 = vunpack.c.0.s8 %v1432
        %v1434 = vperm.slane %v1428, %v1433
        %v1436 = vunpack.c.l.s4 1983009808
        %v1437 = vunpack.c.0.s8 %v1436
        %v1438 = vperm.slane %v1430, %v1437
        %v1439 = vrot.slane %v805, 4
        %v1440 = vsel %vm955, %v1439, %v793
        %v1441 = vrot.slane %v793, 4
        %v1442 = vsel %vm955, %v805, %v1441
        %v1444 = vunpack.c.l.s4 1983009808
        %v1445 = vunpack.c.0.s8 %v1444
        %v1446 = vperm.slane %v1440, %v1445
        %v1448 = vunpack.c.l.s4 1983009808
        %v1449 = vunpack.c.0.s8 %v1448
        %v1450 = vperm.slane %v1442, %v1449
        %v1451 = vrot.slane %v1422, 4
        %v1452 = vsel %vm955, %v1451, %v1410
        %v1453 = vrot.slane %v1410, 4
        %v1454 = vsel %vm955, %v1422, %v1453
        %v1456 = vunpack.c.l.s4 1934713408
        %v1457 = vunpack.c.0.s8 %v1456
        %v1458 = vperm.slane %v1452, %v1457
        %v1460 = vunpack.c.l.s4 1934713408
        %v1461 = vunpack.c.0.s8 %v1460
        %v1462 = vperm.slane %v1454, %v1461
        %v1463 = vrot.slane %v1426, 4
        %v1464 = vsel %vm955, %v1463, %v1414
        %v1465 = vrot.slane %v1414, 4
        %v1466 = vsel %vm955, %v1426, %v1465
        %v1468 = vunpack.c.l.s4 1934713408
        %v1469 = vunpack.c.0.s8 %v1468
        %v1470 = vperm.slane %v1464, %v1469
        %v1472 = vunpack.c.l.s4 1934713408
        %v1473 = vunpack.c.0.s8 %v1472
        %v1474 = vperm.slane %v1466, %v1473
        %v1475 = vrot.slane %v1446, 4
        %v1476 = vsel %vm955, %v1475, %v1434
        %v1477 = vrot.slane %v1434, 4
        %v1478 = vsel %vm955, %v1446, %v1477
        %v1480 = vunpack.c.l.s4 1934713408
        %v1481 = vunpack.c.0.s8 %v1480
        %v1482 = vperm.slane %v1476, %v1481
        %v1484 = vunpack.c.l.s4 1934713408
        %v1485 = vunpack.c.0.s8 %v1484
        %v1486 = vperm.slane %v1478, %v1485
        %v1487 = vrot.slane %v1450, 4
        %v1488 = vsel %vm955, %v1487, %v1438
        %v1489 = vrot.slane %v1438, 4
        %v1490 = vsel %vm955, %v1450, %v1489
        %v1492 = vunpack.c.l.s4 1934713408
        %v1493 = vunpack.c.0.s8 %v1492
        %v1494 = vperm.slane %v1488, %v1493
        %v1496 = vunpack.c.l.s4 1934713408
        %v1497 = vunpack.c.0.s8 %v1496
        %v1498 = vperm.slane %v1490, %v1497
        %v1499 = vrot.slane %v1482, 4
        %v1500 = vsel %vm955, %v1499, %v1458
        %v1501 = vrot.slane %v1458, 4
        %v1502 = vsel %vm955, %v1482, %v1501
        %v1503 = vrot.slane %v1486, 4
        %v1504 = vsel %vm955, %v1503, %v1462
        %v1505 = vrot.slane %v1462, 4
        %v1506 = vsel %vm955, %v1486, %v1505
        %v1507 = vrot.slane %v1494, 4
        %v1508 = vsel %vm955, %v1507, %v1470
        %v1509 = vrot.slane %v1470, 4
        %v1510 = vsel %vm955, %v1494, %v1509
        %v1511 = vrot.slane %v1498, 4
        %v1512 = vsel %vm955, %v1511, %v1474
        %v1513 = vrot.slane %v1474, 4
        %v1514 = vsel %vm955, %v1498, %v1513
        %v1515 = vrot.slane %v823, 4
        %v1516 = vsel %vm955, %v1515, %v811
        %v1517 = vrot.slane %v811, 4
        %v1518 = vsel %vm955, %v823, %v1517
        %v1520 = vunpack.c.l.s4 1983009808
        %v1521 = vunpack.c.0.s8 %v1520
        %v1522 = vperm.slane %v1516, %v1521
        %v1524 = vunpack.c.l.s4 1983009808
        %v1525 = vunpack.c.0.s8 %v1524
        %v1526 = vperm.slane %v1518, %v1525
        %v1527 = vrot.slane %v829, 4
        %v1528 = vsel %vm955, %v1527, %v817
        %v1529 = vrot.slane %v817, 4
        %v1530 = vsel %vm955, %v829, %v1529
        %v1532 = vunpack.c.l.s4 1983009808
        %v1533 = vunpack.c.0.s8 %v1532
        %v1534 = vperm.slane %v1528, %v1533
        %v1536 = vunpack.c.l.s4 1983009808
        %v1537 = vunpack.c.0.s8 %v1536
        %v1538 = vperm.slane %v1530, %v1537
        %v1539 = vrot.slane %v847, 4
        %v1540 = vsel %vm955, %v1539, %v835
        %v1541 = vrot.slane %v835, 4
        %v1542 = vsel %vm955, %v847, %v1541
        %v1544 = vunpack.c.l.s4 1983009808
        %v1545 = vunpack.c.0.s8 %v1544
        %v1546 = vperm.slane %v1540, %v1545
        %v1548 = vunpack.c.l.s4 1983009808
        %v1549 = vunpack.c.0.s8 %v1548
        %v1550 = vperm.slane %v1542, %v1549
        %v1551 = vrot.slane %v853, 4
        %v1552 = vsel %vm955, %v1551, %v841
        %v1553 = vrot.slane %v841, 4
        %v1554 = vsel %vm955, %v853, %v1553
        %v1556 = vunpack.c.l.s4 1983009808
        %v1557 = vunpack.c.0.s8 %v1556
        %v1558 = vperm.slane %v1552, %v1557
        %v1560 = vunpack.c.l.s4 1983009808
        %v1561 = vunpack.c.0.s8 %v1560
        %v1562 = vperm.slane %v1554, %v1561
        %v1563 = vrot.slane %v1534, 4
        %v1564 = vsel %vm955, %v1563, %v1522
        %v1565 = vrot.slane %v1522, 4
        %v1566 = vsel %vm955, %v1534, %v1565
        %v1568 = vunpack.c.l.s4 1934713408
        %v1569 = vunpack.c.0.s8 %v1568
        %v1570 = vperm.slane %v1564, %v1569
        %v1572 = vunpack.c.l.s4 1934713408
        %v1573 = vunpack.c.0.s8 %v1572
        %v1574 = vperm.slane %v1566, %v1573
        %v1575 = vrot.slane %v1538, 4
        %v1576 = vsel %vm955, %v1575, %v1526
        %v1577 = vrot.slane %v1526, 4
        %v1578 = vsel %vm955, %v1538, %v1577
        %v1580 = vunpack.c.l.s4 1934713408
        %v1581 = vunpack.c.0.s8 %v1580
        %v1582 = vperm.slane %v1576, %v1581
        %v1584 = vunpack.c.l.s4 1934713408
        %v1585 = vunpack.c.0.s8 %v1584
        %v1586 = vperm.slane %v1578, %v1585
        %v1587 = vrot.slane %v1558, 4
        %v1588 = vsel %vm955, %v1587, %v1546
        %v1589 = vrot.slane %v1546, 4
        %v1590 = vsel %vm955, %v1558, %v1589
        %v1592 = vunpack.c.l.s4 1934713408
        %v1593 = vunpack.c.0.s8 %v1592
        %v1594 = vperm.slane %v1588, %v1593
        %v1596 = vunpack.c.l.s4 1934713408
        %v1597 = vunpack.c.0.s8 %v1596
        %v1598 = vperm.slane %v1590, %v1597
        %v1599 = vrot.slane %v1562, 4
        %v1600 = vsel %vm955, %v1599, %v1550
        %v1601 = vrot.slane %v1550, 4
        %v1602 = vsel %vm955, %v1562, %v1601
        %v1604 = vunpack.c.l.s4 1934713408
        %v1605 = vunpack.c.0.s8 %v1604
        %v1606 = vperm.slane %v1600, %v1605
        %v1608 = vunpack.c.l.s4 1934713408
        %v1609 = vunpack.c.0.s8 %v1608
        %v1610 = vperm.slane %v1602, %v1609
        %v1611 = vrot.slane %v1594, 4
        %v1612 = vsel %vm955, %v1611, %v1570
        %v1613 = vrot.slane %v1570, 4
        %v1614 = vsel %vm955, %v1594, %v1613
        %v1615 = vrot.slane %v1598, 4
        %v1616 = vsel %vm955, %v1615, %v1574
        %v1617 = vrot.slane %v1574, 4
        %v1618 = vsel %vm955, %v1598, %v1617
        %v1619 = vrot.slane %v1606, 4
        %v1620 = vsel %vm955, %v1619, %v1582
        %v1621 = vrot.slane %v1582, 4
        %v1622 = vsel %vm955, %v1606, %v1621
        %v1623 = vrot.slane %v1610, 4
        %v1624 = vsel %vm955, %v1623, %v1586
        %v1625 = vrot.slane %v1586, 4
        %v1626 = vsel %vm955, %v1610, %v1625
        %v1627 = vrot.slane %v871, 4
        %v1628 = vsel %vm955, %v1627, %v859
        %v1629 = vrot.slane %v859, 4
        %v1630 = vsel %vm955, %v871, %v1629
        %v1632 = vunpack.c.l.s4 1983009808
        %v1633 = vunpack.c.0.s8 %v1632
        %v1634 = vperm.slane %v1628, %v1633
        %v1636 = vunpack.c.l.s4 1983009808
        %v1637 = vunpack.c.0.s8 %v1636
        %v1638 = vperm.slane %v1630, %v1637
        %v1639 = vrot.slane %v877, 4
        %v1640 = vsel %vm955, %v1639, %v865
        %v1641 = vrot.slane %v865, 4
        %v1642 = vsel %vm955, %v877, %v1641
        %v1644 = vunpack.c.l.s4 1983009808
        %v1645 = vunpack.c.0.s8 %v1644
        %v1646 = vperm.slane %v1640, %v1645
        %v1648 = vunpack.c.l.s4 1983009808
        %v1649 = vunpack.c.0.s8 %v1648
        %v1650 = vperm.slane %v1642, %v1649
        %v1651 = vrot.slane %v895, 4
        %v1652 = vsel %vm955, %v1651, %v883
        %v1653 = vrot.slane %v883, 4
        %v1654 = vsel %vm955, %v895, %v1653
        %v1656 = vunpack.c.l.s4 1983009808
        %v1657 = vunpack.c.0.s8 %v1656
        %v1658 = vperm.slane %v1652, %v1657
        %v1660 = vunpack.c.l.s4 1983009808
        %v1661 = vunpack.c.0.s8 %v1660
        %v1662 = vperm.slane %v1654, %v1661
        %v1663 = vrot.slane %v901, 4
        %v1664 = vsel %vm955, %v1663, %v889
        %v1665 = vrot.slane %v889, 4
        %v1666 = vsel %vm955, %v901, %v1665
        %v1668 = vunpack.c.l.s4 1983009808
        %v1669 = vunpack.c.0.s8 %v1668
        %v1670 = vperm.slane %v1664, %v1669
        %v1672 = vunpack.c.l.s4 1983009808
        %v1673 = vunpack.c.0.s8 %v1672
        %v1674 = vperm.slane %v1666, %v1673
        %v1675 = vrot.slane %v1646, 4
        %v1676 = vsel %vm955, %v1675, %v1634
        %v1677 = vrot.slane %v1634, 4
        %v1678 = vsel %vm955, %v1646, %v1677
        %v1680 = vunpack.c.l.s4 1934713408
        %v1681 = vunpack.c.0.s8 %v1680
        %v1682 = vperm.slane %v1676, %v1681
        %v1684 = vunpack.c.l.s4 1934713408
        %v1685 = vunpack.c.0.s8 %v1684
        %v1686 = vperm.slane %v1678, %v1685
        %v1687 = vrot.slane %v1650, 4
        %v1688 = vsel %vm955, %v1687, %v1638
        %v1689 = vrot.slane %v1638, 4
        %v1690 = vsel %vm955, %v1650, %v1689
        %v1692 = vunpack.c.l.s4 1934713408
        %v1693 = vunpack.c.0.s8 %v1692
        %v1694 = vperm.slane %v1688, %v1693
        %v1696 = vunpack.c.l.s4 1934713408
        %v1697 = vunpack.c.0.s8 %v1696
        %v1698 = vperm.slane %v1690, %v1697
        %v1699 = vrot.slane %v1670, 4
        %v1700 = vsel %vm955, %v1699, %v1658
        %v1701 = vrot.slane %v1658, 4
        %v1702 = vsel %vm955, %v1670, %v1701
        %v1704 = vunpack.c.l.s4 1934713408
        %v1705 = vunpack.c.0.s8 %v1704
        %v1706 = vperm.slane %v1700, %v1705
        %v1708 = vunpack.c.l.s4 1934713408
        %v1709 = vunpack.c.0.s8 %v1708
        %v1710 = vperm.slane %v1702, %v1709
        %v1711 = vrot.slane %v1674, 4
        %v1712 = vsel %vm955, %v1711, %v1662
        %v1713 = vrot.slane %v1662, 4
        %v1714 = vsel %vm955, %v1674, %v1713
        %v1716 = vunpack.c.l.s4 1934713408
        %v1717 = vunpack.c.0.s8 %v1716
        %v1718 = vperm.slane %v1712, %v1717
        %v1720 = vunpack.c.l.s4 1934713408
        %v1721 = vunpack.c.0.s8 %v1720
        %v1722 = vperm.slane %v1714, %v1721
        %v1723 = vrot.slane %v1706, 4
        %v1724 = vsel %vm955, %v1723, %v1682
        %v1725 = vrot.slane %v1682, 4
        %v1726 = vsel %vm955, %v1706, %v1725
        %v1727 = vrot.slane %v1710, 4
        %v1728 = vsel %vm955, %v1727, %v1686
        %v1729 = vrot.slane %v1686, 4
        %v1730 = vsel %vm955, %v1710, %v1729
        %v1731 = vrot.slane %v1718, 4
        %v1732 = vsel %vm955, %v1731, %v1694
        %v1733 = vrot.slane %v1694, 4
        %v1734 = vsel %vm955, %v1718, %v1733
        %v1735 = vrot.slane %v1722, 4
        %v1736 = vsel %vm955, %v1735, %v1698
        %v1737 = vrot.slane %v1698, 4
        %v1738 = vsel %vm955, %v1722, %v1737
        %v1739 = vrot.slane %v919, 4
        %v1740 = vsel %vm955, %v1739, %v907
        %v1741 = vrot.slane %v907, 4
        %v1742 = vsel %vm955, %v919, %v1741
        %v1744 = vunpack.c.l.s4 1983009808
        %v1745 = vunpack.c.0.s8 %v1744
        %v1746 = vperm.slane %v1740, %v1745
        %v1748 = vunpack.c.l.s4 1983009808
        %v1749 = vunpack.c.0.s8 %v1748
        %v1750 = vperm.slane %v1742, %v1749
        %v1751 = vrot.slane %v925, 4
        %v1752 = vsel %vm955, %v1751, %v913
        %v1753 = vrot.slane %v913, 4
        %v1754 = vsel %vm955, %v925, %v1753
        %v1756 = vunpack.c.l.s4 1983009808
        %v1757 = vunpack.c.0.s8 %v1756
        %v1758 = vperm.slane %v1752, %v1757
        %v1760 = vunpack.c.l.s4 1983009808
        %v1761 = vunpack.c.0.s8 %v1760
        %v1762 = vperm.slane %v1754, %v1761
        %v1763 = vrot.slane %v943, 4
        %v1764 = vsel %vm955, %v1763, %v931
        %v1765 = vrot.slane %v931, 4
        %v1766 = vsel %vm955, %v943, %v1765
        %v1768 = vunpack.c.l.s4 1983009808
        %v1769 = vunpack.c.0.s8 %v1768
        %v1770 = vperm.slane %v1764, %v1769
        %v1772 = vunpack.c.l.s4 1983009808
        %v1773 = vunpack.c.0.s8 %v1772
        %v1774 = vperm.slane %v1766, %v1773
        %v1775 = vrot.slane %v949, 4
        %v1776 = vsel %vm955, %v1775, %v937
        %v1777 = vrot.slane %v937, 4
        %v1778 = vsel %vm955, %v949, %v1777
        %v1780 = vunpack.c.l.s4 1983009808
        %v1781 = vunpack.c.0.s8 %v1780
        %v1782 = vperm.slane %v1776, %v1781
        %v1784 = vunpack.c.l.s4 1983009808
        %v1785 = vunpack.c.0.s8 %v1784
        %v1786 = vperm.slane %v1778, %v1785
        %v1787 = vrot.slane %v1758, 4
        %v1788 = vsel %vm955, %v1787, %v1746
        %v1789 = vrot.slane %v1746, 4
        %v1790 = vsel %vm955, %v1758, %v1789
        %v1792 = vunpack.c.l.s4 1934713408
        %v1793 = vunpack.c.0.s8 %v1792
        %v1794 = vperm.slane %v1788, %v1793
        %v1796 = vunpack.c.l.s4 1934713408
        %v1797 = vunpack.c.0.s8 %v1796
        %v1798 = vperm.slane %v1790, %v1797
        %v1799 = vrot.slane %v1762, 4
        %v1800 = vsel %vm955, %v1799, %v1750
        %v1801 = vrot.slane %v1750, 4
        %v1802 = vsel %vm955, %v1762, %v1801
        %v1804 = vunpack.c.l.s4 1934713408
        %v1805 = vunpack.c.0.s8 %v1804
        %v1806 = vperm.slane %v1800, %v1805
        %v1808 = vunpack.c.l.s4 1934713408
        %v1809 = vunpack.c.0.s8 %v1808
        %v1810 = vperm.slane %v1802, %v1809
        %v1811 = vrot.slane %v1782, 4
        %v1812 = vsel %vm955, %v1811, %v1770
        %v1813 = vrot.slane %v1770, 4
        %v1814 = vsel %vm955, %v1782, %v1813
        %v1816 = vunpack.c.l.s4 1934713408
        %v1817 = vunpack.c.0.s8 %v1816
        %v1818 = vperm.slane %v1812, %v1817
        %v1820 = vunpack.c.l.s4 1934713408
        %v1821 = vunpack.c.0.s8 %v1820
        %v1822 = vperm.slane %v1814, %v1821
        %v1823 = vrot.slane %v1786, 4
        %v1824 = vsel %vm955, %v1823, %v1774
        %v1825 = vrot.slane %v1774, 4
        %v1826 = vsel %vm955, %v1786, %v1825
        %v1828 = vunpack.c.l.s4 1934713408
        %v1829 = vunpack.c.0.s8 %v1828
        %v1830 = vperm.slane %v1824, %v1829
        %v1832 = vunpack.c.l.s4 1934713408
        %v1833 = vunpack.c.0.s8 %v1832
        %v1834 = vperm.slane %v1826, %v1833
        %v1835 = vrot.slane %v1818, 4
        %v1836 = vsel %vm955, %v1835, %v1794
        %v1837 = vrot.slane %v1794, 4
        %v1838 = vsel %vm955, %v1818, %v1837
        %v1839 = vrot.slane %v1822, 4
        %v1840 = vsel %vm955, %v1839, %v1798
        %v1841 = vrot.slane %v1798, 4
        %v1842 = vsel %vm955, %v1822, %v1841
        %v1843 = vrot.slane %v1830, 4
        %v1844 = vsel %vm955, %v1843, %v1806
        %v1845 = vrot.slane %v1806, 4
        %v1846 = vsel %vm955, %v1830, %v1845
        %v1847 = vrot.slane %v1834, 4
        %v1848 = vsel %vm955, %v1847, %v1810
        %v1849 = vrot.slane %v1810, 4
        %v1850 = vsel %vm955, %v1834, %v1849
        %v1851 = vrot.slane %v585, 4
        %v1852 = vsel %vm955, %v1851, %v567
        %v1853 = vrot.slane %v567, 4
        %v1854 = vsel %vm955, %v585, %v1853
        %v1856 = vunpack.c.l.s4 1983009808
        %v1857 = vunpack.c.0.s8 %v1856
        %v1858 = vperm.slane %v1852, %v1857
        %v1860 = vunpack.c.l.s4 1983009808
        %v1861 = vunpack.c.0.s8 %v1860
        %v1862 = vperm.slane %v1854, %v1861
        %v1863 = vrot.slane %v591, 4
        %v1864 = vsel %vm955, %v1863, %v579
        %v1865 = vrot.slane %v579, 4
        %v1866 = vsel %vm955, %v591, %v1865
        %v1868 = vunpack.c.l.s4 1983009808
        %v1869 = vunpack.c.0.s8 %v1868
        %v1870 = vperm.slane %v1864, %v1869
        %v1872 = vunpack.c.l.s4 1983009808
        %v1873 = vunpack.c.0.s8 %v1872
        %v1874 = vperm.slane %v1866, %v1873
        %v1875 = vrot.slane %v609, 4
        %v1876 = vsel %vm955, %v1875, %v597
        %v1877 = vrot.slane %v597, 4
        %v1878 = vsel %vm955, %v609, %v1877
        %v1880 = vunpack.c.l.s4 1983009808
        %v1881 = vunpack.c.0.s8 %v1880
        %v1882 = vperm.slane %v1876, %v1881
        %v1884 = vunpack.c.l.s4 1983009808
        %v1885 = vunpack.c.0.s8 %v1884
        %v1886 = vperm.slane %v1878, %v1885
        %v1887 = vrot.slane %v615, 4
        %v1888 = vsel %vm955, %v1887, %v603
        %v1889 = vrot.slane %v603, 4
        %v1890 = vsel %vm955, %v615, %v1889
        %v1892 = vunpack.c.l.s4 1983009808
        %v1893 = vunpack.c.0.s8 %v1892
        %v1894 = vperm.slane %v1888, %v1893
        %v1896 = vunpack.c.l.s4 1983009808
        %v1897 = vunpack.c.0.s8 %v1896
        %v1898 = vperm.slane %v1890, %v1897
        %v1899 = vrot.slane %v1870, 4
        %v1900 = vsel %vm955, %v1899, %v1858
        %v1901 = vrot.slane %v1858, 4
        %v1902 = vsel %vm955, %v1870, %v1901
        %v1904 = vunpack.c.l.s4 1934713408
        %v1905 = vunpack.c.0.s8 %v1904
        %v1906 = vperm.slane %v1900, %v1905
        %v1908 = vunpack.c.l.s4 1934713408
        %v1909 = vunpack.c.0.s8 %v1908
        %v1910 = vperm.slane %v1902, %v1909
        %v1911 = vrot.slane %v1874, 4
        %v1912 = vsel %vm955, %v1911, %v1862
        %v1913 = vrot.slane %v1862, 4
        %v1914 = vsel %vm955, %v1874, %v1913
        %v1916 = vunpack.c.l.s4 1934713408
        %v1917 = vunpack.c.0.s8 %v1916
        %v1918 = vperm.slane %v1912, %v1917
        %v1920 = vunpack.c.l.s4 1934713408
        %v1921 = vunpack.c.0.s8 %v1920
        %v1922 = vperm.slane %v1914, %v1921
        %v1923 = vrot.slane %v1894, 4
        %v1924 = vsel %vm955, %v1923, %v1882
        %v1925 = vrot.slane %v1882, 4
        %v1926 = vsel %vm955, %v1894, %v1925
        %v1928 = vunpack.c.l.s4 1934713408
        %v1929 = vunpack.c.0.s8 %v1928
        %v1930 = vperm.slane %v1924, %v1929
        %v1932 = vunpack.c.l.s4 1934713408
        %v1933 = vunpack.c.0.s8 %v1932
        %v1934 = vperm.slane %v1926, %v1933
        %v1935 = vrot.slane %v1898, 4
        %v1936 = vsel %vm955, %v1935, %v1886
        %v1937 = vrot.slane %v1886, 4
        %v1938 = vsel %vm955, %v1898, %v1937
        %v1940 = vunpack.c.l.s4 1934713408
        %v1941 = vunpack.c.0.s8 %v1940
        %v1942 = vperm.slane %v1936, %v1941
        %v1944 = vunpack.c.l.s4 1934713408
        %v1945 = vunpack.c.0.s8 %v1944
        %v1946 = vperm.slane %v1938, %v1945
        %v1947 = vrot.slane %v1930, 4
        %v1948 = vsel %vm955, %v1947, %v1906
        %v1949 = vrot.slane %v1906, 4
        %v1950 = vsel %vm955, %v1930, %v1949
        %v1951 = vrot.slane %v1934, 4
        %v1952 = vsel %vm955, %v1951, %v1910
        %v1953 = vrot.slane %v1910, 4
        %v1954 = vsel %vm955, %v1934, %v1953
        %v1955 = vrot.slane %v1942, 4
        %v1956 = vsel %vm955, %v1955, %v1918
        %v1957 = vrot.slane %v1918, 4
        %v1958 = vsel %vm955, %v1942, %v1957
        %v1959 = vrot.slane %v1946, 4
        %v1960 = vsel %vm955, %v1959, %v1922
        %v1961 = vrot.slane %v1922, 4
        %v1962 = vsel %vm955, %v1946, %v1961
        %v1963 = vrot.slane %v633, 4
        %v1964 = vsel %vm955, %v1963, %v621
        %v1965 = vrot.slane %v621, 4
        %v1966 = vsel %vm955, %v633, %v1965
        %v1968 = vunpack.c.l.s4 1983009808
        %v1969 = vunpack.c.0.s8 %v1968
        %v1970 = vperm.slane %v1964, %v1969
        %v1972 = vunpack.c.l.s4 1983009808
        %v1973 = vunpack.c.0.s8 %v1972
        %v1974 = vperm.slane %v1966, %v1973
        %v1975 = vrot.slane %v639, 4
        %v1976 = vsel %vm955, %v1975, %v627
        %v1977 = vrot.slane %v627, 4
        %v1978 = vsel %vm955, %v639, %v1977
        %v1980 = vunpack.c.l.s4 1983009808
        %v1981 = vunpack.c.0.s8 %v1980
        %v1982 = vperm.slane %v1976, %v1981
        %v1984 = vunpack.c.l.s4 1983009808
        %v1985 = vunpack.c.0.s8 %v1984
        %v1986 = vperm.slane %v1978, %v1985
        %v1987 = vrot.slane %v657, 4
        %v1988 = vsel %vm955, %v1987, %v645
        %v1989 = vrot.slane %v645, 4
        %v1990 = vsel %vm955, %v657, %v1989
        %v1992 = vunpack.c.l.s4 1983009808
        %v1993 = vunpack.c.0.s8 %v1992
        %v1994 = vperm.slane %v1988, %v1993
        %v1996 = vunpack.c.l.s4 1983009808
        %v1997 = vunpack.c.0.s8 %v1996
        %v1998 = vperm.slane %v1990, %v1997
        %v1999 = vrot.slane %v663, 4
        %v2000 = vsel %vm955, %v1999, %v651
        %v2001 = vrot.slane %v651, 4
        %v2002 = vsel %vm955, %v663, %v2001
        %v2004 = vunpack.c.l.s4 1983009808
        %v2005 = vunpack.c.0.s8 %v2004
        %v2006 = vperm.slane %v2000, %v2005
        %v2008 = vunpack.c.l.s4 1983009808
        %v2009 = vunpack.c.0.s8 %v2008
        %v2010 = vperm.slane %v2002, %v2009
        %v2011 = vrot.slane %v1982, 4
        %v2012 = vsel %vm955, %v2011, %v1970
        %v2013 = vrot.slane %v1970, 4
        %v2014 = vsel %vm955, %v1982, %v2013
        %v2016 = vunpack.c.l.s4 1934713408
        %v2017 = vunpack.c.0.s8 %v2016
        %v2018 = vperm.slane %v2012, %v2017
        %v2020 = vunpack.c.l.s4 1934713408
        %v2021 = vunpack.c.0.s8 %v2020
        %v2022 = vperm.slane %v2014, %v2021
        %v2023 = vrot.slane %v1986, 4
        %v2024 = vsel %vm955, %v2023, %v1974
        %v2025 = vrot.slane %v1974, 4
        %v2026 = vsel %vm955, %v1986, %v2025
        %v2028 = vunpack.c.l.s4 1934713408
        %v2029 = vunpack.c.0.s8 %v2028
        %v2030 = vperm.slane %v2024, %v2029
        %v2032 = vunpack.c.l.s4 1934713408
        %v2033 = vunpack.c.0.s8 %v2032
        %v2034 = vperm.slane %v2026, %v2033
        %v2035 = vrot.slane %v2006, 4
        %v2036 = vsel %vm955, %v2035, %v1994
        %v2037 = vrot.slane %v1994, 4
        %v2038 = vsel %vm955, %v2006, %v2037
        %v2040 = vunpack.c.l.s4 1934713408
        %v2041 = vunpack.c.0.s8 %v2040
        %v2042 = vperm.slane %v2036, %v2041
        %v2044 = vunpack.c.l.s4 1934713408
        %v2045 = vunpack.c.0.s8 %v2044
        %v2046 = vperm.slane %v2038, %v2045
        %v2047 = vrot.slane %v2010, 4
        %v2048 = vsel %vm955, %v2047, %v1998
        %v2049 = vrot.slane %v1998, 4
        %v2050 = vsel %vm955, %v2010, %v2049
        %v2052 = vunpack.c.l.s4 1934713408
        %v2053 = vunpack.c.0.s8 %v2052
        %v2054 = vperm.slane %v2048, %v2053
        %v2056 = vunpack.c.l.s4 1934713408
        %v2057 = vunpack.c.0.s8 %v2056
        %v2058 = vperm.slane %v2050, %v2057
        %v2059 = vrot.slane %v2042, 4
        %v2060 = vsel %vm955, %v2059, %v2018
        %v2061 = vrot.slane %v2018, 4
        %v2062 = vsel %vm955, %v2042, %v2061
        %v2063 = vrot.slane %v2046, 4
        %v2064 = vsel %vm955, %v2063, %v2022
        %v2065 = vrot.slane %v2022, 4
        %v2066 = vsel %vm955, %v2046, %v2065
        %v2067 = vrot.slane %v2054, 4
        %v2068 = vsel %vm955, %v2067, %v2030
        %v2069 = vrot.slane %v2030, 4
        %v2070 = vsel %vm955, %v2054, %v2069
        %v2071 = vrot.slane %v2058, 4
        %v2072 = vsel %vm955, %v2071, %v2034
        %v2073 = vrot.slane %v2034, 4
        %v2074 = vsel %vm955, %v2058, %v2073
        %v2075 = vrot.slane %v681, 4
        %v2076 = vsel %vm955, %v2075, %v669
        %v2077 = vrot.slane %v669, 4
        %v2078 = vsel %vm955, %v681, %v2077
        %v2080 = vunpack.c.l.s4 1983009808
        %v2081 = vunpack.c.0.s8 %v2080
        %v2082 = vperm.slane %v2076, %v2081
        %v2084 = vunpack.c.l.s4 1983009808
        %v2085 = vunpack.c.0.s8 %v2084
        %v2086 = vperm.slane %v2078, %v2085
        %v2087 = vrot.slane %v687, 4
        %v2088 = vsel %vm955, %v2087, %v675
        %v2089 = vrot.slane %v675, 4
        %v2090 = vsel %vm955, %v687, %v2089
        %v2092 = vunpack.c.l.s4 1983009808
        %v2093 = vunpack.c.0.s8 %v2092
        %v2094 = vperm.slane %v2088, %v2093
        %v2096 = vunpack.c.l.s4 1983009808
        %v2097 = vunpack.c.0.s8 %v2096
        %v2098 = vperm.slane %v2090, %v2097
        %v2099 = vrot.slane %v705, 4
        %v2100 = vsel %vm955, %v2099, %v693
        %v2101 = vrot.slane %v693, 4
        %v2102 = vsel %vm955, %v705, %v2101
        %v2104 = vunpack.c.l.s4 1983009808
        %v2105 = vunpack.c.0.s8 %v2104
        %v2106 = vperm.slane %v2100, %v2105
        %v2108 = vunpack.c.l.s4 1983009808
        %v2109 = vunpack.c.0.s8 %v2108
        %v2110 = vperm.slane %v2102, %v2109
        %v2111 = vrot.slane %v711, 4
        %v2112 = vsel %vm955, %v2111, %v699
        %v2113 = vrot.slane %v699, 4
        %v2114 = vsel %vm955, %v711, %v2113
        %v2116 = vunpack.c.l.s4 1983009808
        %v2117 = vunpack.c.0.s8 %v2116
        %v2118 = vperm.slane %v2112, %v2117
        %v2120 = vunpack.c.l.s4 1983009808
        %v2121 = vunpack.c.0.s8 %v2120
        %v2122 = vperm.slane %v2114, %v2121
        %v2123 = vrot.slane %v2094, 4
        %v2124 = vsel %vm955, %v2123, %v2082
        %v2125 = vrot.slane %v2082, 4
        %v2126 = vsel %vm955, %v2094, %v2125
        %v2128 = vunpack.c.l.s4 1934713408
        %v2129 = vunpack.c.0.s8 %v2128
        %v2130 = vperm.slane %v2124, %v2129
        %v2132 = vunpack.c.l.s4 1934713408
        %v2133 = vunpack.c.0.s8 %v2132
        %v2134 = vperm.slane %v2126, %v2133
        %v2135 = vrot.slane %v2098, 4
        %v2136 = vsel %vm955, %v2135, %v2086
        %v2137 = vrot.slane %v2086, 4
        %v2138 = vsel %vm955, %v2098, %v2137
        %v2140 = vunpack.c.l.s4 1934713408
        %v2141 = vunpack.c.0.s8 %v2140
        %v2142 = vperm.slane %v2136, %v2141
        %v2144 = vunpack.c.l.s4 1934713408
        %v2145 = vunpack.c.0.s8 %v2144
        %v2146 = vperm.slane %v2138, %v2145
        %v2147 = vrot.slane %v2118, 4
        %v2148 = vsel %vm955, %v2147, %v2106
        %v2149 = vrot.slane %v2106, 4
        %v2150 = vsel %vm955, %v2118, %v2149
        %v2152 = vunpack.c.l.s4 1934713408
        %v2153 = vunpack.c.0.s8 %v2152
        %v2154 = vperm.slane %v2148, %v2153
        %v2156 = vunpack.c.l.s4 1934713408
        %v2157 = vunpack.c.0.s8 %v2156
        %v2158 = vperm.slane %v2150, %v2157
        %v2159 = vrot.slane %v2122, 4
        %v2160 = vsel %vm955, %v2159, %v2110
        %v2161 = vrot.slane %v2110, 4
        %v2162 = vsel %vm955, %v2122, %v2161
        %v2164 = vunpack.c.l.s4 1934713408
        %v2165 = vunpack.c.0.s8 %v2164
        %v2166 = vperm.slane %v2160, %v2165
        %v2168 = vunpack.c.l.s4 1934713408
        %v2169 = vunpack.c.0.s8 %v2168
        %v2170 = vperm.slane %v2162, %v2169
        %v2171 = vrot.slane %v2154, 4
        %v2172 = vsel %vm955, %v2171, %v2130
        %v2173 = vrot.slane %v2130, 4
        %v2174 = vsel %vm955, %v2154, %v2173
        %v2175 = vrot.slane %v2158, 4
        %v2176 = vsel %vm955, %v2175, %v2134
        %v2177 = vrot.slane %v2134, 4
        %v2178 = vsel %vm955, %v2158, %v2177
        %v2179 = vrot.slane %v2166, 4
        %v2180 = vsel %vm955, %v2179, %v2142
        %v2181 = vrot.slane %v2142, 4
        %v2182 = vsel %vm955, %v2166, %v2181
        %v2183 = vrot.slane %v2170, 4
        %v2184 = vsel %vm955, %v2183, %v2146
        %v2185 = vrot.slane %v2146, 4
        %v2186 = vsel %vm955, %v2170, %v2185
        %v2187 = vrot.slane %v729, 4
        %v2188 = vsel %vm955, %v2187, %v717
        %v2189 = vrot.slane %v717, 4
        %v2190 = vsel %vm955, %v729, %v2189
        %v2192 = vunpack.c.l.s4 1983009808
        %v2193 = vunpack.c.0.s8 %v2192
        %v2194 = vperm.slane %v2188, %v2193
        %v2196 = vunpack.c.l.s4 1983009808
        %v2197 = vunpack.c.0.s8 %v2196
        %v2198 = vperm.slane %v2190, %v2197
        %v2199 = vrot.slane %v735, 4
        %v2200 = vsel %vm955, %v2199, %v723
        %v2201 = vrot.slane %v723, 4
        %v2202 = vsel %vm955, %v735, %v2201
        %v2204 = vunpack.c.l.s4 1983009808
        %v2205 = vunpack.c.0.s8 %v2204
        %v2206 = vperm.slane %v2200, %v2205
        %v2208 = vunpack.c.l.s4 1983009808
        %v2209 = vunpack.c.0.s8 %v2208
        %v2210 = vperm.slane %v2202, %v2209
        %v2211 = vrot.slane %v753, 4
        %v2212 = vsel %vm955, %v2211, %v741
        %v2213 = vrot.slane %v741, 4
        %v2214 = vsel %vm955, %v753, %v2213
        %v2216 = vunpack.c.l.s4 1983009808
        %v2217 = vunpack.c.0.s8 %v2216
        %v2218 = vperm.slane %v2212, %v2217
        %v2220 = vunpack.c.l.s4 1983009808
        %v2221 = vunpack.c.0.s8 %v2220
        %v2222 = vperm.slane %v2214, %v2221
        %v2223 = vrot.slane %v759, 4
        %v2224 = vsel %vm955, %v2223, %v747
        %v2225 = vrot.slane %v747, 4
        %v2226 = vsel %vm955, %v759, %v2225
        %v2228 = vunpack.c.l.s4 1983009808
        %v2229 = vunpack.c.0.s8 %v2228
        %v2230 = vperm.slane %v2224, %v2229
        %v2232 = vunpack.c.l.s4 1983009808
        %v2233 = vunpack.c.0.s8 %v2232
        %v2234 = vperm.slane %v2226, %v2233
        %v2235 = vrot.slane %v2206, 4
        %v2236 = vsel %vm955, %v2235, %v2194
        %v2237 = vrot.slane %v2194, 4
        %v2238 = vsel %vm955, %v2206, %v2237
        %v2240 = vunpack.c.l.s4 1934713408
        %v2241 = vunpack.c.0.s8 %v2240
        %v2242 = vperm.slane %v2236, %v2241
        %v2244 = vunpack.c.l.s4 1934713408
        %v2245 = vunpack.c.0.s8 %v2244
        %v2246 = vperm.slane %v2238, %v2245
        %v2247 = vrot.slane %v2210, 4
        %v2248 = vsel %vm955, %v2247, %v2198
        %v2249 = vrot.slane %v2198, 4
        %v2250 = vsel %vm955, %v2210, %v2249
        %v2252 = vunpack.c.l.s4 1934713408
        %v2253 = vunpack.c.0.s8 %v2252
        %v2254 = vperm.slane %v2248, %v2253
        %v2256 = vunpack.c.l.s4 1934713408
        %v2257 = vunpack.c.0.s8 %v2256
        %v2258 = vperm.slane %v2250, %v2257
        %v2259 = vrot.slane %v2230, 4
        %v2260 = vsel %vm955, %v2259, %v2218
        %v2261 = vrot.slane %v2218, 4
        %v2262 = vsel %vm955, %v2230, %v2261
        %v2264 = vunpack.c.l.s4 1934713408
        %v2265 = vunpack.c.0.s8 %v2264
        %v2266 = vperm.slane %v2260, %v2265
        %v2268 = vunpack.c.l.s4 1934713408
        %v2269 = vunpack.c.0.s8 %v2268
        %v2270 = vperm.slane %v2262, %v2269
        %v2271 = vrot.slane %v2234, 4
        %v2272 = vsel %vm955, %v2271, %v2222
        %v2273 = vrot.slane %v2222, 4
        %v2274 = vsel %vm955, %v2234, %v2273
        %v2276 = vunpack.c.l.s4 1934713408
        %v2277 = vunpack.c.0.s8 %v2276
        %v2278 = vperm.slane %v2272, %v2277
        %v2280 = vunpack.c.l.s4 1934713408
        %v2281 = vunpack.c.0.s8 %v2280
        %v2282 = vperm.slane %v2274, %v2281
        %v2283 = vrot.slane %v2266, 4
        %v2284 = vsel %vm955, %v2283, %v2242
        %v2285 = vrot.slane %v2242, 4
        %v2286 = vsel %vm955, %v2266, %v2285
        %v2287 = vrot.slane %v2270, 4
        %v2288 = vsel %vm955, %v2287, %v2246
        %v2289 = vrot.slane %v2246, 4
        %v2290 = vsel %vm955, %v2270, %v2289
        %v2291 = vrot.slane %v2278, 4
        %v2292 = vsel %vm955, %v2291, %v2254
        %v2293 = vrot.slane %v2254, 4
        %v2294 = vsel %vm955, %v2278, %v2293
        %v2295 = vrot.slane %v2282, 4
        %v2296 = vsel %vm955, %v2295, %v2258
        %v2297 = vrot.slane %v2258, 4
        %v2298 = vsel %vm955, %v2282, %v2297
        %v2299 = vrot.slane %v777, 4
        %v2300 = vsel %vm955, %v2299, %v765
        %v2301 = vrot.slane %v765, 4
        %v2302 = vsel %vm955, %v777, %v2301
        %v2304 = vunpack.c.l.s4 1983009808
        %v2305 = vunpack.c.0.s8 %v2304
        %v2306 = vperm.slane %v2300, %v2305
        %v2308 = vunpack.c.l.s4 1983009808
        %v2309 = vunpack.c.0.s8 %v2308
        %v2310 = vperm.slane %v2302, %v2309
        %v2311 = vrot.slane %v783, 4
        %v2312 = vsel %vm955, %v2311, %v771
        %v2313 = vrot.slane %v771, 4
        %v2314 = vsel %vm955, %v783, %v2313
        %v2316 = vunpack.c.l.s4 1983009808
        %v2317 = vunpack.c.0.s8 %v2316
        %v2318 = vperm.slane %v2312, %v2317
        %v2320 = vunpack.c.l.s4 1983009808
        %v2321 = vunpack.c.0.s8 %v2320
        %v2322 = vperm.slane %v2314, %v2321
        %v2323 = vrot.slane %v801, 4
        %v2324 = vsel %vm955, %v2323, %v789
        %v2325 = vrot.slane %v789, 4
        %v2326 = vsel %vm955, %v801, %v2325
        %v2328 = vunpack.c.l.s4 1983009808
        %v2329 = vunpack.c.0.s8 %v2328
        %v2330 = vperm.slane %v2324, %v2329
        %v2332 = vunpack.c.l.s4 1983009808
        %v2333 = vunpack.c.0.s8 %v2332
        %v2334 = vperm.slane %v2326, %v2333
        %v2335 = vrot.slane %v807, 4
        %v2336 = vsel %vm955, %v2335, %v795
        %v2337 = vrot.slane %v795, 4
        %v2338 = vsel %vm955, %v807, %v2337
        %v2340 = vunpack.c.l.s4 1983009808
        %v2341 = vunpack.c.0.s8 %v2340
        %v2342 = vperm.slane %v2336, %v2341
        %v2344 = vunpack.c.l.s4 1983009808
        %v2345 = vunpack.c.0.s8 %v2344
        %v2346 = vperm.slane %v2338, %v2345
        %v2347 = vrot.slane %v2318, 4
        %v2348 = vsel %vm955, %v2347, %v2306
        %v2349 = vrot.slane %v2306, 4
        %v2350 = vsel %vm955, %v2318, %v2349
        %v2352 = vunpack.c.l.s4 1934713408
        %v2353 = vunpack.c.0.s8 %v2352
        %v2354 = vperm.slane %v2348, %v2353
        %v2356 = vunpack.c.l.s4 1934713408
        %v2357 = vunpack.c.0.s8 %v2356
        %v2358 = vperm.slane %v2350, %v2357
        %v2359 = vrot.slane %v2322, 4
        %v2360 = vsel %vm955, %v2359, %v2310
        %v2361 = vrot.slane %v2310, 4
        %v2362 = vsel %vm955, %v2322, %v2361
        %v2364 = vunpack.c.l.s4 1934713408
        %v2365 = vunpack.c.0.s8 %v2364
        %v2366 = vperm.slane %v2360, %v2365
        %v2368 = vunpack.c.l.s4 1934713408
        %v2369 = vunpack.c.0.s8 %v2368
        %v2370 = vperm.slane %v2362, %v2369
        %v2371 = vrot.slane %v2342, 4
        %v2372 = vsel %vm955, %v2371, %v2330
        %v2373 = vrot.slane %v2330, 4
        %v2374 = vsel %vm955, %v2342, %v2373
        %v2376 = vunpack.c.l.s4 1934713408
        %v2377 = vunpack.c.0.s8 %v2376
        %v2378 = vperm.slane %v2372, %v2377
        %v2380 = vunpack.c.l.s4 1934713408
        %v2381 = vunpack.c.0.s8 %v2380
        %v2382 = vperm.slane %v2374, %v2381
        %v2383 = vrot.slane %v2346, 4
        %v2384 = vsel %vm955, %v2383, %v2334
        %v2385 = vrot.slane %v2334, 4
        %v2386 = vsel %vm955, %v2346, %v2385
        %v2388 = vunpack.c.l.s4 1934713408
        %v2389 = vunpack.c.0.s8 %v2388
        %v2390 = vperm.slane %v2384, %v2389
        %v2392 = vunpack.c.l.s4 1934713408
        %v2393 = vunpack.c.0.s8 %v2392
        %v2394 = vperm.slane %v2386, %v2393
        %v2395 = vrot.slane %v2378, 4
        %v2396 = vsel %vm955, %v2395, %v2354
        %v2397 = vrot.slane %v2354, 4
        %v2398 = vsel %vm955, %v2378, %v2397
        %v2399 = vrot.slane %v2382, 4
        %v2400 = vsel %vm955, %v2399, %v2358
        %v2401 = vrot.slane %v2358, 4
        %v2402 = vsel %vm955, %v2382, %v2401
        %v2403 = vrot.slane %v2390, 4
        %v2404 = vsel %vm955, %v2403, %v2366
        %v2405 = vrot.slane %v2366, 4
        %v2406 = vsel %vm955, %v2390, %v2405
        %v2407 = vrot.slane %v2394, 4
        %v2408 = vsel %vm955, %v2407, %v2370
        %v2409 = vrot.slane %v2370, 4
        %v2410 = vsel %vm955, %v2394, %v2409
        %v2411 = vrot.slane %v825, 4
        %v2412 = vsel %vm955, %v2411, %v813
        %v2413 = vrot.slane %v813, 4
        %v2414 = vsel %vm955, %v825, %v2413
        %v2416 = vunpack.c.l.s4 1983009808
        %v2417 = vunpack.c.0.s8 %v2416
        %v2418 = vperm.slane %v2412, %v2417
        %v2420 = vunpack.c.l.s4 1983009808
        %v2421 = vunpack.c.0.s8 %v2420
        %v2422 = vperm.slane %v2414, %v2421
        %v2423 = vrot.slane %v831, 4
        %v2424 = vsel %vm955, %v2423, %v819
        %v2425 = vrot.slane %v819, 4
        %v2426 = vsel %vm955, %v831, %v2425
        %v2428 = vunpack.c.l.s4 1983009808
        %v2429 = vunpack.c.0.s8 %v2428
        %v2430 = vperm.slane %v2424, %v2429
        %v2432 = vunpack.c.l.s4 1983009808
        %v2433 = vunpack.c.0.s8 %v2432
        %v2434 = vperm.slane %v2426, %v2433
        %v2435 = vrot.slane %v849, 4
        %v2436 = vsel %vm955, %v2435, %v837
        %v2437 = vrot.slane %v837, 4
        %v2438 = vsel %vm955, %v849, %v2437
        %v2440 = vunpack.c.l.s4 1983009808
        %v2441 = vunpack.c.0.s8 %v2440
        %v2442 = vperm.slane %v2436, %v2441
        %v2444 = vunpack.c.l.s4 1983009808
        %v2445 = vunpack.c.0.s8 %v2444
        %v2446 = vperm.slane %v2438, %v2445
        %v2447 = vrot.slane %v855, 4
        %v2448 = vsel %vm955, %v2447, %v843
        %v2449 = vrot.slane %v843, 4
        %v2450 = vsel %vm955, %v855, %v2449
        %v2452 = vunpack.c.l.s4 1983009808
        %v2453 = vunpack.c.0.s8 %v2452
        %v2454 = vperm.slane %v2448, %v2453
        %v2456 = vunpack.c.l.s4 1983009808
        %v2457 = vunpack.c.0.s8 %v2456
        %v2458 = vperm.slane %v2450, %v2457
        %v2459 = vrot.slane %v2430, 4
        %v2460 = vsel %vm955, %v2459, %v2418
        %v2461 = vrot.slane %v2418, 4
        %v2462 = vsel %vm955, %v2430, %v2461
        %v2464 = vunpack.c.l.s4 1934713408
        %v2465 = vunpack.c.0.s8 %v2464
        %v2466 = vperm.slane %v2460, %v2465
        %v2468 = vunpack.c.l.s4 1934713408
        %v2469 = vunpack.c.0.s8 %v2468
        %v2470 = vperm.slane %v2462, %v2469
        %v2471 = vrot.slane %v2434, 4
        %v2472 = vsel %vm955, %v2471, %v2422
        %v2473 = vrot.slane %v2422, 4
        %v2474 = vsel %vm955, %v2434, %v2473
        %v2476 = vunpack.c.l.s4 1934713408
        %v2477 = vunpack.c.0.s8 %v2476
        %v2478 = vperm.slane %v2472, %v2477
        %v2480 = vunpack.c.l.s4 1934713408
        %v2481 = vunpack.c.0.s8 %v2480
        %v2482 = vperm.slane %v2474, %v2481
        %v2483 = vrot.slane %v2454, 4
        %v2484 = vsel %vm955, %v2483, %v2442
        %v2485 = vrot.slane %v2442, 4
        %v2486 = vsel %vm955, %v2454, %v2485
        %v2488 = vunpack.c.l.s4 1934713408
        %v2489 = vunpack.c.0.s8 %v2488
        %v2490 = vperm.slane %v2484, %v2489
        %v2492 = vunpack.c.l.s4 1934713408
        %v2493 = vunpack.c.0.s8 %v2492
        %v2494 = vperm.slane %v2486, %v2493
        %v2495 = vrot.slane %v2458, 4
        %v2496 = vsel %vm955, %v2495, %v2446
        %v2497 = vrot.slane %v2446, 4
        %v2498 = vsel %vm955, %v2458, %v2497
        %v2500 = vunpack.c.l.s4 1934713408
        %v2501 = vunpack.c.0.s8 %v2500
        %v2502 = vperm.slane %v2496, %v2501
        %v2504 = vunpack.c.l.s4 1934713408
        %v2505 = vunpack.c.0.s8 %v2504
        %v2506 = vperm.slane %v2498, %v2505
        %v2507 = vrot.slane %v2490, 4
        %v2508 = vsel %vm955, %v2507, %v2466
        %v2509 = vrot.slane %v2466, 4
        %v2510 = vsel %vm955, %v2490, %v2509
        %v2511 = vrot.slane %v2494, 4
        %v2512 = vsel %vm955, %v2511, %v2470
        %v2513 = vrot.slane %v2470, 4
        %v2514 = vsel %vm955, %v2494, %v2513
        %v2515 = vrot.slane %v2502, 4
        %v2516 = vsel %vm955, %v2515, %v2478
        %v2517 = vrot.slane %v2478, 4
        %v2518 = vsel %vm955, %v2502, %v2517
        %v2519 = vrot.slane %v2506, 4
        %v2520 = vsel %vm955, %v2519, %v2482
        %v2521 = vrot.slane %v2482, 4
        %v2522 = vsel %vm955, %v2506, %v2521
        %v2523 = vrot.slane %v873, 4
        %v2524 = vsel %vm955, %v2523, %v861
        %v2525 = vrot.slane %v861, 4
        %v2526 = vsel %vm955, %v873, %v2525
        %v2528 = vunpack.c.l.s4 1983009808
        %v2529 = vunpack.c.0.s8 %v2528
        %v2530 = vperm.slane %v2524, %v2529
        %v2532 = vunpack.c.l.s4 1983009808
        %v2533 = vunpack.c.0.s8 %v2532
        %v2534 = vperm.slane %v2526, %v2533
        %v2535 = vrot.slane %v879, 4
        %v2536 = vsel %vm955, %v2535, %v867
        %v2537 = vrot.slane %v867, 4
        %v2538 = vsel %vm955, %v879, %v2537
        %v2540 = vunpack.c.l.s4 1983009808
        %v2541 = vunpack.c.0.s8 %v2540
        %v2542 = vperm.slane %v2536, %v2541
        %v2544 = vunpack.c.l.s4 1983009808
        %v2545 = vunpack.c.0.s8 %v2544
        %v2546 = vperm.slane %v2538, %v2545
        %v2547 = vrot.slane %v897, 4
        %v2548 = vsel %vm955, %v2547, %v885
        %v2549 = vrot.slane %v885, 4
        %v2550 = vsel %vm955, %v897, %v2549
        %v2552 = vunpack.c.l.s4 1983009808
        %v2553 = vunpack.c.0.s8 %v2552
        %v2554 = vperm.slane %v2548, %v2553
        %v2556 = vunpack.c.l.s4 1983009808
        %v2557 = vunpack.c.0.s8 %v2556
        %v2558 = vperm.slane %v2550, %v2557
        %v2559 = vrot.slane %v903, 4
        %v2560 = vsel %vm955, %v2559, %v891
        %v2561 = vrot.slane %v891, 4
        %v2562 = vsel %vm955, %v903, %v2561
        %v2564 = vunpack.c.l.s4 1983009808
        %v2565 = vunpack.c.0.s8 %v2564
        %v2566 = vperm.slane %v2560, %v2565
        %v2568 = vunpack.c.l.s4 1983009808
        %v2569 = vunpack.c.0.s8 %v2568
        %v2570 = vperm.slane %v2562, %v2569
        %v2571 = vrot.slane %v2542, 4
        %v2572 = vsel %vm955, %v2571, %v2530
        %v2573 = vrot.slane %v2530, 4
        %v2574 = vsel %vm955, %v2542, %v2573
        %v2576 = vunpack.c.l.s4 1934713408
        %v2577 = vunpack.c.0.s8 %v2576
        %v2578 = vperm.slane %v2572, %v2577
        %v2580 = vunpack.c.l.s4 1934713408
        %v2581 = vunpack.c.0.s8 %v2580
        %v2582 = vperm.slane %v2574, %v2581
        %v2583 = vrot.slane %v2546, 4
        %v2584 = vsel %vm955, %v2583, %v2534
        %v2585 = vrot.slane %v2534, 4
        %v2586 = vsel %vm955, %v2546, %v2585
        %v2588 = vunpack.c.l.s4 1934713408
        %v2589 = vunpack.c.0.s8 %v2588
        %v2590 = vperm.slane %v2584, %v2589
        %v2592 = vunpack.c.l.s4 1934713408
        %v2593 = vunpack.c.0.s8 %v2592
        %v2594 = vperm.slane %v2586, %v2593
        %v2595 = vrot.slane %v2566, 4
        %v2596 = vsel %vm955, %v2595, %v2554
        %v2597 = vrot.slane %v2554, 4
        %v2598 = vsel %vm955, %v2566, %v2597
        %v2600 = vunpack.c.l.s4 1934713408
        %v2601 = vunpack.c.0.s8 %v2600
        %v2602 = vperm.slane %v2596, %v2601
        %v2604 = vunpack.c.l.s4 1934713408
        %v2605 = vunpack.c.0.s8 %v2604
        %v2606 = vperm.slane %v2598, %v2605
        %v2607 = vrot.slane %v2570, 4
        %v2608 = vsel %vm955, %v2607, %v2558
        %v2609 = vrot.slane %v2558, 4
        %v2610 = vsel %vm955, %v2570, %v2609
        %v2612 = vunpack.c.l.s4 1934713408
        %v2613 = vunpack.c.0.s8 %v2612
        %v2614 = vperm.slane %v2608, %v2613
        %v2616 = vunpack.c.l.s4 1934713408
        %v2617 = vunpack.c.0.s8 %v2616
        %v2618 = vperm.slane %v2610, %v2617
        %v2619 = vrot.slane %v2602, 4
        %v2620 = vsel %vm955, %v2619, %v2578
        %v2621 = vrot.slane %v2578, 4
        %v2622 = vsel %vm955, %v2602, %v2621
        %v2623 = vrot.slane %v2606, 4
        %v2624 = vsel %vm955, %v2623, %v2582
        %v2625 = vrot.slane %v2582, 4
        %v2626 = vsel %vm955, %v2606, %v2625
        %v2627 = vrot.slane %v2614, 4
        %v2628 = vsel %vm955, %v2627, %v2590
        %v2629 = vrot.slane %v2590, 4
        %v2630 = vsel %vm955, %v2614, %v2629
        %v2631 = vrot.slane %v2618, 4
        %v2632 = vsel %vm955, %v2631, %v2594
        %v2633 = vrot.slane %v2594, 4
        %v2634 = vsel %vm955, %v2618, %v2633
        %v2635 = vrot.slane %v921, 4
        %v2636 = vsel %vm955, %v2635, %v909
        %v2637 = vrot.slane %v909, 4
        %v2638 = vsel %vm955, %v921, %v2637
        %v2640 = vunpack.c.l.s4 1983009808
        %v2641 = vunpack.c.0.s8 %v2640
        %v2642 = vperm.slane %v2636, %v2641
        %v2644 = vunpack.c.l.s4 1983009808
        %v2645 = vunpack.c.0.s8 %v2644
        %v2646 = vperm.slane %v2638, %v2645
        %v2647 = vrot.slane %v927, 4
        %v2648 = vsel %vm955, %v2647, %v915
        %v2649 = vrot.slane %v915, 4
        %v2650 = vsel %vm955, %v927, %v2649
        %v2652 = vunpack.c.l.s4 1983009808
        %v2653 = vunpack.c.0.s8 %v2652
        %v2654 = vperm.slane %v2648, %v2653
        %v2656 = vunpack.c.l.s4 1983009808
        %v2657 = vunpack.c.0.s8 %v2656
        %v2658 = vperm.slane %v2650, %v2657
        %v2659 = vrot.slane %v945, 4
        %v2660 = vsel %vm955, %v2659, %v933
        %v2661 = vrot.slane %v933, 4
        %v2662 = vsel %vm955, %v945, %v2661
        %v2664 = vunpack.c.l.s4 1983009808
        %v2665 = vunpack.c.0.s8 %v2664
        %v2666 = vperm.slane %v2660, %v2665
        %v2668 = vunpack.c.l.s4 1983009808
        %v2669 = vunpack.c.0.s8 %v2668
        %v2670 = vperm.slane %v2662, %v2669
        %v2671 = vrot.slane %v951, 4
        %v2672 = vsel %vm955, %v2671, %v939
        %v2673 = vrot.slane %v939, 4
        %v2674 = vsel %vm955, %v951, %v2673
        %v2676 = vunpack.c.l.s4 1983009808
        %v2677 = vunpack.c.0.s8 %v2676
        %v2678 = vperm.slane %v2672, %v2677
        %v2680 = vunpack.c.l.s4 1983009808
        %v2681 = vunpack.c.0.s8 %v2680
        %v2682 = vperm.slane %v2674, %v2681
        %v2683 = vrot.slane %v2654, 4
        %v2684 = vsel %vm955, %v2683, %v2642
        %v2685 = vrot.slane %v2642, 4
        %v2686 = vsel %vm955, %v2654, %v2685
        %v2688 = vunpack.c.l.s4 1934713408
        %v2689 = vunpack.c.0.s8 %v2688
        %v2690 = vperm.slane %v2684, %v2689
        %v2692 = vunpack.c.l.s4 1934713408
        %v2693 = vunpack.c.0.s8 %v2692
        %v2694 = vperm.slane %v2686, %v2693
        %v2695 = vrot.slane %v2658, 4
        %v2696 = vsel %vm955, %v2695, %v2646
        %v2697 = vrot.slane %v2646, 4
        %v2698 = vsel %vm955, %v2658, %v2697
        %v2700 = vunpack.c.l.s4 1934713408
        %v2701 = vunpack.c.0.s8 %v2700
        %v2702 = vperm.slane %v2696, %v2701
        %v2704 = vunpack.c.l.s4 1934713408
        %v2705 = vunpack.c.0.s8 %v2704
        %v2706 = vperm.slane %v2698, %v2705
        %v2707 = vrot.slane %v2678, 4
        %v2708 = vsel %vm955, %v2707, %v2666
        %v2709 = vrot.slane %v2666, 4
        %v2710 = vsel %vm955, %v2678, %v2709
        %v2712 = vunpack.c.l.s4 1934713408
        %v2713 = vunpack.c.0.s8 %v2712
        %v2714 = vperm.slane %v2708, %v2713
        %v2716 = vunpack.c.l.s4 1934713408
        %v2717 = vunpack.c.0.s8 %v2716
        %v2718 = vperm.slane %v2710, %v2717
        %v2719 = vrot.slane %v2682, 4
        %v2720 = vsel %vm955, %v2719, %v2670
        %v2721 = vrot.slane %v2670, 4
        %v2722 = vsel %vm955, %v2682, %v2721
        %v2724 = vunpack.c.l.s4 1934713408
        %v2725 = vunpack.c.0.s8 %v2724
        %v2726 = vperm.slane %v2720, %v2725
        %v2728 = vunpack.c.l.s4 1934713408
        %v2729 = vunpack.c.0.s8 %v2728
        %v2730 = vperm.slane %v2722, %v2729
        %v2731 = vrot.slane %v2714, 4
        %v2732 = vsel %vm955, %v2731, %v2690
        %v2733 = vrot.slane %v2690, 4
        %v2734 = vsel %vm955, %v2714, %v2733
        %v2735 = vrot.slane %v2718, 4
        %v2736 = vsel %vm955, %v2735, %v2694
        %v2737 = vrot.slane %v2694, 4
        %v2738 = vsel %vm955, %v2718, %v2737
        %v2739 = vrot.slane %v2726, 4
        %v2740 = vsel %vm955, %v2739, %v2702
        %v2741 = vrot.slane %v2702, 4
        %v2742 = vsel %vm955, %v2726, %v2741
        %v2743 = vrot.slane %v2730, 4
        %v2744 = vsel %vm955, %v2743, %v2706
        %v2745 = vrot.slane %v2706, 4
        %v2746 = vsel %vm955, %v2730, %v2745
        %2811 = vset.pattern.permute.xlu0 0
        %2812 = vperm.xlu0 %2811, %v1052
        %v2813 = vpop.permute.xlu0 %2812
        %2814 = vset.pattern.permute.xlu0 0
        %2815 = vperm.xlu0 %2814, %v1164
        %v2816 = vpop.permute.xlu0 %2815
        %2817 = vset.pattern.permute.xlu0 0
        %2818 = vperm.xlu0 %2817, %v1276
        %v2819 = vpop.permute.xlu0 %2818
        %2820 = vset.pattern.permute.xlu0 0
        %2821 = vperm.xlu0 %2820, %v1388
        %v2822 = vpop.permute.xlu0 %2821
        %2823 = vset.pattern.permute.xlu0 0
        %2824 = vperm.xlu0 %2823, %v1500
        %v2825 = vpop.permute.xlu0 %2824
        %2826 = vset.pattern.permute.xlu0 0
        %2827 = vperm.xlu0 %2826, %v1612
        %v2828 = vpop.permute.xlu0 %2827
        %2829 = vset.pattern.permute.xlu0 0
        %2830 = vperm.xlu0 %2829, %v1724
        %v2831 = vpop.permute.xlu0 %2830
        %2832 = vset.pattern.permute.xlu0 0
        %2833 = vperm.xlu0 %2832, %v1836
        %v2834 = vpop.permute.xlu0 %2833
        %2835 = vset.pattern.permute.xlu0 0
        %2836 = vperm.xlu0 %2835, %v1056
        %v2837 = vpop.permute.xlu0 %2836
        %2838 = vset.pattern.permute.xlu0 0
        %2839 = vperm.xlu0 %2838, %v1168
        %v2840 = vpop.permute.xlu0 %2839
        %2841 = vset.pattern.permute.xlu0 0
        %2842 = vperm.xlu0 %2841, %v1280
        %v2843 = vpop.permute.xlu0 %2842
        %2844 = vset.pattern.permute.xlu0 0
        %2845 = vperm.xlu0 %2844, %v1392
        %v2846 = vpop.permute.xlu0 %2845
        %2847 = vset.pattern.permute.xlu0 0
        %2848 = vperm.xlu0 %2847, %v1504
        %v2849 = vpop.permute.xlu0 %2848
        %2850 = vset.pattern.permute.xlu0 0
        %2851 = vperm.xlu0 %2850, %v1616
        %v2852 = vpop.permute.xlu0 %2851
        %2853 = vset.pattern.permute.xlu0 0
        %2854 = vperm.xlu0 %2853, %v1728
        %v2855 = vpop.permute.xlu0 %2854
        %2856 = vset.pattern.permute.xlu0 0
        %2857 = vperm.xlu0 %2856, %v1840
        %v2858 = vpop.permute.xlu0 %2857
        %2859 = vset.pattern.permute.xlu0 0
        %2860 = vperm.xlu0 %2859, %v1060
        %v2861 = vpop.permute.xlu0 %2860
        %2862 = vset.pattern.permute.xlu0 0
        %2863 = vperm.xlu0 %2862, %v1172
        %v2864 = vpop.permute.xlu0 %2863
        %2865 = vset.pattern.permute.xlu0 0
        %2866 = vperm.xlu0 %2865, %v1284
        %v2867 = vpop.permute.xlu0 %2866
        %2868 = vset.pattern.permute.xlu0 0
        %2869 = vperm.xlu0 %2868, %v1396
        %v2870 = vpop.permute.xlu0 %2869
        %2871 = vset.pattern.permute.xlu0 0
        %2872 = vperm.xlu0 %2871, %v1508
        %v2873 = vpop.permute.xlu0 %2872
        %2874 = vset.pattern.permute.xlu0 0
        %2875 = vperm.xlu0 %2874, %v1620
        %v2876 = vpop.permute.xlu0 %2875
        %2877 = vset.pattern.permute.xlu0 0
        %2878 = vperm.xlu0 %2877, %v1732
        %v2879 = vpop.permute.xlu0 %2878
        %2880 = vset.pattern.permute.xlu0 0
        %2881 = vperm.xlu0 %2880, %v1844
        %v2882 = vpop.permute.xlu0 %2881
        %2883 = vset.pattern.permute.xlu0 0
        %2884 = vperm.xlu0 %2883, %v1064
        %v2885 = vpop.permute.xlu0 %2884
        %2886 = vset.pattern.permute.xlu0 0
        %2887 = vperm.xlu0 %2886, %v1176
        %v2888 = vpop.permute.xlu0 %2887
        %2889 = vset.pattern.permute.xlu0 0
        %2890 = vperm.xlu0 %2889, %v1288
        %v2891 = vpop.permute.xlu0 %2890
        %2892 = vset.pattern.permute.xlu0 0
        %2893 = vperm.xlu0 %2892, %v1400
        %v2894 = vpop.permute.xlu0 %2893
        %2895 = vset.pattern.permute.xlu0 0
        %2896 = vperm.xlu0 %2895, %v1512
        %v2897 = vpop.permute.xlu0 %2896
        %2898 = vset.pattern.permute.xlu0 0
        %2899 = vperm.xlu0 %2898, %v1624
        %v2900 = vpop.permute.xlu0 %2899
        %2901 = vset.pattern.permute.xlu0 0
        %2902 = vperm.xlu0 %2901, %v1736
        %v2903 = vpop.permute.xlu0 %2902
        %2904 = vset.pattern.permute.xlu0 0
        %2905 = vperm.xlu0 %2904, %v1848
        %v2906 = vpop.permute.xlu0 %2905
        %2907 = vset.pattern.permute.xlu0 0
        %2908 = vperm.xlu0 %2907, %v1948
        %v2909 = vpop.permute.xlu0 %2908
        %2910 = vset.pattern.permute.xlu0 0
        %2911 = vperm.xlu0 %2910, %v2060
        %v2912 = vpop.permute.xlu0 %2911
        %2913 = vset.pattern.permute.xlu0 0
        %2914 = vperm.xlu0 %2913, %v2172
        %v2915 = vpop.permute.xlu0 %2914
        %2916 = vset.pattern.permute.xlu0 0
        %2917 = vperm.xlu0 %2916, %v2284
        %v2918 = vpop.permute.xlu0 %2917
        %2919 = vset.pattern.permute.xlu0 0
        %2920 = vperm.xlu0 %2919, %v2396
        %v2921 = vpop.permute.xlu0 %2920
        %2922 = vset.pattern.permute.xlu0 0
        %2923 = vperm.xlu0 %2922, %v2508
        %v2924 = vpop.permute.xlu0 %2923
        %2925 = vset.pattern.permute.xlu0 0
        %2926 = vperm.xlu0 %2925, %v2620
        %v2927 = vpop.permute.xlu0 %2926
        %2928 = vset.pattern.permute.xlu0 0
        %2929 = vperm.xlu0 %2928, %v2732
        %v2930 = vpop.permute.xlu0 %2929
        %2931 = vset.pattern.permute.xlu0 0
        %2932 = vperm.xlu0 %2931, %v1952
        %v2933 = vpop.permute.xlu0 %2932
        %2934 = vset.pattern.permute.xlu0 0
        %2935 = vperm.xlu0 %2934, %v2064
        %v2936 = vpop.permute.xlu0 %2935
        %2937 = vset.pattern.permute.xlu0 0
        %2938 = vperm.xlu0 %2937, %v2176
        %v2939 = vpop.permute.xlu0 %2938
        %2940 = vset.pattern.permute.xlu0 0
        %2941 = vperm.xlu0 %2940, %v2288
        %v2942 = vpop.permute.xlu0 %2941
        %2943 = vset.pattern.permute.xlu0 0
        %2944 = vperm.xlu0 %2943, %v2400
        %v2945 = vpop.permute.xlu0 %2944
        %2946 = vset.pattern.permute.xlu0 0
        %2947 = vperm.xlu0 %2946, %v2512
        %v2948 = vpop.permute.xlu0 %2947
        %2949 = vset.pattern.permute.xlu0 0
        %2950 = vperm.xlu0 %2949, %v2624
        %v2951 = vpop.permute.xlu0 %2950
        %2952 = vset.pattern.permute.xlu0 0
        %2953 = vperm.xlu0 %2952, %v2736
        %v2954 = vpop.permute.xlu0 %2953
        %2955 = vset.pattern.permute.xlu0 0
        %2956 = vperm.xlu0 %2955, %v1956
        %v2957 = vpop.permute.xlu0 %2956
        %2958 = vset.pattern.permute.xlu0 0
        %2959 = vperm.xlu0 %2958, %v2068
        %v2960 = vpop.permute.xlu0 %2959
        %2961 = vset.pattern.permute.xlu0 0
        %2962 = vperm.xlu0 %2961, %v2180
        %v2963 = vpop.permute.xlu0 %2962
        %2964 = vset.pattern.permute.xlu0 0
        %2965 = vperm.xlu0 %2964, %v2292
        %v2966 = vpop.permute.xlu0 %2965
        %2967 = vset.pattern.permute.xlu0 0
        %2968 = vperm.xlu0 %2967, %v2404
        %v2969 = vpop.permute.xlu0 %2968
        %2970 = vset.pattern.permute.xlu0 0
        %2971 = vperm.xlu0 %2970, %v2516
        %v2972 = vpop.permute.xlu0 %2971
        %2973 = vset.pattern.permute.xlu0 0
        %2974 = vperm.xlu0 %2973, %v2628
        %v2975 = vpop.permute.xlu0 %2974
        %2976 = vset.pattern.permute.xlu0 0
        %2977 = vperm.xlu0 %2976, %v2740
        %v2978 = vpop.permute.xlu0 %2977
        %2979 = vset.pattern.permute.xlu0 0
        %2980 = vperm.xlu0 %2979, %v1960
        %v2981 = vpop.permute.xlu0 %2980
        %2982 = vset.pattern.permute.xlu0 0
        %2983 = vperm.xlu0 %2982, %v2072
        %v2984 = vpop.permute.xlu0 %2983
        %2985 = vset.pattern.permute.xlu0 0
        %2986 = vperm.xlu0 %2985, %v2184
        %v2987 = vpop.permute.xlu0 %2986
        %2988 = vset.pattern.permute.xlu0 0
        %2989 = vperm.xlu0 %2988, %v2296
        %v2990 = vpop.permute.xlu0 %2989
        %2991 = vset.pattern.permute.xlu0 0
        %2992 = vperm.xlu0 %2991, %v2408
        %v2993 = vpop.permute.xlu0 %2992
        %2994 = vset.pattern.permute.xlu0 0
        %2995 = vperm.xlu0 %2994, %v2520
        %v2996 = vpop.permute.xlu0 %2995
        %2997 = vset.pattern.permute.xlu0 0
        %2998 = vperm.xlu0 %2997, %v2632
        %v2999 = vpop.permute.xlu0 %2998
        %3000 = vset.pattern.permute.xlu0 0
        %3001 = vperm.xlu0 %3000, %v2744
        %v3002 = vpop.permute.xlu0 %3001
        %v3003 = vlaneseq
        %v3004 = vand.u32 %v3003, 127
        %v3005 = vperm.slane %v2813, %v3004
        %v3006 = vadd.s32 %v3004, 4294967288
        %v3007 = vperm.slane %v2816, %v3006
        %vm3008 = vcmask 130112
        %v3009 = vsel %vm3008, %v3007, %v3005
        %v3010 = vadd.s32 %v3004, 4294967280
        %v3011 = vperm.slane %v2819, %v3010
        %vm3012 = vcmask 195712
        %v3013 = vsel %vm3012, %v3011, %v3009
        %v3014 = vadd.s32 %v3004, 4294967272
        %v3015 = vperm.slane %v2822, %v3014
        %vm3016 = vcmask 261312
        %v3017 = vsel %vm3016, %v3015, %v3013
        %v3018 = vadd.s32 %v3004, 4294967264
        %v3019 = vperm.slane %v2825, %v3018
        %vm3020 = vcmask 326912
        %v3021 = vsel %vm3020, %v3019, %v3017
        %v3022 = vadd.s32 %v3004, 4294967256
        %v3023 = vperm.slane %v2828, %v3022
        %vm3024 = vcmask 392512
        %v3025 = vsel %vm3024, %v3023, %v3021
        %v3026 = vadd.s32 %v3004, 4294967248
        %v3027 = vperm.slane %v2831, %v3026
        %vm3028 = vcmask 458112
        %v3029 = vsel %vm3028, %v3027, %v3025
        %v3030 = vadd.s32 %v3004, 4294967240
        %v3031 = vperm.slane %v2834, %v3030
        %vm3032 = vcmask 523712
        %v3033 = vsel %vm3032, %v3031, %v3029
        %v3034 = vperm.slane %v2837, %v3004
        %v3035 = vperm.slane %v2840, %v3006
        %v3036 = vsel %vm3008, %v3035, %v3034
        %v3037 = vperm.slane %v2843, %v3010
        %v3038 = vsel %vm3012, %v3037, %v3036
        %v3039 = vperm.slane %v2846, %v3014
        %v3040 = vsel %vm3016, %v3039, %v3038
        %v3041 = vperm.slane %v2849, %v3018
        %v3042 = vsel %vm3020, %v3041, %v3040
        %v3043 = vperm.slane %v2852, %v3022
        %v3044 = vsel %vm3024, %v3043, %v3042
        %v3045 = vperm.slane %v2855, %v3026
        %v3046 = vsel %vm3028, %v3045, %v3044
        %v3047 = vperm.slane %v2858, %v3030
        %v3048 = vsel %vm3032, %v3047, %v3046
        %v3049 = vperm.slane %v2861, %v3004
        %v3050 = vperm.slane %v2864, %v3006
        %v3051 = vsel %vm3008, %v3050, %v3049
        %v3052 = vperm.slane %v2867, %v3010
        %v3053 = vsel %vm3012, %v3052, %v3051
        %v3054 = vperm.slane %v2870, %v3014
        %v3055 = vsel %vm3016, %v3054, %v3053
        %v3056 = vperm.slane %v2873, %v3018
        %v3057 = vsel %vm3020, %v3056, %v3055
        %v3058 = vperm.slane %v2876, %v3022
        %v3059 = vsel %vm3024, %v3058, %v3057
        %v3060 = vperm.slane %v2879, %v3026
        %v3061 = vsel %vm3028, %v3060, %v3059
        %v3062 = vperm.slane %v2882, %v3030
        %v3063 = vsel %vm3032, %v3062, %v3061
        %v3064 = vperm.slane %v2885, %v3004
        %v3065 = vperm.slane %v2888, %v3006
        %v3066 = vsel %vm3008, %v3065, %v3064
        %v3067 = vperm.slane %v2891, %v3010
        %v3068 = vsel %vm3012, %v3067, %v3066
        %v3069 = vperm.slane %v2894, %v3014
        %v3070 = vsel %vm3016, %v3069, %v3068
        %v3071 = vperm.slane %v2897, %v3018
        %v3072 = vsel %vm3020, %v3071, %v3070
        %v3073 = vperm.slane %v2900, %v3022
        %v3074 = vsel %vm3024, %v3073, %v3072
        %v3075 = vperm.slane %v2903, %v3026
        %v3076 = vsel %vm3028, %v3075, %v3074
        %v3077 = vperm.slane %v2906, %v3030
        %v3078 = vsel %vm3032, %v3077, %v3076
        %v3079 = vperm.slane %v2909, %v3004
        %v3080 = vperm.slane %v2912, %v3006
        %v3081 = vsel %vm3008, %v3080, %v3079
        %v3082 = vperm.slane %v2915, %v3010
        %v3083 = vsel %vm3012, %v3082, %v3081
        %v3084 = vperm.slane %v2918, %v3014
        %v3085 = vsel %vm3016, %v3084, %v3083
        %v3086 = vperm.slane %v2921, %v3018
        %v3087 = vsel %vm3020, %v3086, %v3085
        %v3088 = vperm.slane %v2924, %v3022
        %v3089 = vsel %vm3024, %v3088, %v3087
        %v3090 = vperm.slane %v2927, %v3026
        %v3091 = vsel %vm3028, %v3090, %v3089
        %v3092 = vperm.slane %v2930, %v3030
        %v3093 = vsel %vm3032, %v3092, %v3091
        %v3094 = vperm.slane %v2933, %v3004
        %v3095 = vperm.slane %v2936, %v3006
        %v3096 = vsel %vm3008, %v3095, %v3094
        %v3097 = vperm.slane %v2939, %v3010
        %v3098 = vsel %vm3012, %v3097, %v3096
        %v3099 = vperm.slane %v2942, %v3014
        %v3100 = vsel %vm3016, %v3099, %v3098
        %v3101 = vperm.slane %v2945, %v3018
        %v3102 = vsel %vm3020, %v3101, %v3100
        %v3103 = vperm.slane %v2948, %v3022
        %v3104 = vsel %vm3024, %v3103, %v3102
        %v3105 = vperm.slane %v2951, %v3026
        %v3106 = vsel %vm3028, %v3105, %v3104
        %v3107 = vperm.slane %v2954, %v3030
        %v3108 = vsel %vm3032, %v3107, %v3106
        %v3109 = vperm.slane %v2957, %v3004
        %v3110 = vperm.slane %v2960, %v3006
        %v3111 = vsel %vm3008, %v3110, %v3109
        %v3112 = vperm.slane %v2963, %v3010
        %v3113 = vsel %vm3012, %v3112, %v3111
        %v3114 = vperm.slane %v2966, %v3014
        %v3115 = vsel %vm3016, %v3114, %v3113
        %v3116 = vperm.slane %v2969, %v3018
        %v3117 = vsel %vm3020, %v3116, %v3115
        %v3118 = vperm.slane %v2972, %v3022
        %v3119 = vsel %vm3024, %v3118, %v3117
        %v3120 = vperm.slane %v2975, %v3026
        %v3121 = vsel %vm3028, %v3120, %v3119
        %v3122 = vperm.slane %v2978, %v3030
        %v3123 = vsel %vm3032, %v3122, %v3121
        %v3124 = vperm.slane %v2981, %v3004
        %v3125 = vperm.slane %v2984, %v3006
        %v3126 = vsel %vm3008, %v3125, %v3124
        %v3127 = vperm.slane %v2987, %v3010
        %v3128 = vsel %vm3012, %v3127, %v3126
        %v3129 = vperm.slane %v2990, %v3014
        %v3130 = vsel %vm3016, %v3129, %v3128
        %v3131 = vperm.slane %v2993, %v3018
        %v3132 = vsel %vm3020, %v3131, %v3130
        %v3133 = vperm.slane %v2996, %v3022
        %v3134 = vsel %vm3024, %v3133, %v3132
        %v3135 = vperm.slane %v2999, %v3026
        %v3136 = vsel %vm3028, %v3135, %v3134
        %v3137 = vperm.slane %v3002, %v3030
        %v3138 = vsel %vm3032, %v3137, %v3136
        %vm3139 = vcmask 1041409
        %v3140 = vsel %vm3139, %v3048, %v3033
        %vm3141 = vcmask 1042434
        %v3142 = vsel %vm3141, %v3063, %v3140
        %vm3143 = vcmask 1043459
        %v3144 = vsel %vm3143, %v3078, %v3142
        %vm3145 = vcmask 1044484
        %v3146 = vsel %vm3145, %v3093, %v3144
        %vm3147 = vcmask 1045509
        %v3148 = vsel %vm3147, %v3108, %v3146
        %vm3149 = vcmask 1046534
        %v3150 = vsel %vm3149, %v3123, %v3148
        %vm3151 = vcmask 1047559
        %v3152 = vsel %vm3151, %v3138, %v3150
        %vm3154 = vcmask 523264
        %3155 = vst.msk [vmem:[%s169] sm:$0xff] %vm3154, %v3152
        %3156 = vset.pattern.permute.xlu0 1
        %3157 = vperm.xlu0 %3156, %v1052
        %v3158 = vpop.permute.xlu0 %3157
        %3159 = vset.pattern.permute.xlu0 1
        %3160 = vperm.xlu0 %3159, %v1164
        %v3161 = vpop.permute.xlu0 %3160
        %3162 = vset.pattern.permute.xlu0 1
        %3163 = vperm.xlu0 %3162, %v1276
        %v3164 = vpop.permute.xlu0 %3163
        %3165 = vset.pattern.permute.xlu0 1
        %3166 = vperm.xlu0 %3165, %v1388
        %v3167 = vpop.permute.xlu0 %3166
        %3168 = vset.pattern.permute.xlu0 1
        %3169 = vperm.xlu0 %3168, %v1500
        %v3170 = vpop.permute.xlu0 %3169
        %3171 = vset.pattern.permute.xlu0 1
        %3172 = vperm.xlu0 %3171, %v1612
        %v3173 = vpop.permute.xlu0 %3172
        %3174 = vset.pattern.permute.xlu0 1
        %3175 = vperm.xlu0 %3174, %v1724
        %v3176 = vpop.permute.xlu0 %3175
        %3177 = vset.pattern.permute.xlu0 1
        %3178 = vperm.xlu0 %3177, %v1836
        %v3179 = vpop.permute.xlu0 %3178
        %3180 = vset.pattern.permute.xlu0 1
        %3181 = vperm.xlu0 %3180, %v1056
        %v3182 = vpop.permute.xlu0 %3181
        %3183 = vset.pattern.permute.xlu0 1
        %3184 = vperm.xlu0 %3183, %v1168
        %v3185 = vpop.permute.xlu0 %3184
        %3186 = vset.pattern.permute.xlu0 1
        %3187 = vperm.xlu0 %3186, %v1280
        %v3188 = vpop.permute.xlu0 %3187
        %3189 = vset.pattern.permute.xlu0 1
        %3190 = vperm.xlu0 %3189, %v1392
        %v3191 = vpop.permute.xlu0 %3190
        %3192 = vset.pattern.permute.xlu0 1
        %3193 = vperm.xlu0 %3192, %v1504
        %v3194 = vpop.permute.xlu0 %3193
        %3195 = vset.pattern.permute.xlu0 1
        %3196 = vperm.xlu0 %3195, %v1616
        %v3197 = vpop.permute.xlu0 %3196
        %3198 = vset.pattern.permute.xlu0 1
        %3199 = vperm.xlu0 %3198, %v1728
        %v3200 = vpop.permute.xlu0 %3199
        %3201 = vset.pattern.permute.xlu0 1
        %3202 = vperm.xlu0 %3201, %v1840
        %v3203 = vpop.permute.xlu0 %3202
        %3204 = vset.pattern.permute.xlu0 1
        %3205 = vperm.xlu0 %3204, %v1060
        %v3206 = vpop.permute.xlu0 %3205
        %3207 = vset.pattern.permute.xlu0 1
        %3208 = vperm.xlu0 %3207, %v1172
        %v3209 = vpop.permute.xlu0 %3208
        %3210 = vset.pattern.permute.xlu0 1
        %3211 = vperm.xlu0 %3210, %v1284
        %v3212 = vpop.permute.xlu0 %3211
        %3213 = vset.pattern.permute.xlu0 1
        %3214 = vperm.xlu0 %3213, %v1396
        %v3215 = vpop.permute.xlu0 %3214
        %3216 = vset.pattern.permute.xlu0 1
        %3217 = vperm.xlu0 %3216, %v1508
        %v3218 = vpop.permute.xlu0 %3217
        %3219 = vset.pattern.permute.xlu0 1
        %3220 = vperm.xlu0 %3219, %v1620
        %v3221 = vpop.permute.xlu0 %3220
        %3222 = vset.pattern.permute.xlu0 1
        %3223 = vperm.xlu0 %3222, %v1732
        %v3224 = vpop.permute.xlu0 %3223
        %3225 = vset.pattern.permute.xlu0 1
        %3226 = vperm.xlu0 %3225, %v1844
        %v3227 = vpop.permute.xlu0 %3226
        %3228 = vset.pattern.permute.xlu0 1
        %3229 = vperm.xlu0 %3228, %v1064
        %v3230 = vpop.permute.xlu0 %3229
        %3231 = vset.pattern.permute.xlu0 1
        %3232 = vperm.xlu0 %3231, %v1176
        %v3233 = vpop.permute.xlu0 %3232
        %3234 = vset.pattern.permute.xlu0 1
        %3235 = vperm.xlu0 %3234, %v1288
        %v3236 = vpop.permute.xlu0 %3235
        %3237 = vset.pattern.permute.xlu0 1
        %3238 = vperm.xlu0 %3237, %v1400
        %v3239 = vpop.permute.xlu0 %3238
        %3240 = vset.pattern.permute.xlu0 1
        %3241 = vperm.xlu0 %3240, %v1512
        %v3242 = vpop.permute.xlu0 %3241
        %3243 = vset.pattern.permute.xlu0 1
        %3244 = vperm.xlu0 %3243, %v1624
        %v3245 = vpop.permute.xlu0 %3244
        %3246 = vset.pattern.permute.xlu0 1
        %3247 = vperm.xlu0 %3246, %v1736
        %v3248 = vpop.permute.xlu0 %3247
        %3249 = vset.pattern.permute.xlu0 1
        %3250 = vperm.xlu0 %3249, %v1848
        %v3251 = vpop.permute.xlu0 %3250
        %3252 = vset.pattern.permute.xlu0 1
        %3253 = vperm.xlu0 %3252, %v1948
        %v3254 = vpop.permute.xlu0 %3253
        %3255 = vset.pattern.permute.xlu0 1
        %3256 = vperm.xlu0 %3255, %v2060
        %v3257 = vpop.permute.xlu0 %3256
        %3258 = vset.pattern.permute.xlu0 1
        %3259 = vperm.xlu0 %3258, %v2172
        %v3260 = vpop.permute.xlu0 %3259
        %3261 = vset.pattern.permute.xlu0 1
        %3262 = vperm.xlu0 %3261, %v2284
        %v3263 = vpop.permute.xlu0 %3262
        %3264 = vset.pattern.permute.xlu0 1
        %3265 = vperm.xlu0 %3264, %v2396
        %v3266 = vpop.permute.xlu0 %3265
        %3267 = vset.pattern.permute.xlu0 1
        %3268 = vperm.xlu0 %3267, %v2508
        %v3269 = vpop.permute.xlu0 %3268
        %3270 = vset.pattern.permute.xlu0 1
        %3271 = vperm.xlu0 %3270, %v2620
        %v3272 = vpop.permute.xlu0 %3271
        %3273 = vset.pattern.permute.xlu0 1
        %3274 = vperm.xlu0 %3273, %v2732
        %v3275 = vpop.permute.xlu0 %3274
        %3276 = vset.pattern.permute.xlu0 1
        %3277 = vperm.xlu0 %3276, %v1952
        %v3278 = vpop.permute.xlu0 %3277
        %3279 = vset.pattern.permute.xlu0 1
        %3280 = vperm.xlu0 %3279, %v2064
        %v3281 = vpop.permute.xlu0 %3280
        %3282 = vset.pattern.permute.xlu0 1
        %3283 = vperm.xlu0 %3282, %v2176
        %v3284 = vpop.permute.xlu0 %3283
        %3285 = vset.pattern.permute.xlu0 1
        %3286 = vperm.xlu0 %3285, %v2288
        %v3287 = vpop.permute.xlu0 %3286
        %3288 = vset.pattern.permute.xlu0 1
        %3289 = vperm.xlu0 %3288, %v2400
        %v3290 = vpop.permute.xlu0 %3289
        %3291 = vset.pattern.permute.xlu0 1
        %3292 = vperm.xlu0 %3291, %v2512
        %v3293 = vpop.permute.xlu0 %3292
        %3294 = vset.pattern.permute.xlu0 1
        %3295 = vperm.xlu0 %3294, %v2624
        %v3296 = vpop.permute.xlu0 %3295
        %3297 = vset.pattern.permute.xlu0 1
        %3298 = vperm.xlu0 %3297, %v2736
        %v3299 = vpop.permute.xlu0 %3298
        %3300 = vset.pattern.permute.xlu0 1
        %3301 = vperm.xlu0 %3300, %v1956
        %v3302 = vpop.permute.xlu0 %3301
        %3303 = vset.pattern.permute.xlu0 1
        %3304 = vperm.xlu0 %3303, %v2068
        %v3305 = vpop.permute.xlu0 %3304
        %3306 = vset.pattern.permute.xlu0 1
        %3307 = vperm.xlu0 %3306, %v2180
        %v3308 = vpop.permute.xlu0 %3307
        %3309 = vset.pattern.permute.xlu0 1
        %3310 = vperm.xlu0 %3309, %v2292
        %v3311 = vpop.permute.xlu0 %3310
        %3312 = vset.pattern.permute.xlu0 1
        %3313 = vperm.xlu0 %3312, %v2404
        %v3314 = vpop.permute.xlu0 %3313
        %3315 = vset.pattern.permute.xlu0 1
        %3316 = vperm.xlu0 %3315, %v2516
        %v3317 = vpop.permute.xlu0 %3316
        %3318 = vset.pattern.permute.xlu0 1
        %3319 = vperm.xlu0 %3318, %v2628
        %v3320 = vpop.permute.xlu0 %3319
        %3321 = vset.pattern.permute.xlu0 1
        %3322 = vperm.xlu0 %3321, %v2740
        %v3323 = vpop.permute.xlu0 %3322
        %3324 = vset.pattern.permute.xlu0 1
        %3325 = vperm.xlu0 %3324, %v1960
        %v3326 = vpop.permute.xlu0 %3325
        %3327 = vset.pattern.permute.xlu0 1
        %3328 = vperm.xlu0 %3327, %v2072
        %v3329 = vpop.permute.xlu0 %3328
        %3330 = vset.pattern.permute.xlu0 1
        %3331 = vperm.xlu0 %3330, %v2184
        %v3332 = vpop.permute.xlu0 %3331
        %3333 = vset.pattern.permute.xlu0 1
        %3334 = vperm.xlu0 %3333, %v2296
        %v3335 = vpop.permute.xlu0 %3334
        %3336 = vset.pattern.permute.xlu0 1
        %3337 = vperm.xlu0 %3336, %v2408
        %v3338 = vpop.permute.xlu0 %3337
        %3339 = vset.pattern.permute.xlu0 1
        %3340 = vperm.xlu0 %3339, %v2520
        %v3341 = vpop.permute.xlu0 %3340
        %3342 = vset.pattern.permute.xlu0 1
        %3343 = vperm.xlu0 %3342, %v2632
        %v3344 = vpop.permute.xlu0 %3343
        %3345 = vset.pattern.permute.xlu0 1
        %3346 = vperm.xlu0 %3345, %v2744
        %v3347 = vpop.permute.xlu0 %3346
        %v3348 = vperm.slane %v3158, %v3004
        %v3349 = vperm.slane %v3161, %v3006
        %v3350 = vsel %vm3008, %v3349, %v3348
        %v3351 = vperm.slane %v3164, %v3010
        %v3352 = vsel %vm3012, %v3351, %v3350
        %v3353 = vperm.slane %v3167, %v3014
        %v3354 = vsel %vm3016, %v3353, %v3352
        %v3355 = vperm.slane %v3170, %v3018
        %v3356 = vsel %vm3020, %v3355, %v3354
        %v3357 = vperm.slane %v3173, %v3022
        %v3358 = vsel %vm3024, %v3357, %v3356
        %v3359 = vperm.slane %v3176, %v3026
        %v3360 = vsel %vm3028, %v3359, %v3358
        %v3361 = vperm.slane %v3179, %v3030
        %v3362 = vsel %vm3032, %v3361, %v3360
        %v3363 = vperm.slane %v3182, %v3004
        %v3364 = vperm.slane %v3185, %v3006
        %v3365 = vsel %vm3008, %v3364, %v3363
        %v3366 = vperm.slane %v3188, %v3010
        %v3367 = vsel %vm3012, %v3366, %v3365
        %v3368 = vperm.slane %v3191, %v3014
        %v3369 = vsel %vm3016, %v3368, %v3367
        %v3370 = vperm.slane %v3194, %v3018
        %v3371 = vsel %vm3020, %v3370, %v3369
        %v3372 = vperm.slane %v3197, %v3022
        %v3373 = vsel %vm3024, %v3372, %v3371
        %v3374 = vperm.slane %v3200, %v3026
        %v3375 = vsel %vm3028, %v3374, %v3373
        %v3376 = vperm.slane %v3203, %v3030
        %v3377 = vsel %vm3032, %v3376, %v3375
        %v3378 = vperm.slane %v3206, %v3004
        %v3379 = vperm.slane %v3209, %v3006
        %v3380 = vsel %vm3008, %v3379, %v3378
        %v3381 = vperm.slane %v3212, %v3010
        %v3382 = vsel %vm3012, %v3381, %v3380
        %v3383 = vperm.slane %v3215, %v3014
        %v3384 = vsel %vm3016, %v3383, %v3382
        %v3385 = vperm.slane %v3218, %v3018
        %v3386 = vsel %vm3020, %v3385, %v3384
        %v3387 = vperm.slane %v3221, %v3022
        %v3388 = vsel %vm3024, %v3387, %v3386
        %v3389 = vperm.slane %v3224, %v3026
        %v3390 = vsel %vm3028, %v3389, %v3388
        %v3391 = vperm.slane %v3227, %v3030
        %v3392 = vsel %vm3032, %v3391, %v3390
        %v3393 = vperm.slane %v3230, %v3004
        %v3394 = vperm.slane %v3233, %v3006
        %v3395 = vsel %vm3008, %v3394, %v3393
        %v3396 = vperm.slane %v3236, %v3010
        %v3397 = vsel %vm3012, %v3396, %v3395
        %v3398 = vperm.slane %v3239, %v3014
        %v3399 = vsel %vm3016, %v3398, %v3397
        %v3400 = vperm.slane %v3242, %v3018
        %v3401 = vsel %vm3020, %v3400, %v3399
        %v3402 = vperm.slane %v3245, %v3022
        %v3403 = vsel %vm3024, %v3402, %v3401
        %v3404 = vperm.slane %v3248, %v3026
        %v3405 = vsel %vm3028, %v3404, %v3403
        %v3406 = vperm.slane %v3251, %v3030
        %v3407 = vsel %vm3032, %v3406, %v3405
        %v3408 = vperm.slane %v3254, %v3004
        %v3409 = vperm.slane %v3257, %v3006
        %v3410 = vsel %vm3008, %v3409, %v3408
        %v3411 = vperm.slane %v3260, %v3010
        %v3412 = vsel %vm3012, %v3411, %v3410
        %v3413 = vperm.slane %v3263, %v3014
        %v3414 = vsel %vm3016, %v3413, %v3412
        %v3415 = vperm.slane %v3266, %v3018
        %v3416 = vsel %vm3020, %v3415, %v3414
        %v3417 = vperm.slane %v3269, %v3022
        %v3418 = vsel %vm3024, %v3417, %v3416
        %v3419 = vperm.slane %v3272, %v3026
        %v3420 = vsel %vm3028, %v3419, %v3418
        %v3421 = vperm.slane %v3275, %v3030
        %v3422 = vsel %vm3032, %v3421, %v3420
        %v3423 = vperm.slane %v3278, %v3004
        %v3424 = vperm.slane %v3281, %v3006
        %v3425 = vsel %vm3008, %v3424, %v3423
        %v3426 = vperm.slane %v3284, %v3010
        %v3427 = vsel %vm3012, %v3426, %v3425
        %v3428 = vperm.slane %v3287, %v3014
        %v3429 = vsel %vm3016, %v3428, %v3427
        %v3430 = vperm.slane %v3290, %v3018
        %v3431 = vsel %vm3020, %v3430, %v3429
        %v3432 = vperm.slane %v3293, %v3022
        %v3433 = vsel %vm3024, %v3432, %v3431
        %v3434 = vperm.slane %v3296, %v3026
        %v3435 = vsel %vm3028, %v3434, %v3433
        %v3436 = vperm.slane %v3299, %v3030
        %v3437 = vsel %vm3032, %v3436, %v3435
        %v3438 = vperm.slane %v3302, %v3004
        %v3439 = vperm.slane %v3305, %v3006
        %v3440 = vsel %vm3008, %v3439, %v3438
        %v3441 = vperm.slane %v3308, %v3010
        %v3442 = vsel %vm3012, %v3441, %v3440
        %v3443 = vperm.slane %v3311, %v3014
        %v3444 = vsel %vm3016, %v3443, %v3442
        %v3445 = vperm.slane %v3314, %v3018
        %v3446 = vsel %vm3020, %v3445, %v3444
        %v3447 = vperm.slane %v3317, %v3022
        %v3448 = vsel %vm3024, %v3447, %v3446
        %v3449 = vperm.slane %v3320, %v3026
        %v3450 = vsel %vm3028, %v3449, %v3448
        %v3451 = vperm.slane %v3323, %v3030
        %v3452 = vsel %vm3032, %v3451, %v3450
        %v3453 = vperm.slane %v3326, %v3004
        %v3454 = vperm.slane %v3329, %v3006
        %v3455 = vsel %vm3008, %v3454, %v3453
        %v3456 = vperm.slane %v3332, %v3010
        %v3457 = vsel %vm3012, %v3456, %v3455
        %v3458 = vperm.slane %v3335, %v3014
        %v3459 = vsel %vm3016, %v3458, %v3457
        %v3460 = vperm.slane %v3338, %v3018
        %v3461 = vsel %vm3020, %v3460, %v3459
        %v3462 = vperm.slane %v3341, %v3022
        %v3463 = vsel %vm3024, %v3462, %v3461
        %v3464 = vperm.slane %v3344, %v3026
        %v3465 = vsel %vm3028, %v3464, %v3463
        %v3466 = vperm.slane %v3347, %v3030
        %v3467 = vsel %vm3032, %v3466, %v3465
        %v3468 = vsel %vm3139, %v3377, %v3362
        %v3469 = vsel %vm3141, %v3392, %v3468
        %v3470 = vsel %vm3143, %v3407, %v3469
        %v3471 = vsel %vm3145, %v3422, %v3470
        %v3472 = vsel %vm3147, %v3437, %v3471
        %v3473 = vsel %vm3149, %v3452, %v3472
        %v3474 = vsel %vm3151, %v3467, %v3473
        %s3476 = scalar_lea.vmem %s169, 8 [#allocation8]
        %3477 = vst.msk [vmem:[%s3476] sm:$0xff] %vm3154, %v3474
        %3542 = vset.pattern.permute.xlu0 0
        %3543 = vperm.xlu0 %3542, %v1054
        %v3544 = vpop.permute.xlu0 %3543
        %3545 = vset.pattern.permute.xlu0 0
        %3546 = vperm.xlu0 %3545, %v1166
        %v3547 = vpop.permute.xlu0 %3546
        %3548 = vset.pattern.permute.xlu0 0
        %3549 = vperm.xlu0 %3548, %v1278
        %v3550 = vpop.permute.xlu0 %3549
        %3551 = vset.pattern.permute.xlu0 0
        %3552 = vperm.xlu0 %3551, %v1390
        %v3553 = vpop.permute.xlu0 %3552
        %3554 = vset.pattern.permute.xlu0 0
        %3555 = vperm.xlu0 %3554, %v1502
        %v3556 = vpop.permute.xlu0 %3555
        %3557 = vset.pattern.permute.xlu0 0
        %3558 = vperm.xlu0 %3557, %v1614
        %v3559 = vpop.permute.xlu0 %3558
        %3560 = vset.pattern.permute.xlu0 0
        %3561 = vperm.xlu0 %3560, %v1726
        %v3562 = vpop.permute.xlu0 %3561
        %3563 = vset.pattern.permute.xlu0 0
        %3564 = vperm.xlu0 %3563, %v1838
        %v3565 = vpop.permute.xlu0 %3564
        %3566 = vset.pattern.permute.xlu0 0
        %3567 = vperm.xlu0 %3566, %v1058
        %v3568 = vpop.permute.xlu0 %3567
        %3569 = vset.pattern.permute.xlu0 0
        %3570 = vperm.xlu0 %3569, %v1170
        %v3571 = vpop.permute.xlu0 %3570
        %3572 = vset.pattern.permute.xlu0 0
        %3573 = vperm.xlu0 %3572, %v1282
        %v3574 = vpop.permute.xlu0 %3573
        %3575 = vset.pattern.permute.xlu0 0
        %3576 = vperm.xlu0 %3575, %v1394
        %v3577 = vpop.permute.xlu0 %3576
        %3578 = vset.pattern.permute.xlu0 0
        %3579 = vperm.xlu0 %3578, %v1506
        %v3580 = vpop.permute.xlu0 %3579
        %3581 = vset.pattern.permute.xlu0 0
        %3582 = vperm.xlu0 %3581, %v1618
        %v3583 = vpop.permute.xlu0 %3582
        %3584 = vset.pattern.permute.xlu0 0
        %3585 = vperm.xlu0 %3584, %v1730
        %v3586 = vpop.permute.xlu0 %3585
        %3587 = vset.pattern.permute.xlu0 0
        %3588 = vperm.xlu0 %3587, %v1842
        %v3589 = vpop.permute.xlu0 %3588
        %3590 = vset.pattern.permute.xlu0 0
        %3591 = vperm.xlu0 %3590, %v1062
        %v3592 = vpop.permute.xlu0 %3591
        %3593 = vset.pattern.permute.xlu0 0
        %3594 = vperm.xlu0 %3593, %v1174
        %v3595 = vpop.permute.xlu0 %3594
        %3596 = vset.pattern.permute.xlu0 0
        %3597 = vperm.xlu0 %3596, %v1286
        %v3598 = vpop.permute.xlu0 %3597
        %3599 = vset.pattern.permute.xlu0 0
        %3600 = vperm.xlu0 %3599, %v1398
        %v3601 = vpop.permute.xlu0 %3600
        %3602 = vset.pattern.permute.xlu0 0
        %3603 = vperm.xlu0 %3602, %v1510
        %v3604 = vpop.permute.xlu0 %3603
        %3605 = vset.pattern.permute.xlu0 0
        %3606 = vperm.xlu0 %3605, %v1622
        %v3607 = vpop.permute.xlu0 %3606
        %3608 = vset.pattern.permute.xlu0 0
        %3609 = vperm.xlu0 %3608, %v1734
        %v3610 = vpop.permute.xlu0 %3609
        %3611 = vset.pattern.permute.xlu0 0
        %3612 = vperm.xlu0 %3611, %v1846
        %v3613 = vpop.permute.xlu0 %3612
        %3614 = vset.pattern.permute.xlu0 0
        %3615 = vperm.xlu0 %3614, %v1066
        %v3616 = vpop.permute.xlu0 %3615
        %3617 = vset.pattern.permute.xlu0 0
        %3618 = vperm.xlu0 %3617, %v1178
        %v3619 = vpop.permute.xlu0 %3618
        %3620 = vset.pattern.permute.xlu0 0
        %3621 = vperm.xlu0 %3620, %v1290
        %v3622 = vpop.permute.xlu0 %3621
        %3623 = vset.pattern.permute.xlu0 0
        %3624 = vperm.xlu0 %3623, %v1402
        %v3625 = vpop.permute.xlu0 %3624
        %3626 = vset.pattern.permute.xlu0 0
        %3627 = vperm.xlu0 %3626, %v1514
        %v3628 = vpop.permute.xlu0 %3627
        %3629 = vset.pattern.permute.xlu0 0
        %3630 = vperm.xlu0 %3629, %v1626
        %v3631 = vpop.permute.xlu0 %3630
        %3632 = vset.pattern.permute.xlu0 0
        %3633 = vperm.xlu0 %3632, %v1738
        %v3634 = vpop.permute.xlu0 %3633
        %3635 = vset.pattern.permute.xlu0 0
        %3636 = vperm.xlu0 %3635, %v1850
        %v3637 = vpop.permute.xlu0 %3636
        %3638 = vset.pattern.permute.xlu0 0
        %3639 = vperm.xlu0 %3638, %v1950
        %v3640 = vpop.permute.xlu0 %3639
        %3641 = vset.pattern.permute.xlu0 0
        %3642 = vperm.xlu0 %3641, %v2062
        %v3643 = vpop.permute.xlu0 %3642
        %3644 = vset.pattern.permute.xlu0 0
        %3645 = vperm.xlu0 %3644, %v2174
        %v3646 = vpop.permute.xlu0 %3645
        %3647 = vset.pattern.permute.xlu0 0
        %3648 = vperm.xlu0 %3647, %v2286
        %v3649 = vpop.permute.xlu0 %3648
        %3650 = vset.pattern.permute.xlu0 0
        %3651 = vperm.xlu0 %3650, %v2398
        %v3652 = vpop.permute.xlu0 %3651
        %3653 = vset.pattern.permute.xlu0 0
        %3654 = vperm.xlu0 %3653, %v2510
        %v3655 = vpop.permute.xlu0 %3654
        %3656 = vset.pattern.permute.xlu0 0
        %3657 = vperm.xlu0 %3656, %v2622
        %v3658 = vpop.permute.xlu0 %3657
        %3659 = vset.pattern.permute.xlu0 0
        %3660 = vperm.xlu0 %3659, %v2734
        %v3661 = vpop.permute.xlu0 %3660
        %3662 = vset.pattern.permute.xlu0 0
        %3663 = vperm.xlu0 %3662, %v1954
        %v3664 = vpop.permute.xlu0 %3663
        %3665 = vset.pattern.permute.xlu0 0
        %3666 = vperm.xlu0 %3665, %v2066
        %v3667 = vpop.permute.xlu0 %3666
        %3668 = vset.pattern.permute.xlu0 0
        %3669 = vperm.xlu0 %3668, %v2178
        %v3670 = vpop.permute.xlu0 %3669
        %3671 = vset.pattern.permute.xlu0 0
        %3672 = vperm.xlu0 %3671, %v2290
        %v3673 = vpop.permute.xlu0 %3672
        %3674 = vset.pattern.permute.xlu0 0
        %3675 = vperm.xlu0 %3674, %v2402
        %v3676 = vpop.permute.xlu0 %3675
        %3677 = vset.pattern.permute.xlu0 0
        %3678 = vperm.xlu0 %3677, %v2514
        %v3679 = vpop.permute.xlu0 %3678
        %3680 = vset.pattern.permute.xlu0 0
        %3681 = vperm.xlu0 %3680, %v2626
        %v3682 = vpop.permute.xlu0 %3681
        %3683 = vset.pattern.permute.xlu0 0
        %3684 = vperm.xlu0 %3683, %v2738
        %v3685 = vpop.permute.xlu0 %3684
        %3686 = vset.pattern.permute.xlu0 0
        %3687 = vperm.xlu0 %3686, %v1958
        %v3688 = vpop.permute.xlu0 %3687
        %3689 = vset.pattern.permute.xlu0 0
        %3690 = vperm.xlu0 %3689, %v2070
        %v3691 = vpop.permute.xlu0 %3690
        %3692 = vset.pattern.permute.xlu0 0
        %3693 = vperm.xlu0 %3692, %v2182
        %v3694 = vpop.permute.xlu0 %3693
        %3695 = vset.pattern.permute.xlu0 0
        %3696 = vperm.xlu0 %3695, %v2294
        %v3697 = vpop.permute.xlu0 %3696
        %3698 = vset.pattern.permute.xlu0 0
        %3699 = vperm.xlu0 %3698, %v2406
        %v3700 = vpop.permute.xlu0 %3699
        %3701 = vset.pattern.permute.xlu0 0
        %3702 = vperm.xlu0 %3701, %v2518
        %v3703 = vpop.permute.xlu0 %3702
        %3704 = vset.pattern.permute.xlu0 0
        %3705 = vperm.xlu0 %3704, %v2630
        %v3706 = vpop.permute.xlu0 %3705
        %3707 = vset.pattern.permute.xlu0 0
        %3708 = vperm.xlu0 %3707, %v2742
        %v3709 = vpop.permute.xlu0 %3708
        %3710 = vset.pattern.permute.xlu0 0
        %3711 = vperm.xlu0 %3710, %v1962
        %v3712 = vpop.permute.xlu0 %3711
        %3713 = vset.pattern.permute.xlu0 0
        %3714 = vperm.xlu0 %3713, %v2074
        %v3715 = vpop.permute.xlu0 %3714
        %3716 = vset.pattern.permute.xlu0 0
        %3717 = vperm.xlu0 %3716, %v2186
        %v3718 = vpop.permute.xlu0 %3717
        %3719 = vset.pattern.permute.xlu0 0
        %3720 = vperm.xlu0 %3719, %v2298
        %v3721 = vpop.permute.xlu0 %3720
        %3722 = vset.pattern.permute.xlu0 0
        %3723 = vperm.xlu0 %3722, %v2410
        %v3724 = vpop.permute.xlu0 %3723
        %3725 = vset.pattern.permute.xlu0 0
        %3726 = vperm.xlu0 %3725, %v2522
        %v3727 = vpop.permute.xlu0 %3726
        %3728 = vset.pattern.permute.xlu0 0
        %3729 = vperm.xlu0 %3728, %v2634
        %v3730 = vpop.permute.xlu0 %3729
        %3731 = vset.pattern.permute.xlu0 0
        %3732 = vperm.xlu0 %3731, %v2746
        %v3733 = vpop.permute.xlu0 %3732
        %v3734 = vperm.slane %v3544, %v3004
        %v3735 = vperm.slane %v3547, %v3006
        %v3736 = vsel %vm3008, %v3735, %v3734
        %v3737 = vperm.slane %v3550, %v3010
        %v3738 = vsel %vm3012, %v3737, %v3736
        %v3739 = vperm.slane %v3553, %v3014
        %v3740 = vsel %vm3016, %v3739, %v3738
        %v3741 = vperm.slane %v3556, %v3018
        %v3742 = vsel %vm3020, %v3741, %v3740
        %v3743 = vperm.slane %v3559, %v3022
        %v3744 = vsel %vm3024, %v3743, %v3742
        %v3745 = vperm.slane %v3562, %v3026
        %v3746 = vsel %vm3028, %v3745, %v3744
        %v3747 = vperm.slane %v3565, %v3030
        %v3748 = vsel %vm3032, %v3747, %v3746
        %v3749 = vperm.slane %v3568, %v3004
        %v3750 = vperm.slane %v3571, %v3006
        %v3751 = vsel %vm3008, %v3750, %v3749
        %v3752 = vperm.slane %v3574, %v3010
        %v3753 = vsel %vm3012, %v3752, %v3751
        %v3754 = vperm.slane %v3577, %v3014
        %v3755 = vsel %vm3016, %v3754, %v3753
        %v3756 = vperm.slane %v3580, %v3018
        %v3757 = vsel %vm3020, %v3756, %v3755
        %v3758 = vperm.slane %v3583, %v3022
        %v3759 = vsel %vm3024, %v3758, %v3757
        %v3760 = vperm.slane %v3586, %v3026
        %v3761 = vsel %vm3028, %v3760, %v3759
        %v3762 = vperm.slane %v3589, %v3030
        %v3763 = vsel %vm3032, %v3762, %v3761
        %v3764 = vperm.slane %v3592, %v3004
        %v3765 = vperm.slane %v3595, %v3006
        %v3766 = vsel %vm3008, %v3765, %v3764
        %v3767 = vperm.slane %v3598, %v3010
        %v3768 = vsel %vm3012, %v3767, %v3766
        %v3769 = vperm.slane %v3601, %v3014
        %v3770 = vsel %vm3016, %v3769, %v3768
        %v3771 = vperm.slane %v3604, %v3018
        %v3772 = vsel %vm3020, %v3771, %v3770
        %v3773 = vperm.slane %v3607, %v3022
        %v3774 = vsel %vm3024, %v3773, %v3772
        %v3775 = vperm.slane %v3610, %v3026
        %v3776 = vsel %vm3028, %v3775, %v3774
        %v3777 = vperm.slane %v3613, %v3030
        %v3778 = vsel %vm3032, %v3777, %v3776
        %v3779 = vperm.slane %v3616, %v3004
        %v3780 = vperm.slane %v3619, %v3006
        %v3781 = vsel %vm3008, %v3780, %v3779
        %v3782 = vperm.slane %v3622, %v3010
        %v3783 = vsel %vm3012, %v3782, %v3781
        %v3784 = vperm.slane %v3625, %v3014
        %v3785 = vsel %vm3016, %v3784, %v3783
        %v3786 = vperm.slane %v3628, %v3018
        %v3787 = vsel %vm3020, %v3786, %v3785
        %v3788 = vperm.slane %v3631, %v3022
        %v3789 = vsel %vm3024, %v3788, %v3787
        %v3790 = vperm.slane %v3634, %v3026
        %v3791 = vsel %vm3028, %v3790, %v3789
        %v3792 = vperm.slane %v3637, %v3030
        %v3793 = vsel %vm3032, %v3792, %v3791
        %v3794 = vperm.slane %v3640, %v3004
        %v3795 = vperm.slane %v3643, %v3006
        %v3796 = vsel %vm3008, %v3795, %v3794
        %v3797 = vperm.slane %v3646, %v3010
        %v3798 = vsel %vm3012, %v3797, %v3796
        %v3799 = vperm.slane %v3649, %v3014
        %v3800 = vsel %vm3016, %v3799, %v3798
        %v3801 = vperm.slane %v3652, %v3018
        %v3802 = vsel %vm3020, %v3801, %v3800
        %v3803 = vperm.slane %v3655, %v3022
        %v3804 = vsel %vm3024, %v3803, %v3802
        %v3805 = vperm.slane %v3658, %v3026
        %v3806 = vsel %vm3028, %v3805, %v3804
        %v3807 = vperm.slane %v3661, %v3030
        %v3808 = vsel %vm3032, %v3807, %v3806
        %v3809 = vperm.slane %v3664, %v3004
        %v3810 = vperm.slane %v3667, %v3006
        %v3811 = vsel %vm3008, %v3810, %v3809
        %v3812 = vperm.slane %v3670, %v3010
        %v3813 = vsel %vm3012, %v3812, %v3811
        %v3814 = vperm.slane %v3673, %v3014
        %v3815 = vsel %vm3016, %v3814, %v3813
        %v3816 = vperm.slane %v3676, %v3018
        %v3817 = vsel %vm3020, %v3816, %v3815
        %v3818 = vperm.slane %v3679, %v3022
        %v3819 = vsel %vm3024, %v3818, %v3817
        %v3820 = vperm.slane %v3682, %v3026
        %v3821 = vsel %vm3028, %v3820, %v3819
        %v3822 = vperm.slane %v3685, %v3030
        %v3823 = vsel %vm3032, %v3822, %v3821
        %v3824 = vperm.slane %v3688, %v3004
        %v3825 = vperm.slane %v3691, %v3006
        %v3826 = vsel %vm3008, %v3825, %v3824
        %v3827 = vperm.slane %v3694, %v3010
        %v3828 = vsel %vm3012, %v3827, %v3826
        %v3829 = vperm.slane %v3697, %v3014
        %v3830 = vsel %vm3016, %v3829, %v3828
        %v3831 = vperm.slane %v3700, %v3018
        %v3832 = vsel %vm3020, %v3831, %v3830
        %v3833 = vperm.slane %v3703, %v3022
        %v3834 = vsel %vm3024, %v3833, %v3832
        %v3835 = vperm.slane %v3706, %v3026
        %v3836 = vsel %vm3028, %v3835, %v3834
        %v3837 = vperm.slane %v3709, %v3030
        %v3838 = vsel %vm3032, %v3837, %v3836
        %v3839 = vperm.slane %v3712, %v3004
        %v3840 = vperm.slane %v3715, %v3006
        %v3841 = vsel %vm3008, %v3840, %v3839
        %v3842 = vperm.slane %v3718, %v3010
        %v3843 = vsel %vm3012, %v3842, %v3841
        %v3844 = vperm.slane %v3721, %v3014
        %v3845 = vsel %vm3016, %v3844, %v3843
        %v3846 = vperm.slane %v3724, %v3018
        %v3847 = vsel %vm3020, %v3846, %v3845
        %v3848 = vperm.slane %v3727, %v3022
        %v3849 = vsel %vm3024, %v3848, %v3847
        %v3850 = vperm.slane %v3730, %v3026
        %v3851 = vsel %vm3028, %v3850, %v3849
        %v3852 = vperm.slane %v3733, %v3030
        %v3853 = vsel %vm3032, %v3852, %v3851
        %v3854 = vsel %vm3139, %v3763, %v3748
        %v3855 = vsel %vm3141, %v3778, %v3854
        %v3856 = vsel %vm3143, %v3793, %v3855
        %v3857 = vsel %vm3145, %v3808, %v3856
        %v3858 = vsel %vm3147, %v3823, %v3857
        %v3859 = vsel %vm3149, %v3838, %v3858
        %v3860 = vsel %vm3151, %v3853, %v3859
        %s3862 = scalar_lea.vmem %s169, 16 [#allocation8]
        %3863 = vst.msk [vmem:[%s3862] sm:$0xff] %vm3154, %v3860
        %3864 = vset.pattern.permute.xlu0 1
        %3865 = vperm.xlu0 %3864, %v1054
        %v3866 = vpop.permute.xlu0 %3865
        %3867 = vset.pattern.permute.xlu0 1
        %3868 = vperm.xlu0 %3867, %v1166
        %v3869 = vpop.permute.xlu0 %3868
        %3870 = vset.pattern.permute.xlu0 1
        %3871 = vperm.xlu0 %3870, %v1278
        %v3872 = vpop.permute.xlu0 %3871
        %3873 = vset.pattern.permute.xlu0 1
        %3874 = vperm.xlu0 %3873, %v1390
        %v3875 = vpop.permute.xlu0 %3874
        %3876 = vset.pattern.permute.xlu0 1
        %3877 = vperm.xlu0 %3876, %v1502
        %v3878 = vpop.permute.xlu0 %3877
        %3879 = vset.pattern.permute.xlu0 1
        %3880 = vperm.xlu0 %3879, %v1614
        %v3881 = vpop.permute.xlu0 %3880
        %3882 = vset.pattern.permute.xlu0 1
        %3883 = vperm.xlu0 %3882, %v1726
        %v3884 = vpop.permute.xlu0 %3883
        %3885 = vset.pattern.permute.xlu0 1
        %3886 = vperm.xlu0 %3885, %v1838
        %v3887 = vpop.permute.xlu0 %3886
        %3888 = vset.pattern.permute.xlu0 1
        %3889 = vperm.xlu0 %3888, %v1058
        %v3890 = vpop.permute.xlu0 %3889
        %3891 = vset.pattern.permute.xlu0 1
        %3892 = vperm.xlu0 %3891, %v1170
        %v3893 = vpop.permute.xlu0 %3892
        %3894 = vset.pattern.permute.xlu0 1
        %3895 = vperm.xlu0 %3894, %v1282
        %v3896 = vpop.permute.xlu0 %3895
        %3897 = vset.pattern.permute.xlu0 1
        %3898 = vperm.xlu0 %3897, %v1394
        %v3899 = vpop.permute.xlu0 %3898
        %3900 = vset.pattern.permute.xlu0 1
        %3901 = vperm.xlu0 %3900, %v1506
        %v3902 = vpop.permute.xlu0 %3901
        %3903 = vset.pattern.permute.xlu0 1
        %3904 = vperm.xlu0 %3903, %v1618
        %v3905 = vpop.permute.xlu0 %3904
        %3906 = vset.pattern.permute.xlu0 1
        %3907 = vperm.xlu0 %3906, %v1730
        %v3908 = vpop.permute.xlu0 %3907
        %3909 = vset.pattern.permute.xlu0 1
        %3910 = vperm.xlu0 %3909, %v1842
        %v3911 = vpop.permute.xlu0 %3910
        %3912 = vset.pattern.permute.xlu0 1
        %3913 = vperm.xlu0 %3912, %v1062
        %v3914 = vpop.permute.xlu0 %3913
        %3915 = vset.pattern.permute.xlu0 1
        %3916 = vperm.xlu0 %3915, %v1174
        %v3917 = vpop.permute.xlu0 %3916
        %3918 = vset.pattern.permute.xlu0 1
        %3919 = vperm.xlu0 %3918, %v1286
        %v3920 = vpop.permute.xlu0 %3919
        %3921 = vset.pattern.permute.xlu0 1
        %3922 = vperm.xlu0 %3921, %v1398
        %v3923 = vpop.permute.xlu0 %3922
        %3924 = vset.pattern.permute.xlu0 1
        %3925 = vperm.xlu0 %3924, %v1510
        %v3926 = vpop.permute.xlu0 %3925
        %3927 = vset.pattern.permute.xlu0 1
        %3928 = vperm.xlu0 %3927, %v1622
        %v3929 = vpop.permute.xlu0 %3928
        %3930 = vset.pattern.permute.xlu0 1
        %3931 = vperm.xlu0 %3930, %v1734
        %v3932 = vpop.permute.xlu0 %3931
        %3933 = vset.pattern.permute.xlu0 1
        %3934 = vperm.xlu0 %3933, %v1846
        %v3935 = vpop.permute.xlu0 %3934
        %3936 = vset.pattern.permute.xlu0 1
        %3937 = vperm.xlu0 %3936, %v1066
        %v3938 = vpop.permute.xlu0 %3937
        %3939 = vset.pattern.permute.xlu0 1
        %3940 = vperm.xlu0 %3939, %v1178
        %v3941 = vpop.permute.xlu0 %3940
        %3942 = vset.pattern.permute.xlu0 1
        %3943 = vperm.xlu0 %3942, %v1290
        %v3944 = vpop.permute.xlu0 %3943
        %3945 = vset.pattern.permute.xlu0 1
        %3946 = vperm.xlu0 %3945, %v1402
        %v3947 = vpop.permute.xlu0 %3946
        %3948 = vset.pattern.permute.xlu0 1
        %3949 = vperm.xlu0 %3948, %v1514
        %v3950 = vpop.permute.xlu0 %3949
        %3951 = vset.pattern.permute.xlu0 1
        %3952 = vperm.xlu0 %3951, %v1626
        %v3953 = vpop.permute.xlu0 %3952
        %3954 = vset.pattern.permute.xlu0 1
        %3955 = vperm.xlu0 %3954, %v1738
        %v3956 = vpop.permute.xlu0 %3955
        %3957 = vset.pattern.permute.xlu0 1
        %3958 = vperm.xlu0 %3957, %v1850
        %v3959 = vpop.permute.xlu0 %3958
        %3960 = vset.pattern.permute.xlu0 1
        %3961 = vperm.xlu0 %3960, %v1950
        %v3962 = vpop.permute.xlu0 %3961
        %3963 = vset.pattern.permute.xlu0 1
        %3964 = vperm.xlu0 %3963, %v2062
        %v3965 = vpop.permute.xlu0 %3964
        %3966 = vset.pattern.permute.xlu0 1
        %3967 = vperm.xlu0 %3966, %v2174
        %v3968 = vpop.permute.xlu0 %3967
        %3969 = vset.pattern.permute.xlu0 1
        %3970 = vperm.xlu0 %3969, %v2286
        %v3971 = vpop.permute.xlu0 %3970
        %3972 = vset.pattern.permute.xlu0 1
        %3973 = vperm.xlu0 %3972, %v2398
        %v3974 = vpop.permute.xlu0 %3973
        %3975 = vset.pattern.permute.xlu0 1
        %3976 = vperm.xlu0 %3975, %v2510
        %v3977 = vpop.permute.xlu0 %3976
        %3978 = vset.pattern.permute.xlu0 1
        %3979 = vperm.xlu0 %3978, %v2622
        %v3980 = vpop.permute.xlu0 %3979
        %3981 = vset.pattern.permute.xlu0 1
        %3982 = vperm.xlu0 %3981, %v2734
        %v3983 = vpop.permute.xlu0 %3982
        %3984 = vset.pattern.permute.xlu0 1
        %3985 = vperm.xlu0 %3984, %v1954
        %v3986 = vpop.permute.xlu0 %3985
        %3987 = vset.pattern.permute.xlu0 1
        %3988 = vperm.xlu0 %3987, %v2066
        %v3989 = vpop.permute.xlu0 %3988
        %3990 = vset.pattern.permute.xlu0 1
        %3991 = vperm.xlu0 %3990, %v2178
        %v3992 = vpop.permute.xlu0 %3991
        %3993 = vset.pattern.permute.xlu0 1
        %3994 = vperm.xlu0 %3993, %v2290
        %v3995 = vpop.permute.xlu0 %3994
        %3996 = vset.pattern.permute.xlu0 1
        %3997 = vperm.xlu0 %3996, %v2402
        %v3998 = vpop.permute.xlu0 %3997
        %3999 = vset.pattern.permute.xlu0 1
        %4000 = vperm.xlu0 %3999, %v2514
        %v4001 = vpop.permute.xlu0 %4000
        %4002 = vset.pattern.permute.xlu0 1
        %4003 = vperm.xlu0 %4002, %v2626
        %v4004 = vpop.permute.xlu0 %4003
        %4005 = vset.pattern.permute.xlu0 1
        %4006 = vperm.xlu0 %4005, %v2738
        %v4007 = vpop.permute.xlu0 %4006
        %4008 = vset.pattern.permute.xlu0 1
        %4009 = vperm.xlu0 %4008, %v1958
        %v4010 = vpop.permute.xlu0 %4009
        %4011 = vset.pattern.permute.xlu0 1
        %4012 = vperm.xlu0 %4011, %v2070
        %v4013 = vpop.permute.xlu0 %4012
        %4014 = vset.pattern.permute.xlu0 1
        %4015 = vperm.xlu0 %4014, %v2182
        %v4016 = vpop.permute.xlu0 %4015
        %4017 = vset.pattern.permute.xlu0 1
        %4018 = vperm.xlu0 %4017, %v2294
        %v4019 = vpop.permute.xlu0 %4018
        %4020 = vset.pattern.permute.xlu0 1
        %4021 = vperm.xlu0 %4020, %v2406
        %v4022 = vpop.permute.xlu0 %4021
        %4023 = vset.pattern.permute.xlu0 1
        %4024 = vperm.xlu0 %4023, %v2518
        %v4025 = vpop.permute.xlu0 %4024
        %4026 = vset.pattern.permute.xlu0 1
        %4027 = vperm.xlu0 %4026, %v2630
        %v4028 = vpop.permute.xlu0 %4027
        %4029 = vset.pattern.permute.xlu0 1
        %4030 = vperm.xlu0 %4029, %v2742
        %v4031 = vpop.permute.xlu0 %4030
        %4032 = vset.pattern.permute.xlu0 1
        %4033 = vperm.xlu0 %4032, %v1962
        %v4034 = vpop.permute.xlu0 %4033
        %4035 = vset.pattern.permute.xlu0 1
        %4036 = vperm.xlu0 %4035, %v2074
        %v4037 = vpop.permute.xlu0 %4036
        %4038 = vset.pattern.permute.xlu0 1
        %4039 = vperm.xlu0 %4038, %v2186
        %v4040 = vpop.permute.xlu0 %4039
        %4041 = vset.pattern.permute.xlu0 1
        %4042 = vperm.xlu0 %4041, %v2298
        %v4043 = vpop.permute.xlu0 %4042
        %4044 = vset.pattern.permute.xlu0 1
        %4045 = vperm.xlu0 %4044, %v2410
        %v4046 = vpop.permute.xlu0 %4045
        %4047 = vset.pattern.permute.xlu0 1
        %4048 = vperm.xlu0 %4047, %v2522
        %v4049 = vpop.permute.xlu0 %4048
        %4050 = vset.pattern.permute.xlu0 1
        %4051 = vperm.xlu0 %4050, %v2634
        %v4052 = vpop.permute.xlu0 %4051
        %4053 = vset.pattern.permute.xlu0 1
        %4054 = vperm.xlu0 %4053, %v2746
        %v4055 = vpop.permute.xlu0 %4054
        %v4056 = vperm.slane %v3866, %v3004
        %v4057 = vperm.slane %v3869, %v3006
        %v4058 = vsel %vm3008, %v4057, %v4056
        %v4059 = vperm.slane %v3872, %v3010
        %v4060 = vsel %vm3012, %v4059, %v4058
        %v4061 = vperm.slane %v3875, %v3014
        %v4062 = vsel %vm3016, %v4061, %v4060
        %v4063 = vperm.slane %v3878, %v3018
        %v4064 = vsel %vm3020, %v4063, %v4062
        %v4065 = vperm.slane %v3881, %v3022
        %v4066 = vsel %vm3024, %v4065, %v4064
        %v4067 = vperm.slane %v3884, %v3026
        %v4068 = vsel %vm3028, %v4067, %v4066
        %v4069 = vperm.slane %v3887, %v3030
        %v4070 = vsel %vm3032, %v4069, %v4068
        %v4071 = vperm.slane %v3890, %v3004
        %v4072 = vperm.slane %v3893, %v3006
        %v4073 = vsel %vm3008, %v4072, %v4071
        %v4074 = vperm.slane %v3896, %v3010
        %v4075 = vsel %vm3012, %v4074, %v4073
        %v4076 = vperm.slane %v3899, %v3014
        %v4077 = vsel %vm3016, %v4076, %v4075
        %v4078 = vperm.slane %v3902, %v3018
        %v4079 = vsel %vm3020, %v4078, %v4077
        %v4080 = vperm.slane %v3905, %v3022
        %v4081 = vsel %vm3024, %v4080, %v4079
        %v4082 = vperm.slane %v3908, %v3026
        %v4083 = vsel %vm3028, %v4082, %v4081
        %v4084 = vperm.slane %v3911, %v3030
        %v4085 = vsel %vm3032, %v4084, %v4083
        %v4086 = vperm.slane %v3914, %v3004
        %v4087 = vperm.slane %v3917, %v3006
        %v4088 = vsel %vm3008, %v4087, %v4086
        %v4089 = vperm.slane %v3920, %v3010
        %v4090 = vsel %vm3012, %v4089, %v4088
        %v4091 = vperm.slane %v3923, %v3014
        %v4092 = vsel %vm3016, %v4091, %v4090
        %v4093 = vperm.slane %v3926, %v3018
        %v4094 = vsel %vm3020, %v4093, %v4092
        %v4095 = vperm.slane %v3929, %v3022
        %v4096 = vsel %vm3024, %v4095, %v4094
        %v4097 = vperm.slane %v3932, %v3026
        %v4098 = vsel %vm3028, %v4097, %v4096
        %v4099 = vperm.slane %v3935, %v3030
        %v4100 = vsel %vm3032, %v4099, %v4098
        %v4101 = vperm.slane %v3938, %v3004
        %v4102 = vperm.slane %v3941, %v3006
        %v4103 = vsel %vm3008, %v4102, %v4101
        %v4104 = vperm.slane %v3944, %v3010
        %v4105 = vsel %vm3012, %v4104, %v4103
        %v4106 = vperm.slane %v3947, %v3014
        %v4107 = vsel %vm3016, %v4106, %v4105
        %v4108 = vperm.slane %v3950, %v3018
        %v4109 = vsel %vm3020, %v4108, %v4107
        %v4110 = vperm.slane %v3953, %v3022
        %v4111 = vsel %vm3024, %v4110, %v4109
        %v4112 = vperm.slane %v3956, %v3026
        %v4113 = vsel %vm3028, %v4112, %v4111
        %v4114 = vperm.slane %v3959, %v3030
        %v4115 = vsel %vm3032, %v4114, %v4113
        %v4116 = vperm.slane %v3962, %v3004
        %v4117 = vperm.slane %v3965, %v3006
        %v4118 = vsel %vm3008, %v4117, %v4116
        %v4119 = vperm.slane %v3968, %v3010
        %v4120 = vsel %vm3012, %v4119, %v4118
        %v4121 = vperm.slane %v3971, %v3014
        %v4122 = vsel %vm3016, %v4121, %v4120
        %v4123 = vperm.slane %v3974, %v3018
        %v4124 = vsel %vm3020, %v4123, %v4122
        %v4125 = vperm.slane %v3977, %v3022
        %v4126 = vsel %vm3024, %v4125, %v4124
        %v4127 = vperm.slane %v3980, %v3026
        %v4128 = vsel %vm3028, %v4127, %v4126
        %v4129 = vperm.slane %v3983, %v3030
        %v4130 = vsel %vm3032, %v4129, %v4128
        %v4131 = vperm.slane %v3986, %v3004
        %v4132 = vperm.slane %v3989, %v3006
        %v4133 = vsel %vm3008, %v4132, %v4131
        %v4134 = vperm.slane %v3992, %v3010
        %v4135 = vsel %vm3012, %v4134, %v4133
        %v4136 = vperm.slane %v3995, %v3014
        %v4137 = vsel %vm3016, %v4136, %v4135
        %v4138 = vperm.slane %v3998, %v3018
        %v4139 = vsel %vm3020, %v4138, %v4137
        %v4140 = vperm.slane %v4001, %v3022
        %v4141 = vsel %vm3024, %v4140, %v4139
        %v4142 = vperm.slane %v4004, %v3026
        %v4143 = vsel %vm3028, %v4142, %v4141
        %v4144 = vperm.slane %v4007, %v3030
        %v4145 = vsel %vm3032, %v4144, %v4143
        %v4146 = vperm.slane %v4010, %v3004
        %v4147 = vperm.slane %v4013, %v3006
        %v4148 = vsel %vm3008, %v4147, %v4146
        %v4149 = vperm.slane %v4016, %v3010
        %v4150 = vsel %vm3012, %v4149, %v4148
        %v4151 = vperm.slane %v4019, %v3014
        %v4152 = vsel %vm3016, %v4151, %v4150
        %v4153 = vperm.slane %v4022, %v3018
        %v4154 = vsel %vm3020, %v4153, %v4152
        %v4155 = vperm.slane %v4025, %v3022
        %v4156 = vsel %vm3024, %v4155, %v4154
        %v4157 = vperm.slane %v4028, %v3026
        %v4158 = vsel %vm3028, %v4157, %v4156
        %v4159 = vperm.slane %v4031, %v3030
        %v4160 = vsel %vm3032, %v4159, %v4158
        %v4161 = vperm.slane %v4034, %v3004
        %v4162 = vperm.slane %v4037, %v3006
        %v4163 = vsel %vm3008, %v4162, %v4161
        %v4164 = vperm.slane %v4040, %v3010
        %v4165 = vsel %vm3012, %v4164, %v4163
        %v4166 = vperm.slane %v4043, %v3014
        %v4167 = vsel %vm3016, %v4166, %v4165
        %v4168 = vperm.slane %v4046, %v3018
        %v4169 = vsel %vm3020, %v4168, %v4167
        %v4170 = vperm.slane %v4049, %v3022
        %v4171 = vsel %vm3024, %v4170, %v4169
        %v4172 = vperm.slane %v4052, %v3026
        %v4173 = vsel %vm3028, %v4172, %v4171
        %v4174 = vperm.slane %v4055, %v3030
        %v4175 = vsel %vm3032, %v4174, %v4173
        %v4176 = vsel %vm3139, %v4085, %v4070
        %v4177 = vsel %vm3141, %v4100, %v4176
        %v4178 = vsel %vm3143, %v4115, %v4177
        %v4179 = vsel %vm3145, %v4130, %v4178
        %v4180 = vsel %vm3147, %v4145, %v4179
        %v4181 = vsel %vm3149, %v4160, %v4180
        %v4182 = vsel %vm3151, %v4175, %v4181
        %s4184 = scalar_lea.vmem %s169, 24 [#allocation8]
        %4185 = vst.msk [vmem:[%s4184] sm:$0xff] %vm3154, %v4182
        %4188 = vrot.lane.b32.xlu0 %v572, 126
        %v4189 = vpop.permute.xlu0 %4188
        %4190 = vrot.lane.b32.xlu0 %v573, 126
        %v4191 = vpop.permute.xlu0 %4190
        %4194 = vrot.lane.b32.xlu0 %v572, 124
        %v4195 = vpop.permute.xlu0 %4194
        %4196 = vrot.lane.b32.xlu0 %v573, 124
        %v4197 = vpop.permute.xlu0 %4196
        %4200 = vrot.lane.b32.xlu0 %v572, 122
        %v4201 = vpop.permute.xlu0 %4200
        %4202 = vrot.lane.b32.xlu0 %v573, 122
        %v4203 = vpop.permute.xlu0 %4202
        %4206 = vrot.lane.b32.xlu0 %v572, 120
        %v4207 = vpop.permute.xlu0 %4206
        %4208 = vrot.lane.b32.xlu0 %v573, 120
        %v4209 = vpop.permute.xlu0 %4208
        %4212 = vrot.lane.b32.xlu0 %v572, 118
        %v4213 = vpop.permute.xlu0 %4212
        %4214 = vrot.lane.b32.xlu0 %v573, 118
        %v4215 = vpop.permute.xlu0 %4214
        %4218 = vrot.lane.b32.xlu0 %v572, 116
        %v4219 = vpop.permute.xlu0 %4218
        %4220 = vrot.lane.b32.xlu0 %v573, 116
        %v4221 = vpop.permute.xlu0 %4220
        %4224 = vrot.lane.b32.xlu0 %v572, 114
        %v4225 = vpop.permute.xlu0 %4224
        %4226 = vrot.lane.b32.xlu0 %v573, 114
        %v4227 = vpop.permute.xlu0 %4226
        %4230 = vrot.lane.b32.xlu0 %v572, 112
        %v4231 = vpop.permute.xlu0 %4230
        %4232 = vrot.lane.b32.xlu0 %v573, 112
        %v4233 = vpop.permute.xlu0 %4232
        %4236 = vrot.lane.b32.xlu0 %v572, 110
        %v4237 = vpop.permute.xlu0 %4236
        %4238 = vrot.lane.b32.xlu0 %v573, 110
        %v4239 = vpop.permute.xlu0 %4238
        %4242 = vrot.lane.b32.xlu0 %v572, 108
        %v4243 = vpop.permute.xlu0 %4242
        %4244 = vrot.lane.b32.xlu0 %v573, 108
        %v4245 = vpop.permute.xlu0 %4244
        %4248 = vrot.lane.b32.xlu0 %v572, 106
        %v4249 = vpop.permute.xlu0 %4248
        %4250 = vrot.lane.b32.xlu0 %v573, 106
        %v4251 = vpop.permute.xlu0 %4250
        %4254 = vrot.lane.b32.xlu0 %v572, 104
        %v4255 = vpop.permute.xlu0 %4254
        %4256 = vrot.lane.b32.xlu0 %v573, 104
        %v4257 = vpop.permute.xlu0 %4256
        %4260 = vrot.lane.b32.xlu0 %v572, 102
        %v4261 = vpop.permute.xlu0 %4260
        %4262 = vrot.lane.b32.xlu0 %v573, 102
        %v4263 = vpop.permute.xlu0 %4262
        %4266 = vrot.lane.b32.xlu0 %v572, 100
        %v4267 = vpop.permute.xlu0 %4266
        %4268 = vrot.lane.b32.xlu0 %v573, 100
        %v4269 = vpop.permute.xlu0 %4268
        %4272 = vrot.lane.b32.xlu0 %v572, 98
        %v4273 = vpop.permute.xlu0 %4272
        %4274 = vrot.lane.b32.xlu0 %v573, 98
        %v4275 = vpop.permute.xlu0 %4274
        %4278 = vrot.lane.b32.xlu0 %v572, 96
        %v4279 = vpop.permute.xlu0 %4278
        %4280 = vrot.lane.b32.xlu0 %v573, 96
        %v4281 = vpop.permute.xlu0 %4280
        %4284 = vrot.lane.b32.xlu0 %v572, 94
        %v4285 = vpop.permute.xlu0 %4284
        %4286 = vrot.lane.b32.xlu0 %v573, 94
        %v4287 = vpop.permute.xlu0 %4286
        %4290 = vrot.lane.b32.xlu0 %v572, 92
        %v4291 = vpop.permute.xlu0 %4290
        %4292 = vrot.lane.b32.xlu0 %v573, 92
        %v4293 = vpop.permute.xlu0 %4292
        %4296 = vrot.lane.b32.xlu0 %v572, 90
        %v4297 = vpop.permute.xlu0 %4296
        %4298 = vrot.lane.b32.xlu0 %v573, 90
        %v4299 = vpop.permute.xlu0 %4298
        %4302 = vrot.lane.b32.xlu0 %v572, 88
        %v4303 = vpop.permute.xlu0 %4302
        %4304 = vrot.lane.b32.xlu0 %v573, 88
        %v4305 = vpop.permute.xlu0 %4304
        %4308 = vrot.lane.b32.xlu0 %v572, 86
        %v4309 = vpop.permute.xlu0 %4308
        %4310 = vrot.lane.b32.xlu0 %v573, 86
        %v4311 = vpop.permute.xlu0 %4310
        %4314 = vrot.lane.b32.xlu0 %v572, 84
        %v4315 = vpop.permute.xlu0 %4314
        %4316 = vrot.lane.b32.xlu0 %v573, 84
        %v4317 = vpop.permute.xlu0 %4316
        %4320 = vrot.lane.b32.xlu0 %v572, 82
        %v4321 = vpop.permute.xlu0 %4320
        %4322 = vrot.lane.b32.xlu0 %v573, 82
        %v4323 = vpop.permute.xlu0 %4322
        %4326 = vrot.lane.b32.xlu0 %v572, 80
        %v4327 = vpop.permute.xlu0 %4326
        %4328 = vrot.lane.b32.xlu0 %v573, 80
        %v4329 = vpop.permute.xlu0 %4328
        %4332 = vrot.lane.b32.xlu0 %v572, 78
        %v4333 = vpop.permute.xlu0 %4332
        %4334 = vrot.lane.b32.xlu0 %v573, 78
        %v4335 = vpop.permute.xlu0 %4334
        %4338 = vrot.lane.b32.xlu0 %v572, 76
        %v4339 = vpop.permute.xlu0 %4338
        %4340 = vrot.lane.b32.xlu0 %v573, 76
        %v4341 = vpop.permute.xlu0 %4340
        %4344 = vrot.lane.b32.xlu0 %v572, 74
        %v4345 = vpop.permute.xlu0 %4344
        %4346 = vrot.lane.b32.xlu0 %v573, 74
        %v4347 = vpop.permute.xlu0 %4346
        %4350 = vrot.lane.b32.xlu0 %v572, 72
        %v4351 = vpop.permute.xlu0 %4350
        %4352 = vrot.lane.b32.xlu0 %v573, 72
        %v4353 = vpop.permute.xlu0 %4352
        %4356 = vrot.lane.b32.xlu0 %v572, 70
        %v4357 = vpop.permute.xlu0 %4356
        %4358 = vrot.lane.b32.xlu0 %v573, 70
        %v4359 = vpop.permute.xlu0 %4358
        %4362 = vrot.lane.b32.xlu0 %v572, 68
        %v4363 = vpop.permute.xlu0 %4362
        %4364 = vrot.lane.b32.xlu0 %v573, 68
        %v4365 = vpop.permute.xlu0 %4364
        %4368 = vrot.lane.b32.xlu0 %v572, 66
        %v4369 = vpop.permute.xlu0 %4368
        %4370 = vrot.lane.b32.xlu0 %v573, 66
        %v4371 = vpop.permute.xlu0 %4370
        %4374 = vrot.lane.b32.xlu0 %v572, 64
        %v4375 = vpop.permute.xlu0 %4374
        %4376 = vrot.lane.b32.xlu0 %v573, 64
        %v4377 = vpop.permute.xlu0 %4376
        %4380 = vrot.lane.b32.xlu0 %v572, 62
        %v4381 = vpop.permute.xlu0 %4380
        %4382 = vrot.lane.b32.xlu0 %v573, 62
        %v4383 = vpop.permute.xlu0 %4382
        %4386 = vrot.lane.b32.xlu0 %v572, 60
        %v4387 = vpop.permute.xlu0 %4386
        %4388 = vrot.lane.b32.xlu0 %v573, 60
        %v4389 = vpop.permute.xlu0 %4388
        %4392 = vrot.lane.b32.xlu0 %v572, 58
        %v4393 = vpop.permute.xlu0 %4392
        %4394 = vrot.lane.b32.xlu0 %v573, 58
        %v4395 = vpop.permute.xlu0 %4394
        %4398 = vrot.lane.b32.xlu0 %v572, 56
        %v4399 = vpop.permute.xlu0 %4398
        %4400 = vrot.lane.b32.xlu0 %v573, 56
        %v4401 = vpop.permute.xlu0 %4400
        %4404 = vrot.lane.b32.xlu0 %v572, 54
        %v4405 = vpop.permute.xlu0 %4404
        %4406 = vrot.lane.b32.xlu0 %v573, 54
        %v4407 = vpop.permute.xlu0 %4406
        %4410 = vrot.lane.b32.xlu0 %v572, 52
        %v4411 = vpop.permute.xlu0 %4410
        %4412 = vrot.lane.b32.xlu0 %v573, 52
        %v4413 = vpop.permute.xlu0 %4412
        %4416 = vrot.lane.b32.xlu0 %v572, 50
        %v4417 = vpop.permute.xlu0 %4416
        %4418 = vrot.lane.b32.xlu0 %v573, 50
        %v4419 = vpop.permute.xlu0 %4418
        %4422 = vrot.lane.b32.xlu0 %v572, 48
        %v4423 = vpop.permute.xlu0 %4422
        %4424 = vrot.lane.b32.xlu0 %v573, 48
        %v4425 = vpop.permute.xlu0 %4424
        %4428 = vrot.lane.b32.xlu0 %v572, 46
        %v4429 = vpop.permute.xlu0 %4428
        %4430 = vrot.lane.b32.xlu0 %v573, 46
        %v4431 = vpop.permute.xlu0 %4430
        %4434 = vrot.lane.b32.xlu0 %v572, 44
        %v4435 = vpop.permute.xlu0 %4434
        %4436 = vrot.lane.b32.xlu0 %v573, 44
        %v4437 = vpop.permute.xlu0 %4436
        %4440 = vrot.lane.b32.xlu0 %v572, 42
        %v4441 = vpop.permute.xlu0 %4440
        %4442 = vrot.lane.b32.xlu0 %v573, 42
        %v4443 = vpop.permute.xlu0 %4442
        %4446 = vrot.lane.b32.xlu0 %v572, 40
        %v4447 = vpop.permute.xlu0 %4446
        %4448 = vrot.lane.b32.xlu0 %v573, 40
        %v4449 = vpop.permute.xlu0 %4448
        %4452 = vrot.lane.b32.xlu0 %v572, 38
        %v4453 = vpop.permute.xlu0 %4452
        %4454 = vrot.lane.b32.xlu0 %v573, 38
        %v4455 = vpop.permute.xlu0 %4454
        %4458 = vrot.lane.b32.xlu0 %v572, 36
        %v4459 = vpop.permute.xlu0 %4458
        %4460 = vrot.lane.b32.xlu0 %v573, 36
        %v4461 = vpop.permute.xlu0 %4460
        %4464 = vrot.lane.b32.xlu0 %v572, 34
        %v4465 = vpop.permute.xlu0 %4464
        %4466 = vrot.lane.b32.xlu0 %v573, 34
        %v4467 = vpop.permute.xlu0 %4466
        %4470 = vrot.lane.b32.xlu0 %v572, 32
        %v4471 = vpop.permute.xlu0 %4470
        %4472 = vrot.lane.b32.xlu0 %v573, 32
        %v4473 = vpop.permute.xlu0 %4472
        %4476 = vrot.lane.b32.xlu0 %v572, 30
        %v4477 = vpop.permute.xlu0 %4476
        %4478 = vrot.lane.b32.xlu0 %v573, 30
        %v4479 = vpop.permute.xlu0 %4478
        %4482 = vrot.lane.b32.xlu0 %v572, 28
        %v4483 = vpop.permute.xlu0 %4482
        %4484 = vrot.lane.b32.xlu0 %v573, 28
        %v4485 = vpop.permute.xlu0 %4484
        %4488 = vrot.lane.b32.xlu0 %v572, 26
        %v4489 = vpop.permute.xlu0 %4488
        %4490 = vrot.lane.b32.xlu0 %v573, 26
        %v4491 = vpop.permute.xlu0 %4490
        %4494 = vrot.lane.b32.xlu0 %v572, 24
        %v4495 = vpop.permute.xlu0 %4494
        %4496 = vrot.lane.b32.xlu0 %v573, 24
        %v4497 = vpop.permute.xlu0 %4496
        %4500 = vrot.lane.b32.xlu0 %v572, 22
        %v4501 = vpop.permute.xlu0 %4500
        %4502 = vrot.lane.b32.xlu0 %v573, 22
        %v4503 = vpop.permute.xlu0 %4502
        %4506 = vrot.lane.b32.xlu0 %v572, 20
        %v4507 = vpop.permute.xlu0 %4506
        %4508 = vrot.lane.b32.xlu0 %v573, 20
        %v4509 = vpop.permute.xlu0 %4508
        %4512 = vrot.lane.b32.xlu0 %v572, 18
        %v4513 = vpop.permute.xlu0 %4512
        %4514 = vrot.lane.b32.xlu0 %v573, 18
        %v4515 = vpop.permute.xlu0 %4514
        %4518 = vrot.lane.b32.xlu0 %v572, 16
        %v4519 = vpop.permute.xlu0 %4518
        %4520 = vrot.lane.b32.xlu0 %v573, 16
        %v4521 = vpop.permute.xlu0 %4520
        %4524 = vrot.lane.b32.xlu0 %v572, 14
        %v4525 = vpop.permute.xlu0 %4524
        %4526 = vrot.lane.b32.xlu0 %v573, 14
        %v4527 = vpop.permute.xlu0 %4526
        %4530 = vrot.lane.b32.xlu0 %v572, 12
        %v4531 = vpop.permute.xlu0 %4530
        %4532 = vrot.lane.b32.xlu0 %v573, 12
        %v4533 = vpop.permute.xlu0 %4532
        %4536 = vrot.lane.b32.xlu0 %v572, 10
        %v4537 = vpop.permute.xlu0 %4536
        %4538 = vrot.lane.b32.xlu0 %v573, 10
        %v4539 = vpop.permute.xlu0 %4538
        %4542 = vrot.lane.b32.xlu0 %v572, 8
        %v4543 = vpop.permute.xlu0 %4542
        %4544 = vrot.lane.b32.xlu0 %v573, 8
        %v4545 = vpop.permute.xlu0 %4544
        %4548 = vrot.lane.b32.xlu0 %v572, 6
        %v4549 = vpop.permute.xlu0 %4548
        %4550 = vrot.lane.b32.xlu0 %v573, 6
        %v4551 = vpop.permute.xlu0 %4550
        %4554 = vrot.lane.b32.xlu0 %v572, 4
        %v4555 = vpop.permute.xlu0 %4554
        %4556 = vrot.lane.b32.xlu0 %v573, 4
        %v4557 = vpop.permute.xlu0 %4556
        %4560 = vrot.lane.b32.xlu0 %v572, 2
        %v4561 = vpop.permute.xlu0 %4560
        %4562 = vrot.lane.b32.xlu0 %v573, 2
        %v4563 = vpop.permute.xlu0 %4562
        %v4566 = vrot.slane %v4195, 4
        %v4567 = vsel %vm955, %v4566, %v572
        %v4568 = vrot.slane %v572, 4
        %v4569 = vsel %vm955, %v4195, %v4568
        %v4571 = vunpack.c.l.s4 1983009808
        %v4572 = vunpack.c.0.s8 %v4571
        %v4573 = vperm.slane %v4567, %v4572
        %v4575 = vunpack.c.l.s4 1983009808
        %v4576 = vunpack.c.0.s8 %v4575
        %v4577 = vperm.slane %v4569, %v4576
        %v4578 = vrot.slane %v4201, 4
        %v4579 = vsel %vm955, %v4578, %v4189
        %v4580 = vrot.slane %v4189, 4
        %v4581 = vsel %vm955, %v4201, %v4580
        %v4583 = vunpack.c.l.s4 1983009808
        %v4584 = vunpack.c.0.s8 %v4583
        %v4585 = vperm.slane %v4579, %v4584
        %v4587 = vunpack.c.l.s4 1983009808
        %v4588 = vunpack.c.0.s8 %v4587
        %v4589 = vperm.slane %v4581, %v4588
        %v4590 = vrot.slane %v4219, 4
        %v4591 = vsel %vm955, %v4590, %v4207
        %v4592 = vrot.slane %v4207, 4
        %v4593 = vsel %vm955, %v4219, %v4592
        %v4595 = vunpack.c.l.s4 1983009808
        %v4596 = vunpack.c.0.s8 %v4595
        %v4597 = vperm.slane %v4591, %v4596
        %v4599 = vunpack.c.l.s4 1983009808
        %v4600 = vunpack.c.0.s8 %v4599
        %v4601 = vperm.slane %v4593, %v4600
        %v4602 = vrot.slane %v4225, 4
        %v4603 = vsel %vm955, %v4602, %v4213
        %v4604 = vrot.slane %v4213, 4
        %v4605 = vsel %vm955, %v4225, %v4604
        %v4607 = vunpack.c.l.s4 1983009808
        %v4608 = vunpack.c.0.s8 %v4607
        %v4609 = vperm.slane %v4603, %v4608
        %v4611 = vunpack.c.l.s4 1983009808
        %v4612 = vunpack.c.0.s8 %v4611
        %v4613 = vperm.slane %v4605, %v4612
        %v4614 = vrot.slane %v4585, 4
        %v4615 = vsel %vm955, %v4614, %v4573
        %v4616 = vrot.slane %v4573, 4
        %v4617 = vsel %vm955, %v4585, %v4616
        %v4619 = vunpack.c.l.s4 1934713408
        %v4620 = vunpack.c.0.s8 %v4619
        %v4621 = vperm.slane %v4615, %v4620
        %v4623 = vunpack.c.l.s4 1934713408
        %v4624 = vunpack.c.0.s8 %v4623
        %v4625 = vperm.slane %v4617, %v4624
        %v4626 = vrot.slane %v4589, 4
        %v4627 = vsel %vm955, %v4626, %v4577
        %v4628 = vrot.slane %v4577, 4
        %v4629 = vsel %vm955, %v4589, %v4628
        %v4631 = vunpack.c.l.s4 1934713408
        %v4632 = vunpack.c.0.s8 %v4631
        %v4633 = vperm.slane %v4627, %v4632
        %v4635 = vunpack.c.l.s4 1934713408
        %v4636 = vunpack.c.0.s8 %v4635
        %v4637 = vperm.slane %v4629, %v4636
        %v4638 = vrot.slane %v4609, 4
        %v4639 = vsel %vm955, %v4638, %v4597
        %v4640 = vrot.slane %v4597, 4
        %v4641 = vsel %vm955, %v4609, %v4640
        %v4643 = vunpack.c.l.s4 1934713408
        %v4644 = vunpack.c.0.s8 %v4643
        %v4645 = vperm.slane %v4639, %v4644
        %v4647 = vunpack.c.l.s4 1934713408
        %v4648 = vunpack.c.0.s8 %v4647
        %v4649 = vperm.slane %v4641, %v4648
        %v4650 = vrot.slane %v4613, 4
        %v4651 = vsel %vm955, %v4650, %v4601
        %v4652 = vrot.slane %v4601, 4
        %v4653 = vsel %vm955, %v4613, %v4652
        %v4655 = vunpack.c.l.s4 1934713408
        %v4656 = vunpack.c.0.s8 %v4655
        %v4657 = vperm.slane %v4651, %v4656
        %v4659 = vunpack.c.l.s4 1934713408
        %v4660 = vunpack.c.0.s8 %v4659
        %v4661 = vperm.slane %v4653, %v4660
        %v4662 = vrot.slane %v4645, 4
        %v4663 = vsel %vm955, %v4662, %v4621
        %v4664 = vrot.slane %v4621, 4
        %v4665 = vsel %vm955, %v4645, %v4664
        %v4666 = vrot.slane %v4649, 4
        %v4667 = vsel %vm955, %v4666, %v4625
        %v4668 = vrot.slane %v4625, 4
        %v4669 = vsel %vm955, %v4649, %v4668
        %v4670 = vrot.slane %v4657, 4
        %v4671 = vsel %vm955, %v4670, %v4633
        %v4672 = vrot.slane %v4633, 4
        %v4673 = vsel %vm955, %v4657, %v4672
        %v4674 = vrot.slane %v4661, 4
        %v4675 = vsel %vm955, %v4674, %v4637
        %v4676 = vrot.slane %v4637, 4
        %v4677 = vsel %vm955, %v4661, %v4676
        %v4678 = vrot.slane %v4243, 4
        %v4679 = vsel %vm955, %v4678, %v4231
        %v4680 = vrot.slane %v4231, 4
        %v4681 = vsel %vm955, %v4243, %v4680
        %v4683 = vunpack.c.l.s4 1983009808
        %v4684 = vunpack.c.0.s8 %v4683
        %v4685 = vperm.slane %v4679, %v4684
        %v4687 = vunpack.c.l.s4 1983009808
        %v4688 = vunpack.c.0.s8 %v4687
        %v4689 = vperm.slane %v4681, %v4688
        %v4690 = vrot.slane %v4249, 4
        %v4691 = vsel %vm955, %v4690, %v4237
        %v4692 = vrot.slane %v4237, 4
        %v4693 = vsel %vm955, %v4249, %v4692
        %v4695 = vunpack.c.l.s4 1983009808
        %v4696 = vunpack.c.0.s8 %v4695
        %v4697 = vperm.slane %v4691, %v4696
        %v4699 = vunpack.c.l.s4 1983009808
        %v4700 = vunpack.c.0.s8 %v4699
        %v4701 = vperm.slane %v4693, %v4700
        %v4702 = vrot.slane %v4267, 4
        %v4703 = vsel %vm955, %v4702, %v4255
        %v4704 = vrot.slane %v4255, 4
        %v4705 = vsel %vm955, %v4267, %v4704
        %v4707 = vunpack.c.l.s4 1983009808
        %v4708 = vunpack.c.0.s8 %v4707
        %v4709 = vperm.slane %v4703, %v4708
        %v4711 = vunpack.c.l.s4 1983009808
        %v4712 = vunpack.c.0.s8 %v4711
        %v4713 = vperm.slane %v4705, %v4712
        %v4714 = vrot.slane %v4273, 4
        %v4715 = vsel %vm955, %v4714, %v4261
        %v4716 = vrot.slane %v4261, 4
        %v4717 = vsel %vm955, %v4273, %v4716
        %v4719 = vunpack.c.l.s4 1983009808
        %v4720 = vunpack.c.0.s8 %v4719
        %v4721 = vperm.slane %v4715, %v4720
        %v4723 = vunpack.c.l.s4 1983009808
        %v4724 = vunpack.c.0.s8 %v4723
        %v4725 = vperm.slane %v4717, %v4724
        %v4726 = vrot.slane %v4697, 4
        %v4727 = vsel %vm955, %v4726, %v4685
        %v4728 = vrot.slane %v4685, 4
        %v4729 = vsel %vm955, %v4697, %v4728
        %v4731 = vunpack.c.l.s4 1934713408
        %v4732 = vunpack.c.0.s8 %v4731
        %v4733 = vperm.slane %v4727, %v4732
        %v4735 = vunpack.c.l.s4 1934713408
        %v4736 = vunpack.c.0.s8 %v4735
        %v4737 = vperm.slane %v4729, %v4736
        %v4738 = vrot.slane %v4701, 4
        %v4739 = vsel %vm955, %v4738, %v4689
        %v4740 = vrot.slane %v4689, 4
        %v4741 = vsel %vm955, %v4701, %v4740
        %v4743 = vunpack.c.l.s4 1934713408
        %v4744 = vunpack.c.0.s8 %v4743
        %v4745 = vperm.slane %v4739, %v4744
        %v4747 = vunpack.c.l.s4 1934713408
        %v4748 = vunpack.c.0.s8 %v4747
        %v4749 = vperm.slane %v4741, %v4748
        %v4750 = vrot.slane %v4721, 4
        %v4751 = vsel %vm955, %v4750, %v4709
        %v4752 = vrot.slane %v4709, 4
        %v4753 = vsel %vm955, %v4721, %v4752
        %v4755 = vunpack.c.l.s4 1934713408
        %v4756 = vunpack.c.0.s8 %v4755
        %v4757 = vperm.slane %v4751, %v4756
        %v4759 = vunpack.c.l.s4 1934713408
        %v4760 = vunpack.c.0.s8 %v4759
        %v4761 = vperm.slane %v4753, %v4760
        %v4762 = vrot.slane %v4725, 4
        %v4763 = vsel %vm955, %v4762, %v4713
        %v4764 = vrot.slane %v4713, 4
        %v4765 = vsel %vm955, %v4725, %v4764
        %v4767 = vunpack.c.l.s4 1934713408
        %v4768 = vunpack.c.0.s8 %v4767
        %v4769 = vperm.slane %v4763, %v4768
        %v4771 = vunpack.c.l.s4 1934713408
        %v4772 = vunpack.c.0.s8 %v4771
        %v4773 = vperm.slane %v4765, %v4772
        %v4774 = vrot.slane %v4757, 4
        %v4775 = vsel %vm955, %v4774, %v4733
        %v4776 = vrot.slane %v4733, 4
        %v4777 = vsel %vm955, %v4757, %v4776
        %v4778 = vrot.slane %v4761, 4
        %v4779 = vsel %vm955, %v4778, %v4737
        %v4780 = vrot.slane %v4737, 4
        %v4781 = vsel %vm955, %v4761, %v4780
        %v4782 = vrot.slane %v4769, 4
        %v4783 = vsel %vm955, %v4782, %v4745
        %v4784 = vrot.slane %v4745, 4
        %v4785 = vsel %vm955, %v4769, %v4784
        %v4786 = vrot.slane %v4773, 4
        %v4787 = vsel %vm955, %v4786, %v4749
        %v4788 = vrot.slane %v4749, 4
        %v4789 = vsel %vm955, %v4773, %v4788
        %v4790 = vrot.slane %v4291, 4
        %v4791 = vsel %vm955, %v4790, %v4279
        %v4792 = vrot.slane %v4279, 4
        %v4793 = vsel %vm955, %v4291, %v4792
        %v4795 = vunpack.c.l.s4 1983009808
        %v4796 = vunpack.c.0.s8 %v4795
        %v4797 = vperm.slane %v4791, %v4796
        %v4799 = vunpack.c.l.s4 1983009808
        %v4800 = vunpack.c.0.s8 %v4799
        %v4801 = vperm.slane %v4793, %v4800
        %v4802 = vrot.slane %v4297, 4
        %v4803 = vsel %vm955, %v4802, %v4285
        %v4804 = vrot.slane %v4285, 4
        %v4805 = vsel %vm955, %v4297, %v4804
        %v4807 = vunpack.c.l.s4 1983009808
        %v4808 = vunpack.c.0.s8 %v4807
        %v4809 = vperm.slane %v4803, %v4808
        %v4811 = vunpack.c.l.s4 1983009808
        %v4812 = vunpack.c.0.s8 %v4811
        %v4813 = vperm.slane %v4805, %v4812
        %v4814 = vrot.slane %v4315, 4
        %v4815 = vsel %vm955, %v4814, %v4303
        %v4816 = vrot.slane %v4303, 4
        %v4817 = vsel %vm955, %v4315, %v4816
        %v4819 = vunpack.c.l.s4 1983009808
        %v4820 = vunpack.c.0.s8 %v4819
        %v4821 = vperm.slane %v4815, %v4820
        %v4823 = vunpack.c.l.s4 1983009808
        %v4824 = vunpack.c.0.s8 %v4823
        %v4825 = vperm.slane %v4817, %v4824
        %v4826 = vrot.slane %v4321, 4
        %v4827 = vsel %vm955, %v4826, %v4309
        %v4828 = vrot.slane %v4309, 4
        %v4829 = vsel %vm955, %v4321, %v4828
        %v4831 = vunpack.c.l.s4 1983009808
        %v4832 = vunpack.c.0.s8 %v4831
        %v4833 = vperm.slane %v4827, %v4832
        %v4835 = vunpack.c.l.s4 1983009808
        %v4836 = vunpack.c.0.s8 %v4835
        %v4837 = vperm.slane %v4829, %v4836
        %v4838 = vrot.slane %v4809, 4
        %v4839 = vsel %vm955, %v4838, %v4797
        %v4840 = vrot.slane %v4797, 4
        %v4841 = vsel %vm955, %v4809, %v4840
        %v4843 = vunpack.c.l.s4 1934713408
        %v4844 = vunpack.c.0.s8 %v4843
        %v4845 = vperm.slane %v4839, %v4844
        %v4847 = vunpack.c.l.s4 1934713408
        %v4848 = vunpack.c.0.s8 %v4847
        %v4849 = vperm.slane %v4841, %v4848
        %v4850 = vrot.slane %v4813, 4
        %v4851 = vsel %vm955, %v4850, %v4801
        %v4852 = vrot.slane %v4801, 4
        %v4853 = vsel %vm955, %v4813, %v4852
        %v4855 = vunpack.c.l.s4 1934713408
        %v4856 = vunpack.c.0.s8 %v4855
        %v4857 = vperm.slane %v4851, %v4856
        %v4859 = vunpack.c.l.s4 1934713408
        %v4860 = vunpack.c.0.s8 %v4859
        %v4861 = vperm.slane %v4853, %v4860
        %v4862 = vrot.slane %v4833, 4
        %v4863 = vsel %vm955, %v4862, %v4821
        %v4864 = vrot.slane %v4821, 4
        %v4865 = vsel %vm955, %v4833, %v4864
        %v4867 = vunpack.c.l.s4 1934713408
        %v4868 = vunpack.c.0.s8 %v4867
        %v4869 = vperm.slane %v4863, %v4868
        %v4871 = vunpack.c.l.s4 1934713408
        %v4872 = vunpack.c.0.s8 %v4871
        %v4873 = vperm.slane %v4865, %v4872
        %v4874 = vrot.slane %v4837, 4
        %v4875 = vsel %vm955, %v4874, %v4825
        %v4876 = vrot.slane %v4825, 4
        %v4877 = vsel %vm955, %v4837, %v4876
        %v4879 = vunpack.c.l.s4 1934713408
        %v4880 = vunpack.c.0.s8 %v4879
        %v4881 = vperm.slane %v4875, %v4880
        %v4883 = vunpack.c.l.s4 1934713408
        %v4884 = vunpack.c.0.s8 %v4883
        %v4885 = vperm.slane %v4877, %v4884
        %v4886 = vrot.slane %v4869, 4
        %v4887 = vsel %vm955, %v4886, %v4845
        %v4888 = vrot.slane %v4845, 4
        %v4889 = vsel %vm955, %v4869, %v4888
        %v4890 = vrot.slane %v4873, 4
        %v4891 = vsel %vm955, %v4890, %v4849
        %v4892 = vrot.slane %v4849, 4
        %v4893 = vsel %vm955, %v4873, %v4892
        %v4894 = vrot.slane %v4881, 4
        %v4895 = vsel %vm955, %v4894, %v4857
        %v4896 = vrot.slane %v4857, 4
        %v4897 = vsel %vm955, %v4881, %v4896
        %v4898 = vrot.slane %v4885, 4
        %v4899 = vsel %vm955, %v4898, %v4861
        %v4900 = vrot.slane %v4861, 4
        %v4901 = vsel %vm955, %v4885, %v4900
        %v4902 = vrot.slane %v4339, 4
        %v4903 = vsel %vm955, %v4902, %v4327
        %v4904 = vrot.slane %v4327, 4
        %v4905 = vsel %vm955, %v4339, %v4904
        %v4907 = vunpack.c.l.s4 1983009808
        %v4908 = vunpack.c.0.s8 %v4907
        %v4909 = vperm.slane %v4903, %v4908
        %v4911 = vunpack.c.l.s4 1983009808
        %v4912 = vunpack.c.0.s8 %v4911
        %v4913 = vperm.slane %v4905, %v4912
        %v4914 = vrot.slane %v4345, 4
        %v4915 = vsel %vm955, %v4914, %v4333
        %v4916 = vrot.slane %v4333, 4
        %v4917 = vsel %vm955, %v4345, %v4916
        %v4919 = vunpack.c.l.s4 1983009808
        %v4920 = vunpack.c.0.s8 %v4919
        %v4921 = vperm.slane %v4915, %v4920
        %v4923 = vunpack.c.l.s4 1983009808
        %v4924 = vunpack.c.0.s8 %v4923
        %v4925 = vperm.slane %v4917, %v4924
        %v4926 = vrot.slane %v4363, 4
        %v4927 = vsel %vm955, %v4926, %v4351
        %v4928 = vrot.slane %v4351, 4
        %v4929 = vsel %vm955, %v4363, %v4928
        %v4931 = vunpack.c.l.s4 1983009808
        %v4932 = vunpack.c.0.s8 %v4931
        %v4933 = vperm.slane %v4927, %v4932
        %v4935 = vunpack.c.l.s4 1983009808
        %v4936 = vunpack.c.0.s8 %v4935
        %v4937 = vperm.slane %v4929, %v4936
        %v4938 = vrot.slane %v4369, 4
        %v4939 = vsel %vm955, %v4938, %v4357
        %v4940 = vrot.slane %v4357, 4
        %v4941 = vsel %vm955, %v4369, %v4940
        %v4943 = vunpack.c.l.s4 1983009808
        %v4944 = vunpack.c.0.s8 %v4943
        %v4945 = vperm.slane %v4939, %v4944
        %v4947 = vunpack.c.l.s4 1983009808
        %v4948 = vunpack.c.0.s8 %v4947
        %v4949 = vperm.slane %v4941, %v4948
        %v4950 = vrot.slane %v4921, 4
        %v4951 = vsel %vm955, %v4950, %v4909
        %v4952 = vrot.slane %v4909, 4
        %v4953 = vsel %vm955, %v4921, %v4952
        %v4955 = vunpack.c.l.s4 1934713408
        %v4956 = vunpack.c.0.s8 %v4955
        %v4957 = vperm.slane %v4951, %v4956
        %v4959 = vunpack.c.l.s4 1934713408
        %v4960 = vunpack.c.0.s8 %v4959
        %v4961 = vperm.slane %v4953, %v4960
        %v4962 = vrot.slane %v4925, 4
        %v4963 = vsel %vm955, %v4962, %v4913
        %v4964 = vrot.slane %v4913, 4
        %v4965 = vsel %vm955, %v4925, %v4964
        %v4967 = vunpack.c.l.s4 1934713408
        %v4968 = vunpack.c.0.s8 %v4967
        %v4969 = vperm.slane %v4963, %v4968
        %v4971 = vunpack.c.l.s4 1934713408
        %v4972 = vunpack.c.0.s8 %v4971
        %v4973 = vperm.slane %v4965, %v4972
        %v4974 = vrot.slane %v4945, 4
        %v4975 = vsel %vm955, %v4974, %v4933
        %v4976 = vrot.slane %v4933, 4
        %v4977 = vsel %vm955, %v4945, %v4976
        %v4979 = vunpack.c.l.s4 1934713408
        %v4980 = vunpack.c.0.s8 %v4979
        %v4981 = vperm.slane %v4975, %v4980
        %v4983 = vunpack.c.l.s4 1934713408
        %v4984 = vunpack.c.0.s8 %v4983
        %v4985 = vperm.slane %v4977, %v4984
        %v4986 = vrot.slane %v4949, 4
        %v4987 = vsel %vm955, %v4986, %v4937
        %v4988 = vrot.slane %v4937, 4
        %v4989 = vsel %vm955, %v4949, %v4988
        %v4991 = vunpack.c.l.s4 1934713408
        %v4992 = vunpack.c.0.s8 %v4991
        %v4993 = vperm.slane %v4987, %v4992
        %v4995 = vunpack.c.l.s4 1934713408
        %v4996 = vunpack.c.0.s8 %v4995
        %v4997 = vperm.slane %v4989, %v4996
        %v4998 = vrot.slane %v4981, 4
        %v4999 = vsel %vm955, %v4998, %v4957
        %v5000 = vrot.slane %v4957, 4
        %v5001 = vsel %vm955, %v4981, %v5000
        %v5002 = vrot.slane %v4985, 4
        %v5003 = vsel %vm955, %v5002, %v4961
        %v5004 = vrot.slane %v4961, 4
        %v5005 = vsel %vm955, %v4985, %v5004
        %v5006 = vrot.slane %v4993, 4
        %v5007 = vsel %vm955, %v5006, %v4969
        %v5008 = vrot.slane %v4969, 4
        %v5009 = vsel %vm955, %v4993, %v5008
        %v5010 = vrot.slane %v4997, 4
        %v5011 = vsel %vm955, %v5010, %v4973
        %v5012 = vrot.slane %v4973, 4
        %v5013 = vsel %vm955, %v4997, %v5012
        %v5014 = vrot.slane %v4387, 4
        %v5015 = vsel %vm955, %v5014, %v4375
        %v5016 = vrot.slane %v4375, 4
        %v5017 = vsel %vm955, %v4387, %v5016
        %v5019 = vunpack.c.l.s4 1983009808
        %v5020 = vunpack.c.0.s8 %v5019
        %v5021 = vperm.slane %v5015, %v5020
        %v5023 = vunpack.c.l.s4 1983009808
        %v5024 = vunpack.c.0.s8 %v5023
        %v5025 = vperm.slane %v5017, %v5024
        %v5026 = vrot.slane %v4393, 4
        %v5027 = vsel %vm955, %v5026, %v4381
        %v5028 = vrot.slane %v4381, 4
        %v5029 = vsel %vm955, %v4393, %v5028
        %v5031 = vunpack.c.l.s4 1983009808
        %v5032 = vunpack.c.0.s8 %v5031
        %v5033 = vperm.slane %v5027, %v5032
        %v5035 = vunpack.c.l.s4 1983009808
        %v5036 = vunpack.c.0.s8 %v5035
        %v5037 = vperm.slane %v5029, %v5036
        %v5038 = vrot.slane %v4411, 4
        %v5039 = vsel %vm955, %v5038, %v4399
        %v5040 = vrot.slane %v4399, 4
        %v5041 = vsel %vm955, %v4411, %v5040
        %v5043 = vunpack.c.l.s4 1983009808
        %v5044 = vunpack.c.0.s8 %v5043
        %v5045 = vperm.slane %v5039, %v5044
        %v5047 = vunpack.c.l.s4 1983009808
        %v5048 = vunpack.c.0.s8 %v5047
        %v5049 = vperm.slane %v5041, %v5048
        %v5050 = vrot.slane %v4417, 4
        %v5051 = vsel %vm955, %v5050, %v4405
        %v5052 = vrot.slane %v4405, 4
        %v5053 = vsel %vm955, %v4417, %v5052
        %v5055 = vunpack.c.l.s4 1983009808
        %v5056 = vunpack.c.0.s8 %v5055
        %v5057 = vperm.slane %v5051, %v5056
        %v5059 = vunpack.c.l.s4 1983009808
        %v5060 = vunpack.c.0.s8 %v5059
        %v5061 = vperm.slane %v5053, %v5060
        %v5062 = vrot.slane %v5033, 4
        %v5063 = vsel %vm955, %v5062, %v5021
        %v5064 = vrot.slane %v5021, 4
        %v5065 = vsel %vm955, %v5033, %v5064
        %v5067 = vunpack.c.l.s4 1934713408
        %v5068 = vunpack.c.0.s8 %v5067
        %v5069 = vperm.slane %v5063, %v5068
        %v5071 = vunpack.c.l.s4 1934713408
        %v5072 = vunpack.c.0.s8 %v5071
        %v5073 = vperm.slane %v5065, %v5072
        %v5074 = vrot.slane %v5037, 4
        %v5075 = vsel %vm955, %v5074, %v5025
        %v5076 = vrot.slane %v5025, 4
        %v5077 = vsel %vm955, %v5037, %v5076
        %v5079 = vunpack.c.l.s4 1934713408
        %v5080 = vunpack.c.0.s8 %v5079
        %v5081 = vperm.slane %v5075, %v5080
        %v5083 = vunpack.c.l.s4 1934713408
        %v5084 = vunpack.c.0.s8 %v5083
        %v5085 = vperm.slane %v5077, %v5084
        %v5086 = vrot.slane %v5057, 4
        %v5087 = vsel %vm955, %v5086, %v5045
        %v5088 = vrot.slane %v5045, 4
        %v5089 = vsel %vm955, %v5057, %v5088
        %v5091 = vunpack.c.l.s4 1934713408
        %v5092 = vunpack.c.0.s8 %v5091
        %v5093 = vperm.slane %v5087, %v5092
        %v5095 = vunpack.c.l.s4 1934713408
        %v5096 = vunpack.c.0.s8 %v5095
        %v5097 = vperm.slane %v5089, %v5096
        %v5098 = vrot.slane %v5061, 4
        %v5099 = vsel %vm955, %v5098, %v5049
        %v5100 = vrot.slane %v5049, 4
        %v5101 = vsel %vm955, %v5061, %v5100
        %v5103 = vunpack.c.l.s4 1934713408
        %v5104 = vunpack.c.0.s8 %v5103
        %v5105 = vperm.slane %v5099, %v5104
        %v5107 = vunpack.c.l.s4 1934713408
        %v5108 = vunpack.c.0.s8 %v5107
        %v5109 = vperm.slane %v5101, %v5108
        %v5110 = vrot.slane %v5093, 4
        %v5111 = vsel %vm955, %v5110, %v5069
        %v5112 = vrot.slane %v5069, 4
        %v5113 = vsel %vm955, %v5093, %v5112
        %v5114 = vrot.slane %v5097, 4
        %v5115 = vsel %vm955, %v5114, %v5073
        %v5116 = vrot.slane %v5073, 4
        %v5117 = vsel %vm955, %v5097, %v5116
        %v5118 = vrot.slane %v5105, 4
        %v5119 = vsel %vm955, %v5118, %v5081
        %v5120 = vrot.slane %v5081, 4
        %v5121 = vsel %vm955, %v5105, %v5120
        %v5122 = vrot.slane %v5109, 4
        %v5123 = vsel %vm955, %v5122, %v5085
        %v5124 = vrot.slane %v5085, 4
        %v5125 = vsel %vm955, %v5109, %v5124
        %v5126 = vrot.slane %v4435, 4
        %v5127 = vsel %vm955, %v5126, %v4423
        %v5128 = vrot.slane %v4423, 4
        %v5129 = vsel %vm955, %v4435, %v5128
        %v5131 = vunpack.c.l.s4 1983009808
        %v5132 = vunpack.c.0.s8 %v5131
        %v5133 = vperm.slane %v5127, %v5132
        %v5135 = vunpack.c.l.s4 1983009808
        %v5136 = vunpack.c.0.s8 %v5135
        %v5137 = vperm.slane %v5129, %v5136
        %v5138 = vrot.slane %v4441, 4
        %v5139 = vsel %vm955, %v5138, %v4429
        %v5140 = vrot.slane %v4429, 4
        %v5141 = vsel %vm955, %v4441, %v5140
        %v5143 = vunpack.c.l.s4 1983009808
        %v5144 = vunpack.c.0.s8 %v5143
        %v5145 = vperm.slane %v5139, %v5144
        %v5147 = vunpack.c.l.s4 1983009808
        %v5148 = vunpack.c.0.s8 %v5147
        %v5149 = vperm.slane %v5141, %v5148
        %v5150 = vrot.slane %v4459, 4
        %v5151 = vsel %vm955, %v5150, %v4447
        %v5152 = vrot.slane %v4447, 4
        %v5153 = vsel %vm955, %v4459, %v5152
        %v5155 = vunpack.c.l.s4 1983009808
        %v5156 = vunpack.c.0.s8 %v5155
        %v5157 = vperm.slane %v5151, %v5156
        %v5159 = vunpack.c.l.s4 1983009808
        %v5160 = vunpack.c.0.s8 %v5159
        %v5161 = vperm.slane %v5153, %v5160
        %v5162 = vrot.slane %v4465, 4
        %v5163 = vsel %vm955, %v5162, %v4453
        %v5164 = vrot.slane %v4453, 4
        %v5165 = vsel %vm955, %v4465, %v5164
        %v5167 = vunpack.c.l.s4 1983009808
        %v5168 = vunpack.c.0.s8 %v5167
        %v5169 = vperm.slane %v5163, %v5168
        %v5171 = vunpack.c.l.s4 1983009808
        %v5172 = vunpack.c.0.s8 %v5171
        %v5173 = vperm.slane %v5165, %v5172
        %v5174 = vrot.slane %v5145, 4
        %v5175 = vsel %vm955, %v5174, %v5133
        %v5176 = vrot.slane %v5133, 4
        %v5177 = vsel %vm955, %v5145, %v5176
        %v5179 = vunpack.c.l.s4 1934713408
        %v5180 = vunpack.c.0.s8 %v5179
        %v5181 = vperm.slane %v5175, %v5180
        %v5183 = vunpack.c.l.s4 1934713408
        %v5184 = vunpack.c.0.s8 %v5183
        %v5185 = vperm.slane %v5177, %v5184
        %v5186 = vrot.slane %v5149, 4
        %v5187 = vsel %vm955, %v5186, %v5137
        %v5188 = vrot.slane %v5137, 4
        %v5189 = vsel %vm955, %v5149, %v5188
        %v5191 = vunpack.c.l.s4 1934713408
        %v5192 = vunpack.c.0.s8 %v5191
        %v5193 = vperm.slane %v5187, %v5192
        %v5195 = vunpack.c.l.s4 1934713408
        %v5196 = vunpack.c.0.s8 %v5195
        %v5197 = vperm.slane %v5189, %v5196
        %v5198 = vrot.slane %v5169, 4
        %v5199 = vsel %vm955, %v5198, %v5157
        %v5200 = vrot.slane %v5157, 4
        %v5201 = vsel %vm955, %v5169, %v5200
        %v5203 = vunpack.c.l.s4 1934713408
        %v5204 = vunpack.c.0.s8 %v5203
        %v5205 = vperm.slane %v5199, %v5204
        %v5207 = vunpack.c.l.s4 1934713408
        %v5208 = vunpack.c.0.s8 %v5207
        %v5209 = vperm.slane %v5201, %v5208
        %v5210 = vrot.slane %v5173, 4
        %v5211 = vsel %vm955, %v5210, %v5161
        %v5212 = vrot.slane %v5161, 4
        %v5213 = vsel %vm955, %v5173, %v5212
        %v5215 = vunpack.c.l.s4 1934713408
        %v5216 = vunpack.c.0.s8 %v5215
        %v5217 = vperm.slane %v5211, %v5216
        %v5219 = vunpack.c.l.s4 1934713408
        %v5220 = vunpack.c.0.s8 %v5219
        %v5221 = vperm.slane %v5213, %v5220
        %v5222 = vrot.slane %v5205, 4
        %v5223 = vsel %vm955, %v5222, %v5181
        %v5224 = vrot.slane %v5181, 4
        %v5225 = vsel %vm955, %v5205, %v5224
        %v5226 = vrot.slane %v5209, 4
        %v5227 = vsel %vm955, %v5226, %v5185
        %v5228 = vrot.slane %v5185, 4
        %v5229 = vsel %vm955, %v5209, %v5228
        %v5230 = vrot.slane %v5217, 4
        %v5231 = vsel %vm955, %v5230, %v5193
        %v5232 = vrot.slane %v5193, 4
        %v5233 = vsel %vm955, %v5217, %v5232
        %v5234 = vrot.slane %v5221, 4
        %v5235 = vsel %vm955, %v5234, %v5197
        %v5236 = vrot.slane %v5197, 4
        %v5237 = vsel %vm955, %v5221, %v5236
        %v5238 = vrot.slane %v4483, 4
        %v5239 = vsel %vm955, %v5238, %v4471
        %v5240 = vrot.slane %v4471, 4
        %v5241 = vsel %vm955, %v4483, %v5240
        %v5243 = vunpack.c.l.s4 1983009808
        %v5244 = vunpack.c.0.s8 %v5243
        %v5245 = vperm.slane %v5239, %v5244
        %v5247 = vunpack.c.l.s4 1983009808
        %v5248 = vunpack.c.0.s8 %v5247
        %v5249 = vperm.slane %v5241, %v5248
        %v5250 = vrot.slane %v4489, 4
        %v5251 = vsel %vm955, %v5250, %v4477
        %v5252 = vrot.slane %v4477, 4
        %v5253 = vsel %vm955, %v4489, %v5252
        %v5255 = vunpack.c.l.s4 1983009808
        %v5256 = vunpack.c.0.s8 %v5255
        %v5257 = vperm.slane %v5251, %v5256
        %v5259 = vunpack.c.l.s4 1983009808
        %v5260 = vunpack.c.0.s8 %v5259
        %v5261 = vperm.slane %v5253, %v5260
        %v5262 = vrot.slane %v4507, 4
        %v5263 = vsel %vm955, %v5262, %v4495
        %v5264 = vrot.slane %v4495, 4
        %v5265 = vsel %vm955, %v4507, %v5264
        %v5267 = vunpack.c.l.s4 1983009808
        %v5268 = vunpack.c.0.s8 %v5267
        %v5269 = vperm.slane %v5263, %v5268
        %v5271 = vunpack.c.l.s4 1983009808
        %v5272 = vunpack.c.0.s8 %v5271
        %v5273 = vperm.slane %v5265, %v5272
        %v5274 = vrot.slane %v4513, 4
        %v5275 = vsel %vm955, %v5274, %v4501
        %v5276 = vrot.slane %v4501, 4
        %v5277 = vsel %vm955, %v4513, %v5276
        %v5279 = vunpack.c.l.s4 1983009808
        %v5280 = vunpack.c.0.s8 %v5279
        %v5281 = vperm.slane %v5275, %v5280
        %v5283 = vunpack.c.l.s4 1983009808
        %v5284 = vunpack.c.0.s8 %v5283
        %v5285 = vperm.slane %v5277, %v5284
        %v5286 = vrot.slane %v5257, 4
        %v5287 = vsel %vm955, %v5286, %v5245
        %v5288 = vrot.slane %v5245, 4
        %v5289 = vsel %vm955, %v5257, %v5288
        %v5291 = vunpack.c.l.s4 1934713408
        %v5292 = vunpack.c.0.s8 %v5291
        %v5293 = vperm.slane %v5287, %v5292
        %v5295 = vunpack.c.l.s4 1934713408
        %v5296 = vunpack.c.0.s8 %v5295
        %v5297 = vperm.slane %v5289, %v5296
        %v5298 = vrot.slane %v5261, 4
        %v5299 = vsel %vm955, %v5298, %v5249
        %v5300 = vrot.slane %v5249, 4
        %v5301 = vsel %vm955, %v5261, %v5300
        %v5303 = vunpack.c.l.s4 1934713408
        %v5304 = vunpack.c.0.s8 %v5303
        %v5305 = vperm.slane %v5299, %v5304
        %v5307 = vunpack.c.l.s4 1934713408
        %v5308 = vunpack.c.0.s8 %v5307
        %v5309 = vperm.slane %v5301, %v5308
        %v5310 = vrot.slane %v5281, 4
        %v5311 = vsel %vm955, %v5310, %v5269
        %v5312 = vrot.slane %v5269, 4
        %v5313 = vsel %vm955, %v5281, %v5312
        %v5315 = vunpack.c.l.s4 1934713408
        %v5316 = vunpack.c.0.s8 %v5315
        %v5317 = vperm.slane %v5311, %v5316
        %v5319 = vunpack.c.l.s4 1934713408
        %v5320 = vunpack.c.0.s8 %v5319
        %v5321 = vperm.slane %v5313, %v5320
        %v5322 = vrot.slane %v5285, 4
        %v5323 = vsel %vm955, %v5322, %v5273
        %v5324 = vrot.slane %v5273, 4
        %v5325 = vsel %vm955, %v5285, %v5324
        %v5327 = vunpack.c.l.s4 1934713408
        %v5328 = vunpack.c.0.s8 %v5327
        %v5329 = vperm.slane %v5323, %v5328
        %v5331 = vunpack.c.l.s4 1934713408
        %v5332 = vunpack.c.0.s8 %v5331
        %v5333 = vperm.slane %v5325, %v5332
        %v5334 = vrot.slane %v5317, 4
        %v5335 = vsel %vm955, %v5334, %v5293
        %v5336 = vrot.slane %v5293, 4
        %v5337 = vsel %vm955, %v5317, %v5336
        %v5338 = vrot.slane %v5321, 4
        %v5339 = vsel %vm955, %v5338, %v5297
        %v5340 = vrot.slane %v5297, 4
        %v5341 = vsel %vm955, %v5321, %v5340
        %v5342 = vrot.slane %v5329, 4
        %v5343 = vsel %vm955, %v5342, %v5305
        %v5344 = vrot.slane %v5305, 4
        %v5345 = vsel %vm955, %v5329, %v5344
        %v5346 = vrot.slane %v5333, 4
        %v5347 = vsel %vm955, %v5346, %v5309
        %v5348 = vrot.slane %v5309, 4
        %v5349 = vsel %vm955, %v5333, %v5348
        %v5350 = vrot.slane %v4531, 4
        %v5351 = vsel %vm955, %v5350, %v4519
        %v5352 = vrot.slane %v4519, 4
        %v5353 = vsel %vm955, %v4531, %v5352
        %v5355 = vunpack.c.l.s4 1983009808
        %v5356 = vunpack.c.0.s8 %v5355
        %v5357 = vperm.slane %v5351, %v5356
        %v5359 = vunpack.c.l.s4 1983009808
        %v5360 = vunpack.c.0.s8 %v5359
        %v5361 = vperm.slane %v5353, %v5360
        %v5362 = vrot.slane %v4537, 4
        %v5363 = vsel %vm955, %v5362, %v4525
        %v5364 = vrot.slane %v4525, 4
        %v5365 = vsel %vm955, %v4537, %v5364
        %v5367 = vunpack.c.l.s4 1983009808
        %v5368 = vunpack.c.0.s8 %v5367
        %v5369 = vperm.slane %v5363, %v5368
        %v5371 = vunpack.c.l.s4 1983009808
        %v5372 = vunpack.c.0.s8 %v5371
        %v5373 = vperm.slane %v5365, %v5372
        %v5374 = vrot.slane %v4555, 4
        %v5375 = vsel %vm955, %v5374, %v4543
        %v5376 = vrot.slane %v4543, 4
        %v5377 = vsel %vm955, %v4555, %v5376
        %v5379 = vunpack.c.l.s4 1983009808
        %v5380 = vunpack.c.0.s8 %v5379
        %v5381 = vperm.slane %v5375, %v5380
        %v5383 = vunpack.c.l.s4 1983009808
        %v5384 = vunpack.c.0.s8 %v5383
        %v5385 = vperm.slane %v5377, %v5384
        %v5386 = vrot.slane %v4561, 4
        %v5387 = vsel %vm955, %v5386, %v4549
        %v5388 = vrot.slane %v4549, 4
        %v5389 = vsel %vm955, %v4561, %v5388
        %v5391 = vunpack.c.l.s4 1983009808
        %v5392 = vunpack.c.0.s8 %v5391
        %v5393 = vperm.slane %v5387, %v5392
        %v5395 = vunpack.c.l.s4 1983009808
        %v5396 = vunpack.c.0.s8 %v5395
        %v5397 = vperm.slane %v5389, %v5396
        %v5398 = vrot.slane %v5369, 4
        %v5399 = vsel %vm955, %v5398, %v5357
        %v5400 = vrot.slane %v5357, 4
        %v5401 = vsel %vm955, %v5369, %v5400
        %v5403 = vunpack.c.l.s4 1934713408
        %v5404 = vunpack.c.0.s8 %v5403
        %v5405 = vperm.slane %v5399, %v5404
        %v5407 = vunpack.c.l.s4 1934713408
        %v5408 = vunpack.c.0.s8 %v5407
        %v5409 = vperm.slane %v5401, %v5408
        %v5410 = vrot.slane %v5373, 4
        %v5411 = vsel %vm955, %v5410, %v5361
        %v5412 = vrot.slane %v5361, 4
        %v5413 = vsel %vm955, %v5373, %v5412
        %v5415 = vunpack.c.l.s4 1934713408
        %v5416 = vunpack.c.0.s8 %v5415
        %v5417 = vperm.slane %v5411, %v5416
        %v5419 = vunpack.c.l.s4 1934713408
        %v5420 = vunpack.c.0.s8 %v5419
        %v5421 = vperm.slane %v5413, %v5420
        %v5422 = vrot.slane %v5393, 4
        %v5423 = vsel %vm955, %v5422, %v5381
        %v5424 = vrot.slane %v5381, 4
        %v5425 = vsel %vm955, %v5393, %v5424
        %v5427 = vunpack.c.l.s4 1934713408
        %v5428 = vunpack.c.0.s8 %v5427
        %v5429 = vperm.slane %v5423, %v5428
        %v5431 = vunpack.c.l.s4 1934713408
        %v5432 = vunpack.c.0.s8 %v5431
        %v5433 = vperm.slane %v5425, %v5432
        %v5434 = vrot.slane %v5397, 4
        %v5435 = vsel %vm955, %v5434, %v5385
        %v5436 = vrot.slane %v5385, 4
        %v5437 = vsel %vm955, %v5397, %v5436
        %v5439 = vunpack.c.l.s4 1934713408
        %v5440 = vunpack.c.0.s8 %v5439
        %v5441 = vperm.slane %v5435, %v5440
        %v5443 = vunpack.c.l.s4 1934713408
        %v5444 = vunpack.c.0.s8 %v5443
        %v5445 = vperm.slane %v5437, %v5444
        %v5446 = vrot.slane %v5429, 4
        %v5447 = vsel %vm955, %v5446, %v5405
        %v5448 = vrot.slane %v5405, 4
        %v5449 = vsel %vm955, %v5429, %v5448
        %v5450 = vrot.slane %v5433, 4
        %v5451 = vsel %vm955, %v5450, %v5409
        %v5452 = vrot.slane %v5409, 4
        %v5453 = vsel %vm955, %v5433, %v5452
        %v5454 = vrot.slane %v5441, 4
        %v5455 = vsel %vm955, %v5454, %v5417
        %v5456 = vrot.slane %v5417, 4
        %v5457 = vsel %vm955, %v5441, %v5456
        %v5458 = vrot.slane %v5445, 4
        %v5459 = vsel %vm955, %v5458, %v5421
        %v5460 = vrot.slane %v5421, 4
        %v5461 = vsel %vm955, %v5445, %v5460
        %v5462 = vrot.slane %v4197, 4
        %v5463 = vsel %vm955, %v5462, %v573
        %v5464 = vrot.slane %v573, 4
        %v5465 = vsel %vm955, %v4197, %v5464
        %v5467 = vunpack.c.l.s4 1983009808
        %v5468 = vunpack.c.0.s8 %v5467
        %v5469 = vperm.slane %v5463, %v5468
        %v5471 = vunpack.c.l.s4 1983009808
        %v5472 = vunpack.c.0.s8 %v5471
        %v5473 = vperm.slane %v5465, %v5472
        %v5474 = vrot.slane %v4203, 4
        %v5475 = vsel %vm955, %v5474, %v4191
        %v5476 = vrot.slane %v4191, 4
        %v5477 = vsel %vm955, %v4203, %v5476
        %v5479 = vunpack.c.l.s4 1983009808
        %v5480 = vunpack.c.0.s8 %v5479
        %v5481 = vperm.slane %v5475, %v5480
        %v5483 = vunpack.c.l.s4 1983009808
        %v5484 = vunpack.c.0.s8 %v5483
        %v5485 = vperm.slane %v5477, %v5484
        %v5486 = vrot.slane %v4221, 4
        %v5487 = vsel %vm955, %v5486, %v4209
        %v5488 = vrot.slane %v4209, 4
        %v5489 = vsel %vm955, %v4221, %v5488
        %v5491 = vunpack.c.l.s4 1983009808
        %v5492 = vunpack.c.0.s8 %v5491
        %v5493 = vperm.slane %v5487, %v5492
        %v5495 = vunpack.c.l.s4 1983009808
        %v5496 = vunpack.c.0.s8 %v5495
        %v5497 = vperm.slane %v5489, %v5496
        %v5498 = vrot.slane %v4227, 4
        %v5499 = vsel %vm955, %v5498, %v4215
        %v5500 = vrot.slane %v4215, 4
        %v5501 = vsel %vm955, %v4227, %v5500
        %v5503 = vunpack.c.l.s4 1983009808
        %v5504 = vunpack.c.0.s8 %v5503
        %v5505 = vperm.slane %v5499, %v5504
        %v5507 = vunpack.c.l.s4 1983009808
        %v5508 = vunpack.c.0.s8 %v5507
        %v5509 = vperm.slane %v5501, %v5508
        %v5510 = vrot.slane %v5481, 4
        %v5511 = vsel %vm955, %v5510, %v5469
        %v5512 = vrot.slane %v5469, 4
        %v5513 = vsel %vm955, %v5481, %v5512
        %v5515 = vunpack.c.l.s4 1934713408
        %v5516 = vunpack.c.0.s8 %v5515
        %v5517 = vperm.slane %v5511, %v5516
        %v5519 = vunpack.c.l.s4 1934713408
        %v5520 = vunpack.c.0.s8 %v5519
        %v5521 = vperm.slane %v5513, %v5520
        %v5522 = vrot.slane %v5485, 4
        %v5523 = vsel %vm955, %v5522, %v5473
        %v5524 = vrot.slane %v5473, 4
        %v5525 = vsel %vm955, %v5485, %v5524
        %v5527 = vunpack.c.l.s4 1934713408
        %v5528 = vunpack.c.0.s8 %v5527
        %v5529 = vperm.slane %v5523, %v5528
        %v5531 = vunpack.c.l.s4 1934713408
        %v5532 = vunpack.c.0.s8 %v5531
        %v5533 = vperm.slane %v5525, %v5532
        %v5534 = vrot.slane %v5505, 4
        %v5535 = vsel %vm955, %v5534, %v5493
        %v5536 = vrot.slane %v5493, 4
        %v5537 = vsel %vm955, %v5505, %v5536
        %v5539 = vunpack.c.l.s4 1934713408
        %v5540 = vunpack.c.0.s8 %v5539
        %v5541 = vperm.slane %v5535, %v5540
        %v5543 = vunpack.c.l.s4 1934713408
        %v5544 = vunpack.c.0.s8 %v5543
        %v5545 = vperm.slane %v5537, %v5544
        %v5546 = vrot.slane %v5509, 4
        %v5547 = vsel %vm955, %v5546, %v5497
        %v5548 = vrot.slane %v5497, 4
        %v5549 = vsel %vm955, %v5509, %v5548
        %v5551 = vunpack.c.l.s4 1934713408
        %v5552 = vunpack.c.0.s8 %v5551
        %v5553 = vperm.slane %v5547, %v5552
        %v5555 = vunpack.c.l.s4 1934713408
        %v5556 = vunpack.c.0.s8 %v5555
        %v5557 = vperm.slane %v5549, %v5556
        %v5558 = vrot.slane %v5541, 4
        %v5559 = vsel %vm955, %v5558, %v5517
        %v5560 = vrot.slane %v5517, 4
        %v5561 = vsel %vm955, %v5541, %v5560
        %v5562 = vrot.slane %v5545, 4
        %v5563 = vsel %vm955, %v5562, %v5521
        %v5564 = vrot.slane %v5521, 4
        %v5565 = vsel %vm955, %v5545, %v5564
        %v5566 = vrot.slane %v5553, 4
        %v5567 = vsel %vm955, %v5566, %v5529
        %v5568 = vrot.slane %v5529, 4
        %v5569 = vsel %vm955, %v5553, %v5568
        %v5570 = vrot.slane %v5557, 4
        %v5571 = vsel %vm955, %v5570, %v5533
        %v5572 = vrot.slane %v5533, 4
        %v5573 = vsel %vm955, %v5557, %v5572
        %v5574 = vrot.slane %v4245, 4
        %v5575 = vsel %vm955, %v5574, %v4233
        %v5576 = vrot.slane %v4233, 4
        %v5577 = vsel %vm955, %v4245, %v5576
        %v5579 = vunpack.c.l.s4 1983009808
        %v5580 = vunpack.c.0.s8 %v5579
        %v5581 = vperm.slane %v5575, %v5580
        %v5583 = vunpack.c.l.s4 1983009808
        %v5584 = vunpack.c.0.s8 %v5583
        %v5585 = vperm.slane %v5577, %v5584
        %v5586 = vrot.slane %v4251, 4
        %v5587 = vsel %vm955, %v5586, %v4239
        %v5588 = vrot.slane %v4239, 4
        %v5589 = vsel %vm955, %v4251, %v5588
        %v5591 = vunpack.c.l.s4 1983009808
        %v5592 = vunpack.c.0.s8 %v5591
        %v5593 = vperm.slane %v5587, %v5592
        %v5595 = vunpack.c.l.s4 1983009808
        %v5596 = vunpack.c.0.s8 %v5595
        %v5597 = vperm.slane %v5589, %v5596
        %v5598 = vrot.slane %v4269, 4
        %v5599 = vsel %vm955, %v5598, %v4257
        %v5600 = vrot.slane %v4257, 4
        %v5601 = vsel %vm955, %v4269, %v5600
        %v5603 = vunpack.c.l.s4 1983009808
        %v5604 = vunpack.c.0.s8 %v5603
        %v5605 = vperm.slane %v5599, %v5604
        %v5607 = vunpack.c.l.s4 1983009808
        %v5608 = vunpack.c.0.s8 %v5607
        %v5609 = vperm.slane %v5601, %v5608
        %v5610 = vrot.slane %v4275, 4
        %v5611 = vsel %vm955, %v5610, %v4263
        %v5612 = vrot.slane %v4263, 4
        %v5613 = vsel %vm955, %v4275, %v5612
        %v5615 = vunpack.c.l.s4 1983009808
        %v5616 = vunpack.c.0.s8 %v5615
        %v5617 = vperm.slane %v5611, %v5616
        %v5619 = vunpack.c.l.s4 1983009808
        %v5620 = vunpack.c.0.s8 %v5619
        %v5621 = vperm.slane %v5613, %v5620
        %v5622 = vrot.slane %v5593, 4
        %v5623 = vsel %vm955, %v5622, %v5581
        %v5624 = vrot.slane %v5581, 4
        %v5625 = vsel %vm955, %v5593, %v5624
        %v5627 = vunpack.c.l.s4 1934713408
        %v5628 = vunpack.c.0.s8 %v5627
        %v5629 = vperm.slane %v5623, %v5628
        %v5631 = vunpack.c.l.s4 1934713408
        %v5632 = vunpack.c.0.s8 %v5631
        %v5633 = vperm.slane %v5625, %v5632
        %v5634 = vrot.slane %v5597, 4
        %v5635 = vsel %vm955, %v5634, %v5585
        %v5636 = vrot.slane %v5585, 4
        %v5637 = vsel %vm955, %v5597, %v5636
        %v5639 = vunpack.c.l.s4 1934713408
        %v5640 = vunpack.c.0.s8 %v5639
        %v5641 = vperm.slane %v5635, %v5640
        %v5643 = vunpack.c.l.s4 1934713408
        %v5644 = vunpack.c.0.s8 %v5643
        %v5645 = vperm.slane %v5637, %v5644
        %v5646 = vrot.slane %v5617, 4
        %v5647 = vsel %vm955, %v5646, %v5605
        %v5648 = vrot.slane %v5605, 4
        %v5649 = vsel %vm955, %v5617, %v5648
        %v5651 = vunpack.c.l.s4 1934713408
        %v5652 = vunpack.c.0.s8 %v5651
        %v5653 = vperm.slane %v5647, %v5652
        %v5655 = vunpack.c.l.s4 1934713408
        %v5656 = vunpack.c.0.s8 %v5655
        %v5657 = vperm.slane %v5649, %v5656
        %v5658 = vrot.slane %v5621, 4
        %v5659 = vsel %vm955, %v5658, %v5609
        %v5660 = vrot.slane %v5609, 4
        %v5661 = vsel %vm955, %v5621, %v5660
        %v5663 = vunpack.c.l.s4 1934713408
        %v5664 = vunpack.c.0.s8 %v5663
        %v5665 = vperm.slane %v5659, %v5664
        %v5667 = vunpack.c.l.s4 1934713408
        %v5668 = vunpack.c.0.s8 %v5667
        %v5669 = vperm.slane %v5661, %v5668
        %v5670 = vrot.slane %v5653, 4
        %v5671 = vsel %vm955, %v5670, %v5629
        %v5672 = vrot.slane %v5629, 4
        %v5673 = vsel %vm955, %v5653, %v5672
        %v5674 = vrot.slane %v5657, 4
        %v5675 = vsel %vm955, %v5674, %v5633
        %v5676 = vrot.slane %v5633, 4
        %v5677 = vsel %vm955, %v5657, %v5676
        %v5678 = vrot.slane %v5665, 4
        %v5679 = vsel %vm955, %v5678, %v5641
        %v5680 = vrot.slane %v5641, 4
        %v5681 = vsel %vm955, %v5665, %v5680
        %v5682 = vrot.slane %v5669, 4
        %v5683 = vsel %vm955, %v5682, %v5645
        %v5684 = vrot.slane %v5645, 4
        %v5685 = vsel %vm955, %v5669, %v5684
        %v5686 = vrot.slane %v4293, 4
        %v5687 = vsel %vm955, %v5686, %v4281
        %v5688 = vrot.slane %v4281, 4
        %v5689 = vsel %vm955, %v4293, %v5688
        %v5691 = vunpack.c.l.s4 1983009808
        %v5692 = vunpack.c.0.s8 %v5691
        %v5693 = vperm.slane %v5687, %v5692
        %v5695 = vunpack.c.l.s4 1983009808
        %v5696 = vunpack.c.0.s8 %v5695
        %v5697 = vperm.slane %v5689, %v5696
        %v5698 = vrot.slane %v4299, 4
        %v5699 = vsel %vm955, %v5698, %v4287
        %v5700 = vrot.slane %v4287, 4
        %v5701 = vsel %vm955, %v4299, %v5700
        %v5703 = vunpack.c.l.s4 1983009808
        %v5704 = vunpack.c.0.s8 %v5703
        %v5705 = vperm.slane %v5699, %v5704
        %v5707 = vunpack.c.l.s4 1983009808
        %v5708 = vunpack.c.0.s8 %v5707
        %v5709 = vperm.slane %v5701, %v5708
        %v5710 = vrot.slane %v4317, 4
        %v5711 = vsel %vm955, %v5710, %v4305
        %v5712 = vrot.slane %v4305, 4
        %v5713 = vsel %vm955, %v4317, %v5712
        %v5715 = vunpack.c.l.s4 1983009808
        %v5716 = vunpack.c.0.s8 %v5715
        %v5717 = vperm.slane %v5711, %v5716
        %v5719 = vunpack.c.l.s4 1983009808
        %v5720 = vunpack.c.0.s8 %v5719
        %v5721 = vperm.slane %v5713, %v5720
        %v5722 = vrot.slane %v4323, 4
        %v5723 = vsel %vm955, %v5722, %v4311
        %v5724 = vrot.slane %v4311, 4
        %v5725 = vsel %vm955, %v4323, %v5724
        %v5727 = vunpack.c.l.s4 1983009808
        %v5728 = vunpack.c.0.s8 %v5727
        %v5729 = vperm.slane %v5723, %v5728
        %v5731 = vunpack.c.l.s4 1983009808
        %v5732 = vunpack.c.0.s8 %v5731
        %v5733 = vperm.slane %v5725, %v5732
        %v5734 = vrot.slane %v5705, 4
        %v5735 = vsel %vm955, %v5734, %v5693
        %v5736 = vrot.slane %v5693, 4
        %v5737 = vsel %vm955, %v5705, %v5736
        %v5739 = vunpack.c.l.s4 1934713408
        %v5740 = vunpack.c.0.s8 %v5739
        %v5741 = vperm.slane %v5735, %v5740
        %v5743 = vunpack.c.l.s4 1934713408
        %v5744 = vunpack.c.0.s8 %v5743
        %v5745 = vperm.slane %v5737, %v5744
        %v5746 = vrot.slane %v5709, 4
        %v5747 = vsel %vm955, %v5746, %v5697
        %v5748 = vrot.slane %v5697, 4
        %v5749 = vsel %vm955, %v5709, %v5748
        %v5751 = vunpack.c.l.s4 1934713408
        %v5752 = vunpack.c.0.s8 %v5751
        %v5753 = vperm.slane %v5747, %v5752
        %v5755 = vunpack.c.l.s4 1934713408
        %v5756 = vunpack.c.0.s8 %v5755
        %v5757 = vperm.slane %v5749, %v5756
        %v5758 = vrot.slane %v5729, 4
        %v5759 = vsel %vm955, %v5758, %v5717
        %v5760 = vrot.slane %v5717, 4
        %v5761 = vsel %vm955, %v5729, %v5760
        %v5763 = vunpack.c.l.s4 1934713408
        %v5764 = vunpack.c.0.s8 %v5763
        %v5765 = vperm.slane %v5759, %v5764
        %v5767 = vunpack.c.l.s4 1934713408
        %v5768 = vunpack.c.0.s8 %v5767
        %v5769 = vperm.slane %v5761, %v5768
        %v5770 = vrot.slane %v5733, 4
        %v5771 = vsel %vm955, %v5770, %v5721
        %v5772 = vrot.slane %v5721, 4
        %v5773 = vsel %vm955, %v5733, %v5772
        %v5775 = vunpack.c.l.s4 1934713408
        %v5776 = vunpack.c.0.s8 %v5775
        %v5777 = vperm.slane %v5771, %v5776
        %v5779 = vunpack.c.l.s4 1934713408
        %v5780 = vunpack.c.0.s8 %v5779
        %v5781 = vperm.slane %v5773, %v5780
        %v5782 = vrot.slane %v5765, 4
        %v5783 = vsel %vm955, %v5782, %v5741
        %v5784 = vrot.slane %v5741, 4
        %v5785 = vsel %vm955, %v5765, %v5784
        %v5786 = vrot.slane %v5769, 4
        %v5787 = vsel %vm955, %v5786, %v5745
        %v5788 = vrot.slane %v5745, 4
        %v5789 = vsel %vm955, %v5769, %v5788
        %v5790 = vrot.slane %v5777, 4
        %v5791 = vsel %vm955, %v5790, %v5753
        %v5792 = vrot.slane %v5753, 4
        %v5793 = vsel %vm955, %v5777, %v5792
        %v5794 = vrot.slane %v5781, 4
        %v5795 = vsel %vm955, %v5794, %v5757
        %v5796 = vrot.slane %v5757, 4
        %v5797 = vsel %vm955, %v5781, %v5796
        %v5798 = vrot.slane %v4341, 4
        %v5799 = vsel %vm955, %v5798, %v4329
        %v5800 = vrot.slane %v4329, 4
        %v5801 = vsel %vm955, %v4341, %v5800
        %v5803 = vunpack.c.l.s4 1983009808
        %v5804 = vunpack.c.0.s8 %v5803
        %v5805 = vperm.slane %v5799, %v5804
        %v5807 = vunpack.c.l.s4 1983009808
        %v5808 = vunpack.c.0.s8 %v5807
        %v5809 = vperm.slane %v5801, %v5808
        %v5810 = vrot.slane %v4347, 4
        %v5811 = vsel %vm955, %v5810, %v4335
        %v5812 = vrot.slane %v4335, 4
        %v5813 = vsel %vm955, %v4347, %v5812
        %v5815 = vunpack.c.l.s4 1983009808
        %v5816 = vunpack.c.0.s8 %v5815
        %v5817 = vperm.slane %v5811, %v5816
        %v5819 = vunpack.c.l.s4 1983009808
        %v5820 = vunpack.c.0.s8 %v5819
        %v5821 = vperm.slane %v5813, %v5820
        %v5822 = vrot.slane %v4365, 4
        %v5823 = vsel %vm955, %v5822, %v4353
        %v5824 = vrot.slane %v4353, 4
        %v5825 = vsel %vm955, %v4365, %v5824
        %v5827 = vunpack.c.l.s4 1983009808
        %v5828 = vunpack.c.0.s8 %v5827
        %v5829 = vperm.slane %v5823, %v5828
        %v5831 = vunpack.c.l.s4 1983009808
        %v5832 = vunpack.c.0.s8 %v5831
        %v5833 = vperm.slane %v5825, %v5832
        %v5834 = vrot.slane %v4371, 4
        %v5835 = vsel %vm955, %v5834, %v4359
        %v5836 = vrot.slane %v4359, 4
        %v5837 = vsel %vm955, %v4371, %v5836
        %v5839 = vunpack.c.l.s4 1983009808
        %v5840 = vunpack.c.0.s8 %v5839
        %v5841 = vperm.slane %v5835, %v5840
        %v5843 = vunpack.c.l.s4 1983009808
        %v5844 = vunpack.c.0.s8 %v5843
        %v5845 = vperm.slane %v5837, %v5844
        %v5846 = vrot.slane %v5817, 4
        %v5847 = vsel %vm955, %v5846, %v5805
        %v5848 = vrot.slane %v5805, 4
        %v5849 = vsel %vm955, %v5817, %v5848
        %v5851 = vunpack.c.l.s4 1934713408
        %v5852 = vunpack.c.0.s8 %v5851
        %v5853 = vperm.slane %v5847, %v5852
        %v5855 = vunpack.c.l.s4 1934713408
        %v5856 = vunpack.c.0.s8 %v5855
        %v5857 = vperm.slane %v5849, %v5856
        %v5858 = vrot.slane %v5821, 4
        %v5859 = vsel %vm955, %v5858, %v5809
        %v5860 = vrot.slane %v5809, 4
        %v5861 = vsel %vm955, %v5821, %v5860
        %v5863 = vunpack.c.l.s4 1934713408
        %v5864 = vunpack.c.0.s8 %v5863
        %v5865 = vperm.slane %v5859, %v5864
        %v5867 = vunpack.c.l.s4 1934713408
        %v5868 = vunpack.c.0.s8 %v5867
        %v5869 = vperm.slane %v5861, %v5868
        %v5870 = vrot.slane %v5841, 4
        %v5871 = vsel %vm955, %v5870, %v5829
        %v5872 = vrot.slane %v5829, 4
        %v5873 = vsel %vm955, %v5841, %v5872
        %v5875 = vunpack.c.l.s4 1934713408
        %v5876 = vunpack.c.0.s8 %v5875
        %v5877 = vperm.slane %v5871, %v5876
        %v5879 = vunpack.c.l.s4 1934713408
        %v5880 = vunpack.c.0.s8 %v5879
        %v5881 = vperm.slane %v5873, %v5880
        %v5882 = vrot.slane %v5845, 4
        %v5883 = vsel %vm955, %v5882, %v5833
        %v5884 = vrot.slane %v5833, 4
        %v5885 = vsel %vm955, %v5845, %v5884
        %v5887 = vunpack.c.l.s4 1934713408
        %v5888 = vunpack.c.0.s8 %v5887
        %v5889 = vperm.slane %v5883, %v5888
        %v5891 = vunpack.c.l.s4 1934713408
        %v5892 = vunpack.c.0.s8 %v5891
        %v5893 = vperm.slane %v5885, %v5892
        %v5894 = vrot.slane %v5877, 4
        %v5895 = vsel %vm955, %v5894, %v5853
        %v5896 = vrot.slane %v5853, 4
        %v5897 = vsel %vm955, %v5877, %v5896
        %v5898 = vrot.slane %v5881, 4
        %v5899 = vsel %vm955, %v5898, %v5857
        %v5900 = vrot.slane %v5857, 4
        %v5901 = vsel %vm955, %v5881, %v5900
        %v5902 = vrot.slane %v5889, 4
        %v5903 = vsel %vm955, %v5902, %v5865
        %v5904 = vrot.slane %v5865, 4
        %v5905 = vsel %vm955, %v5889, %v5904
        %v5906 = vrot.slane %v5893, 4
        %v5907 = vsel %vm955, %v5906, %v5869
        %v5908 = vrot.slane %v5869, 4
        %v5909 = vsel %vm955, %v5893, %v5908
        %v5910 = vrot.slane %v4389, 4
        %v5911 = vsel %vm955, %v5910, %v4377
        %v5912 = vrot.slane %v4377, 4
        %v5913 = vsel %vm955, %v4389, %v5912
        %v5915 = vunpack.c.l.s4 1983009808
        %v5916 = vunpack.c.0.s8 %v5915
        %v5917 = vperm.slane %v5911, %v5916
        %v5919 = vunpack.c.l.s4 1983009808
        %v5920 = vunpack.c.0.s8 %v5919
        %v5921 = vperm.slane %v5913, %v5920
        %v5922 = vrot.slane %v4395, 4
        %v5923 = vsel %vm955, %v5922, %v4383
        %v5924 = vrot.slane %v4383, 4
        %v5925 = vsel %vm955, %v4395, %v5924
        %v5927 = vunpack.c.l.s4 1983009808
        %v5928 = vunpack.c.0.s8 %v5927
        %v5929 = vperm.slane %v5923, %v5928
        %v5931 = vunpack.c.l.s4 1983009808
        %v5932 = vunpack.c.0.s8 %v5931
        %v5933 = vperm.slane %v5925, %v5932
        %v5934 = vrot.slane %v4413, 4
        %v5935 = vsel %vm955, %v5934, %v4401
        %v5936 = vrot.slane %v4401, 4
        %v5937 = vsel %vm955, %v4413, %v5936
        %v5939 = vunpack.c.l.s4 1983009808
        %v5940 = vunpack.c.0.s8 %v5939
        %v5941 = vperm.slane %v5935, %v5940
        %v5943 = vunpack.c.l.s4 1983009808
        %v5944 = vunpack.c.0.s8 %v5943
        %v5945 = vperm.slane %v5937, %v5944
        %v5946 = vrot.slane %v4419, 4
        %v5947 = vsel %vm955, %v5946, %v4407
        %v5948 = vrot.slane %v4407, 4
        %v5949 = vsel %vm955, %v4419, %v5948
        %v5951 = vunpack.c.l.s4 1983009808
        %v5952 = vunpack.c.0.s8 %v5951
        %v5953 = vperm.slane %v5947, %v5952
        %v5955 = vunpack.c.l.s4 1983009808
        %v5956 = vunpack.c.0.s8 %v5955
        %v5957 = vperm.slane %v5949, %v5956
        %v5958 = vrot.slane %v5929, 4
        %v5959 = vsel %vm955, %v5958, %v5917
        %v5960 = vrot.slane %v5917, 4
        %v5961 = vsel %vm955, %v5929, %v5960
        %v5963 = vunpack.c.l.s4 1934713408
        %v5964 = vunpack.c.0.s8 %v5963
        %v5965 = vperm.slane %v5959, %v5964
        %v5967 = vunpack.c.l.s4 1934713408
        %v5968 = vunpack.c.0.s8 %v5967
        %v5969 = vperm.slane %v5961, %v5968
        %v5970 = vrot.slane %v5933, 4
        %v5971 = vsel %vm955, %v5970, %v5921
        %v5972 = vrot.slane %v5921, 4
        %v5973 = vsel %vm955, %v5933, %v5972
        %v5975 = vunpack.c.l.s4 1934713408
        %v5976 = vunpack.c.0.s8 %v5975
        %v5977 = vperm.slane %v5971, %v5976
        %v5979 = vunpack.c.l.s4 1934713408
        %v5980 = vunpack.c.0.s8 %v5979
        %v5981 = vperm.slane %v5973, %v5980
        %v5982 = vrot.slane %v5953, 4
        %v5983 = vsel %vm955, %v5982, %v5941
        %v5984 = vrot.slane %v5941, 4
        %v5985 = vsel %vm955, %v5953, %v5984
        %v5987 = vunpack.c.l.s4 1934713408
        %v5988 = vunpack.c.0.s8 %v5987
        %v5989 = vperm.slane %v5983, %v5988
        %v5991 = vunpack.c.l.s4 1934713408
        %v5992 = vunpack.c.0.s8 %v5991
        %v5993 = vperm.slane %v5985, %v5992
        %v5994 = vrot.slane %v5957, 4
        %v5995 = vsel %vm955, %v5994, %v5945
        %v5996 = vrot.slane %v5945, 4
        %v5997 = vsel %vm955, %v5957, %v5996
        %v5999 = vunpack.c.l.s4 1934713408
        %v6000 = vunpack.c.0.s8 %v5999
        %v6001 = vperm.slane %v5995, %v6000
        %v6003 = vunpack.c.l.s4 1934713408
        %v6004 = vunpack.c.0.s8 %v6003
        %v6005 = vperm.slane %v5997, %v6004
        %v6006 = vrot.slane %v5989, 4
        %v6007 = vsel %vm955, %v6006, %v5965
        %v6008 = vrot.slane %v5965, 4
        %v6009 = vsel %vm955, %v5989, %v6008
        %v6010 = vrot.slane %v5993, 4
        %v6011 = vsel %vm955, %v6010, %v5969
        %v6012 = vrot.slane %v5969, 4
        %v6013 = vsel %vm955, %v5993, %v6012
        %v6014 = vrot.slane %v6001, 4
        %v6015 = vsel %vm955, %v6014, %v5977
        %v6016 = vrot.slane %v5977, 4
        %v6017 = vsel %vm955, %v6001, %v6016
        %v6018 = vrot.slane %v6005, 4
        %v6019 = vsel %vm955, %v6018, %v5981
        %v6020 = vrot.slane %v5981, 4
        %v6021 = vsel %vm955, %v6005, %v6020
        %v6022 = vrot.slane %v4437, 4
        %v6023 = vsel %vm955, %v6022, %v4425
        %v6024 = vrot.slane %v4425, 4
        %v6025 = vsel %vm955, %v4437, %v6024
        %v6027 = vunpack.c.l.s4 1983009808
        %v6028 = vunpack.c.0.s8 %v6027
        %v6029 = vperm.slane %v6023, %v6028
        %v6031 = vunpack.c.l.s4 1983009808
        %v6032 = vunpack.c.0.s8 %v6031
        %v6033 = vperm.slane %v6025, %v6032
        %v6034 = vrot.slane %v4443, 4
        %v6035 = vsel %vm955, %v6034, %v4431
        %v6036 = vrot.slane %v4431, 4
        %v6037 = vsel %vm955, %v4443, %v6036
        %v6039 = vunpack.c.l.s4 1983009808
        %v6040 = vunpack.c.0.s8 %v6039
        %v6041 = vperm.slane %v6035, %v6040
        %v6043 = vunpack.c.l.s4 1983009808
        %v6044 = vunpack.c.0.s8 %v6043
        %v6045 = vperm.slane %v6037, %v6044
        %v6046 = vrot.slane %v4461, 4
        %v6047 = vsel %vm955, %v6046, %v4449
        %v6048 = vrot.slane %v4449, 4
        %v6049 = vsel %vm955, %v4461, %v6048
        %v6051 = vunpack.c.l.s4 1983009808
        %v6052 = vunpack.c.0.s8 %v6051
        %v6053 = vperm.slane %v6047, %v6052
        %v6055 = vunpack.c.l.s4 1983009808
        %v6056 = vunpack.c.0.s8 %v6055
        %v6057 = vperm.slane %v6049, %v6056
        %v6058 = vrot.slane %v4467, 4
        %v6059 = vsel %vm955, %v6058, %v4455
        %v6060 = vrot.slane %v4455, 4
        %v6061 = vsel %vm955, %v4467, %v6060
        %v6063 = vunpack.c.l.s4 1983009808
        %v6064 = vunpack.c.0.s8 %v6063
        %v6065 = vperm.slane %v6059, %v6064
        %v6067 = vunpack.c.l.s4 1983009808
        %v6068 = vunpack.c.0.s8 %v6067
        %v6069 = vperm.slane %v6061, %v6068
        %v6070 = vrot.slane %v6041, 4
        %v6071 = vsel %vm955, %v6070, %v6029
        %v6072 = vrot.slane %v6029, 4
        %v6073 = vsel %vm955, %v6041, %v6072
        %v6075 = vunpack.c.l.s4 1934713408
        %v6076 = vunpack.c.0.s8 %v6075
        %v6077 = vperm.slane %v6071, %v6076
        %v6079 = vunpack.c.l.s4 1934713408
        %v6080 = vunpack.c.0.s8 %v6079
        %v6081 = vperm.slane %v6073, %v6080
        %v6082 = vrot.slane %v6045, 4
        %v6083 = vsel %vm955, %v6082, %v6033
        %v6084 = vrot.slane %v6033, 4
        %v6085 = vsel %vm955, %v6045, %v6084
        %v6087 = vunpack.c.l.s4 1934713408
        %v6088 = vunpack.c.0.s8 %v6087
        %v6089 = vperm.slane %v6083, %v6088
        %v6091 = vunpack.c.l.s4 1934713408
        %v6092 = vunpack.c.0.s8 %v6091
        %v6093 = vperm.slane %v6085, %v6092
        %v6094 = vrot.slane %v6065, 4
        %v6095 = vsel %vm955, %v6094, %v6053
        %v6096 = vrot.slane %v6053, 4
        %v6097 = vsel %vm955, %v6065, %v6096
        %v6099 = vunpack.c.l.s4 1934713408
        %v6100 = vunpack.c.0.s8 %v6099
        %v6101 = vperm.slane %v6095, %v6100
        %v6103 = vunpack.c.l.s4 1934713408
        %v6104 = vunpack.c.0.s8 %v6103
        %v6105 = vperm.slane %v6097, %v6104
        %v6106 = vrot.slane %v6069, 4
        %v6107 = vsel %vm955, %v6106, %v6057
        %v6108 = vrot.slane %v6057, 4
        %v6109 = vsel %vm955, %v6069, %v6108
        %v6111 = vunpack.c.l.s4 1934713408
        %v6112 = vunpack.c.0.s8 %v6111
        %v6113 = vperm.slane %v6107, %v6112
        %v6115 = vunpack.c.l.s4 1934713408
        %v6116 = vunpack.c.0.s8 %v6115
        %v6117 = vperm.slane %v6109, %v6116
        %v6118 = vrot.slane %v6101, 4
        %v6119 = vsel %vm955, %v6118, %v6077
        %v6120 = vrot.slane %v6077, 4
        %v6121 = vsel %vm955, %v6101, %v6120
        %v6122 = vrot.slane %v6105, 4
        %v6123 = vsel %vm955, %v6122, %v6081
        %v6124 = vrot.slane %v6081, 4
        %v6125 = vsel %vm955, %v6105, %v6124
        %v6126 = vrot.slane %v6113, 4
        %v6127 = vsel %vm955, %v6126, %v6089
        %v6128 = vrot.slane %v6089, 4
        %v6129 = vsel %vm955, %v6113, %v6128
        %v6130 = vrot.slane %v6117, 4
        %v6131 = vsel %vm955, %v6130, %v6093
        %v6132 = vrot.slane %v6093, 4
        %v6133 = vsel %vm955, %v6117, %v6132
        %v6134 = vrot.slane %v4485, 4
        %v6135 = vsel %vm955, %v6134, %v4473
        %v6136 = vrot.slane %v4473, 4
        %v6137 = vsel %vm955, %v4485, %v6136
        %v6139 = vunpack.c.l.s4 1983009808
        %v6140 = vunpack.c.0.s8 %v6139
        %v6141 = vperm.slane %v6135, %v6140
        %v6143 = vunpack.c.l.s4 1983009808
        %v6144 = vunpack.c.0.s8 %v6143
        %v6145 = vperm.slane %v6137, %v6144
        %v6146 = vrot.slane %v4491, 4
        %v6147 = vsel %vm955, %v6146, %v4479
        %v6148 = vrot.slane %v4479, 4
        %v6149 = vsel %vm955, %v4491, %v6148
        %v6151 = vunpack.c.l.s4 1983009808
        %v6152 = vunpack.c.0.s8 %v6151
        %v6153 = vperm.slane %v6147, %v6152
        %v6155 = vunpack.c.l.s4 1983009808
        %v6156 = vunpack.c.0.s8 %v6155
        %v6157 = vperm.slane %v6149, %v6156
        %v6158 = vrot.slane %v4509, 4
        %v6159 = vsel %vm955, %v6158, %v4497
        %v6160 = vrot.slane %v4497, 4
        %v6161 = vsel %vm955, %v4509, %v6160
        %v6163 = vunpack.c.l.s4 1983009808
        %v6164 = vunpack.c.0.s8 %v6163
        %v6165 = vperm.slane %v6159, %v6164
        %v6167 = vunpack.c.l.s4 1983009808
        %v6168 = vunpack.c.0.s8 %v6167
        %v6169 = vperm.slane %v6161, %v6168
        %v6170 = vrot.slane %v4515, 4
        %v6171 = vsel %vm955, %v6170, %v4503
        %v6172 = vrot.slane %v4503, 4
        %v6173 = vsel %vm955, %v4515, %v6172
        %v6175 = vunpack.c.l.s4 1983009808
        %v6176 = vunpack.c.0.s8 %v6175
        %v6177 = vperm.slane %v6171, %v6176
        %v6179 = vunpack.c.l.s4 1983009808
        %v6180 = vunpack.c.0.s8 %v6179
        %v6181 = vperm.slane %v6173, %v6180
        %v6182 = vrot.slane %v6153, 4
        %v6183 = vsel %vm955, %v6182, %v6141
        %v6184 = vrot.slane %v6141, 4
        %v6185 = vsel %vm955, %v6153, %v6184
        %v6187 = vunpack.c.l.s4 1934713408
        %v6188 = vunpack.c.0.s8 %v6187
        %v6189 = vperm.slane %v6183, %v6188
        %v6191 = vunpack.c.l.s4 1934713408
        %v6192 = vunpack.c.0.s8 %v6191
        %v6193 = vperm.slane %v6185, %v6192
        %v6194 = vrot.slane %v6157, 4
        %v6195 = vsel %vm955, %v6194, %v6145
        %v6196 = vrot.slane %v6145, 4
        %v6197 = vsel %vm955, %v6157, %v6196
        %v6199 = vunpack.c.l.s4 1934713408
        %v6200 = vunpack.c.0.s8 %v6199
        %v6201 = vperm.slane %v6195, %v6200
        %v6203 = vunpack.c.l.s4 1934713408
        %v6204 = vunpack.c.0.s8 %v6203
        %v6205 = vperm.slane %v6197, %v6204
        %v6206 = vrot.slane %v6177, 4
        %v6207 = vsel %vm955, %v6206, %v6165
        %v6208 = vrot.slane %v6165, 4
        %v6209 = vsel %vm955, %v6177, %v6208
        %v6211 = vunpack.c.l.s4 1934713408
        %v6212 = vunpack.c.0.s8 %v6211
        %v6213 = vperm.slane %v6207, %v6212
        %v6215 = vunpack.c.l.s4 1934713408
        %v6216 = vunpack.c.0.s8 %v6215
        %v6217 = vperm.slane %v6209, %v6216
        %v6218 = vrot.slane %v6181, 4
        %v6219 = vsel %vm955, %v6218, %v6169
        %v6220 = vrot.slane %v6169, 4
        %v6221 = vsel %vm955, %v6181, %v6220
        %v6223 = vunpack.c.l.s4 1934713408
        %v6224 = vunpack.c.0.s8 %v6223
        %v6225 = vperm.slane %v6219, %v6224
        %v6227 = vunpack.c.l.s4 1934713408
        %v6228 = vunpack.c.0.s8 %v6227
        %v6229 = vperm.slane %v6221, %v6228
        %v6230 = vrot.slane %v6213, 4
        %v6231 = vsel %vm955, %v6230, %v6189
        %v6232 = vrot.slane %v6189, 4
        %v6233 = vsel %vm955, %v6213, %v6232
        %v6234 = vrot.slane %v6217, 4
        %v6235 = vsel %vm955, %v6234, %v6193
        %v6236 = vrot.slane %v6193, 4
        %v6237 = vsel %vm955, %v6217, %v6236
        %v6238 = vrot.slane %v6225, 4
        %v6239 = vsel %vm955, %v6238, %v6201
        %v6240 = vrot.slane %v6201, 4
        %v6241 = vsel %vm955, %v6225, %v6240
        %v6242 = vrot.slane %v6229, 4
        %v6243 = vsel %vm955, %v6242, %v6205
        %v6244 = vrot.slane %v6205, 4
        %v6245 = vsel %vm955, %v6229, %v6244
        %v6246 = vrot.slane %v4533, 4
        %v6247 = vsel %vm955, %v6246, %v4521
        %v6248 = vrot.slane %v4521, 4
        %v6249 = vsel %vm955, %v4533, %v6248
        %v6251 = vunpack.c.l.s4 1983009808
        %v6252 = vunpack.c.0.s8 %v6251
        %v6253 = vperm.slane %v6247, %v6252
        %v6255 = vunpack.c.l.s4 1983009808
        %v6256 = vunpack.c.0.s8 %v6255
        %v6257 = vperm.slane %v6249, %v6256
        %v6258 = vrot.slane %v4539, 4
        %v6259 = vsel %vm955, %v6258, %v4527
        %v6260 = vrot.slane %v4527, 4
        %v6261 = vsel %vm955, %v4539, %v6260
        %v6263 = vunpack.c.l.s4 1983009808
        %v6264 = vunpack.c.0.s8 %v6263
        %v6265 = vperm.slane %v6259, %v6264
        %v6267 = vunpack.c.l.s4 1983009808
        %v6268 = vunpack.c.0.s8 %v6267
        %v6269 = vperm.slane %v6261, %v6268
        %v6270 = vrot.slane %v4557, 4
        %v6271 = vsel %vm955, %v6270, %v4545
        %v6272 = vrot.slane %v4545, 4
        %v6273 = vsel %vm955, %v4557, %v6272
        %v6275 = vunpack.c.l.s4 1983009808
        %v6276 = vunpack.c.0.s8 %v6275
        %v6277 = vperm.slane %v6271, %v6276
        %v6279 = vunpack.c.l.s4 1983009808
        %v6280 = vunpack.c.0.s8 %v6279
        %v6281 = vperm.slane %v6273, %v6280
        %v6282 = vrot.slane %v4563, 4
        %v6283 = vsel %vm955, %v6282, %v4551
        %v6284 = vrot.slane %v4551, 4
        %v6285 = vsel %vm955, %v4563, %v6284
        %v6287 = vunpack.c.l.s4 1983009808
        %v6288 = vunpack.c.0.s8 %v6287
        %v6289 = vperm.slane %v6283, %v6288
        %v6291 = vunpack.c.l.s4 1983009808
        %v6292 = vunpack.c.0.s8 %v6291
        %v6293 = vperm.slane %v6285, %v6292
        %v6294 = vrot.slane %v6265, 4
        %v6295 = vsel %vm955, %v6294, %v6253
        %v6296 = vrot.slane %v6253, 4
        %v6297 = vsel %vm955, %v6265, %v6296
        %v6299 = vunpack.c.l.s4 1934713408
        %v6300 = vunpack.c.0.s8 %v6299
        %v6301 = vperm.slane %v6295, %v6300
        %v6303 = vunpack.c.l.s4 1934713408
        %v6304 = vunpack.c.0.s8 %v6303
        %v6305 = vperm.slane %v6297, %v6304
        %v6306 = vrot.slane %v6269, 4
        %v6307 = vsel %vm955, %v6306, %v6257
        %v6308 = vrot.slane %v6257, 4
        %v6309 = vsel %vm955, %v6269, %v6308
        %v6311 = vunpack.c.l.s4 1934713408
        %v6312 = vunpack.c.0.s8 %v6311
        %v6313 = vperm.slane %v6307, %v6312
        %v6315 = vunpack.c.l.s4 1934713408
        %v6316 = vunpack.c.0.s8 %v6315
        %v6317 = vperm.slane %v6309, %v6316
        %v6318 = vrot.slane %v6289, 4
        %v6319 = vsel %vm955, %v6318, %v6277
        %v6320 = vrot.slane %v6277, 4
        %v6321 = vsel %vm955, %v6289, %v6320
        %v6323 = vunpack.c.l.s4 1934713408
        %v6324 = vunpack.c.0.s8 %v6323
        %v6325 = vperm.slane %v6319, %v6324
        %v6327 = vunpack.c.l.s4 1934713408
        %v6328 = vunpack.c.0.s8 %v6327
        %v6329 = vperm.slane %v6321, %v6328
        %v6330 = vrot.slane %v6293, 4
        %v6331 = vsel %vm955, %v6330, %v6281
        %v6332 = vrot.slane %v6281, 4
        %v6333 = vsel %vm955, %v6293, %v6332
        %v6335 = vunpack.c.l.s4 1934713408
        %v6336 = vunpack.c.0.s8 %v6335
        %v6337 = vperm.slane %v6331, %v6336
        %v6339 = vunpack.c.l.s4 1934713408
        %v6340 = vunpack.c.0.s8 %v6339
        %v6341 = vperm.slane %v6333, %v6340
        %v6342 = vrot.slane %v6325, 4
        %v6343 = vsel %vm955, %v6342, %v6301
        %v6344 = vrot.slane %v6301, 4
        %v6345 = vsel %vm955, %v6325, %v6344
        %v6346 = vrot.slane %v6329, 4
        %v6347 = vsel %vm955, %v6346, %v6305
        %v6348 = vrot.slane %v6305, 4
        %v6349 = vsel %vm955, %v6329, %v6348
        %v6350 = vrot.slane %v6337, 4
        %v6351 = vsel %vm955, %v6350, %v6313
        %v6352 = vrot.slane %v6313, 4
        %v6353 = vsel %vm955, %v6337, %v6352
        %v6354 = vrot.slane %v6341, 4
        %v6355 = vsel %vm955, %v6354, %v6317
        %v6356 = vrot.slane %v6317, 4
        %v6357 = vsel %vm955, %v6341, %v6356
        %6422 = vset.pattern.permute.xlu0 0
        %6423 = vperm.xlu0 %6422, %v4663
        %v6424 = vpop.permute.xlu0 %6423
        %6425 = vset.pattern.permute.xlu0 0
        %6426 = vperm.xlu0 %6425, %v4775
        %v6427 = vpop.permute.xlu0 %6426
        %6428 = vset.pattern.permute.xlu0 0
        %6429 = vperm.xlu0 %6428, %v4887
        %v6430 = vpop.permute.xlu0 %6429
        %6431 = vset.pattern.permute.xlu0 0
        %6432 = vperm.xlu0 %6431, %v4999
        %v6433 = vpop.permute.xlu0 %6432
        %6434 = vset.pattern.permute.xlu0 0
        %6435 = vperm.xlu0 %6434, %v5111
        %v6436 = vpop.permute.xlu0 %6435
        %6437 = vset.pattern.permute.xlu0 0
        %6438 = vperm.xlu0 %6437, %v5223
        %v6439 = vpop.permute.xlu0 %6438
        %6440 = vset.pattern.permute.xlu0 0
        %6441 = vperm.xlu0 %6440, %v5335
        %v6442 = vpop.permute.xlu0 %6441
        %6443 = vset.pattern.permute.xlu0 0
        %6444 = vperm.xlu0 %6443, %v5447
        %v6445 = vpop.permute.xlu0 %6444
        %6446 = vset.pattern.permute.xlu0 0
        %6447 = vperm.xlu0 %6446, %v4667
        %v6448 = vpop.permute.xlu0 %6447
        %6449 = vset.pattern.permute.xlu0 0
        %6450 = vperm.xlu0 %6449, %v4779
        %v6451 = vpop.permute.xlu0 %6450
        %6452 = vset.pattern.permute.xlu0 0
        %6453 = vperm.xlu0 %6452, %v4891
        %v6454 = vpop.permute.xlu0 %6453
        %6455 = vset.pattern.permute.xlu0 0
        %6456 = vperm.xlu0 %6455, %v5003
        %v6457 = vpop.permute.xlu0 %6456
        %6458 = vset.pattern.permute.xlu0 0
        %6459 = vperm.xlu0 %6458, %v5115
        %v6460 = vpop.permute.xlu0 %6459
        %6461 = vset.pattern.permute.xlu0 0
        %6462 = vperm.xlu0 %6461, %v5227
        %v6463 = vpop.permute.xlu0 %6462
        %6464 = vset.pattern.permute.xlu0 0
        %6465 = vperm.xlu0 %6464, %v5339
        %v6466 = vpop.permute.xlu0 %6465
        %6467 = vset.pattern.permute.xlu0 0
        %6468 = vperm.xlu0 %6467, %v5451
        %v6469 = vpop.permute.xlu0 %6468
        %6470 = vset.pattern.permute.xlu0 0
        %6471 = vperm.xlu0 %6470, %v4671
        %v6472 = vpop.permute.xlu0 %6471
        %6473 = vset.pattern.permute.xlu0 0
        %6474 = vperm.xlu0 %6473, %v4783
        %v6475 = vpop.permute.xlu0 %6474
        %6476 = vset.pattern.permute.xlu0 0
        %6477 = vperm.xlu0 %6476, %v4895
        %v6478 = vpop.permute.xlu0 %6477
        %6479 = vset.pattern.permute.xlu0 0
        %6480 = vperm.xlu0 %6479, %v5007
        %v6481 = vpop.permute.xlu0 %6480
        %6482 = vset.pattern.permute.xlu0 0
        %6483 = vperm.xlu0 %6482, %v5119
        %v6484 = vpop.permute.xlu0 %6483
        %6485 = vset.pattern.permute.xlu0 0
        %6486 = vperm.xlu0 %6485, %v5231
        %v6487 = vpop.permute.xlu0 %6486
        %6488 = vset.pattern.permute.xlu0 0
        %6489 = vperm.xlu0 %6488, %v5343
        %v6490 = vpop.permute.xlu0 %6489
        %6491 = vset.pattern.permute.xlu0 0
        %6492 = vperm.xlu0 %6491, %v5455
        %v6493 = vpop.permute.xlu0 %6492
        %6494 = vset.pattern.permute.xlu0 0
        %6495 = vperm.xlu0 %6494, %v4675
        %v6496 = vpop.permute.xlu0 %6495
        %6497 = vset.pattern.permute.xlu0 0
        %6498 = vperm.xlu0 %6497, %v4787
        %v6499 = vpop.permute.xlu0 %6498
        %6500 = vset.pattern.permute.xlu0 0
        %6501 = vperm.xlu0 %6500, %v4899
        %v6502 = vpop.permute.xlu0 %6501
        %6503 = vset.pattern.permute.xlu0 0
        %6504 = vperm.xlu0 %6503, %v5011
        %v6505 = vpop.permute.xlu0 %6504
        %6506 = vset.pattern.permute.xlu0 0
        %6507 = vperm.xlu0 %6506, %v5123
        %v6508 = vpop.permute.xlu0 %6507
        %6509 = vset.pattern.permute.xlu0 0
        %6510 = vperm.xlu0 %6509, %v5235
        %v6511 = vpop.permute.xlu0 %6510
        %6512 = vset.pattern.permute.xlu0 0
        %6513 = vperm.xlu0 %6512, %v5347
        %v6514 = vpop.permute.xlu0 %6513
        %6515 = vset.pattern.permute.xlu0 0
        %6516 = vperm.xlu0 %6515, %v5459
        %v6517 = vpop.permute.xlu0 %6516
        %6518 = vset.pattern.permute.xlu0 0
        %6519 = vperm.xlu0 %6518, %v5559
        %v6520 = vpop.permute.xlu0 %6519
        %6521 = vset.pattern.permute.xlu0 0
        %6522 = vperm.xlu0 %6521, %v5671
        %v6523 = vpop.permute.xlu0 %6522
        %6524 = vset.pattern.permute.xlu0 0
        %6525 = vperm.xlu0 %6524, %v5783
        %v6526 = vpop.permute.xlu0 %6525
        %6527 = vset.pattern.permute.xlu0 0
        %6528 = vperm.xlu0 %6527, %v5895
        %v6529 = vpop.permute.xlu0 %6528
        %6530 = vset.pattern.permute.xlu0 0
        %6531 = vperm.xlu0 %6530, %v6007
        %v6532 = vpop.permute.xlu0 %6531
        %6533 = vset.pattern.permute.xlu0 0
        %6534 = vperm.xlu0 %6533, %v6119
        %v6535 = vpop.permute.xlu0 %6534
        %6536 = vset.pattern.permute.xlu0 0
        %6537 = vperm.xlu0 %6536, %v6231
        %v6538 = vpop.permute.xlu0 %6537
        %6539 = vset.pattern.permute.xlu0 0
        %6540 = vperm.xlu0 %6539, %v6343
        %v6541 = vpop.permute.xlu0 %6540
        %6542 = vset.pattern.permute.xlu0 0
        %6543 = vperm.xlu0 %6542, %v5563
        %v6544 = vpop.permute.xlu0 %6543
        %6545 = vset.pattern.permute.xlu0 0
        %6546 = vperm.xlu0 %6545, %v5675
        %v6547 = vpop.permute.xlu0 %6546
        %6548 = vset.pattern.permute.xlu0 0
        %6549 = vperm.xlu0 %6548, %v5787
        %v6550 = vpop.permute.xlu0 %6549
        %6551 = vset.pattern.permute.xlu0 0
        %6552 = vperm.xlu0 %6551, %v5899
        %v6553 = vpop.permute.xlu0 %6552
        %6554 = vset.pattern.permute.xlu0 0
        %6555 = vperm.xlu0 %6554, %v6011
        %v6556 = vpop.permute.xlu0 %6555
        %6557 = vset.pattern.permute.xlu0 0
        %6558 = vperm.xlu0 %6557, %v6123
        %v6559 = vpop.permute.xlu0 %6558
        %6560 = vset.pattern.permute.xlu0 0
        %6561 = vperm.xlu0 %6560, %v6235
        %v6562 = vpop.permute.xlu0 %6561
        %6563 = vset.pattern.permute.xlu0 0
        %6564 = vperm.xlu0 %6563, %v6347
        %v6565 = vpop.permute.xlu0 %6564
        %6566 = vset.pattern.permute.xlu0 0
        %6567 = vperm.xlu0 %6566, %v5567
        %v6568 = vpop.permute.xlu0 %6567
        %6569 = vset.pattern.permute.xlu0 0
        %6570 = vperm.xlu0 %6569, %v5679
        %v6571 = vpop.permute.xlu0 %6570
        %6572 = vset.pattern.permute.xlu0 0
        %6573 = vperm.xlu0 %6572, %v5791
        %v6574 = vpop.permute.xlu0 %6573
        %6575 = vset.pattern.permute.xlu0 0
        %6576 = vperm.xlu0 %6575, %v5903
        %v6577 = vpop.permute.xlu0 %6576
        %6578 = vset.pattern.permute.xlu0 0
        %6579 = vperm.xlu0 %6578, %v6015
        %v6580 = vpop.permute.xlu0 %6579
        %6581 = vset.pattern.permute.xlu0 0
        %6582 = vperm.xlu0 %6581, %v6127
        %v6583 = vpop.permute.xlu0 %6582
        %6584 = vset.pattern.permute.xlu0 0
        %6585 = vperm.xlu0 %6584, %v6239
        %v6586 = vpop.permute.xlu0 %6585
        %6587 = vset.pattern.permute.xlu0 0
        %6588 = vperm.xlu0 %6587, %v6351
        %v6589 = vpop.permute.xlu0 %6588
        %6590 = vset.pattern.permute.xlu0 0
        %6591 = vperm.xlu0 %6590, %v5571
        %v6592 = vpop.permute.xlu0 %6591
        %6593 = vset.pattern.permute.xlu0 0
        %6594 = vperm.xlu0 %6593, %v5683
        %v6595 = vpop.permute.xlu0 %6594
        %6596 = vset.pattern.permute.xlu0 0
        %6597 = vperm.xlu0 %6596, %v5795
        %v6598 = vpop.permute.xlu0 %6597
        %6599 = vset.pattern.permute.xlu0 0
        %6600 = vperm.xlu0 %6599, %v5907
        %v6601 = vpop.permute.xlu0 %6600
        %6602 = vset.pattern.permute.xlu0 0
        %6603 = vperm.xlu0 %6602, %v6019
        %v6604 = vpop.permute.xlu0 %6603
        %6605 = vset.pattern.permute.xlu0 0
        %6606 = vperm.xlu0 %6605, %v6131
        %v6607 = vpop.permute.xlu0 %6606
        %6608 = vset.pattern.permute.xlu0 0
        %6609 = vperm.xlu0 %6608, %v6243
        %v6610 = vpop.permute.xlu0 %6609
        %6611 = vset.pattern.permute.xlu0 0
        %6612 = vperm.xlu0 %6611, %v6355
        %v6613 = vpop.permute.xlu0 %6612
        %v6614 = vperm.slane %v6424, %v3004
        %v6615 = vperm.slane %v6427, %v3006
        %v6616 = vsel %vm3008, %v6615, %v6614
        %v6617 = vperm.slane %v6430, %v3010
        %v6618 = vsel %vm3012, %v6617, %v6616
        %v6619 = vperm.slane %v6433, %v3014
        %v6620 = vsel %vm3016, %v6619, %v6618
        %v6621 = vperm.slane %v6436, %v3018
        %v6622 = vsel %vm3020, %v6621, %v6620
        %v6623 = vperm.slane %v6439, %v3022
        %v6624 = vsel %vm3024, %v6623, %v6622
        %v6625 = vperm.slane %v6442, %v3026
        %v6626 = vsel %vm3028, %v6625, %v6624
        %v6627 = vperm.slane %v6445, %v3030
        %v6628 = vsel %vm3032, %v6627, %v6626
        %v6629 = vperm.slane %v6448, %v3004
        %v6630 = vperm.slane %v6451, %v3006
        %v6631 = vsel %vm3008, %v6630, %v6629
        %v6632 = vperm.slane %v6454, %v3010
        %v6633 = vsel %vm3012, %v6632, %v6631
        %v6634 = vperm.slane %v6457, %v3014
        %v6635 = vsel %vm3016, %v6634, %v6633
        %v6636 = vperm.slane %v6460, %v3018
        %v6637 = vsel %vm3020, %v6636, %v6635
        %v6638 = vperm.slane %v6463, %v3022
        %v6639 = vsel %vm3024, %v6638, %v6637
        %v6640 = vperm.slane %v6466, %v3026
        %v6641 = vsel %vm3028, %v6640, %v6639
        %v6642 = vperm.slane %v6469, %v3030
        %v6643 = vsel %vm3032, %v6642, %v6641
        %v6644 = vperm.slane %v6472, %v3004
        %v6645 = vperm.slane %v6475, %v3006
        %v6646 = vsel %vm3008, %v6645, %v6644
        %v6647 = vperm.slane %v6478, %v3010
        %v6648 = vsel %vm3012, %v6647, %v6646
        %v6649 = vperm.slane %v6481, %v3014
        %v6650 = vsel %vm3016, %v6649, %v6648
        %v6651 = vperm.slane %v6484, %v3018
        %v6652 = vsel %vm3020, %v6651, %v6650
        %v6653 = vperm.slane %v6487, %v3022
        %v6654 = vsel %vm3024, %v6653, %v6652
        %v6655 = vperm.slane %v6490, %v3026
        %v6656 = vsel %vm3028, %v6655, %v6654
        %v6657 = vperm.slane %v6493, %v3030
        %v6658 = vsel %vm3032, %v6657, %v6656
        %v6659 = vperm.slane %v6496, %v3004
        %v6660 = vperm.slane %v6499, %v3006
        %v6661 = vsel %vm3008, %v6660, %v6659
        %v6662 = vperm.slane %v6502, %v3010
        %v6663 = vsel %vm3012, %v6662, %v6661
        %v6664 = vperm.slane %v6505, %v3014
        %v6665 = vsel %vm3016, %v6664, %v6663
        %v6666 = vperm.slane %v6508, %v3018
        %v6667 = vsel %vm3020, %v6666, %v6665
        %v6668 = vperm.slane %v6511, %v3022
        %v6669 = vsel %vm3024, %v6668, %v6667
        %v6670 = vperm.slane %v6514, %v3026
        %v6671 = vsel %vm3028, %v6670, %v6669
        %v6672 = vperm.slane %v6517, %v3030
        %v6673 = vsel %vm3032, %v6672, %v6671
        %v6674 = vperm.slane %v6520, %v3004
        %v6675 = vperm.slane %v6523, %v3006
        %v6676 = vsel %vm3008, %v6675, %v6674
        %v6677 = vperm.slane %v6526, %v3010
        %v6678 = vsel %vm3012, %v6677, %v6676
        %v6679 = vperm.slane %v6529, %v3014
        %v6680 = vsel %vm3016, %v6679, %v6678
        %v6681 = vperm.slane %v6532, %v3018
        %v6682 = vsel %vm3020, %v6681, %v6680
        %v6683 = vperm.slane %v6535, %v3022
        %v6684 = vsel %vm3024, %v6683, %v6682
        %v6685 = vperm.slane %v6538, %v3026
        %v6686 = vsel %vm3028, %v6685, %v6684
        %v6687 = vperm.slane %v6541, %v3030
        %v6688 = vsel %vm3032, %v6687, %v6686
        %v6689 = vperm.slane %v6544, %v3004
        %v6690 = vperm.slane %v6547, %v3006
        %v6691 = vsel %vm3008, %v6690, %v6689
        %v6692 = vperm.slane %v6550, %v3010
        %v6693 = vsel %vm3012, %v6692, %v6691
        %v6694 = vperm.slane %v6553, %v3014
        %v6695 = vsel %vm3016, %v6694, %v6693
        %v6696 = vperm.slane %v6556, %v3018
        %v6697 = vsel %vm3020, %v6696, %v6695
        %v6698 = vperm.slane %v6559, %v3022
        %v6699 = vsel %vm3024, %v6698, %v6697
        %v6700 = vperm.slane %v6562, %v3026
        %v6701 = vsel %vm3028, %v6700, %v6699
        %v6702 = vperm.slane %v6565, %v3030
        %v6703 = vsel %vm3032, %v6702, %v6701
        %v6704 = vperm.slane %v6568, %v3004
        %v6705 = vperm.slane %v6571, %v3006
        %v6706 = vsel %vm3008, %v6705, %v6704
        %v6707 = vperm.slane %v6574, %v3010
        %v6708 = vsel %vm3012, %v6707, %v6706
        %v6709 = vperm.slane %v6577, %v3014
        %v6710 = vsel %vm3016, %v6709, %v6708
        %v6711 = vperm.slane %v6580, %v3018
        %v6712 = vsel %vm3020, %v6711, %v6710
        %v6713 = vperm.slane %v6583, %v3022
        %v6714 = vsel %vm3024, %v6713, %v6712
        %v6715 = vperm.slane %v6586, %v3026
        %v6716 = vsel %vm3028, %v6715, %v6714
        %v6717 = vperm.slane %v6589, %v3030
        %v6718 = vsel %vm3032, %v6717, %v6716
        %v6719 = vperm.slane %v6592, %v3004
        %v6720 = vperm.slane %v6595, %v3006
        %v6721 = vsel %vm3008, %v6720, %v6719
        %v6722 = vperm.slane %v6598, %v3010
        %v6723 = vsel %vm3012, %v6722, %v6721
        %v6724 = vperm.slane %v6601, %v3014
        %v6725 = vsel %vm3016, %v6724, %v6723
        %v6726 = vperm.slane %v6604, %v3018
        %v6727 = vsel %vm3020, %v6726, %v6725
        %v6728 = vperm.slane %v6607, %v3022
        %v6729 = vsel %vm3024, %v6728, %v6727
        %v6730 = vperm.slane %v6610, %v3026
        %v6731 = vsel %vm3028, %v6730, %v6729
        %v6732 = vperm.slane %v6613, %v3030
        %v6733 = vsel %vm3032, %v6732, %v6731
        %v6734 = vsel %vm3139, %v6643, %v6628
        %v6735 = vsel %vm3141, %v6658, %v6734
        %v6736 = vsel %vm3143, %v6673, %v6735
        %v6737 = vsel %vm3145, %v6688, %v6736
        %v6738 = vsel %vm3147, %v6703, %v6737
        %v6739 = vsel %vm3149, %v6718, %v6738
        %v6740 = vsel %vm3151, %v6733, %v6739
        %s6742 = scalar_lea.vmem %s169, 32 [#allocation8]
        %6743 = vst.msk [vmem:[%s6742] sm:$0xff] %vm3154, %v6740
        %6744 = vset.pattern.permute.xlu0 1
        %6745 = vperm.xlu0 %6744, %v4663
        %v6746 = vpop.permute.xlu0 %6745
        %6747 = vset.pattern.permute.xlu0 1
        %6748 = vperm.xlu0 %6747, %v4775
        %v6749 = vpop.permute.xlu0 %6748
        %6750 = vset.pattern.permute.xlu0 1
        %6751 = vperm.xlu0 %6750, %v4887
        %v6752 = vpop.permute.xlu0 %6751
        %6753 = vset.pattern.permute.xlu0 1
        %6754 = vperm.xlu0 %6753, %v4999
        %v6755 = vpop.permute.xlu0 %6754
        %6756 = vset.pattern.permute.xlu0 1
        %6757 = vperm.xlu0 %6756, %v5111
        %v6758 = vpop.permute.xlu0 %6757
        %6759 = vset.pattern.permute.xlu0 1
        %6760 = vperm.xlu0 %6759, %v5223
        %v6761 = vpop.permute.xlu0 %6760
        %6762 = vset.pattern.permute.xlu0 1
        %6763 = vperm.xlu0 %6762, %v5335
        %v6764 = vpop.permute.xlu0 %6763
        %6765 = vset.pattern.permute.xlu0 1
        %6766 = vperm.xlu0 %6765, %v5447
        %v6767 = vpop.permute.xlu0 %6766
        %6768 = vset.pattern.permute.xlu0 1
        %6769 = vperm.xlu0 %6768, %v4667
        %v6770 = vpop.permute.xlu0 %6769
        %6771 = vset.pattern.permute.xlu0 1
        %6772 = vperm.xlu0 %6771, %v4779
        %v6773 = vpop.permute.xlu0 %6772
        %6774 = vset.pattern.permute.xlu0 1
        %6775 = vperm.xlu0 %6774, %v4891
        %v6776 = vpop.permute.xlu0 %6775
        %6777 = vset.pattern.permute.xlu0 1
        %6778 = vperm.xlu0 %6777, %v5003
        %v6779 = vpop.permute.xlu0 %6778
        %6780 = vset.pattern.permute.xlu0 1
        %6781 = vperm.xlu0 %6780, %v5115
        %v6782 = vpop.permute.xlu0 %6781
        %6783 = vset.pattern.permute.xlu0 1
        %6784 = vperm.xlu0 %6783, %v5227
        %v6785 = vpop.permute.xlu0 %6784
        %6786 = vset.pattern.permute.xlu0 1
        %6787 = vperm.xlu0 %6786, %v5339
        %v6788 = vpop.permute.xlu0 %6787
        %6789 = vset.pattern.permute.xlu0 1
        %6790 = vperm.xlu0 %6789, %v5451
        %v6791 = vpop.permute.xlu0 %6790
        %6792 = vset.pattern.permute.xlu0 1
        %6793 = vperm.xlu0 %6792, %v4671
        %v6794 = vpop.permute.xlu0 %6793
        %6795 = vset.pattern.permute.xlu0 1
        %6796 = vperm.xlu0 %6795, %v4783
        %v6797 = vpop.permute.xlu0 %6796
        %6798 = vset.pattern.permute.xlu0 1
        %6799 = vperm.xlu0 %6798, %v4895
        %v6800 = vpop.permute.xlu0 %6799
        %6801 = vset.pattern.permute.xlu0 1
        %6802 = vperm.xlu0 %6801, %v5007
        %v6803 = vpop.permute.xlu0 %6802
        %6804 = vset.pattern.permute.xlu0 1
        %6805 = vperm.xlu0 %6804, %v5119
        %v6806 = vpop.permute.xlu0 %6805
        %6807 = vset.pattern.permute.xlu0 1
        %6808 = vperm.xlu0 %6807, %v5231
        %v6809 = vpop.permute.xlu0 %6808
        %6810 = vset.pattern.permute.xlu0 1
        %6811 = vperm.xlu0 %6810, %v5343
        %v6812 = vpop.permute.xlu0 %6811
        %6813 = vset.pattern.permute.xlu0 1
        %6814 = vperm.xlu0 %6813, %v5455
        %v6815 = vpop.permute.xlu0 %6814
        %6816 = vset.pattern.permute.xlu0 1
        %6817 = vperm.xlu0 %6816, %v4675
        %v6818 = vpop.permute.xlu0 %6817
        %6819 = vset.pattern.permute.xlu0 1
        %6820 = vperm.xlu0 %6819, %v4787
        %v6821 = vpop.permute.xlu0 %6820
        %6822 = vset.pattern.permute.xlu0 1
        %6823 = vperm.xlu0 %6822, %v4899
        %v6824 = vpop.permute.xlu0 %6823
        %6825 = vset.pattern.permute.xlu0 1
        %6826 = vperm.xlu0 %6825, %v5011
        %v6827 = vpop.permute.xlu0 %6826
        %6828 = vset.pattern.permute.xlu0 1
        %6829 = vperm.xlu0 %6828, %v5123
        %v6830 = vpop.permute.xlu0 %6829
        %6831 = vset.pattern.permute.xlu0 1
        %6832 = vperm.xlu0 %6831, %v5235
        %v6833 = vpop.permute.xlu0 %6832
        %6834 = vset.pattern.permute.xlu0 1
        %6835 = vperm.xlu0 %6834, %v5347
        %v6836 = vpop.permute.xlu0 %6835
        %6837 = vset.pattern.permute.xlu0 1
        %6838 = vperm.xlu0 %6837, %v5459
        %v6839 = vpop.permute.xlu0 %6838
        %6840 = vset.pattern.permute.xlu0 1
        %6841 = vperm.xlu0 %6840, %v5559
        %v6842 = vpop.permute.xlu0 %6841
        %6843 = vset.pattern.permute.xlu0 1
        %6844 = vperm.xlu0 %6843, %v5671
        %v6845 = vpop.permute.xlu0 %6844
        %6846 = vset.pattern.permute.xlu0 1
        %6847 = vperm.xlu0 %6846, %v5783
        %v6848 = vpop.permute.xlu0 %6847
        %6849 = vset.pattern.permute.xlu0 1
        %6850 = vperm.xlu0 %6849, %v5895
        %v6851 = vpop.permute.xlu0 %6850
        %6852 = vset.pattern.permute.xlu0 1
        %6853 = vperm.xlu0 %6852, %v6007
        %v6854 = vpop.permute.xlu0 %6853
        %6855 = vset.pattern.permute.xlu0 1
        %6856 = vperm.xlu0 %6855, %v6119
        %v6857 = vpop.permute.xlu0 %6856
        %6858 = vset.pattern.permute.xlu0 1
        %6859 = vperm.xlu0 %6858, %v6231
        %v6860 = vpop.permute.xlu0 %6859
        %6861 = vset.pattern.permute.xlu0 1
        %6862 = vperm.xlu0 %6861, %v6343
        %v6863 = vpop.permute.xlu0 %6862
        %6864 = vset.pattern.permute.xlu0 1
        %6865 = vperm.xlu0 %6864, %v5563
        %v6866 = vpop.permute.xlu0 %6865
        %6867 = vset.pattern.permute.xlu0 1
        %6868 = vperm.xlu0 %6867, %v5675
        %v6869 = vpop.permute.xlu0 %6868
        %6870 = vset.pattern.permute.xlu0 1
        %6871 = vperm.xlu0 %6870, %v5787
        %v6872 = vpop.permute.xlu0 %6871
        %6873 = vset.pattern.permute.xlu0 1
        %6874 = vperm.xlu0 %6873, %v5899
        %v6875 = vpop.permute.xlu0 %6874
        %6876 = vset.pattern.permute.xlu0 1
        %6877 = vperm.xlu0 %6876, %v6011
        %v6878 = vpop.permute.xlu0 %6877
        %6879 = vset.pattern.permute.xlu0 1
        %6880 = vperm.xlu0 %6879, %v6123
        %v6881 = vpop.permute.xlu0 %6880
        %6882 = vset.pattern.permute.xlu0 1
        %6883 = vperm.xlu0 %6882, %v6235
        %v6884 = vpop.permute.xlu0 %6883
        %6885 = vset.pattern.permute.xlu0 1
        %6886 = vperm.xlu0 %6885, %v6347
        %v6887 = vpop.permute.xlu0 %6886
        %6888 = vset.pattern.permute.xlu0 1
        %6889 = vperm.xlu0 %6888, %v5567
        %v6890 = vpop.permute.xlu0 %6889
        %6891 = vset.pattern.permute.xlu0 1
        %6892 = vperm.xlu0 %6891, %v5679
        %v6893 = vpop.permute.xlu0 %6892
        %6894 = vset.pattern.permute.xlu0 1
        %6895 = vperm.xlu0 %6894, %v5791
        %v6896 = vpop.permute.xlu0 %6895
        %6897 = vset.pattern.permute.xlu0 1
        %6898 = vperm.xlu0 %6897, %v5903
        %v6899 = vpop.permute.xlu0 %6898
        %6900 = vset.pattern.permute.xlu0 1
        %6901 = vperm.xlu0 %6900, %v6015
        %v6902 = vpop.permute.xlu0 %6901
        %6903 = vset.pattern.permute.xlu0 1
        %6904 = vperm.xlu0 %6903, %v6127
        %v6905 = vpop.permute.xlu0 %6904
        %6906 = vset.pattern.permute.xlu0 1
        %6907 = vperm.xlu0 %6906, %v6239
        %v6908 = vpop.permute.xlu0 %6907
        %6909 = vset.pattern.permute.xlu0 1
        %6910 = vperm.xlu0 %6909, %v6351
        %v6911 = vpop.permute.xlu0 %6910
        %6912 = vset.pattern.permute.xlu0 1
        %6913 = vperm.xlu0 %6912, %v5571
        %v6914 = vpop.permute.xlu0 %6913
        %6915 = vset.pattern.permute.xlu0 1
        %6916 = vperm.xlu0 %6915, %v5683
        %v6917 = vpop.permute.xlu0 %6916
        %6918 = vset.pattern.permute.xlu0 1
        %6919 = vperm.xlu0 %6918, %v5795
        %v6920 = vpop.permute.xlu0 %6919
        %6921 = vset.pattern.permute.xlu0 1
        %6922 = vperm.xlu0 %6921, %v5907
        %v6923 = vpop.permute.xlu0 %6922
        %6924 = vset.pattern.permute.xlu0 1
        %6925 = vperm.xlu0 %6924, %v6019
        %v6926 = vpop.permute.xlu0 %6925
        %6927 = vset.pattern.permute.xlu0 1
        %6928 = vperm.xlu0 %6927, %v6131
        %v6929 = vpop.permute.xlu0 %6928
        %6930 = vset.pattern.permute.xlu0 1
        %6931 = vperm.xlu0 %6930, %v6243
        %v6932 = vpop.permute.xlu0 %6931
        %6933 = vset.pattern.permute.xlu0 1
        %6934 = vperm.xlu0 %6933, %v6355
        %v6935 = vpop.permute.xlu0 %6934
        %v6936 = vperm.slane %v6746, %v3004
        %v6937 = vperm.slane %v6749, %v3006
        %v6938 = vsel %vm3008, %v6937, %v6936
        %v6939 = vperm.slane %v6752, %v3010
        %v6940 = vsel %vm3012, %v6939, %v6938
        %v6941 = vperm.slane %v6755, %v3014
        %v6942 = vsel %vm3016, %v6941, %v6940
        %v6943 = vperm.slane %v6758, %v3018
        %v6944 = vsel %vm3020, %v6943, %v6942
        %v6945 = vperm.slane %v6761, %v3022
        %v6946 = vsel %vm3024, %v6945, %v6944
        %v6947 = vperm.slane %v6764, %v3026
        %v6948 = vsel %vm3028, %v6947, %v6946
        %v6949 = vperm.slane %v6767, %v3030
        %v6950 = vsel %vm3032, %v6949, %v6948
        %v6951 = vperm.slane %v6770, %v3004
        %v6952 = vperm.slane %v6773, %v3006
        %v6953 = vsel %vm3008, %v6952, %v6951
        %v6954 = vperm.slane %v6776, %v3010
        %v6955 = vsel %vm3012, %v6954, %v6953
        %v6956 = vperm.slane %v6779, %v3014
        %v6957 = vsel %vm3016, %v6956, %v6955
        %v6958 = vperm.slane %v6782, %v3018
        %v6959 = vsel %vm3020, %v6958, %v6957
        %v6960 = vperm.slane %v6785, %v3022
        %v6961 = vsel %vm3024, %v6960, %v6959
        %v6962 = vperm.slane %v6788, %v3026
        %v6963 = vsel %vm3028, %v6962, %v6961
        %v6964 = vperm.slane %v6791, %v3030
        %v6965 = vsel %vm3032, %v6964, %v6963
        %v6966 = vperm.slane %v6794, %v3004
        %v6967 = vperm.slane %v6797, %v3006
        %v6968 = vsel %vm3008, %v6967, %v6966
        %v6969 = vperm.slane %v6800, %v3010
        %v6970 = vsel %vm3012, %v6969, %v6968
        %v6971 = vperm.slane %v6803, %v3014
        %v6972 = vsel %vm3016, %v6971, %v6970
        %v6973 = vperm.slane %v6806, %v3018
        %v6974 = vsel %vm3020, %v6973, %v6972
        %v6975 = vperm.slane %v6809, %v3022
        %v6976 = vsel %vm3024, %v6975, %v6974
        %v6977 = vperm.slane %v6812, %v3026
        %v6978 = vsel %vm3028, %v6977, %v6976
        %v6979 = vperm.slane %v6815, %v3030
        %v6980 = vsel %vm3032, %v6979, %v6978
        %v6981 = vperm.slane %v6818, %v3004
        %v6982 = vperm.slane %v6821, %v3006
        %v6983 = vsel %vm3008, %v6982, %v6981
        %v6984 = vperm.slane %v6824, %v3010
        %v6985 = vsel %vm3012, %v6984, %v6983
        %v6986 = vperm.slane %v6827, %v3014
        %v6987 = vsel %vm3016, %v6986, %v6985
        %v6988 = vperm.slane %v6830, %v3018
        %v6989 = vsel %vm3020, %v6988, %v6987
        %v6990 = vperm.slane %v6833, %v3022
        %v6991 = vsel %vm3024, %v6990, %v6989
        %v6992 = vperm.slane %v6836, %v3026
        %v6993 = vsel %vm3028, %v6992, %v6991
        %v6994 = vperm.slane %v6839, %v3030
        %v6995 = vsel %vm3032, %v6994, %v6993
        %v6996 = vperm.slane %v6842, %v3004
        %v6997 = vperm.slane %v6845, %v3006
        %v6998 = vsel %vm3008, %v6997, %v6996
        %v6999 = vperm.slane %v6848, %v3010
        %v7000 = vsel %vm3012, %v6999, %v6998
        %v7001 = vperm.slane %v6851, %v3014
        %v7002 = vsel %vm3016, %v7001, %v7000
        %v7003 = vperm.slane %v6854, %v3018
        %v7004 = vsel %vm3020, %v7003, %v7002
        %v7005 = vperm.slane %v6857, %v3022
        %v7006 = vsel %vm3024, %v7005, %v7004
        %v7007 = vperm.slane %v6860, %v3026
        %v7008 = vsel %vm3028, %v7007, %v7006
        %v7009 = vperm.slane %v6863, %v3030
        %v7010 = vsel %vm3032, %v7009, %v7008
        %v7011 = vperm.slane %v6866, %v3004
        %v7012 = vperm.slane %v6869, %v3006
        %v7013 = vsel %vm3008, %v7012, %v7011
        %v7014 = vperm.slane %v6872, %v3010
        %v7015 = vsel %vm3012, %v7014, %v7013
        %v7016 = vperm.slane %v6875, %v3014
        %v7017 = vsel %vm3016, %v7016, %v7015
        %v7018 = vperm.slane %v6878, %v3018
        %v7019 = vsel %vm3020, %v7018, %v7017
        %v7020 = vperm.slane %v6881, %v3022
        %v7021 = vsel %vm3024, %v7020, %v7019
        %v7022 = vperm.slane %v6884, %v3026
        %v7023 = vsel %vm3028, %v7022, %v7021
        %v7024 = vperm.slane %v6887, %v3030
        %v7025 = vsel %vm3032, %v7024, %v7023
        %v7026 = vperm.slane %v6890, %v3004
        %v7027 = vperm.slane %v6893, %v3006
        %v7028 = vsel %vm3008, %v7027, %v7026
        %v7029 = vperm.slane %v6896, %v3010
        %v7030 = vsel %vm3012, %v7029, %v7028
        %v7031 = vperm.slane %v6899, %v3014
        %v7032 = vsel %vm3016, %v7031, %v7030
        %v7033 = vperm.slane %v6902, %v3018
        %v7034 = vsel %vm3020, %v7033, %v7032
        %v7035 = vperm.slane %v6905, %v3022
        %v7036 = vsel %vm3024, %v7035, %v7034
        %v7037 = vperm.slane %v6908, %v3026
        %v7038 = vsel %vm3028, %v7037, %v7036
        %v7039 = vperm.slane %v6911, %v3030
        %v7040 = vsel %vm3032, %v7039, %v7038
        %v7041 = vperm.slane %v6914, %v3004
        %v7042 = vperm.slane %v6917, %v3006
        %v7043 = vsel %vm3008, %v7042, %v7041
        %v7044 = vperm.slane %v6920, %v3010
        %v7045 = vsel %vm3012, %v7044, %v7043
        %v7046 = vperm.slane %v6923, %v3014
        %v7047 = vsel %vm3016, %v7046, %v7045
        %v7048 = vperm.slane %v6926, %v3018
        %v7049 = vsel %vm3020, %v7048, %v7047
        %v7050 = vperm.slane %v6929, %v3022
        %v7051 = vsel %vm3024, %v7050, %v7049
        %v7052 = vperm.slane %v6932, %v3026
        %v7053 = vsel %vm3028, %v7052, %v7051
        %v7054 = vperm.slane %v6935, %v3030
        %v7055 = vsel %vm3032, %v7054, %v7053
        %v7056 = vsel %vm3139, %v6965, %v6950
        %v7057 = vsel %vm3141, %v6980, %v7056
        %v7058 = vsel %vm3143, %v6995, %v7057
        %v7059 = vsel %vm3145, %v7010, %v7058
        %v7060 = vsel %vm3147, %v7025, %v7059
        %v7061 = vsel %vm3149, %v7040, %v7060
        %v7062 = vsel %vm3151, %v7055, %v7061
        %s7064 = scalar_lea.vmem %s169, 40 [#allocation8]
        %7065 = vst.msk [vmem:[%s7064] sm:$0xff] %vm3154, %v7062
        %7130 = vset.pattern.permute.xlu0 0
        %7131 = vperm.xlu0 %7130, %v4665
        %v7132 = vpop.permute.xlu0 %7131
        %7133 = vset.pattern.permute.xlu0 0
        %7134 = vperm.xlu0 %7133, %v4777
        %v7135 = vpop.permute.xlu0 %7134
        %7136 = vset.pattern.permute.xlu0 0
        %7137 = vperm.xlu0 %7136, %v4889
        %v7138 = vpop.permute.xlu0 %7137
        %7139 = vset.pattern.permute.xlu0 0
        %7140 = vperm.xlu0 %7139, %v5001
        %v7141 = vpop.permute.xlu0 %7140
        %7142 = vset.pattern.permute.xlu0 0
        %7143 = vperm.xlu0 %7142, %v5113
        %v7144 = vpop.permute.xlu0 %7143
        %7145 = vset.pattern.permute.xlu0 0
        %7146 = vperm.xlu0 %7145, %v5225
        %v7147 = vpop.permute.xlu0 %7146
        %7148 = vset.pattern.permute.xlu0 0
        %7149 = vperm.xlu0 %7148, %v5337
        %v7150 = vpop.permute.xlu0 %7149
        %7151 = vset.pattern.permute.xlu0 0
        %7152 = vperm.xlu0 %7151, %v5449
        %v7153 = vpop.permute.xlu0 %7152
        %7154 = vset.pattern.permute.xlu0 0
        %7155 = vperm.xlu0 %7154, %v4669
        %v7156 = vpop.permute.xlu0 %7155
        %7157 = vset.pattern.permute.xlu0 0
        %7158 = vperm.xlu0 %7157, %v4781
        %v7159 = vpop.permute.xlu0 %7158
        %7160 = vset.pattern.permute.xlu0 0
        %7161 = vperm.xlu0 %7160, %v4893
        %v7162 = vpop.permute.xlu0 %7161
        %7163 = vset.pattern.permute.xlu0 0
        %7164 = vperm.xlu0 %7163, %v5005
        %v7165 = vpop.permute.xlu0 %7164
        %7166 = vset.pattern.permute.xlu0 0
        %7167 = vperm.xlu0 %7166, %v5117
        %v7168 = vpop.permute.xlu0 %7167
        %7169 = vset.pattern.permute.xlu0 0
        %7170 = vperm.xlu0 %7169, %v5229
        %v7171 = vpop.permute.xlu0 %7170
        %7172 = vset.pattern.permute.xlu0 0
        %7173 = vperm.xlu0 %7172, %v5341
        %v7174 = vpop.permute.xlu0 %7173
        %7175 = vset.pattern.permute.xlu0 0
        %7176 = vperm.xlu0 %7175, %v5453
        %v7177 = vpop.permute.xlu0 %7176
        %7178 = vset.pattern.permute.xlu0 0
        %7179 = vperm.xlu0 %7178, %v4673
        %v7180 = vpop.permute.xlu0 %7179
        %7181 = vset.pattern.permute.xlu0 0
        %7182 = vperm.xlu0 %7181, %v4785
        %v7183 = vpop.permute.xlu0 %7182
        %7184 = vset.pattern.permute.xlu0 0
        %7185 = vperm.xlu0 %7184, %v4897
        %v7186 = vpop.permute.xlu0 %7185
        %7187 = vset.pattern.permute.xlu0 0
        %7188 = vperm.xlu0 %7187, %v5009
        %v7189 = vpop.permute.xlu0 %7188
        %7190 = vset.pattern.permute.xlu0 0
        %7191 = vperm.xlu0 %7190, %v5121
        %v7192 = vpop.permute.xlu0 %7191
        %7193 = vset.pattern.permute.xlu0 0
        %7194 = vperm.xlu0 %7193, %v5233
        %v7195 = vpop.permute.xlu0 %7194
        %7196 = vset.pattern.permute.xlu0 0
        %7197 = vperm.xlu0 %7196, %v5345
        %v7198 = vpop.permute.xlu0 %7197
        %7199 = vset.pattern.permute.xlu0 0
        %7200 = vperm.xlu0 %7199, %v5457
        %v7201 = vpop.permute.xlu0 %7200
        %7202 = vset.pattern.permute.xlu0 0
        %7203 = vperm.xlu0 %7202, %v4677
        %v7204 = vpop.permute.xlu0 %7203
        %7205 = vset.pattern.permute.xlu0 0
        %7206 = vperm.xlu0 %7205, %v4789
        %v7207 = vpop.permute.xlu0 %7206
        %7208 = vset.pattern.permute.xlu0 0
        %7209 = vperm.xlu0 %7208, %v4901
        %v7210 = vpop.permute.xlu0 %7209
        %7211 = vset.pattern.permute.xlu0 0
        %7212 = vperm.xlu0 %7211, %v5013
        %v7213 = vpop.permute.xlu0 %7212
        %7214 = vset.pattern.permute.xlu0 0
        %7215 = vperm.xlu0 %7214, %v5125
        %v7216 = vpop.permute.xlu0 %7215
        %7217 = vset.pattern.permute.xlu0 0
        %7218 = vperm.xlu0 %7217, %v5237
        %v7219 = vpop.permute.xlu0 %7218
        %7220 = vset.pattern.permute.xlu0 0
        %7221 = vperm.xlu0 %7220, %v5349
        %v7222 = vpop.permute.xlu0 %7221
        %7223 = vset.pattern.permute.xlu0 0
        %7224 = vperm.xlu0 %7223, %v5461
        %v7225 = vpop.permute.xlu0 %7224
        %7226 = vset.pattern.permute.xlu0 0
        %7227 = vperm.xlu0 %7226, %v5561
        %v7228 = vpop.permute.xlu0 %7227
        %7229 = vset.pattern.permute.xlu0 0
        %7230 = vperm.xlu0 %7229, %v5673
        %v7231 = vpop.permute.xlu0 %7230
        %7232 = vset.pattern.permute.xlu0 0
        %7233 = vperm.xlu0 %7232, %v5785
        %v7234 = vpop.permute.xlu0 %7233
        %7235 = vset.pattern.permute.xlu0 0
        %7236 = vperm.xlu0 %7235, %v5897
        %v7237 = vpop.permute.xlu0 %7236
        %7238 = vset.pattern.permute.xlu0 0
        %7239 = vperm.xlu0 %7238, %v6009
        %v7240 = vpop.permute.xlu0 %7239
        %7241 = vset.pattern.permute.xlu0 0
        %7242 = vperm.xlu0 %7241, %v6121
        %v7243 = vpop.permute.xlu0 %7242
        %7244 = vset.pattern.permute.xlu0 0
        %7245 = vperm.xlu0 %7244, %v6233
        %v7246 = vpop.permute.xlu0 %7245
        %7247 = vset.pattern.permute.xlu0 0
        %7248 = vperm.xlu0 %7247, %v6345
        %v7249 = vpop.permute.xlu0 %7248
        %7250 = vset.pattern.permute.xlu0 0
        %7251 = vperm.xlu0 %7250, %v5565
        %v7252 = vpop.permute.xlu0 %7251
        %7253 = vset.pattern.permute.xlu0 0
        %7254 = vperm.xlu0 %7253, %v5677
        %v7255 = vpop.permute.xlu0 %7254
        %7256 = vset.pattern.permute.xlu0 0
        %7257 = vperm.xlu0 %7256, %v5789
        %v7258 = vpop.permute.xlu0 %7257
        %7259 = vset.pattern.permute.xlu0 0
        %7260 = vperm.xlu0 %7259, %v5901
        %v7261 = vpop.permute.xlu0 %7260
        %7262 = vset.pattern.permute.xlu0 0
        %7263 = vperm.xlu0 %7262, %v6013
        %v7264 = vpop.permute.xlu0 %7263
        %7265 = vset.pattern.permute.xlu0 0
        %7266 = vperm.xlu0 %7265, %v6125
        %v7267 = vpop.permute.xlu0 %7266
        %7268 = vset.pattern.permute.xlu0 0
        %7269 = vperm.xlu0 %7268, %v6237
        %v7270 = vpop.permute.xlu0 %7269
        %7271 = vset.pattern.permute.xlu0 0
        %7272 = vperm.xlu0 %7271, %v6349
        %v7273 = vpop.permute.xlu0 %7272
        %7274 = vset.pattern.permute.xlu0 0
        %7275 = vperm.xlu0 %7274, %v5569
        %v7276 = vpop.permute.xlu0 %7275
        %7277 = vset.pattern.permute.xlu0 0
        %7278 = vperm.xlu0 %7277, %v5681
        %v7279 = vpop.permute.xlu0 %7278
        %7280 = vset.pattern.permute.xlu0 0
        %7281 = vperm.xlu0 %7280, %v5793
        %v7282 = vpop.permute.xlu0 %7281
        %7283 = vset.pattern.permute.xlu0 0
        %7284 = vperm.xlu0 %7283, %v5905
        %v7285 = vpop.permute.xlu0 %7284
        %7286 = vset.pattern.permute.xlu0 0
        %7287 = vperm.xlu0 %7286, %v6017
        %v7288 = vpop.permute.xlu0 %7287
        %7289 = vset.pattern.permute.xlu0 0
        %7290 = vperm.xlu0 %7289, %v6129
        %v7291 = vpop.permute.xlu0 %7290
        %7292 = vset.pattern.permute.xlu0 0
        %7293 = vperm.xlu0 %7292, %v6241
        %v7294 = vpop.permute.xlu0 %7293
        %7295 = vset.pattern.permute.xlu0 0
        %7296 = vperm.xlu0 %7295, %v6353
        %v7297 = vpop.permute.xlu0 %7296
        %7298 = vset.pattern.permute.xlu0 0
        %7299 = vperm.xlu0 %7298, %v5573
        %v7300 = vpop.permute.xlu0 %7299
        %7301 = vset.pattern.permute.xlu0 0
        %7302 = vperm.xlu0 %7301, %v5685
        %v7303 = vpop.permute.xlu0 %7302
        %7304 = vset.pattern.permute.xlu0 0
        %7305 = vperm.xlu0 %7304, %v5797
        %v7306 = vpop.permute.xlu0 %7305
        %7307 = vset.pattern.permute.xlu0 0
        %7308 = vperm.xlu0 %7307, %v5909
        %v7309 = vpop.permute.xlu0 %7308
        %7310 = vset.pattern.permute.xlu0 0
        %7311 = vperm.xlu0 %7310, %v6021
        %v7312 = vpop.permute.xlu0 %7311
        %7313 = vset.pattern.permute.xlu0 0
        %7314 = vperm.xlu0 %7313, %v6133
        %v7315 = vpop.permute.xlu0 %7314
        %7316 = vset.pattern.permute.xlu0 0
        %7317 = vperm.xlu0 %7316, %v6245
        %v7318 = vpop.permute.xlu0 %7317
        %7319 = vset.pattern.permute.xlu0 0
        %7320 = vperm.xlu0 %7319, %v6357
        %v7321 = vpop.permute.xlu0 %7320
        %v7322 = vperm.slane %v7132, %v3004
        %v7323 = vperm.slane %v7135, %v3006
        %v7324 = vsel %vm3008, %v7323, %v7322
        %v7325 = vperm.slane %v7138, %v3010
        %v7326 = vsel %vm3012, %v7325, %v7324
        %v7327 = vperm.slane %v7141, %v3014
        %v7328 = vsel %vm3016, %v7327, %v7326
        %v7329 = vperm.slane %v7144, %v3018
        %v7330 = vsel %vm3020, %v7329, %v7328
        %v7331 = vperm.slane %v7147, %v3022
        %v7332 = vsel %vm3024, %v7331, %v7330
        %v7333 = vperm.slane %v7150, %v3026
        %v7334 = vsel %vm3028, %v7333, %v7332
        %v7335 = vperm.slane %v7153, %v3030
        %v7336 = vsel %vm3032, %v7335, %v7334
        %v7337 = vperm.slane %v7156, %v3004
        %v7338 = vperm.slane %v7159, %v3006
        %v7339 = vsel %vm3008, %v7338, %v7337
        %v7340 = vperm.slane %v7162, %v3010
        %v7341 = vsel %vm3012, %v7340, %v7339
        %v7342 = vperm.slane %v7165, %v3014
        %v7343 = vsel %vm3016, %v7342, %v7341
        %v7344 = vperm.slane %v7168, %v3018
        %v7345 = vsel %vm3020, %v7344, %v7343
        %v7346 = vperm.slane %v7171, %v3022
        %v7347 = vsel %vm3024, %v7346, %v7345
        %v7348 = vperm.slane %v7174, %v3026
        %v7349 = vsel %vm3028, %v7348, %v7347
        %v7350 = vperm.slane %v7177, %v3030
        %v7351 = vsel %vm3032, %v7350, %v7349
        %v7352 = vperm.slane %v7180, %v3004
        %v7353 = vperm.slane %v7183, %v3006
        %v7354 = vsel %vm3008, %v7353, %v7352
        %v7355 = vperm.slane %v7186, %v3010
        %v7356 = vsel %vm3012, %v7355, %v7354
        %v7357 = vperm.slane %v7189, %v3014
        %v7358 = vsel %vm3016, %v7357, %v7356
        %v7359 = vperm.slane %v7192, %v3018
        %v7360 = vsel %vm3020, %v7359, %v7358
        %v7361 = vperm.slane %v7195, %v3022
        %v7362 = vsel %vm3024, %v7361, %v7360
        %v7363 = vperm.slane %v7198, %v3026
        %v7364 = vsel %vm3028, %v7363, %v7362
        %v7365 = vperm.slane %v7201, %v3030
        %v7366 = vsel %vm3032, %v7365, %v7364
        %v7367 = vperm.slane %v7204, %v3004
        %v7368 = vperm.slane %v7207, %v3006
        %v7369 = vsel %vm3008, %v7368, %v7367
        %v7370 = vperm.slane %v7210, %v3010
        %v7371 = vsel %vm3012, %v7370, %v7369
        %v7372 = vperm.slane %v7213, %v3014
        %v7373 = vsel %vm3016, %v7372, %v7371
        %v7374 = vperm.slane %v7216, %v3018
        %v7375 = vsel %vm3020, %v7374, %v7373
        %v7376 = vperm.slane %v7219, %v3022
        %v7377 = vsel %vm3024, %v7376, %v7375
        %v7378 = vperm.slane %v7222, %v3026
        %v7379 = vsel %vm3028, %v7378, %v7377
        %v7380 = vperm.slane %v7225, %v3030
        %v7381 = vsel %vm3032, %v7380, %v7379
        %v7382 = vperm.slane %v7228, %v3004
        %v7383 = vperm.slane %v7231, %v3006
        %v7384 = vsel %vm3008, %v7383, %v7382
        %v7385 = vperm.slane %v7234, %v3010
        %v7386 = vsel %vm3012, %v7385, %v7384
        %v7387 = vperm.slane %v7237, %v3014
        %v7388 = vsel %vm3016, %v7387, %v7386
        %v7389 = vperm.slane %v7240, %v3018
        %v7390 = vsel %vm3020, %v7389, %v7388
        %v7391 = vperm.slane %v7243, %v3022
        %v7392 = vsel %vm3024, %v7391, %v7390
        %v7393 = vperm.slane %v7246, %v3026
        %v7394 = vsel %vm3028, %v7393, %v7392
        %v7395 = vperm.slane %v7249, %v3030
        %v7396 = vsel %vm3032, %v7395, %v7394
        %v7397 = vperm.slane %v7252, %v3004
        %v7398 = vperm.slane %v7255, %v3006
        %v7399 = vsel %vm3008, %v7398, %v7397
        %v7400 = vperm.slane %v7258, %v3010
        %v7401 = vsel %vm3012, %v7400, %v7399
        %v7402 = vperm.slane %v7261, %v3014
        %v7403 = vsel %vm3016, %v7402, %v7401
        %v7404 = vperm.slane %v7264, %v3018
        %v7405 = vsel %vm3020, %v7404, %v7403
        %v7406 = vperm.slane %v7267, %v3022
        %v7407 = vsel %vm3024, %v7406, %v7405
        %v7408 = vperm.slane %v7270, %v3026
        %v7409 = vsel %vm3028, %v7408, %v7407
        %v7410 = vperm.slane %v7273, %v3030
        %v7411 = vsel %vm3032, %v7410, %v7409
        %v7412 = vperm.slane %v7276, %v3004
        %v7413 = vperm.slane %v7279, %v3006
        %v7414 = vsel %vm3008, %v7413, %v7412
        %v7415 = vperm.slane %v7282, %v3010
        %v7416 = vsel %vm3012, %v7415, %v7414
        %v7417 = vperm.slane %v7285, %v3014
        %v7418 = vsel %vm3016, %v7417, %v7416
        %v7419 = vperm.slane %v7288, %v3018
        %v7420 = vsel %vm3020, %v7419, %v7418
        %v7421 = vperm.slane %v7291, %v3022
        %v7422 = vsel %vm3024, %v7421, %v7420
        %v7423 = vperm.slane %v7294, %v3026
        %v7424 = vsel %vm3028, %v7423, %v7422
        %v7425 = vperm.slane %v7297, %v3030
        %v7426 = vsel %vm3032, %v7425, %v7424
        %v7427 = vperm.slane %v7300, %v3004
        %v7428 = vperm.slane %v7303, %v3006
        %v7429 = vsel %vm3008, %v7428, %v7427
        %v7430 = vperm.slane %v7306, %v3010
        %v7431 = vsel %vm3012, %v7430, %v7429
        %v7432 = vperm.slane %v7309, %v3014
        %v7433 = vsel %vm3016, %v7432, %v7431
        %v7434 = vperm.slane %v7312, %v3018
        %v7435 = vsel %vm3020, %v7434, %v7433
        %v7436 = vperm.slane %v7315, %v3022
        %v7437 = vsel %vm3024, %v7436, %v7435
        %v7438 = vperm.slane %v7318, %v3026
        %v7439 = vsel %vm3028, %v7438, %v7437
        %v7440 = vperm.slane %v7321, %v3030
        %v7441 = vsel %vm3032, %v7440, %v7439
        %v7442 = vsel %vm3139, %v7351, %v7336
        %v7443 = vsel %vm3141, %v7366, %v7442
        %v7444 = vsel %vm3143, %v7381, %v7443
        %v7445 = vsel %vm3145, %v7396, %v7444
        %v7446 = vsel %vm3147, %v7411, %v7445
        %v7447 = vsel %vm3149, %v7426, %v7446
        %v7448 = vsel %vm3151, %v7441, %v7447
        %s7450 = scalar_lea.vmem %s169, 48 [#allocation8]
        %7451 = vst.msk [vmem:[%s7450] sm:$0xff] %vm3154, %v7448
        %7452 = vset.pattern.permute.xlu0 1
        %7453 = vperm.xlu0 %7452, %v4665
        %v7454 = vpop.permute.xlu0 %7453
        %7455 = vset.pattern.permute.xlu0 1
        %7456 = vperm.xlu0 %7455, %v4777
        %v7457 = vpop.permute.xlu0 %7456
        %7458 = vset.pattern.permute.xlu0 1
        %7459 = vperm.xlu0 %7458, %v4889
        %v7460 = vpop.permute.xlu0 %7459
        %7461 = vset.pattern.permute.xlu0 1
        %7462 = vperm.xlu0 %7461, %v5001
        %v7463 = vpop.permute.xlu0 %7462
        %7464 = vset.pattern.permute.xlu0 1
        %7465 = vperm.xlu0 %7464, %v5113
        %v7466 = vpop.permute.xlu0 %7465
        %7467 = vset.pattern.permute.xlu0 1
        %7468 = vperm.xlu0 %7467, %v5225
        %v7469 = vpop.permute.xlu0 %7468
        %7470 = vset.pattern.permute.xlu0 1
        %7471 = vperm.xlu0 %7470, %v5337
        %v7472 = vpop.permute.xlu0 %7471
        %7473 = vset.pattern.permute.xlu0 1
        %7474 = vperm.xlu0 %7473, %v5449
        %v7475 = vpop.permute.xlu0 %7474
        %7476 = vset.pattern.permute.xlu0 1
        %7477 = vperm.xlu0 %7476, %v4669
        %v7478 = vpop.permute.xlu0 %7477
        %7479 = vset.pattern.permute.xlu0 1
        %7480 = vperm.xlu0 %7479, %v4781
        %v7481 = vpop.permute.xlu0 %7480
        %7482 = vset.pattern.permute.xlu0 1
        %7483 = vperm.xlu0 %7482, %v4893
        %v7484 = vpop.permute.xlu0 %7483
        %7485 = vset.pattern.permute.xlu0 1
        %7486 = vperm.xlu0 %7485, %v5005
        %v7487 = vpop.permute.xlu0 %7486
        %7488 = vset.pattern.permute.xlu0 1
        %7489 = vperm.xlu0 %7488, %v5117
        %v7490 = vpop.permute.xlu0 %7489
        %7491 = vset.pattern.permute.xlu0 1
        %7492 = vperm.xlu0 %7491, %v5229
        %v7493 = vpop.permute.xlu0 %7492
        %7494 = vset.pattern.permute.xlu0 1
        %7495 = vperm.xlu0 %7494, %v5341
        %v7496 = vpop.permute.xlu0 %7495
        %7497 = vset.pattern.permute.xlu0 1
        %7498 = vperm.xlu0 %7497, %v5453
        %v7499 = vpop.permute.xlu0 %7498
        %7500 = vset.pattern.permute.xlu0 1
        %7501 = vperm.xlu0 %7500, %v4673
        %v7502 = vpop.permute.xlu0 %7501
        %7503 = vset.pattern.permute.xlu0 1
        %7504 = vperm.xlu0 %7503, %v4785
        %v7505 = vpop.permute.xlu0 %7504
        %7506 = vset.pattern.permute.xlu0 1
        %7507 = vperm.xlu0 %7506, %v4897
        %v7508 = vpop.permute.xlu0 %7507
        %7509 = vset.pattern.permute.xlu0 1
        %7510 = vperm.xlu0 %7509, %v5009
        %v7511 = vpop.permute.xlu0 %7510
        %7512 = vset.pattern.permute.xlu0 1
        %7513 = vperm.xlu0 %7512, %v5121
        %v7514 = vpop.permute.xlu0 %7513
        %7515 = vset.pattern.permute.xlu0 1
        %7516 = vperm.xlu0 %7515, %v5233
        %v7517 = vpop.permute.xlu0 %7516
        %7518 = vset.pattern.permute.xlu0 1
        %7519 = vperm.xlu0 %7518, %v5345
        %v7520 = vpop.permute.xlu0 %7519
        %7521 = vset.pattern.permute.xlu0 1
        %7522 = vperm.xlu0 %7521, %v5457
        %v7523 = vpop.permute.xlu0 %7522
        %7524 = vset.pattern.permute.xlu0 1
        %7525 = vperm.xlu0 %7524, %v4677
        %v7526 = vpop.permute.xlu0 %7525
        %7527 = vset.pattern.permute.xlu0 1
        %7528 = vperm.xlu0 %7527, %v4789
        %v7529 = vpop.permute.xlu0 %7528
        %7530 = vset.pattern.permute.xlu0 1
        %7531 = vperm.xlu0 %7530, %v4901
        %v7532 = vpop.permute.xlu0 %7531
        %7533 = vset.pattern.permute.xlu0 1
        %7534 = vperm.xlu0 %7533, %v5013
        %v7535 = vpop.permute.xlu0 %7534
        %7536 = vset.pattern.permute.xlu0 1
        %7537 = vperm.xlu0 %7536, %v5125
        %v7538 = vpop.permute.xlu0 %7537
        %7539 = vset.pattern.permute.xlu0 1
        %7540 = vperm.xlu0 %7539, %v5237
        %v7541 = vpop.permute.xlu0 %7540
        %7542 = vset.pattern.permute.xlu0 1
        %7543 = vperm.xlu0 %7542, %v5349
        %v7544 = vpop.permute.xlu0 %7543
        %7545 = vset.pattern.permute.xlu0 1
        %7546 = vperm.xlu0 %7545, %v5461
        %v7547 = vpop.permute.xlu0 %7546
        %7548 = vset.pattern.permute.xlu0 1
        %7549 = vperm.xlu0 %7548, %v5561
        %v7550 = vpop.permute.xlu0 %7549
        %7551 = vset.pattern.permute.xlu0 1
        %7552 = vperm.xlu0 %7551, %v5673
        %v7553 = vpop.permute.xlu0 %7552
        %7554 = vset.pattern.permute.xlu0 1
        %7555 = vperm.xlu0 %7554, %v5785
        %v7556 = vpop.permute.xlu0 %7555
        %7557 = vset.pattern.permute.xlu0 1
        %7558 = vperm.xlu0 %7557, %v5897
        %v7559 = vpop.permute.xlu0 %7558
        %7560 = vset.pattern.permute.xlu0 1
        %7561 = vperm.xlu0 %7560, %v6009
        %v7562 = vpop.permute.xlu0 %7561
        %7563 = vset.pattern.permute.xlu0 1
        %7564 = vperm.xlu0 %7563, %v6121
        %v7565 = vpop.permute.xlu0 %7564
        %7566 = vset.pattern.permute.xlu0 1
        %7567 = vperm.xlu0 %7566, %v6233
        %v7568 = vpop.permute.xlu0 %7567
        %7569 = vset.pattern.permute.xlu0 1
        %7570 = vperm.xlu0 %7569, %v6345
        %v7571 = vpop.permute.xlu0 %7570
        %7572 = vset.pattern.permute.xlu0 1
        %7573 = vperm.xlu0 %7572, %v5565
        %v7574 = vpop.permute.xlu0 %7573
        %7575 = vset.pattern.permute.xlu0 1
        %7576 = vperm.xlu0 %7575, %v5677
        %v7577 = vpop.permute.xlu0 %7576
        %7578 = vset.pattern.permute.xlu0 1
        %7579 = vperm.xlu0 %7578, %v5789
        %v7580 = vpop.permute.xlu0 %7579
        %7581 = vset.pattern.permute.xlu0 1
        %7582 = vperm.xlu0 %7581, %v5901
        %v7583 = vpop.permute.xlu0 %7582
        %7584 = vset.pattern.permute.xlu0 1
        %7585 = vperm.xlu0 %7584, %v6013
        %v7586 = vpop.permute.xlu0 %7585
        %7587 = vset.pattern.permute.xlu0 1
        %7588 = vperm.xlu0 %7587, %v6125
        %v7589 = vpop.permute.xlu0 %7588
        %7590 = vset.pattern.permute.xlu0 1
        %7591 = vperm.xlu0 %7590, %v6237
        %v7592 = vpop.permute.xlu0 %7591
        %7593 = vset.pattern.permute.xlu0 1
        %7594 = vperm.xlu0 %7593, %v6349
        %v7595 = vpop.permute.xlu0 %7594
        %7596 = vset.pattern.permute.xlu0 1
        %7597 = vperm.xlu0 %7596, %v5569
        %v7598 = vpop.permute.xlu0 %7597
        %7599 = vset.pattern.permute.xlu0 1
        %7600 = vperm.xlu0 %7599, %v5681
        %v7601 = vpop.permute.xlu0 %7600
        %7602 = vset.pattern.permute.xlu0 1
        %7603 = vperm.xlu0 %7602, %v5793
        %v7604 = vpop.permute.xlu0 %7603
        %7605 = vset.pattern.permute.xlu0 1
        %7606 = vperm.xlu0 %7605, %v5905
        %v7607 = vpop.permute.xlu0 %7606
        %7608 = vset.pattern.permute.xlu0 1
        %7609 = vperm.xlu0 %7608, %v6017
        %v7610 = vpop.permute.xlu0 %7609
        %7611 = vset.pattern.permute.xlu0 1
        %7612 = vperm.xlu0 %7611, %v6129
        %v7613 = vpop.permute.xlu0 %7612
        %7614 = vset.pattern.permute.xlu0 1
        %7615 = vperm.xlu0 %7614, %v6241
        %v7616 = vpop.permute.xlu0 %7615
        %7617 = vset.pattern.permute.xlu0 1
        %7618 = vperm.xlu0 %7617, %v6353
        %v7619 = vpop.permute.xlu0 %7618
        %7620 = vset.pattern.permute.xlu0 1
        %7621 = vperm.xlu0 %7620, %v5573
        %v7622 = vpop.permute.xlu0 %7621
        %7623 = vset.pattern.permute.xlu0 1
        %7624 = vperm.xlu0 %7623, %v5685
        %v7625 = vpop.permute.xlu0 %7624
        %7626 = vset.pattern.permute.xlu0 1
        %7627 = vperm.xlu0 %7626, %v5797
        %v7628 = vpop.permute.xlu0 %7627
        %7629 = vset.pattern.permute.xlu0 1
        %7630 = vperm.xlu0 %7629, %v5909
        %v7631 = vpop.permute.xlu0 %7630
        %7632 = vset.pattern.permute.xlu0 1
        %7633 = vperm.xlu0 %7632, %v6021
        %v7634 = vpop.permute.xlu0 %7633
        %7635 = vset.pattern.permute.xlu0 1
        %7636 = vperm.xlu0 %7635, %v6133
        %v7637 = vpop.permute.xlu0 %7636
        %7638 = vset.pattern.permute.xlu0 1
        %7639 = vperm.xlu0 %7638, %v6245
        %v7640 = vpop.permute.xlu0 %7639
        %7641 = vset.pattern.permute.xlu0 1
        %7642 = vperm.xlu0 %7641, %v6357
        %v7643 = vpop.permute.xlu0 %7642
        %v7644 = vperm.slane %v7454, %v3004
        %v7645 = vperm.slane %v7457, %v3006
        %v7646 = vsel %vm3008, %v7645, %v7644
        %v7647 = vperm.slane %v7460, %v3010
        %v7648 = vsel %vm3012, %v7647, %v7646
        %v7649 = vperm.slane %v7463, %v3014
        %v7650 = vsel %vm3016, %v7649, %v7648
        %v7651 = vperm.slane %v7466, %v3018
        %v7652 = vsel %vm3020, %v7651, %v7650
        %v7653 = vperm.slane %v7469, %v3022
        %v7654 = vsel %vm3024, %v7653, %v7652
        %v7655 = vperm.slane %v7472, %v3026
        %v7656 = vsel %vm3028, %v7655, %v7654
        %v7657 = vperm.slane %v7475, %v3030
        %v7658 = vsel %vm3032, %v7657, %v7656
        %v7659 = vperm.slane %v7478, %v3004
        %v7660 = vperm.slane %v7481, %v3006
        %v7661 = vsel %vm3008, %v7660, %v7659
        %v7662 = vperm.slane %v7484, %v3010
        %v7663 = vsel %vm3012, %v7662, %v7661
        %v7664 = vperm.slane %v7487, %v3014
        %v7665 = vsel %vm3016, %v7664, %v7663
        %v7666 = vperm.slane %v7490, %v3018
        %v7667 = vsel %vm3020, %v7666, %v7665
        %v7668 = vperm.slane %v7493, %v3022
        %v7669 = vsel %vm3024, %v7668, %v7667
        %v7670 = vperm.slane %v7496, %v3026
        %v7671 = vsel %vm3028, %v7670, %v7669
        %v7672 = vperm.slane %v7499, %v3030
        %v7673 = vsel %vm3032, %v7672, %v7671
        %v7674 = vperm.slane %v7502, %v3004
        %v7675 = vperm.slane %v7505, %v3006
        %v7676 = vsel %vm3008, %v7675, %v7674
        %v7677 = vperm.slane %v7508, %v3010
        %v7678 = vsel %vm3012, %v7677, %v7676
        %v7679 = vperm.slane %v7511, %v3014
        %v7680 = vsel %vm3016, %v7679, %v7678
        %v7681 = vperm.slane %v7514, %v3018
        %v7682 = vsel %vm3020, %v7681, %v7680
        %v7683 = vperm.slane %v7517, %v3022
        %v7684 = vsel %vm3024, %v7683, %v7682
        %v7685 = vperm.slane %v7520, %v3026
        %v7686 = vsel %vm3028, %v7685, %v7684
        %v7687 = vperm.slane %v7523, %v3030
        %v7688 = vsel %vm3032, %v7687, %v7686
        %v7689 = vperm.slane %v7526, %v3004
        %v7690 = vperm.slane %v7529, %v3006
        %v7691 = vsel %vm3008, %v7690, %v7689
        %v7692 = vperm.slane %v7532, %v3010
        %v7693 = vsel %vm3012, %v7692, %v7691
        %v7694 = vperm.slane %v7535, %v3014
        %v7695 = vsel %vm3016, %v7694, %v7693
        %v7696 = vperm.slane %v7538, %v3018
        %v7697 = vsel %vm3020, %v7696, %v7695
        %v7698 = vperm.slane %v7541, %v3022
        %v7699 = vsel %vm3024, %v7698, %v7697
        %v7700 = vperm.slane %v7544, %v3026
        %v7701 = vsel %vm3028, %v7700, %v7699
        %v7702 = vperm.slane %v7547, %v3030
        %v7703 = vsel %vm3032, %v7702, %v7701
        %v7704 = vperm.slane %v7550, %v3004
        %v7705 = vperm.slane %v7553, %v3006
        %v7706 = vsel %vm3008, %v7705, %v7704
        %v7707 = vperm.slane %v7556, %v3010
        %v7708 = vsel %vm3012, %v7707, %v7706
        %v7709 = vperm.slane %v7559, %v3014
        %v7710 = vsel %vm3016, %v7709, %v7708
        %v7711 = vperm.slane %v7562, %v3018
        %v7712 = vsel %vm3020, %v7711, %v7710
        %v7713 = vperm.slane %v7565, %v3022
        %v7714 = vsel %vm3024, %v7713, %v7712
        %v7715 = vperm.slane %v7568, %v3026
        %v7716 = vsel %vm3028, %v7715, %v7714
        %v7717 = vperm.slane %v7571, %v3030
        %v7718 = vsel %vm3032, %v7717, %v7716
        %v7719 = vperm.slane %v7574, %v3004
        %v7720 = vperm.slane %v7577, %v3006
        %v7721 = vsel %vm3008, %v7720, %v7719
        %v7722 = vperm.slane %v7580, %v3010
        %v7723 = vsel %vm3012, %v7722, %v7721
        %v7724 = vperm.slane %v7583, %v3014
        %v7725 = vsel %vm3016, %v7724, %v7723
        %v7726 = vperm.slane %v7586, %v3018
        %v7727 = vsel %vm3020, %v7726, %v7725
        %v7728 = vperm.slane %v7589, %v3022
        %v7729 = vsel %vm3024, %v7728, %v7727
        %v7730 = vperm.slane %v7592, %v3026
        %v7731 = vsel %vm3028, %v7730, %v7729
        %v7732 = vperm.slane %v7595, %v3030
        %v7733 = vsel %vm3032, %v7732, %v7731
        %v7734 = vperm.slane %v7598, %v3004
        %v7735 = vperm.slane %v7601, %v3006
        %v7736 = vsel %vm3008, %v7735, %v7734
        %v7737 = vperm.slane %v7604, %v3010
        %v7738 = vsel %vm3012, %v7737, %v7736
        %v7739 = vperm.slane %v7607, %v3014
        %v7740 = vsel %vm3016, %v7739, %v7738
        %v7741 = vperm.slane %v7610, %v3018
        %v7742 = vsel %vm3020, %v7741, %v7740
        %v7743 = vperm.slane %v7613, %v3022
        %v7744 = vsel %vm3024, %v7743, %v7742
        %v7745 = vperm.slane %v7616, %v3026
        %v7746 = vsel %vm3028, %v7745, %v7744
        %v7747 = vperm.slane %v7619, %v3030
        %v7748 = vsel %vm3032, %v7747, %v7746
        %v7749 = vperm.slane %v7622, %v3004
        %v7750 = vperm.slane %v7625, %v3006
        %v7751 = vsel %vm3008, %v7750, %v7749
        %v7752 = vperm.slane %v7628, %v3010
        %v7753 = vsel %vm3012, %v7752, %v7751
        %v7754 = vperm.slane %v7631, %v3014
        %v7755 = vsel %vm3016, %v7754, %v7753
        %v7756 = vperm.slane %v7634, %v3018
        %v7757 = vsel %vm3020, %v7756, %v7755
        %v7758 = vperm.slane %v7637, %v3022
        %v7759 = vsel %vm3024, %v7758, %v7757
        %v7760 = vperm.slane %v7640, %v3026
        %v7761 = vsel %vm3028, %v7760, %v7759
        %v7762 = vperm.slane %v7643, %v3030
        %v7763 = vsel %vm3032, %v7762, %v7761
        %v7764 = vsel %vm3139, %v7673, %v7658
        %v7765 = vsel %vm3141, %v7688, %v7764
        %v7766 = vsel %vm3143, %v7703, %v7765
        %v7767 = vsel %vm3145, %v7718, %v7766
        %v7768 = vsel %vm3147, %v7733, %v7767
        %v7769 = vsel %vm3149, %v7748, %v7768
        %v7770 = vsel %vm3151, %v7763, %v7769
        %s7772 = scalar_lea.vmem %s169, 56 [#allocation8]
        %7773 = vst.msk [vmem:[%s7772] sm:$0xff] %vm3154, %v7770
        %s7774 = sand.u32 %s83, 1
        %s7775 = scalar_lea.sflag [#allocation7], %s7774
        %s7776 = sand.u32 %s83, 1
        %s7777 = smul.addr %s7776, 64
        %s7778 = scalar_lea.vmem [#allocation8], %s7777
        // Predicated region
        $region29: #{tpu_custom_call.1} parent=23 // pred_check
          %p7779 = pneg %p93
        $region30: #{tpu_custom_call.1} parent=23 // pred_check_branch
          %7781 = sbr.rel (%p7779) target = $region32
        $region31: #{tpu_custom_call.1} parent=23 // pred_region
          %7783 = vsyncadd %s7775, 0
          %s7784 = smul.addr %s37, 8
          %s7785 = sadd.s32 %s38, %s7784
          %s7786 = smul.addr %s7785, 8
          %s7787 = scalar_lea.hbm %s3, %s7786
          %s7788 = sshll.u32 %s7778, 4
          %s7789 = int_to_ptr.vmem [resolvable:$true] %s7788
          %s7790 = sshll.u32 %s7787, 4
          %s7791 = int_to_ptr.hbm [resolvable:$true] %s7790
          %7796 = dma.vmem_to_hbm [thread:$0]  %s7789, 1024, %s7791, %s7775, 128, 128, 8
        $region32: #{tpu_custom_call.1} parent=23 // pred_fallthru
          _
      $region24: #{tpu_custom_call.1} parent=5 // pred_fallthru
        _
      %p7797 = scmp.le.s32.totalorder 2, %s28
      // Predicated region
      $region33: #{tpu_custom_call.1} parent=5 // pred_check
        %p7798 = pneg %p7797
      $region34: #{tpu_custom_call.1} parent=5 // pred_check_branch
        %7800 = sbr.rel (%p7798) target = $region36
      $region35: #{tpu_custom_call.1} parent=5 // pred_region
        %s7801 = ssub.s32 %s28, 2
        // Predicated region
        $region37: #{tpu_custom_call.1} parent=35 // pred_check
          %p7802 = pneg %p99
        $region38: #{tpu_custom_call.1} parent=35 // pred_check_branch
          %7804 = sbr.rel (%p7802) target = $region40
        $region39: #{tpu_custom_call.1} parent=35 // pred_region
          %s7805 = sand.u32 %s84, 1
          %s7806 = scalar_lea.sflag [#allocation7], %s7805
          %s7807 = sand.u32 %s84, 1
          %s7808 = smul.addr %s7807, 64
          %s7809 = scalar_lea.vmem [#allocation8], %s7808
          %7811 = dma.done %s7806, 1024
        $region40: #{tpu_custom_call.1} parent=35 // pred_fallthru
          _
      $region36: #{tpu_custom_call.1} parent=5 // pred_fallthru
        _
    $region6: #{tpu_custom_call.1} parent=1 // loop_footer
      %s32 = sadd.s32 1, %s28
    $region7: #{tpu_custom_call.1} parent=1 // loop_footer_branch
      %27 = sbr.rel target = $region3
    $region8: #{tpu_custom_call.1} parent=1 // loop_exit
      _
    %7812 = vsyncpa [#allocation6], 1
    %s7813 = scalar_lea.sflag [#allocation6], 1
    %7814 = vsyncpa %s7813, 1
    %7815 = vsyncpa [#allocation7], 1
    %s7816 = scalar_lea.sflag [#allocation7], 1
    %7817 = vsyncpa %s7816, 1

</llo_original>
